<compile_context>
chip_gen: v7x
topology: tpu7x:2x2x1
jax: 0.10.0
libtpu: 0.0.40
codegen_flags: <defaults>
</compile_context>

<pallas_src>
import functools

import jax
import jax.numpy as jnp
from jax.experimental import pallas as pl
from jax.experimental.pallas import tpu as pltpu


# --------------------------------------------------------------------------- helpers
def _round_up(x, m):
    return ((x + m - 1) // m) * m


def _pick_tile(dim, preferred, granule):
    """Largest tile <= preferred that is a multiple of `granule` and divides `dim`
    (dim is already a multiple of granule)."""
    t = min(preferred, dim)
    t = max(granule, (t // granule) * granule)
    while dim % t:
        t -= granule
    return t


def _act(x, kind):
    if kind == "leaky_relu":
        return jnp.where(x >= 0, x, 0.2 * x)
    if kind == "relu":
        return jnp.maximum(x, 0.0)
    if kind == "tanh":
        return jnp.tanh(x)
    return x


# ----------------------------------------------------------------------------- kernel
def _bmm_bias_act_kernel(a_ref, w_ref, b_ref, o_ref, acc_ref, *, post_act):
    """One (tm, tn) output tile of batch p; K reduced over grid axis 3 (f32 acc)."""

    @pl.when(pl.program_id(3) == 0)
    def _init():
        acc_ref[...] = jnp.zeros_like(acc_ref)

    acc_ref[...] += jnp.dot(a_ref[0], w_ref[0], preferred_element_type=jnp.float32)

    @pl.when(pl.program_id(3) == pl.num_programs(3) - 1)
    def _finalize():
        y = acc_ref[...] + b_ref[...]          # f32 bias add, (tm,tn) + (1,tn)
        o_ref[0] = _act(y, post_act).astype(o_ref.dtype)


def batched_matmul_bias_act(a, w, b, post_act="none", out_dtype=jnp.bfloat16,
                            tm_pref=512, tn_pref=512, tk_pref=512):
    """out[p] = post_act(a[p] @ w[p] + b); a:(P,M,K), w:(P,K,N), b:(N,).
    bf16 MXU operands, f32 accumulation, f32 epilogue; output lane-padded to 128."""
    P, M, K = a.shape
    P2, K2, N = w.shape
    assert P == P2 and K == K2
    Mp = _round_up(M, 16)      # bf16 sublane granule
    Kp = _round_up(K, 128)
    Np = _round_up(N, 128)     # lane-dense output stores
    tm = _pick_tile(Mp, tm_pref, 16)
    tk = _pick_tile(Kp, tk_pref, 128)
    tn = _pick_tile(Np, tn_pref, 128)

    a_p = jnp.pad(a.astype(jnp.bfloat16), ((0, 0), (0, Mp - M), (0, Kp - K)))
    w_p = jnp.pad(w.astype(jnp.bfloat16), ((0, 0), (0, Kp - K), (0, Np - N)))
    b_p = jnp.pad(b.astype(jnp.float32).reshape(1, N), ((0, 0), (0, Np - N)))

    grid = (P, Mp // tm, Np // tn, Kp // tk)
    out_bytes = jnp.dtype(out_dtype).itemsize
    cost = pl.CostEstimate(
        flops=2 * P * Mp * Np * Kp,
        transcendentals=P * Mp * Np if post_act == "tanh" else 0,
        bytes_accessed=2 * P * (Mp * Kp + Kp * Np) + P * Mp * Np * out_bytes,
    )

    out = pl.pallas_call(
        functools.partial(_bmm_bias_act_kernel, post_act=post_act),
        out_shape=jax.ShapeDtypeStruct((P, Mp, Np), out_dtype),
        grid_spec=pltpu.PrefetchScalarGridSpec(
            num_scalar_prefetch=0,
            grid=grid,
            in_specs=[
                pl.BlockSpec((1, tm, tk), lambda p, i, j, k: (p, i, k)),
                pl.BlockSpec((1, tk, tn), lambda p, i, j, k: (p, k, j)),
                pl.BlockSpec((1, tn), lambda p, i, j, k: (0, j)),
            ],
            out_specs=pl.BlockSpec((1, tm, tn), lambda p, i, j, k: (p, i, j)),
            scratch_shapes=[pltpu.VMEM((tm, tn), jnp.float32)],
        ),
        compiler_params=pltpu.CompilerParams(
            dimension_semantics=("parallel", "parallel", "parallel", "arbitrary"),
            vmem_limit_bytes=32 * 1024 * 1024,
        ),
        cost_estimate=cost,
    )(a_p, w_p, b_p)
    return out[:, :M, :N]


# ------------------------------------------------------------------------------- glue
def _im2col(xp, kh, kw, stride):
    """xp: already-padded NHWC. Returns (patches[M, kh*kw*C], (N, Ho, Wo)).
    Patch order is (tap_row, tap_col, channel) with channel fastest."""
    N, H, W, C = xp.shape
    Ho = (H - kh) // stride + 1
    Wo = (W - kw) // stride + 1
    patches = []
    for i in range(kh):
        for j in range(kw):
            patches.append(xp[:, i:i + stride * Ho:stride, j:j + stride * Wo:stride, :])
    p = jnp.stack(patches, axis=3)                 # (N, Ho, Wo, kh*kw, C)
    return p.reshape(N * Ho * Wo, kh * kw * C), (N, Ho, Wo)


def conv3x3_s2_reflect(x, w, b, post_act, out_dtype=jnp.bfloat16):
    """ReflectionPad2d(1) + Conv2d(k=3, s=2, p=0).  x: NHWC, w: torch (Cout,Cin,3,3)."""
    xp = jnp.pad(x, ((0, 0), (1, 1), (1, 1), (0, 0)), mode="reflect")
    A, (N, Ho, Wo) = _im2col(xp, 3, 3, 2)
    Cout = w.shape[0]
    Wm = jnp.transpose(w, (2, 3, 1, 0)).reshape(-1, Cout)     # (3*3*Cin, Cout)
    y = batched_matmul_bias_act(A[None], Wm[None], b, post_act=post_act,
                                out_dtype=out_dtype)
    return y[0].reshape(N, Ho, Wo, Cout)


def convT4x4_s2_p1(x, w, b, post_act, out_dtype=jnp.bfloat16):
    """ConvTranspose2d(k=4, s=2, p=1).  x: NHWC, w: torch (Cin,Cout,4,4).

    Exact parity decomposition: output pixel (2m+a, 2n+b) only touches a 2x2 window of
    the zero-padded input, so each of the 4 output parities is a stride-1 2x2-tap conv
    (no structurally-zero MXU FLOPs). The 4 parity sub-convs run as ONE batched
    pallas_call with a leading grid axis of size 4."""
    N, H, W, Cin = x.shape
    Cout = w.shape[1]
    xp = jnp.pad(x, ((0, 0), (1, 1), (1, 1), (0, 0)))          # zero pad 1
    # kernel taps per output parity (row/col): a=0 -> taps (3,1); a=1 -> taps (2,0)
    sel = {0: slice(3, None, -2), 1: slice(2, None, -2)}
    A_list, W_list = [], []
    for a in (0, 1):
        for bp in (0, 1):
            wsub = w[:, :, sel[a], sel[bp]]                    # (Cin, Cout, 2, 2)
            W_list.append(jnp.transpose(wsub, (2, 3, 0, 1)).reshape(4 * Cin, Cout))
            A, _ = _im2col(xp[:, a:a + H + 1, bp:bp + W + 1, :], 2, 2, 1)
            A_list.append(A)                                   # (N*H*W, 4*Cin)
    A4 = jnp.stack(A_list, axis=0)                             # (4, N*H*W, 4*Cin)
    W4 = jnp.stack(W_list, axis=0)                             # (4, 4*Cin, Cout)
    y = batched_matmul_bias_act(A4, W4, b, post_act=post_act, out_dtype=out_dtype)
    # parity order along axis 0 is (a,b) = (0,0),(0,1),(1,0),(1,1)
    y = y.reshape(2, 2, N, H, W, Cout)
    y = jnp.transpose(y, (2, 3, 0, 4, 1, 5)).reshape(N, 2 * H, 2 * W, Cout)
    return y


# ------------------------------------------------------------------------------ model
def init_params(key, input_nc, output_nc, ngf):
    # down convs: Conv2d(Cin, Cout, 3, stride=2)  -> weight (Cout, Cin, 3, 3)
    dspecs = {
        "d0": (ngf, input_nc),        # outermost
        "d1": (2 * ngf, ngf),
        "d2": (4 * ngf, 2 * ngf),
        "d3": (8 * ngf, 4 * ngf),
        "d4": (8 * ngf, 8 * ngf),     # innermost
    }
    # up convs: ConvTranspose2d(Cin, Cout, 4, 2, 1) -> weight (Cin, Cout, 4, 4)
    tspecs = {
        "u4": (8 * ngf, 8 * ngf),     # innermost
        "u3": (16 * ngf, 4 * ngf),
        "u2": (8 * ngf, 2 * ngf),
        "u1": (4 * ngf, ngf),
        "u0": (2 * ngf, output_nc),   # outermost
    }
    params = {}
    keys = jax.random.split(key, 2 * (len(dspecs) + len(tspecs)))
    idx = 0
    for name, (cout, cin) in dspecs.items():
        scale = 1.0 / jnp.sqrt(cin * 9.0)
        params[name + "_w"] = scale * jax.random.normal(keys[idx], (cout, cin, 3, 3), jnp.float32)
        idx += 1
        params[name + "_b"] = 0.01 * jax.random.normal(keys[idx], (cout,), jnp.float32)
        idx += 1
    for name, (cin, cout) in tspecs.items():
        scale = 1.0 / jnp.sqrt(cin * 16.0)
        params[name + "_w"] = scale * jax.random.normal(keys[idx], (cin, cout, 4, 4), jnp.float32)
        idx += 1
        params[name + "_b"] = 0.01 * jax.random.normal(keys[idx], (cout,), jnp.float32)
        idx += 1
    return params


def g_unet_add_middle_forward(x_nchw, params):
    """Forward of G_Unet_add_middle (num_downs=5).  x_nchw: (B, C, H, W), H,W % 32 == 0.

    Activation fusion (exact):
      * LeakyReLU before each inner down-conv is fused into the *previous* down-conv's
        epilogue (post_act), so the next down-conv consumes it with no pre-activation.
      * The raw skip feature only ever reaches a conv through the up path's ReLU, and
        relu(leaky_relu(t)) == relu(t), so relu(fused_skip) is the exact skip value.
      * ReLU before each up-conv is fused into the producing up-conv's epilogue
        (relu(concat) == concat(relu, relu)); Tanh is fused into the final up-conv."""
    x = jnp.transpose(x_nchw, (0, 2, 3, 1)).astype(jnp.bfloat16)   # -> NHWC bf16

    post_down = ["leaky_relu"] * 4 + ["relu"]   # d4 feeds only the innermost ReLU+ConvT
    skips = []
    h = x
    for i in range(5):
        skips.append(h)      # skips[i] = what down-conv i consumed (already activated)
        h = conv3x3_s2_reflect(h, params[f"d{i}_w"], params[f"d{i}_b"],
                               post_act=post_down[i])

    # Innermost: x1 = up(down(x)); concat([x1, x]); the parent's ReLU is split across the
    # two concat halves (fused into u4's epilogue / applied to the skip half).
    h = convT4x4_s2_p1(h, params["u4_w"], params["u4_b"], post_act="relu")
    h = jnp.concatenate([h, jnp.maximum(skips[4], 0)], axis=-1)

    # Middle blocks.
    for i in (3, 2, 1):
        h = convT4x4_s2_p1(h, params[f"u{i}_w"], params[f"u{i}_b"], post_act="relu")
        h = jnp.concatenate([h, jnp.maximum(skips[i], 0)], axis=-1)

    # Outermost: tanh(upconv(relu(x2))) — the ReLU was already fused upstream.
    h = convT4x4_s2_p1(h, params["u0_w"], params["u0_b"], post_act="tanh",
                       out_dtype=jnp.float32)
    return jnp.transpose(h, (0, 3, 1, 2))       # -> NCHW


# ------------------------------------------------------------------------------- main
if __name__ == "__main__":
    B, IN_NC, OUT_NC, NGF = 2, 4, 3, 4
    H = W = 32  # num_downs=5 -> spatial must be a multiple of 32

    x = jax.random.normal(jax.random.PRNGKey(0), (B, IN_NC, H, W), jnp.float32)
    params = init_params(jax.random.PRNGKey(42), IN_NC, OUT_NC, NGF)

    fwd = jax.jit(functools.partial(g_unet_add_middle_forward, params=params))
    y = fwd(x)
    jax.block_until_ready(y)

    assert y.shape == (B, OUT_NC, H, W), y.shape
    assert bool(jnp.all(jnp.isfinite(y)))
    assert bool(jnp.all(jnp.abs(y) <= 1.0 + 1e-6))  # tanh output range
    print("KERNEL_OK")
</pallas_src>

<mosaic_0001>
module attributes {stable_mosaic.version = 11 : i64} {
  func.func @_bmm_bias_act_kernel(%arg0: i32, %arg1: i32, %arg2: i32, %arg3: i32, %arg4: memref<1x512x128xbf16, #tpu.memory_space<vmem>>, %arg5: memref<1x128x128xbf16, #tpu.memory_space<vmem>>, %arg6: memref<1x128xf32, #tpu.memory_space<vmem>>, %arg7: memref<1x512x128xbf16, #tpu.memory_space<vmem>>, %arg8: memref<512x128xf32, #tpu.memory_space<vmem>>) attributes {dimension_semantics = [#tpu.dimension_semantics<parallel>, #tpu.dimension_semantics<parallel>, #tpu.dimension_semantics<parallel>, #tpu.dimension_semantics<arbitrary>], iteration_bounds = array<i64: 1, 1, 1, 1>, scalar_prefetch = 0 : i64, scratch_operands = 1 : i64, tpu.core_type = #tpu.core_type<tc>, window_params = [{transform_indices = @transform_0, window_bounds = array<i64: 1, 512, 128>}, {transform_indices = @transform_1, window_bounds = array<i64: 1, 128, 128>}, {transform_indices = @transform_2, window_bounds = array<i64: 1, 128>}, {transform_indices = @transform_3, window_bounds = array<i64: 1, 512, 128>}]} {
    %c0_i32 = arith.constant 0 : i32
    %0 = arith.cmpi eq, %arg3, %c0_i32 : i32
    %1 = arith.extui %0 : i1 to i32
    %c0_i32_0 = arith.constant 0 : i32
    %2 = arith.cmpi ne, %1, %c0_i32_0 : i32
    scf.if %2 {
      %cst_12 = arith.constant 0.000000e+00 : f32
      %14 = vector.broadcast %cst_12 : f32 to vector<512x128xf32>
      %c0_13 = arith.constant 0 : index
      %c0_14 = arith.constant 0 : index
      %15 = vector.load %arg8[%c0_13, %c0_14] : memref<512x128xf32, #tpu.memory_space<vmem>>, vector<512x128xf32>
      tpu.vector_store %arg8[%c0_13, %c0_14], %14 {strides = array<i32>} : memref<512x128xf32, #tpu.memory_space<vmem>>, vector<512x128xf32>,
    } else {
    }
    %c0 = arith.constant 0 : index
    %c0_1 = arith.constant 0 : index
    %3 = vector.load %arg8[%c0, %c0_1] : memref<512x128xf32, #tpu.memory_space<vmem>>, vector<512x128xf32>
    %c0_2 = arith.constant 0 : index
    %c0_3 = arith.constant 0 : index
    %c0_4 = arith.constant 0 : index
    %4 = vector.load %arg4[%c0_2, %c0_3, %c0_4] : memref<1x512x128xbf16, #tpu.memory_space<vmem>>, vector<1x512x128xbf16>
    %5 = vector.shape_cast %4 : vector<1x512x128xbf16> to vector<512x128xbf16>
    %c0_5 = arith.constant 0 : index
    %c0_6 = arith.constant 0 : index
    %c0_7 = arith.constant 0 : index
    %6 = vector.load %arg5[%c0_5, %c0_6, %c0_7] : memref<1x128x128xbf16, #tpu.memory_space<vmem>>, vector<1x128x128xbf16>
    %7 = vector.shape_cast %6 : vector<1x128x128xbf16> to vector<128x128xbf16>
    %cst = arith.constant dense<0.000000e+00> : vector<512x128xf32>
    %8 = tpu.matmul %5, %7, %cst {dimension_numbers = #tpu.dot_dimension_numbers<[1], [0], [0], [1], [0, 0, 1, 1], [], []>} : vector<512x128xbf16>, vector<128x128xbf16>, vector<512x128xf32> -> vector<512x128xf32>
    %9 = arith.addf %3, %8 : vector<512x128xf32>
    %c0_8 = arith.constant 0 : index
    %c0_9 = arith.constant 0 : index
    %10 = vector.load %arg8[%c0_8, %c0_9] : memref<512x128xf32, #tpu.memory_space<vmem>>, vector<512x128xf32>
    tpu.vector_store %arg8[%c0_8, %c0_9], %9 {strides = array<i32>} : memref<512x128xf32, #tpu.memory_space<vmem>>, vector<512x128xf32>,
    %c0_i32_10 = arith.constant 0 : i32
    %11 = arith.cmpi eq, %arg3, %c0_i32_10 : i32
    %12 = arith.extui %11 : i1 to i32
    %c0_i32_11 = arith.constant 0 : i32
    %13 = arith.cmpi ne, %12, %c0_i32_11 : i32
    scf.if %13 {
      %c0_12 = arith.constant 0 : index
      %c0_13 = arith.constant 0 : index
      %14 = vector.load %arg8[%c0_12, %c0_13] : memref<512x128xf32, #tpu.memory_space<vmem>>, vector<512x128xf32>
      %c0_14 = arith.constant 0 : index
      %c0_15 = arith.constant 0 : index
      %15 = vector.load %arg6[%c0_14, %c0_15] : memref<1x128xf32, #tpu.memory_space<vmem>>, vector<1x128xf32>
      %16 = vector.broadcast %15 : vector<1x128xf32> to vector<512x128xf32>
      %17 = arith.addf %14, %16 : vector<512x128xf32>
      %cst_16 = arith.constant 0.000000e+00 : f32
      %18 = vector.broadcast %cst_16 : f32 to vector<512x128xf32>
      %19 = arith.cmpf oge, %17, %18 : vector<512x128xf32>
      %cst_17 = arith.constant 2.000000e-01 : f32
      %20 = vector.broadcast %cst_17 : f32 to vector<512x128xf32>
      %21 = arith.mulf %20, %17 : vector<512x128xf32>
      %22 = arith.select %19, %17, %21 : vector<512x128xi1>, vector<512x128xf32>
      %23 = arith.truncf %22 : vector<512x128xf32> to vector<512x128xbf16>
      %c0_18 = arith.constant 0 : index
      %c0_19 = arith.constant 0 : index
      %c0_20 = arith.constant 0 : index
      %24 = vector.load %arg7[%c0_18, %c0_19, %c0_20] : memref<1x512x128xbf16, #tpu.memory_space<vmem>>, vector<1x512x128xbf16>
      %25 = vector.shape_cast %24 : vector<1x512x128xbf16> to vector<512x128xbf16>
      %26 = vector.shape_cast %23 : vector<512x128xbf16> to vector<1x512x128xbf16>
      tpu.vector_store %arg7[%c0_18, %c0_19, %c0_20], %26 {strides = array<i32>} : memref<1x512x128xbf16, #tpu.memory_space<vmem>>, vector<1x512x128xbf16>,
    } else {
    }
    return
  }
  func.func @transform_0(%arg0: i32, %arg1: i32, %arg2: i32, %arg3: i32) -> (i32, i32, i32) {
    %c0_i32 = arith.constant 0 : i32
    return %arg0, %arg1, %arg3 : i32, i32, i32
  }
  func.func @transform_1(%arg0: i32, %arg1: i32, %arg2: i32, %arg3: i32) -> (i32, i32, i32) {
    %c0_i32 = arith.constant 0 : i32
    return %arg0, %arg3, %arg2 : i32, i32, i32
  }
  func.func @transform_2(%arg0: i32, %arg1: i32, %arg2: i32, %arg3: i32) -> (i32, i32) {
    %c0_i32 = arith.constant 0 : i32
    %c0_i32_0 = arith.constant 0 : i32
    return %c0_i32, %arg2 : i32, i32
  }
  func.func @transform_3(%arg0: i32, %arg1: i32, %arg2: i32, %arg3: i32) -> (i32, i32, i32) {
    %c0_i32 = arith.constant 0 : i32
    return %arg0, %arg1, %arg2 : i32, i32, i32
  }
}

module attributes {stable_mosaic.version = 11 : i64} {
  func.func @_bmm_bias_act_kernel(%arg0: i32, %arg1: i32, %arg2: i32, %arg3: i32, %arg4: memref<1x128x128xbf16, #tpu.memory_space<vmem>>, %arg5: memref<1x128x128xbf16, #tpu.memory_space<vmem>>, %arg6: memref<1x128xf32, #tpu.memory_space<vmem>>, %arg7: memref<1x128x128xbf16, #tpu.memory_space<vmem>>, %arg8: memref<128x128xf32, #tpu.memory_space<vmem>>) attributes {dimension_semantics = [#tpu.dimension_semantics<parallel>, #tpu.dimension_semantics<parallel>, #tpu.dimension_semantics<parallel>, #tpu.dimension_semantics<arbitrary>], iteration_bounds = array<i64: 1, 1, 1, 1>, scalar_prefetch = 0 : i64, scratch_operands = 1 : i64, tpu.core_type = #tpu.core_type<tc>, window_params = [{transform_indices = @transform_0, window_bounds = array<i64: 1, 128, 128>}, {transform_indices = @transform_1, window_bounds = array<i64: 1, 128, 128>}, {transform_indices = @transform_2, window_bounds = array<i64: 1, 128>}, {transform_indices = @transform_3, window_bounds = array<i64: 1, 128, 128>}]} {
    %c0_i32 = arith.constant 0 : i32
    %0 = arith.cmpi eq, %arg3, %c0_i32 : i32
    %1 = arith.extui %0 : i1 to i32
    %c0_i32_0 = arith.constant 0 : i32
    %2 = arith.cmpi ne, %1, %c0_i32_0 : i32
    scf.if %2 {
      %cst_12 = arith.constant 0.000000e+00 : f32
      %14 = vector.broadcast %cst_12 : f32 to vector<128x128xf32>
      %c0_13 = arith.constant 0 : index
      %c0_14 = arith.constant 0 : index
      %15 = vector.load %arg8[%c0_13, %c0_14] : memref<128x128xf32, #tpu.memory_space<vmem>>, vector<128x128xf32>
      tpu.vector_store %arg8[%c0_13, %c0_14], %14 {strides = array<i32>} : memref<128x128xf32, #tpu.memory_space<vmem>>, vector<128x128xf32>,
    } else {
    }
    %c0 = arith.constant 0 : index
    %c0_1 = arith.constant 0 : index
    %3 = vector.load %arg8[%c0, %c0_1] : memref<128x128xf32, #tpu.memory_space<vmem>>, vector<128x128xf32>
    %c0_2 = arith.constant 0 : index
    %c0_3 = arith.constant 0 : index
    %c0_4 = arith.constant 0 : index
    %4 = vector.load %arg4[%c0_2, %c0_3, %c0_4] : memref<1x128x128xbf16, #tpu.memory_space<vmem>>, vector<1x128x128xbf16>
    %5 = vector.shape_cast %4 : vector<1x128x128xbf16> to vector<128x128xbf16>
    %c0_5 = arith.constant 0 : index
    %c0_6 = arith.constant 0 : index
    %c0_7 = arith.constant 0 : index
    %6 = vector.load %arg5[%c0_5, %c0_6, %c0_7] : memref<1x128x128xbf16, #tpu.memory_space<vmem>>, vector<1x128x128xbf16>
    %7 = vector.shape_cast %6 : vector<1x128x128xbf16> to vector<128x128xbf16>
    %cst = arith.constant dense<0.000000e+00> : vector<128x128xf32>
    %8 = tpu.matmul %5, %7, %cst {dimension_numbers = #tpu.dot_dimension_numbers<[1], [0], [0], [1], [0, 0, 1, 1], [], []>} : vector<128x128xbf16>, vector<128x128xbf16>, vector<128x128xf32> -> vector<128x128xf32>
    %9 = arith.addf %3, %8 : vector<128x128xf32>
    %c0_8 = arith.constant 0 : index
    %c0_9 = arith.constant 0 : index
    %10 = vector.load %arg8[%c0_8, %c0_9] : memref<128x128xf32, #tpu.memory_space<vmem>>, vector<128x128xf32>
    tpu.vector_store %arg8[%c0_8, %c0_9], %9 {strides = array<i32>} : memref<128x128xf32, #tpu.memory_space<vmem>>, vector<128x128xf32>,
    %c0_i32_10 = arith.constant 0 : i32
    %11 = arith.cmpi eq, %arg3, %c0_i32_10 : i32
    %12 = arith.extui %11 : i1 to i32
    %c0_i32_11 = arith.constant 0 : i32
    %13 = arith.cmpi ne, %12, %c0_i32_11 : i32
    scf.if %13 {
      %c0_12 = arith.constant 0 : index
      %c0_13 = arith.constant 0 : index
      %14 = vector.load %arg8[%c0_12, %c0_13] : memref<128x128xf32, #tpu.memory_space<vmem>>, vector<128x128xf32>
      %c0_14 = arith.constant 0 : index
      %c0_15 = arith.constant 0 : index
      %15 = vector.load %arg6[%c0_14, %c0_15] : memref<1x128xf32, #tpu.memory_space<vmem>>, vector<1x128xf32>
      %16 = vector.broadcast %15 : vector<1x128xf32> to vector<128x128xf32>
      %17 = arith.addf %14, %16 : vector<128x128xf32>
      %cst_16 = arith.constant 0.000000e+00 : f32
      %18 = vector.broadcast %cst_16 : f32 to vector<128x128xf32>
      %19 = arith.cmpf oge, %17, %18 : vector<128x128xf32>
      %cst_17 = arith.constant 2.000000e-01 : f32
      %20 = vector.broadcast %cst_17 : f32 to vector<128x128xf32>
      %21 = arith.mulf %20, %17 : vector<128x128xf32>
      %22 = arith.select %19, %17, %21 : vector<128x128xi1>, vector<128x128xf32>
      %23 = arith.truncf %22 : vector<128x128xf32> to vector<128x128xbf16>
      %c0_18 = arith.constant 0 : index
      %c0_19 = arith.constant 0 : index
      %c0_20 = arith.constant 0 : index
      %24 = vector.load %arg7[%c0_18, %c0_19, %c0_20] : memref<1x128x128xbf16, #tpu.memory_space<vmem>>, vector<1x128x128xbf16>
      %25 = vector.shape_cast %24 : vector<1x128x128xbf16> to vector<128x128xbf16>
      %26 = vector.shape_cast %23 : vector<128x128xbf16> to vector<1x128x128xbf16>
      tpu.vector_store %arg7[%c0_18, %c0_19, %c0_20], %26 {strides = array<i32>} : memref<1x128x128xbf16, #tpu.memory_space<vmem>>, vector<1x128x128xbf16>,
    } else {
    }
    return
  }
  func.func @transform_0(%arg0: i32, %arg1: i32, %arg2: i32, %arg3: i32) -> (i32, i32, i32) {
    %c0_i32 = arith.constant 0 : i32
    return %arg0, %arg1, %arg3 : i32, i32, i32
  }
  func.func @transform_1(%arg0: i32, %arg1: i32, %arg2: i32, %arg3: i32) -> (i32, i32, i32) {
    %c0_i32 = arith.constant 0 : i32
    return %arg0, %arg3, %arg2 : i32, i32, i32
  }
  func.func @transform_2(%arg0: i32, %arg1: i32, %arg2: i32, %arg3: i32) -> (i32, i32) {
    %c0_i32 = arith.constant 0 : i32
    %c0_i32_0 = arith.constant 0 : i32
    return %c0_i32, %arg2 : i32, i32
  }
  func.func @transform_3(%arg0: i32, %arg1: i32, %arg2: i32, %arg3: i32) -> (i32, i32, i32) {
    %c0_i32 = arith.constant 0 : i32
    return %arg0, %arg1, %arg2 : i32, i32, i32
  }
}

module attributes {stable_mosaic.version = 11 : i64} {
  func.func @_bmm_bias_act_kernel(%arg0: i32, %arg1: i32, %arg2: i32, %arg3: i32, %arg4: memref<1x32x128xbf16, #tpu.memory_space<vmem>>, %arg5: memref<1x128x128xbf16, #tpu.memory_space<vmem>>, %arg6: memref<1x128xf32, #tpu.memory_space<vmem>>, %arg7: memref<1x32x128xbf16, #tpu.memory_space<vmem>>, %arg8: memref<32x128xf32, #tpu.memory_space<vmem>>) attributes {dimension_semantics = [#tpu.dimension_semantics<parallel>, #tpu.dimension_semantics<parallel>, #tpu.dimension_semantics<parallel>, #tpu.dimension_semantics<arbitrary>], iteration_bounds = array<i64: 1, 1, 1, 1>, scalar_prefetch = 0 : i64, scratch_operands = 1 : i64, tpu.core_type = #tpu.core_type<tc>, window_params = [{transform_indices = @transform_0, window_bounds = array<i64: 1, 32, 128>}, {transform_indices = @transform_1, window_bounds = array<i64: 1, 128, 128>}, {transform_indices = @transform_2, window_bounds = array<i64: 1, 128>}, {transform_indices = @transform_3, window_bounds = array<i64: 1, 32, 128>}]} {
    %c0_i32 = arith.constant 0 : i32
    %0 = arith.cmpi eq, %arg3, %c0_i32 : i32
    %1 = arith.extui %0 : i1 to i32
    %c0_i32_0 = arith.constant 0 : i32
    %2 = arith.cmpi ne, %1, %c0_i32_0 : i32
    scf.if %2 {
      %cst_12 = arith.constant 0.000000e+00 : f32
      %14 = vector.broadcast %cst_12 : f32 to vector<32x128xf32>
      %c0_13 = arith.constant 0 : index
      %c0_14 = arith.constant 0 : index
      %15 = vector.load %arg8[%c0_13, %c0_14] : memref<32x128xf32, #tpu.memory_space<vmem>>, vector<32x128xf32>
      tpu.vector_store %arg8[%c0_13, %c0_14], %14 {strides = array<i32>} : memref<32x128xf32, #tpu.memory_space<vmem>>, vector<32x128xf32>,
    } else {
    }
    %c0 = arith.constant 0 : index
    %c0_1 = arith.constant 0 : index
    %3 = vector.load %arg8[%c0, %c0_1] : memref<32x128xf32, #tpu.memory_space<vmem>>, vector<32x128xf32>
    %c0_2 = arith.constant 0 : index
    %c0_3 = arith.constant 0 : index
    %c0_4 = arith.constant 0 : index
    %4 = vector.load %arg4[%c0_2, %c0_3, %c0_4] : memref<1x32x128xbf16, #tpu.memory_space<vmem>>, vector<1x32x128xbf16>
    %5 = vector.shape_cast %4 : vector<1x32x128xbf16> to vector<32x128xbf16>
    %c0_5 = arith.constant 0 : index
    %c0_6 = arith.constant 0 : index
    %c0_7 = arith.constant 0 : index
    %6 = vector.load %arg5[%c0_5, %c0_6, %c0_7] : memref<1x128x128xbf16, #tpu.memory_space<vmem>>, vector<1x128x128xbf16>
    %7 = vector.shape_cast %6 : vector<1x128x128xbf16> to vector<128x128xbf16>
    %cst = arith.constant dense<0.000000e+00> : vector<32x128xf32>
    %8 = tpu.matmul %5, %7, %cst {dimension_numbers = #tpu.dot_dimension_numbers<[1], [0], [0], [1], [0, 0, 1, 1], [], []>} : vector<32x128xbf16>, vector<128x128xbf16>, vector<32x128xf32> -> vector<32x128xf32>
    %9 = arith.addf %3, %8 : vector<32x128xf32>
    %c0_8 = arith.constant 0 : index
    %c0_9 = arith.constant 0 : index
    %10 = vector.load %arg8[%c0_8, %c0_9] : memref<32x128xf32, #tpu.memory_space<vmem>>, vector<32x128xf32>
    tpu.vector_store %arg8[%c0_8, %c0_9], %9 {strides = array<i32>} : memref<32x128xf32, #tpu.memory_space<vmem>>, vector<32x128xf32>,
    %c0_i32_10 = arith.constant 0 : i32
    %11 = arith.cmpi eq, %arg3, %c0_i32_10 : i32
    %12 = arith.extui %11 : i1 to i32
    %c0_i32_11 = arith.constant 0 : i32
    %13 = arith.cmpi ne, %12, %c0_i32_11 : i32
    scf.if %13 {
      %c0_12 = arith.constant 0 : index
      %c0_13 = arith.constant 0 : index
      %14 = vector.load %arg8[%c0_12, %c0_13] : memref<32x128xf32, #tpu.memory_space<vmem>>, vector<32x128xf32>
      %c0_14 = arith.constant 0 : index
      %c0_15 = arith.constant 0 : index
      %15 = vector.load %arg6[%c0_14, %c0_15] : memref<1x128xf32, #tpu.memory_space<vmem>>, vector<1x128xf32>
      %16 = vector.broadcast %15 : vector<1x128xf32> to vector<32x128xf32>
      %17 = arith.addf %14, %16 : vector<32x128xf32>
      %cst_16 = arith.constant 0.000000e+00 : f32
      %18 = vector.broadcast %cst_16 : f32 to vector<32x128xf32>
      %19 = arith.cmpf oge, %17, %18 : vector<32x128xf32>
      %cst_17 = arith.constant 2.000000e-01 : f32
      %20 = vector.broadcast %cst_17 : f32 to vector<32x128xf32>
      %21 = arith.mulf %20, %17 : vector<32x128xf32>
      %22 = arith.select %19, %17, %21 : vector<32x128xi1>, vector<32x128xf32>
      %23 = arith.truncf %22 : vector<32x128xf32> to vector<32x128xbf16>
      %c0_18 = arith.constant 0 : index
      %c0_19 = arith.constant 0 : index
      %c0_20 = arith.constant 0 : index
      %24 = vector.load %arg7[%c0_18, %c0_19, %c0_20] : memref<1x32x128xbf16, #tpu.memory_space<vmem>>, vector<1x32x128xbf16>
      %25 = vector.shape_cast %24 : vector<1x32x128xbf16> to vector<32x128xbf16>
      %26 = vector.shape_cast %23 : vector<32x128xbf16> to vector<1x32x128xbf16>
      tpu.vector_store %arg7[%c0_18, %c0_19, %c0_20], %26 {strides = array<i32>} : memref<1x32x128xbf16, #tpu.memory_space<vmem>>, vector<1x32x128xbf16>,
    } else {
    }
    return
  }
  func.func @transform_0(%arg0: i32, %arg1: i32, %arg2: i32, %arg3: i32) -> (i32, i32, i32) {
    %c0_i32 = arith.constant 0 : i32
    return %arg0, %arg1, %arg3 : i32, i32, i32
  }
  func.func @transform_1(%arg0: i32, %arg1: i32, %arg2: i32, %arg3: i32) -> (i32, i32, i32) {
    %c0_i32 = arith.constant 0 : i32
    return %arg0, %arg3, %arg2 : i32, i32, i32
  }
  func.func @transform_2(%arg0: i32, %arg1: i32, %arg2: i32, %arg3: i32) -> (i32, i32) {
    %c0_i32 = arith.constant 0 : i32
    %c0_i32_0 = arith.constant 0 : i32
    return %c0_i32, %arg2 : i32, i32
  }
  func.func @transform_3(%arg0: i32, %arg1: i32, %arg2: i32, %arg3: i32) -> (i32, i32, i32) {
    %c0_i32 = arith.constant 0 : i32
    return %arg0, %arg1, %arg2 : i32, i32, i32
  }
}

module attributes {stable_mosaic.version = 11 : i64} {
  func.func @_bmm_bias_act_kernel(%arg0: i32, %arg1: i32, %arg2: i32, %arg3: i32, %arg4: memref<1x16x256xbf16, #tpu.memory_space<vmem>>, %arg5: memref<1x256x128xbf16, #tpu.memory_space<vmem>>, %arg6: memref<1x128xf32, #tpu.memory_space<vmem>>, %arg7: memref<1x16x128xbf16, #tpu.memory_space<vmem>>, %arg8: memref<16x128xf32, #tpu.memory_space<vmem>>) attributes {dimension_semantics = [#tpu.dimension_semantics<parallel>, #tpu.dimension_semantics<parallel>, #tpu.dimension_semantics<parallel>, #tpu.dimension_semantics<arbitrary>], iteration_bounds = array<i64: 1, 1, 1, 1>, scalar_prefetch = 0 : i64, scratch_operands = 1 : i64, tpu.core_type = #tpu.core_type<tc>, window_params = [{transform_indices = @transform_0, window_bounds = array<i64: 1, 16, 256>}, {transform_indices = @transform_1, window_bounds = array<i64: 1, 256, 128>}, {transform_indices = @transform_2, window_bounds = array<i64: 1, 128>}, {transform_indices = @transform_3, window_bounds = array<i64: 1, 16, 128>}]} {
    %c0_i32 = arith.constant 0 : i32
    %0 = arith.cmpi eq, %arg3, %c0_i32 : i32
    %1 = arith.extui %0 : i1 to i32
    %c0_i32_0 = arith.constant 0 : i32
    %2 = arith.cmpi ne, %1, %c0_i32_0 : i32
    scf.if %2 {
      %cst_12 = arith.constant 0.000000e+00 : f32
      %14 = vector.broadcast %cst_12 : f32 to vector<16x128xf32>
      %c0_13 = arith.constant 0 : index
      %c0_14 = arith.constant 0 : index
      %15 = vector.load %arg8[%c0_13, %c0_14] : memref<16x128xf32, #tpu.memory_space<vmem>>, vector<16x128xf32>
      tpu.vector_store %arg8[%c0_13, %c0_14], %14 {strides = array<i32>} : memref<16x128xf32, #tpu.memory_space<vmem>>, vector<16x128xf32>,
    } else {
    }
    %c0 = arith.constant 0 : index
    %c0_1 = arith.constant 0 : index
    %3 = vector.load %arg8[%c0, %c0_1] : memref<16x128xf32, #tpu.memory_space<vmem>>, vector<16x128xf32>
    %c0_2 = arith.constant 0 : index
    %c0_3 = arith.constant 0 : index
    %c0_4 = arith.constant 0 : index
    %4 = vector.load %arg4[%c0_2, %c0_3, %c0_4] : memref<1x16x256xbf16, #tpu.memory_space<vmem>>, vector<1x16x256xbf16>
    %5 = vector.shape_cast %4 : vector<1x16x256xbf16> to vector<16x256xbf16>
    %c0_5 = arith.constant 0 : index
    %c0_6 = arith.constant 0 : index
    %c0_7 = arith.constant 0 : index
    %6 = vector.load %arg5[%c0_5, %c0_6, %c0_7] : memref<1x256x128xbf16, #tpu.memory_space<vmem>>, vector<1x256x128xbf16>
    %7 = vector.shape_cast %6 : vector<1x256x128xbf16> to vector<256x128xbf16>
    %cst = arith.constant dense<0.000000e+00> : vector<16x128xf32>
    %8 = tpu.matmul %5, %7, %cst {dimension_numbers = #tpu.dot_dimension_numbers<[1], [0], [0], [1], [0, 0, 1, 1], [], []>} : vector<16x256xbf16>, vector<256x128xbf16>, vector<16x128xf32> -> vector<16x128xf32>
    %9 = arith.addf %3, %8 : vector<16x128xf32>
    %c0_8 = arith.constant 0 : index
    %c0_9 = arith.constant 0 : index
    %10 = vector.load %arg8[%c0_8, %c0_9] : memref<16x128xf32, #tpu.memory_space<vmem>>, vector<16x128xf32>
    tpu.vector_store %arg8[%c0_8, %c0_9], %9 {strides = array<i32>} : memref<16x128xf32, #tpu.memory_space<vmem>>, vector<16x128xf32>,
    %c0_i32_10 = arith.constant 0 : i32
    %11 = arith.cmpi eq, %arg3, %c0_i32_10 : i32
    %12 = arith.extui %11 : i1 to i32
    %c0_i32_11 = arith.constant 0 : i32
    %13 = arith.cmpi ne, %12, %c0_i32_11 : i32
    scf.if %13 {
      %c0_12 = arith.constant 0 : index
      %c0_13 = arith.constant 0 : index
      %14 = vector.load %arg8[%c0_12, %c0_13] : memref<16x128xf32, #tpu.memory_space<vmem>>, vector<16x128xf32>
      %c0_14 = arith.constant 0 : index
      %c0_15 = arith.constant 0 : index
      %15 = vector.load %arg6[%c0_14, %c0_15] : memref<1x128xf32, #tpu.memory_space<vmem>>, vector<1x128xf32>
      %16 = vector.broadcast %15 : vector<1x128xf32> to vector<16x128xf32>
      %17 = arith.addf %14, %16 : vector<16x128xf32>
      %cst_16 = arith.constant 0.000000e+00 : f32
      %18 = vector.broadcast %cst_16 : f32 to vector<16x128xf32>
      %19 = arith.cmpf oge, %17, %18 : vector<16x128xf32>
      %cst_17 = arith.constant 2.000000e-01 : f32
      %20 = vector.broadcast %cst_17 : f32 to vector<16x128xf32>
      %21 = arith.mulf %20, %17 : vector<16x128xf32>
      %22 = arith.select %19, %17, %21 : vector<16x128xi1>, vector<16x128xf32>
      %23 = arith.truncf %22 : vector<16x128xf32> to vector<16x128xbf16>
      %c0_18 = arith.constant 0 : index
      %c0_19 = arith.constant 0 : index
      %c0_20 = arith.constant 0 : index
      %24 = vector.load %arg7[%c0_18, %c0_19, %c0_20] : memref<1x16x128xbf16, #tpu.memory_space<vmem>>, vector<1x16x128xbf16>
      %25 = vector.shape_cast %24 : vector<1x16x128xbf16> to vector<16x128xbf16>
      %26 = vector.shape_cast %23 : vector<16x128xbf16> to vector<1x16x128xbf16>
      tpu.vector_store %arg7[%c0_18, %c0_19, %c0_20], %26 {strides = array<i32>} : memref<1x16x128xbf16, #tpu.memory_space<vmem>>, vector<1x16x128xbf16>,
    } else {
    }
    return
  }
  func.func @transform_0(%arg0: i32, %arg1: i32, %arg2: i32, %arg3: i32) -> (i32, i32, i32) {
    %c0_i32 = arith.constant 0 : i32
    return %arg0, %arg1, %arg3 : i32, i32, i32
  }
  func.func @transform_1(%arg0: i32, %arg1: i32, %arg2: i32, %arg3: i32) -> (i32, i32, i32) {
    %c0_i32 = arith.constant 0 : i32
    return %arg0, %arg3, %arg2 : i32, i32, i32
  }
  func.func @transform_2(%arg0: i32, %arg1: i32, %arg2: i32, %arg3: i32) -> (i32, i32) {
    %c0_i32 = arith.constant 0 : i32
    %c0_i32_0 = arith.constant 0 : i32
    return %c0_i32, %arg2 : i32, i32
  }
  func.func @transform_3(%arg0: i32, %arg1: i32, %arg2: i32, %arg3: i32) -> (i32, i32, i32) {
    %c0_i32 = arith.constant 0 : i32
    return %arg0, %arg1, %arg2 : i32, i32, i32
  }
}

module attributes {stable_mosaic.version = 11 : i64} {
  func.func @_bmm_bias_act_kernel(%arg0: i32, %arg1: i32, %arg2: i32, %arg3: i32, %arg4: memref<1x16x384xbf16, #tpu.memory_space<vmem>>, %arg5: memref<1x384x128xbf16, #tpu.memory_space<vmem>>, %arg6: memref<1x128xf32, #tpu.memory_space<vmem>>, %arg7: memref<1x16x128xbf16, #tpu.memory_space<vmem>>, %arg8: memref<16x128xf32, #tpu.memory_space<vmem>>) attributes {dimension_semantics = [#tpu.dimension_semantics<parallel>, #tpu.dimension_semantics<parallel>, #tpu.dimension_semantics<parallel>, #tpu.dimension_semantics<arbitrary>], iteration_bounds = array<i64: 1, 1, 1, 1>, scalar_prefetch = 0 : i64, scratch_operands = 1 : i64, tpu.core_type = #tpu.core_type<tc>, window_params = [{transform_indices = @transform_0, window_bounds = array<i64: 1, 16, 384>}, {transform_indices = @transform_1, window_bounds = array<i64: 1, 384, 128>}, {transform_indices = @transform_2, window_bounds = array<i64: 1, 128>}, {transform_indices = @transform_3, window_bounds = array<i64: 1, 16, 128>}]} {
    %c0_i32 = arith.constant 0 : i32
    %0 = arith.cmpi eq, %arg3, %c0_i32 : i32
    %1 = arith.extui %0 : i1 to i32
    %c0_i32_0 = arith.constant 0 : i32
    %2 = arith.cmpi ne, %1, %c0_i32_0 : i32
    scf.if %2 {
      %cst_12 = arith.constant 0.000000e+00 : f32
      %14 = vector.broadcast %cst_12 : f32 to vector<16x128xf32>
      %c0_13 = arith.constant 0 : index
      %c0_14 = arith.constant 0 : index
      %15 = vector.load %arg8[%c0_13, %c0_14] : memref<16x128xf32, #tpu.memory_space<vmem>>, vector<16x128xf32>
      tpu.vector_store %arg8[%c0_13, %c0_14], %14 {strides = array<i32>} : memref<16x128xf32, #tpu.memory_space<vmem>>, vector<16x128xf32>,
    } else {
    }
    %c0 = arith.constant 0 : index
    %c0_1 = arith.constant 0 : index
    %3 = vector.load %arg8[%c0, %c0_1] : memref<16x128xf32, #tpu.memory_space<vmem>>, vector<16x128xf32>
    %c0_2 = arith.constant 0 : index
    %c0_3 = arith.constant 0 : index
    %c0_4 = arith.constant 0 : index
    %4 = vector.load %arg4[%c0_2, %c0_3, %c0_4] : memref<1x16x384xbf16, #tpu.memory_space<vmem>>, vector<1x16x384xbf16>
    %5 = vector.shape_cast %4 : vector<1x16x384xbf16> to vector<16x384xbf16>
    %c0_5 = arith.constant 0 : index
    %c0_6 = arith.constant 0 : index
    %c0_7 = arith.constant 0 : index
    %6 = vector.load %arg5[%c0_5, %c0_6, %c0_7] : memref<1x384x128xbf16, #tpu.memory_space<vmem>>, vector<1x384x128xbf16>
    %7 = vector.shape_cast %6 : vector<1x384x128xbf16> to vector<384x128xbf16>
    %cst = arith.constant dense<0.000000e+00> : vector<16x128xf32>
    %8 = tpu.matmul %5, %7, %cst {dimension_numbers = #tpu.dot_dimension_numbers<[1], [0], [0], [1], [0, 0, 1, 1], [], []>} : vector<16x384xbf16>, vector<384x128xbf16>, vector<16x128xf32> -> vector<16x128xf32>
    %9 = arith.addf %3, %8 : vector<16x128xf32>
    %c0_8 = arith.constant 0 : index
    %c0_9 = arith.constant 0 : index
    %10 = vector.load %arg8[%c0_8, %c0_9] : memref<16x128xf32, #tpu.memory_space<vmem>>, vector<16x128xf32>
    tpu.vector_store %arg8[%c0_8, %c0_9], %9 {strides = array<i32>} : memref<16x128xf32, #tpu.memory_space<vmem>>, vector<16x128xf32>,
    %c0_i32_10 = arith.constant 0 : i32
    %11 = arith.cmpi eq, %arg3, %c0_i32_10 : i32
    %12 = arith.extui %11 : i1 to i32
    %c0_i32_11 = arith.constant 0 : i32
    %13 = arith.cmpi ne, %12, %c0_i32_11 : i32
    scf.if %13 {
      %c0_12 = arith.constant 0 : index
      %c0_13 = arith.constant 0 : index
      %14 = vector.load %arg8[%c0_12, %c0_13] : memref<16x128xf32, #tpu.memory_space<vmem>>, vector<16x128xf32>
      %c0_14 = arith.constant 0 : index
      %c0_15 = arith.constant 0 : index
      %15 = vector.load %arg6[%c0_14, %c0_15] : memref<1x128xf32, #tpu.memory_space<vmem>>, vector<1x128xf32>
      %16 = vector.broadcast %15 : vector<1x128xf32> to vector<16x128xf32>
      %17 = arith.addf %14, %16 : vector<16x128xf32>
      %cst_16 = arith.constant 0.000000e+00 : f32
      %18 = vector.broadcast %cst_16 : f32 to vector<16x128xf32>
      %19 = arith.maximumf %17, %18 : vector<16x128xf32>
      %20 = arith.truncf %19 : vector<16x128xf32> to vector<16x128xbf16>
      %c0_17 = arith.constant 0 : index
      %c0_18 = arith.constant 0 : index
      %c0_19 = arith.constant 0 : index
      %21 = vector.load %arg7[%c0_17, %c0_18, %c0_19] : memref<1x16x128xbf16, #tpu.memory_space<vmem>>, vector<1x16x128xbf16>
      %22 = vector.shape_cast %21 : vector<1x16x128xbf16> to vector<16x128xbf16>
      %23 = vector.shape_cast %20 : vector<16x128xbf16> to vector<1x16x128xbf16>
      tpu.vector_store %arg7[%c0_17, %c0_18, %c0_19], %23 {strides = array<i32>} : memref<1x16x128xbf16, #tpu.memory_space<vmem>>, vector<1x16x128xbf16>,
    } else {
    }
    return
  }
  func.func @transform_0(%arg0: i32, %arg1: i32, %arg2: i32, %arg3: i32) -> (i32, i32, i32) {
    %c0_i32 = arith.constant 0 : i32
    return %arg0, %arg1, %arg3 : i32, i32, i32
  }
  func.func @transform_1(%arg0: i32, %arg1: i32, %arg2: i32, %arg3: i32) -> (i32, i32, i32) {
    %c0_i32 = arith.constant 0 : i32
    return %arg0, %arg3, %arg2 : i32, i32, i32
  }
  func.func @transform_2(%arg0: i32, %arg1: i32, %arg2: i32, %arg3: i32) -> (i32, i32) {
    %c0_i32 = arith.constant 0 : i32
    %c0_i32_0 = arith.constant 0 : i32
    return %c0_i32, %arg2 : i32, i32
  }
  func.func @transform_3(%arg0: i32, %arg1: i32, %arg2: i32, %arg3: i32) -> (i32, i32, i32) {
    %c0_i32 = arith.constant 0 : i32
    return %arg0, %arg1, %arg2 : i32, i32, i32
  }
}

module attributes {stable_mosaic.version = 11 : i64} {
  func.func @_bmm_bias_act_kernel(%arg0: i32, %arg1: i32, %arg2: i32, %arg3: i32, %arg4: memref<1x16x128xbf16, #tpu.memory_space<vmem>>, %arg5: memref<1x128x128xbf16, #tpu.memory_space<vmem>>, %arg6: memref<1x128xf32, #tpu.memory_space<vmem>>, %arg7: memref<1x16x128xbf16, #tpu.memory_space<vmem>>, %arg8: memref<16x128xf32, #tpu.memory_space<vmem>>) attributes {dimension_semantics = [#tpu.dimension_semantics<parallel>, #tpu.dimension_semantics<parallel>, #tpu.dimension_semantics<parallel>, #tpu.dimension_semantics<arbitrary>], iteration_bounds = array<i64: 4, 1, 1, 1>, scalar_prefetch = 0 : i64, scratch_operands = 1 : i64, tpu.core_type = #tpu.core_type<tc>, window_params = [{transform_indices = @transform_0, window_bounds = array<i64: 1, 16, 128>}, {transform_indices = @transform_1, window_bounds = array<i64: 1, 128, 128>}, {transform_indices = @transform_2, window_bounds = array<i64: 1, 128>}, {transform_indices = @transform_3, window_bounds = array<i64: 1, 16, 128>}]} {
    %c0_i32 = arith.constant 0 : i32
    %0 = arith.cmpi eq, %arg3, %c0_i32 : i32
    %1 = arith.extui %0 : i1 to i32
    %c0_i32_0 = arith.constant 0 : i32
    %2 = arith.cmpi ne, %1, %c0_i32_0 : i32
    scf.if %2 {
      %cst_12 = arith.constant 0.000000e+00 : f32
      %14 = vector.broadcast %cst_12 : f32 to vector<16x128xf32>
      %c0_13 = arith.constant 0 : index
      %c0_14 = arith.constant 0 : index
      %15 = vector.load %arg8[%c0_13, %c0_14] : memref<16x128xf32, #tpu.memory_space<vmem>>, vector<16x128xf32>
      tpu.vector_store %arg8[%c0_13, %c0_14], %14 {strides = array<i32>} : memref<16x128xf32, #tpu.memory_space<vmem>>, vector<16x128xf32>,
    } else {
    }
    %c0 = arith.constant 0 : index
    %c0_1 = arith.constant 0 : index
    %3 = vector.load %arg8[%c0, %c0_1] : memref<16x128xf32, #tpu.memory_space<vmem>>, vector<16x128xf32>
    %c0_2 = arith.constant 0 : index
    %c0_3 = arith.constant 0 : index
    %c0_4 = arith.constant 0 : index
    %4 = vector.load %arg4[%c0_2, %c0_3, %c0_4] : memref<1x16x128xbf16, #tpu.memory_space<vmem>>, vector<1x16x128xbf16>
    %5 = vector.shape_cast %4 : vector<1x16x128xbf16> to vector<16x128xbf16>
    %c0_5 = arith.constant 0 : index
    %c0_6 = arith.constant 0 : index
    %c0_7 = arith.constant 0 : index
    %6 = vector.load %arg5[%c0_5, %c0_6, %c0_7] : memref<1x128x128xbf16, #tpu.memory_space<vmem>>, vector<1x128x128xbf16>
    %7 = vector.shape_cast %6 : vector<1x128x128xbf16> to vector<128x128xbf16>
    %cst = arith.constant dense<0.000000e+00> : vector<16x128xf32>
    %8 = tpu.matmul %5, %7, %cst {dimension_numbers = #tpu.dot_dimension_numbers<[1], [0], [0], [1], [0, 0, 1, 1], [], []>} : vector<16x128xbf16>, vector<128x128xbf16>, vector<16x128xf32> -> vector<16x128xf32>
    %9 = arith.addf %3, %8 : vector<16x128xf32>
    %c0_8 = arith.constant 0 : index
    %c0_9 = arith.constant 0 : index
    %10 = vector.load %arg8[%c0_8, %c0_9] : memref<16x128xf32, #tpu.memory_space<vmem>>, vector<16x128xf32>
    tpu.vector_store %arg8[%c0_8, %c0_9], %9 {strides = array<i32>} : memref<16x128xf32, #tpu.memory_space<vmem>>, vector<16x128xf32>,
    %c0_i32_10 = arith.constant 0 : i32
    %11 = arith.cmpi eq, %arg3, %c0_i32_10 : i32
    %12 = arith.extui %11 : i1 to i32
    %c0_i32_11 = arith.constant 0 : i32
    %13 = arith.cmpi ne, %12, %c0_i32_11 : i32
    scf.if %13 {
      %c0_12 = arith.constant 0 : index
      %c0_13 = arith.constant 0 : index
      %14 = vector.load %arg8[%c0_12, %c0_13] : memref<16x128xf32, #tpu.memory_space<vmem>>, vector<16x128xf32>
      %c0_14 = arith.constant 0 : index
      %c0_15 = arith.constant 0 : index
      %15 = vector.load %arg6[%c0_14, %c0_15] : memref<1x128xf32, #tpu.memory_space<vmem>>, vector<1x128xf32>
      %16 = vector.broadcast %15 : vector<1x128xf32> to vector<16x128xf32>
      %17 = arith.addf %14, %16 : vector<16x128xf32>
      %cst_16 = arith.constant 0.000000e+00 : f32
      %18 = vector.broadcast %cst_16 : f32 to vector<16x128xf32>
      %19 = arith.maximumf %17, %18 : vector<16x128xf32>
      %20 = arith.truncf %19 : vector<16x128xf32> to vector<16x128xbf16>
      %c0_17 = arith.constant 0 : index
      %c0_18 = arith.constant 0 : index
      %c0_19 = arith.constant 0 : index
      %21 = vector.load %arg7[%c0_17, %c0_18, %c0_19] : memref<1x16x128xbf16, #tpu.memory_space<vmem>>, vector<1x16x128xbf16>
      %22 = vector.shape_cast %21 : vector<1x16x128xbf16> to vector<16x128xbf16>
      %23 = vector.shape_cast %20 : vector<16x128xbf16> to vector<1x16x128xbf16>
      tpu.vector_store %arg7[%c0_17, %c0_18, %c0_19], %23 {strides = array<i32>} : memref<1x16x128xbf16, #tpu.memory_space<vmem>>, vector<1x16x128xbf16>,
    } else {
    }
    return
  }
  func.func @transform_0(%arg0: i32, %arg1: i32, %arg2: i32, %arg3: i32) -> (i32, i32, i32) {
    %c0_i32 = arith.constant 0 : i32
    return %arg0, %arg1, %arg3 : i32, i32, i32
  }
  func.func @transform_1(%arg0: i32, %arg1: i32, %arg2: i32, %arg3: i32) -> (i32, i32, i32) {
    %c0_i32 = arith.constant 0 : i32
    return %arg0, %arg3, %arg2 : i32, i32, i32
  }
  func.func @transform_2(%arg0: i32, %arg1: i32, %arg2: i32, %arg3: i32) -> (i32, i32) {
    %c0_i32 = arith.constant 0 : i32
    %c0_i32_0 = arith.constant 0 : i32
    return %c0_i32, %arg2 : i32, i32
  }
  func.func @transform_3(%arg0: i32, %arg1: i32, %arg2: i32, %arg3: i32) -> (i32, i32, i32) {
    %c0_i32 = arith.constant 0 : i32
    return %arg0, %arg1, %arg2 : i32, i32, i32
  }
}

module attributes {stable_mosaic.version = 11 : i64} {
  func.func @_bmm_bias_act_kernel(%arg0: i32, %arg1: i32, %arg2: i32, %arg3: i32, %arg4: memref<1x16x256xbf16, #tpu.memory_space<vmem>>, %arg5: memref<1x256x128xbf16, #tpu.memory_space<vmem>>, %arg6: memref<1x128xf32, #tpu.memory_space<vmem>>, %arg7: memref<1x16x128xbf16, #tpu.memory_space<vmem>>, %arg8: memref<16x128xf32, #tpu.memory_space<vmem>>) attributes {dimension_semantics = [#tpu.dimension_semantics<parallel>, #tpu.dimension_semantics<parallel>, #tpu.dimension_semantics<parallel>, #tpu.dimension_semantics<arbitrary>], iteration_bounds = array<i64: 4, 1, 1, 1>, scalar_prefetch = 0 : i64, scratch_operands = 1 : i64, tpu.core_type = #tpu.core_type<tc>, window_params = [{transform_indices = @transform_0, window_bounds = array<i64: 1, 16, 256>}, {transform_indices = @transform_1, window_bounds = array<i64: 1, 256, 128>}, {transform_indices = @transform_2, window_bounds = array<i64: 1, 128>}, {transform_indices = @transform_3, window_bounds = array<i64: 1, 16, 128>}]} {
    %c0_i32 = arith.constant 0 : i32
    %0 = arith.cmpi eq, %arg3, %c0_i32 : i32
    %1 = arith.extui %0 : i1 to i32
    %c0_i32_0 = arith.constant 0 : i32
    %2 = arith.cmpi ne, %1, %c0_i32_0 : i32
    scf.if %2 {
      %cst_12 = arith.constant 0.000000e+00 : f32
      %14 = vector.broadcast %cst_12 : f32 to vector<16x128xf32>
      %c0_13 = arith.constant 0 : index
      %c0_14 = arith.constant 0 : index
      %15 = vector.load %arg8[%c0_13, %c0_14] : memref<16x128xf32, #tpu.memory_space<vmem>>, vector<16x128xf32>
      tpu.vector_store %arg8[%c0_13, %c0_14], %14 {strides = array<i32>} : memref<16x128xf32, #tpu.memory_space<vmem>>, vector<16x128xf32>,
    } else {
    }
    %c0 = arith.constant 0 : index
    %c0_1 = arith.constant 0 : index
    %3 = vector.load %arg8[%c0, %c0_1] : memref<16x128xf32, #tpu.memory_space<vmem>>, vector<16x128xf32>
    %c0_2 = arith.constant 0 : index
    %c0_3 = arith.constant 0 : index
    %c0_4 = arith.constant 0 : index
    %4 = vector.load %arg4[%c0_2, %c0_3, %c0_4] : memref<1x16x256xbf16, #tpu.memory_space<vmem>>, vector<1x16x256xbf16>
    %5 = vector.shape_cast %4 : vector<1x16x256xbf16> to vector<16x256xbf16>
    %c0_5 = arith.constant 0 : index
    %c0_6 = arith.constant 0 : index
    %c0_7 = arith.constant 0 : index
    %6 = vector.load %arg5[%c0_5, %c0_6, %c0_7] : memref<1x256x128xbf16, #tpu.memory_space<vmem>>, vector<1x256x128xbf16>
    %7 = vector.shape_cast %6 : vector<1x256x128xbf16> to vector<256x128xbf16>
    %cst = arith.constant dense<0.000000e+00> : vector<16x128xf32>
    %8 = tpu.matmul %5, %7, %cst {dimension_numbers = #tpu.dot_dimension_numbers<[1], [0], [0], [1], [0, 0, 1, 1], [], []>} : vector<16x256xbf16>, vector<256x128xbf16>, vector<16x128xf32> -> vector<16x128xf32>
    %9 = arith.addf %3, %8 : vector<16x128xf32>
    %c0_8 = arith.constant 0 : index
    %c0_9 = arith.constant 0 : index
    %10 = vector.load %arg8[%c0_8, %c0_9] : memref<16x128xf32, #tpu.memory_space<vmem>>, vector<16x128xf32>
    tpu.vector_store %arg8[%c0_8, %c0_9], %9 {strides = array<i32>} : memref<16x128xf32, #tpu.memory_space<vmem>>, vector<16x128xf32>,
    %c0_i32_10 = arith.constant 0 : i32
    %11 = arith.cmpi eq, %arg3, %c0_i32_10 : i32
    %12 = arith.extui %11 : i1 to i32
    %c0_i32_11 = arith.constant 0 : i32
    %13 = arith.cmpi ne, %12, %c0_i32_11 : i32
    scf.if %13 {
      %c0_12 = arith.constant 0 : index
      %c0_13 = arith.constant 0 : index
      %14 = vector.load %arg8[%c0_12, %c0_13] : memref<16x128xf32, #tpu.memory_space<vmem>>, vector<16x128xf32>
      %c0_14 = arith.constant 0 : index
      %c0_15 = arith.constant 0 : index
      %15 = vector.load %arg6[%c0_14, %c0_15] : memref<1x128xf32, #tpu.memory_space<vmem>>, vector<1x128xf32>
      %16 = vector.broadcast %15 : vector<1x128xf32> to vector<16x128xf32>
      %17 = arith.addf %14, %16 : vector<16x128xf32>
      %cst_16 = arith.constant 0.000000e+00 : f32
      %18 = vector.broadcast %cst_16 : f32 to vector<16x128xf32>
      %19 = arith.maximumf %17, %18 : vector<16x128xf32>
      %20 = arith.truncf %19 : vector<16x128xf32> to vector<16x128xbf16>
      %c0_17 = arith.constant 0 : index
      %c0_18 = arith.constant 0 : index
      %c0_19 = arith.constant 0 : index
      %21 = vector.load %arg7[%c0_17, %c0_18, %c0_19] : memref<1x16x128xbf16, #tpu.memory_space<vmem>>, vector<1x16x128xbf16>
      %22 = vector.shape_cast %21 : vector<1x16x128xbf16> to vector<16x128xbf16>
      %23 = vector.shape_cast %20 : vector<16x128xbf16> to vector<1x16x128xbf16>
      tpu.vector_store %arg7[%c0_17, %c0_18, %c0_19], %23 {strides = array<i32>} : memref<1x16x128xbf16, #tpu.memory_space<vmem>>, vector<1x16x128xbf16>,
    } else {
    }
    return
  }
  func.func @transform_0(%arg0: i32, %arg1: i32, %arg2: i32, %arg3: i32) -> (i32, i32, i32) {
    %c0_i32 = arith.constant 0 : i32
    return %arg0, %arg1, %arg3 : i32, i32, i32
  }
  func.func @transform_1(%arg0: i32, %arg1: i32, %arg2: i32, %arg3: i32) -> (i32, i32, i32) {
    %c0_i32 = arith.constant 0 : i32
    return %arg0, %arg3, %arg2 : i32, i32, i32
  }
  func.func @transform_2(%arg0: i32, %arg1: i32, %arg2: i32, %arg3: i32) -> (i32, i32) {
    %c0_i32 = arith.constant 0 : i32
    %c0_i32_0 = arith.constant 0 : i32
    return %c0_i32, %arg2 : i32, i32
  }
  func.func @transform_3(%arg0: i32, %arg1: i32, %arg2: i32, %arg3: i32) -> (i32, i32, i32) {
    %c0_i32 = arith.constant 0 : i32
    return %arg0, %arg1, %arg2 : i32, i32, i32
  }
}

module attributes {stable_mosaic.version = 11 : i64} {
  func.func @_bmm_bias_act_kernel(%arg0: i32, %arg1: i32, %arg2: i32, %arg3: i32, %arg4: memref<1x32x128xbf16, #tpu.memory_space<vmem>>, %arg5: memref<1x128x128xbf16, #tpu.memory_space<vmem>>, %arg6: memref<1x128xf32, #tpu.memory_space<vmem>>, %arg7: memref<1x32x128xbf16, #tpu.memory_space<vmem>>, %arg8: memref<32x128xf32, #tpu.memory_space<vmem>>) attributes {dimension_semantics = [#tpu.dimension_semantics<parallel>, #tpu.dimension_semantics<parallel>, #tpu.dimension_semantics<parallel>, #tpu.dimension_semantics<arbitrary>], iteration_bounds = array<i64: 4, 1, 1, 1>, scalar_prefetch = 0 : i64, scratch_operands = 1 : i64, tpu.core_type = #tpu.core_type<tc>, window_params = [{transform_indices = @transform_0, window_bounds = array<i64: 1, 32, 128>}, {transform_indices = @transform_1, window_bounds = array<i64: 1, 128, 128>}, {transform_indices = @transform_2, window_bounds = array<i64: 1, 128>}, {transform_indices = @transform_3, window_bounds = array<i64: 1, 32, 128>}]} {
    %c0_i32 = arith.constant 0 : i32
    %0 = arith.cmpi eq, %arg3, %c0_i32 : i32
    %1 = arith.extui %0 : i1 to i32
    %c0_i32_0 = arith.constant 0 : i32
    %2 = arith.cmpi ne, %1, %c0_i32_0 : i32
    scf.if %2 {
      %cst_12 = arith.constant 0.000000e+00 : f32
      %14 = vector.broadcast %cst_12 : f32 to vector<32x128xf32>
      %c0_13 = arith.constant 0 : index
      %c0_14 = arith.constant 0 : index
      %15 = vector.load %arg8[%c0_13, %c0_14] : memref<32x128xf32, #tpu.memory_space<vmem>>, vector<32x128xf32>
      tpu.vector_store %arg8[%c0_13, %c0_14], %14 {strides = array<i32>} : memref<32x128xf32, #tpu.memory_space<vmem>>, vector<32x128xf32>,
    } else {
    }
    %c0 = arith.constant 0 : index
    %c0_1 = arith.constant 0 : index
    %3 = vector.load %arg8[%c0, %c0_1] : memref<32x128xf32, #tpu.memory_space<vmem>>, vector<32x128xf32>
    %c0_2 = arith.constant 0 : index
    %c0_3 = arith.constant 0 : index
    %c0_4 = arith.constant 0 : index
    %4 = vector.load %arg4[%c0_2, %c0_3, %c0_4] : memref<1x32x128xbf16, #tpu.memory_space<vmem>>, vector<1x32x128xbf16>
    %5 = vector.shape_cast %4 : vector<1x32x128xbf16> to vector<32x128xbf16>
    %c0_5 = arith.constant 0 : index
    %c0_6 = arith.constant 0 : index
    %c0_7 = arith.constant 0 : index
    %6 = vector.load %arg5[%c0_5, %c0_6, %c0_7] : memref<1x128x128xbf16, #tpu.memory_space<vmem>>, vector<1x128x128xbf16>
    %7 = vector.shape_cast %6 : vector<1x128x128xbf16> to vector<128x128xbf16>
    %cst = arith.constant dense<0.000000e+00> : vector<32x128xf32>
    %8 = tpu.matmul %5, %7, %cst {dimension_numbers = #tpu.dot_dimension_numbers<[1], [0], [0], [1], [0, 0, 1, 1], [], []>} : vector<32x128xbf16>, vector<128x128xbf16>, vector<32x128xf32> -> vector<32x128xf32>
    %9 = arith.addf %3, %8 : vector<32x128xf32>
    %c0_8 = arith.constant 0 : index
    %c0_9 = arith.constant 0 : index
    %10 = vector.load %arg8[%c0_8, %c0_9] : memref<32x128xf32, #tpu.memory_space<vmem>>, vector<32x128xf32>
    tpu.vector_store %arg8[%c0_8, %c0_9], %9 {strides = array<i32>} : memref<32x128xf32, #tpu.memory_space<vmem>>, vector<32x128xf32>,
    %c0_i32_10 = arith.constant 0 : i32
    %11 = arith.cmpi eq, %arg3, %c0_i32_10 : i32
    %12 = arith.extui %11 : i1 to i32
    %c0_i32_11 = arith.constant 0 : i32
    %13 = arith.cmpi ne, %12, %c0_i32_11 : i32
    scf.if %13 {
      %c0_12 = arith.constant 0 : index
      %c0_13 = arith.constant 0 : index
      %14 = vector.load %arg8[%c0_12, %c0_13] : memref<32x128xf32, #tpu.memory_space<vmem>>, vector<32x128xf32>
      %c0_14 = arith.constant 0 : index
      %c0_15 = arith.constant 0 : index
      %15 = vector.load %arg6[%c0_14, %c0_15] : memref<1x128xf32, #tpu.memory_space<vmem>>, vector<1x128xf32>
      %16 = vector.broadcast %15 : vector<1x128xf32> to vector<32x128xf32>
      %17 = arith.addf %14, %16 : vector<32x128xf32>
      %cst_16 = arith.constant 0.000000e+00 : f32
      %18 = vector.broadcast %cst_16 : f32 to vector<32x128xf32>
      %19 = arith.maximumf %17, %18 : vector<32x128xf32>
      %20 = arith.truncf %19 : vector<32x128xf32> to vector<32x128xbf16>
      %c0_17 = arith.constant 0 : index
      %c0_18 = arith.constant 0 : index
      %c0_19 = arith.constant 0 : index
      %21 = vector.load %arg7[%c0_17, %c0_18, %c0_19] : memref<1x32x128xbf16, #tpu.memory_space<vmem>>, vector<1x32x128xbf16>
      %22 = vector.shape_cast %21 : vector<1x32x128xbf16> to vector<32x128xbf16>
      %23 = vector.shape_cast %20 : vector<32x128xbf16> to vector<1x32x128xbf16>
      tpu.vector_store %arg7[%c0_17, %c0_18, %c0_19], %23 {strides = array<i32>} : memref<1x32x128xbf16, #tpu.memory_space<vmem>>, vector<1x32x128xbf16>,
    } else {
    }
    return
  }
  func.func @transform_0(%arg0: i32, %arg1: i32, %arg2: i32, %arg3: i32) -> (i32, i32, i32) {
    %c0_i32 = arith.constant 0 : i32
    return %arg0, %arg1, %arg3 : i32, i32, i32
  }
  func.func @transform_1(%arg0: i32, %arg1: i32, %arg2: i32, %arg3: i32) -> (i32, i32, i32) {
    %c0_i32 = arith.constant 0 : i32
    return %arg0, %arg3, %arg2 : i32, i32, i32
  }
  func.func @transform_2(%arg0: i32, %arg1: i32, %arg2: i32, %arg3: i32) -> (i32, i32) {
    %c0_i32 = arith.constant 0 : i32
    %c0_i32_0 = arith.constant 0 : i32
    return %c0_i32, %arg2 : i32, i32
  }
  func.func @transform_3(%arg0: i32, %arg1: i32, %arg2: i32, %arg3: i32) -> (i32, i32, i32) {
    %c0_i32 = arith.constant 0 : i32
    return %arg0, %arg1, %arg2 : i32, i32, i32
  }
}

module attributes {stable_mosaic.version = 11 : i64} {
  func.func @_bmm_bias_act_kernel(%arg0: i32, %arg1: i32, %arg2: i32, %arg3: i32, %arg4: memref<1x128x128xbf16, #tpu.memory_space<vmem>>, %arg5: memref<1x128x128xbf16, #tpu.memory_space<vmem>>, %arg6: memref<1x128xf32, #tpu.memory_space<vmem>>, %arg7: memref<1x128x128xbf16, #tpu.memory_space<vmem>>, %arg8: memref<128x128xf32, #tpu.memory_space<vmem>>) attributes {dimension_semantics = [#tpu.dimension_semantics<parallel>, #tpu.dimension_semantics<parallel>, #tpu.dimension_semantics<parallel>, #tpu.dimension_semantics<arbitrary>], iteration_bounds = array<i64: 4, 1, 1, 1>, scalar_prefetch = 0 : i64, scratch_operands = 1 : i64, tpu.core_type = #tpu.core_type<tc>, window_params = [{transform_indices = @transform_0, window_bounds = array<i64: 1, 128, 128>}, {transform_indices = @transform_1, window_bounds = array<i64: 1, 128, 128>}, {transform_indices = @transform_2, window_bounds = array<i64: 1, 128>}, {transform_indices = @transform_3, window_bounds = array<i64: 1, 128, 128>}]} {
    %c0_i32 = arith.constant 0 : i32
    %0 = arith.cmpi eq, %arg3, %c0_i32 : i32
    %1 = arith.extui %0 : i1 to i32
    %c0_i32_0 = arith.constant 0 : i32
    %2 = arith.cmpi ne, %1, %c0_i32_0 : i32
    scf.if %2 {
      %cst_12 = arith.constant 0.000000e+00 : f32
      %14 = vector.broadcast %cst_12 : f32 to vector<128x128xf32>
      %c0_13 = arith.constant 0 : index
      %c0_14 = arith.constant 0 : index
      %15 = vector.load %arg8[%c0_13, %c0_14] : memref<128x128xf32, #tpu.memory_space<vmem>>, vector<128x128xf32>
      tpu.vector_store %arg8[%c0_13, %c0_14], %14 {strides = array<i32>} : memref<128x128xf32, #tpu.memory_space<vmem>>, vector<128x128xf32>,
    } else {
    }
    %c0 = arith.constant 0 : index
    %c0_1 = arith.constant 0 : index
    %3 = vector.load %arg8[%c0, %c0_1] : memref<128x128xf32, #tpu.memory_space<vmem>>, vector<128x128xf32>
    %c0_2 = arith.constant 0 : index
    %c0_3 = arith.constant 0 : index
    %c0_4 = arith.constant 0 : index
    %4 = vector.load %arg4[%c0_2, %c0_3, %c0_4] : memref<1x128x128xbf16, #tpu.memory_space<vmem>>, vector<1x128x128xbf16>
    %5 = vector.shape_cast %4 : vector<1x128x128xbf16> to vector<128x128xbf16>
    %c0_5 = arith.constant 0 : index
    %c0_6 = arith.constant 0 : index
    %c0_7 = arith.constant 0 : index
    %6 = vector.load %arg5[%c0_5, %c0_6, %c0_7] : memref<1x128x128xbf16, #tpu.memory_space<vmem>>, vector<1x128x128xbf16>
    %7 = vector.shape_cast %6 : vector<1x128x128xbf16> to vector<128x128xbf16>
    %cst = arith.constant dense<0.000000e+00> : vector<128x128xf32>
    %8 = tpu.matmul %5, %7, %cst {dimension_numbers = #tpu.dot_dimension_numbers<[1], [0], [0], [1], [0, 0, 1, 1], [], []>} : vector<128x128xbf16>, vector<128x128xbf16>, vector<128x128xf32> -> vector<128x128xf32>
    %9 = arith.addf %3, %8 : vector<128x128xf32>
    %c0_8 = arith.constant 0 : index
    %c0_9 = arith.constant 0 : index
    %10 = vector.load %arg8[%c0_8, %c0_9] : memref<128x128xf32, #tpu.memory_space<vmem>>, vector<128x128xf32>
    tpu.vector_store %arg8[%c0_8, %c0_9], %9 {strides = array<i32>} : memref<128x128xf32, #tpu.memory_space<vmem>>, vector<128x128xf32>,
    %c0_i32_10 = arith.constant 0 : i32
    %11 = arith.cmpi eq, %arg3, %c0_i32_10 : i32
    %12 = arith.extui %11 : i1 to i32
    %c0_i32_11 = arith.constant 0 : i32
    %13 = arith.cmpi ne, %12, %c0_i32_11 : i32
    scf.if %13 {
      %c0_12 = arith.constant 0 : index
      %c0_13 = arith.constant 0 : index
      %14 = vector.load %arg8[%c0_12, %c0_13] : memref<128x128xf32, #tpu.memory_space<vmem>>, vector<128x128xf32>
      %c0_14 = arith.constant 0 : index
      %c0_15 = arith.constant 0 : index
      %15 = vector.load %arg6[%c0_14, %c0_15] : memref<1x128xf32, #tpu.memory_space<vmem>>, vector<1x128xf32>
      %16 = vector.broadcast %15 : vector<1x128xf32> to vector<128x128xf32>
      %17 = arith.addf %14, %16 : vector<128x128xf32>
      %cst_16 = arith.constant 0.000000e+00 : f32
      %18 = vector.broadcast %cst_16 : f32 to vector<128x128xf32>
      %19 = arith.maximumf %17, %18 : vector<128x128xf32>
      %20 = arith.truncf %19 : vector<128x128xf32> to vector<128x128xbf16>
      %c0_17 = arith.constant 0 : index
      %c0_18 = arith.constant 0 : index
      %c0_19 = arith.constant 0 : index
      %21 = vector.load %arg7[%c0_17, %c0_18, %c0_19] : memref<1x128x128xbf16, #tpu.memory_space<vmem>>, vector<1x128x128xbf16>
      %22 = vector.shape_cast %21 : vector<1x128x128xbf16> to vector<128x128xbf16>
      %23 = vector.shape_cast %20 : vector<128x128xbf16> to vector<1x128x128xbf16>
      tpu.vector_store %arg7[%c0_17, %c0_18, %c0_19], %23 {strides = array<i32>} : memref<1x128x128xbf16, #tpu.memory_space<vmem>>, vector<1x128x128xbf16>,
    } else {
    }
    return
  }
  func.func @transform_0(%arg0: i32, %arg1: i32, %arg2: i32, %arg3: i32) -> (i32, i32, i32) {
    %c0_i32 = arith.constant 0 : i32
    return %arg0, %arg1, %arg3 : i32, i32, i32
  }
  func.func @transform_1(%arg0: i32, %arg1: i32, %arg2: i32, %arg3: i32) -> (i32, i32, i32) {
    %c0_i32 = arith.constant 0 : i32
    return %arg0, %arg3, %arg2 : i32, i32, i32
  }
  func.func @transform_2(%arg0: i32, %arg1: i32, %arg2: i32, %arg3: i32) -> (i32, i32) {
    %c0_i32 = arith.constant 0 : i32
    %c0_i32_0 = arith.constant 0 : i32
    return %c0_i32, %arg2 : i32, i32
  }
  func.func @transform_3(%arg0: i32, %arg1: i32, %arg2: i32, %arg3: i32) -> (i32, i32, i32) {
    %c0_i32 = arith.constant 0 : i32
    return %arg0, %arg1, %arg2 : i32, i32, i32
  }
}

module attributes {stable_mosaic.version = 11 : i64} {
  func.func @_bmm_bias_act_kernel(%arg0: i32, %arg1: i32, %arg2: i32, %arg3: i32, %arg4: memref<1x512x128xbf16, #tpu.memory_space<vmem>>, %arg5: memref<1x128x128xbf16, #tpu.memory_space<vmem>>, %arg6: memref<1x128xf32, #tpu.memory_space<vmem>>, %arg7: memref<1x512x128xf32, #tpu.memory_space<vmem>>, %arg8: memref<512x128xf32, #tpu.memory_space<vmem>>) attributes {dimension_semantics = [#tpu.dimension_semantics<parallel>, #tpu.dimension_semantics<parallel>, #tpu.dimension_semantics<parallel>, #tpu.dimension_semantics<arbitrary>], iteration_bounds = array<i64: 4, 1, 1, 1>, scalar_prefetch = 0 : i64, scratch_operands = 1 : i64, tpu.core_type = #tpu.core_type<tc>, window_params = [{transform_indices = @transform_0, window_bounds = array<i64: 1, 512, 128>}, {transform_indices = @transform_1, window_bounds = array<i64: 1, 128, 128>}, {transform_indices = @transform_2, window_bounds = array<i64: 1, 128>}, {transform_indices = @transform_3, window_bounds = array<i64: 1, 512, 128>}]} {
    %c0_i32 = arith.constant 0 : i32
    %0 = arith.cmpi eq, %arg3, %c0_i32 : i32
    %1 = arith.extui %0 : i1 to i32
    %c0_i32_0 = arith.constant 0 : i32
    %2 = arith.cmpi ne, %1, %c0_i32_0 : i32
    scf.if %2 {
      %cst_12 = arith.constant 0.000000e+00 : f32
      %14 = vector.broadcast %cst_12 : f32 to vector<512x128xf32>
      %c0_13 = arith.constant 0 : index
      %c0_14 = arith.constant 0 : index
      %15 = vector.load %arg8[%c0_13, %c0_14] : memref<512x128xf32, #tpu.memory_space<vmem>>, vector<512x128xf32>
      tpu.vector_store %arg8[%c0_13, %c0_14], %14 {strides = array<i32>} : memref<512x128xf32, #tpu.memory_space<vmem>>, vector<512x128xf32>,
    } else {
    }
    %c0 = arith.constant 0 : index
    %c0_1 = arith.constant 0 : index
    %3 = vector.load %arg8[%c0, %c0_1] : memref<512x128xf32, #tpu.memory_space<vmem>>, vector<512x128xf32>
    %c0_2 = arith.constant 0 : index
    %c0_3 = arith.constant 0 : index
    %c0_4 = arith.constant 0 : index
    %4 = vector.load %arg4[%c0_2, %c0_3, %c0_4] : memref<1x512x128xbf16, #tpu.memory_space<vmem>>, vector<1x512x128xbf16>
    %5 = vector.shape_cast %4 : vector<1x512x128xbf16> to vector<512x128xbf16>
    %c0_5 = arith.constant 0 : index
    %c0_6 = arith.constant 0 : index
    %c0_7 = arith.constant 0 : index
    %6 = vector.load %arg5[%c0_5, %c0_6, %c0_7] : memref<1x128x128xbf16, #tpu.memory_space<vmem>>, vector<1x128x128xbf16>
    %7 = vector.shape_cast %6 : vector<1x128x128xbf16> to vector<128x128xbf16>
    %cst = arith.constant dense<0.000000e+00> : vector<512x128xf32>
    %8 = tpu.matmul %5, %7, %cst {dimension_numbers = #tpu.dot_dimension_numbers<[1], [0], [0], [1], [0, 0, 1, 1], [], []>} : vector<512x128xbf16>, vector<128x128xbf16>, vector<512x128xf32> -> vector<512x128xf32>
    %9 = arith.addf %3, %8 : vector<512x128xf32>
    %c0_8 = arith.constant 0 : index
    %c0_9 = arith.constant 0 : index
    %10 = vector.load %arg8[%c0_8, %c0_9] : memref<512x128xf32, #tpu.memory_space<vmem>>, vector<512x128xf32>
    tpu.vector_store %arg8[%c0_8, %c0_9], %9 {strides = array<i32>} : memref<512x128xf32, #tpu.memory_space<vmem>>, vector<512x128xf32>,
    %c0_i32_10 = arith.constant 0 : i32
    %11 = arith.cmpi eq, %arg3, %c0_i32_10 : i32
    %12 = arith.extui %11 : i1 to i32
    %c0_i32_11 = arith.constant 0 : i32
    %13 = arith.cmpi ne, %12, %c0_i32_11 : i32
    scf.if %13 {
      %c0_12 = arith.constant 0 : index
      %c0_13 = arith.constant 0 : index
      %14 = vector.load %arg8[%c0_12, %c0_13] : memref<512x128xf32, #tpu.memory_space<vmem>>, vector<512x128xf32>
      %c0_14 = arith.constant 0 : index
      %c0_15 = arith.constant 0 : index
      %15 = vector.load %arg6[%c0_14, %c0_15] : memref<1x128xf32, #tpu.memory_space<vmem>>, vector<1x128xf32>
      %16 = vector.broadcast %15 : vector<1x128xf32> to vector<512x128xf32>
      %17 = arith.addf %14, %16 : vector<512x128xf32>
      %18 = math.tanh %17 : vector<512x128xf32>
      %c0_16 = arith.constant 0 : index
      %c0_17 = arith.constant 0 : index
      %c0_18 = arith.constant 0 : index
      %19 = vector.load %arg7[%c0_16, %c0_17, %c0_18] : memref<1x512x128xf32, #tpu.memory_space<vmem>>, vector<1x512x128xf32>
      %20 = vector.shape_cast %19 : vector<1x512x128xf32> to vector<512x128xf32>
      %21 = vector.shape_cast %18 : vector<512x128xf32> to vector<1x512x128xf32>
      tpu.vector_store %arg7[%c0_16, %c0_17, %c0_18], %21 {strides = array<i32>} : memref<1x512x128xf32, #tpu.memory_space<vmem>>, vector<1x512x128xf32>,
    } else {
    }
    return
  }
  func.func @transform_0(%arg0: i32, %arg1: i32, %arg2: i32, %arg3: i32) -> (i32, i32, i32) {
    %c0_i32 = arith.constant 0 : i32
    return %arg0, %arg1, %arg3 : i32, i32, i32
  }
  func.func @transform_1(%arg0: i32, %arg1: i32, %arg2: i32, %arg3: i32) -> (i32, i32, i32) {
    %c0_i32 = arith.constant 0 : i32
    return %arg0, %arg3, %arg2 : i32, i32, i32
  }
  func.func @transform_2(%arg0: i32, %arg1: i32, %arg2: i32, %arg3: i32) -> (i32, i32) {
    %c0_i32 = arith.constant 0 : i32
    %c0_i32_0 = arith.constant 0 : i32
    return %c0_i32, %arg2 : i32, i32
  }
  func.func @transform_3(%arg0: i32, %arg1: i32, %arg2: i32, %arg3: i32) -> (i32, i32, i32) {
    %c0_i32 = arith.constant 0 : i32
    return %arg0, %arg1, %arg2 : i32, i32, i32
  }
}

</mosaic_0001>

<llo_original>
// kernel: g_unet_add_middle_forward.10
$region0: #{g_unet_add_middle_forward.10}
  #allocation0 [shape = 'u32[]', space=smem, size = 0x4, offset = 0x4, fixed_abs, tag = 'smem constant byte address 0x4 - core index']
  #allocation1 [shape = 'u32[144,128]{1,0:T(1,128)}', space=vmem, size = 0x12000, scoped, tag = 'internal scratch']
  #allocation2 [shape = 'f32[512,128]{1,0:T(8,128)}', space=vmem, size = 0x40000, scoped, tag = 'scratch operand']
  %s0 = inlined_call_operand.vmem [shape: bf16[1,512,128], index: 0, kind: input, shape index: {}]
  %s1 = inlined_call_operand.vmem [shape: bf16[1,128,128], index: 1, kind: input, shape index: {}]
  %s2 = inlined_call_operand.vmem [shape: f32[1,128], index: 2, kind: input, shape index: {}]
  %s3 = inlined_call_operand.vmem [shape: bf16[1,512,128], index: 3, kind: output, shape index: {}]
  %s4 = sld [smem:[#allocation0]]
  $region30: #{g_unet_add_middle_forward.10} parent=0
    _
  %s6 = ssub.s32 1, %s4
  %s7 = scalar_select 0, %s6, %s4
  // Predicated region
  $region2: #{g_unet_add_middle_forward.10} parent=0 // pred_check
    _
  $region3: #{g_unet_add_middle_forward.10} parent=0 // pred_check_branch
    %9 = sbr.rel (0) target = $region5
  $region4: #{g_unet_add_middle_forward.10} parent=0 // pred_region
    _
  $region5: #{g_unet_add_middle_forward.10} parent=0 // pred_fallthru
    _
  // Predicated region
  $region6: #{g_unet_add_middle_forward.10} parent=0 // pred_check
    _
  $region7: #{g_unet_add_middle_forward.10} parent=0 // pred_check_branch
    %11 = sbr.rel (0) target = $region9
  $region8: #{g_unet_add_middle_forward.10} parent=0 // pred_region
    _
  $region9: #{g_unet_add_middle_forward.10} parent=0 // pred_fallthru
    _
  // Predicated region
  $region10: #{g_unet_add_middle_forward.10} parent=0 // pred_check
    _
  $region11: #{g_unet_add_middle_forward.10} parent=0 // pred_check_branch
    %13 = sbr.rel (0) target = $region13
  $region12: #{g_unet_add_middle_forward.10} parent=0 // pred_region
    _
  $region13: #{g_unet_add_middle_forward.10} parent=0 // pred_fallthru
    _
  %p15 = scmp.eq.s32.totalorder 0, 0
  // Predicated region
  $region14: #{g_unet_add_middle_forward.10} parent=0 // pred_check
    %p16 = pneg %p15
  $region15: #{g_unet_add_middle_forward.10} parent=0 // pred_check_branch
    %18 = sbr.rel (%p16) target = $region17
  $region16: #{g_unet_add_middle_forward.10} parent=0 // pred_region
    %19 = vst [vmem:[#allocation2] sm:$0xff] 0.0
    %20 = vst [vmem:[#allocation2 + $0x8] sm:$0xff] 0.0
    %21 = vst [vmem:[#allocation2 + $0x10] sm:$0xff] 0.0
    %22 = vst [vmem:[#allocation2 + $0x18] sm:$0xff] 0.0
    %23 = vst [vmem:[#allocation2 + $0x20] sm:$0xff] 0.0
    %24 = vst [vmem:[#allocation2 + $0x28] sm:$0xff] 0.0
    %25 = vst [vmem:[#allocation2 + $0x30] sm:$0xff] 0.0
    %26 = vst [vmem:[#allocation2 + $0x38] sm:$0xff] 0.0
    %27 = vst [vmem:[#allocation2 + $0x40] sm:$0xff] 0.0
    %28 = vst [vmem:[#allocation2 + $0x48] sm:$0xff] 0.0
    %29 = vst [vmem:[#allocation2 + $0x50] sm:$0xff] 0.0
    %30 = vst [vmem:[#allocation2 + $0x58] sm:$0xff] 0.0
    %31 = vst [vmem:[#allocation2 + $0x60] sm:$0xff] 0.0
    %32 = vst [vmem:[#allocation2 + $0x68] sm:$0xff] 0.0
    %33 = vst [vmem:[#allocation2 + $0x70] sm:$0xff] 0.0
    %34 = vst [vmem:[#allocation2 + $0x78] sm:$0xff] 0.0
    %35 = vst [vmem:[#allocation2 + $0x80] sm:$0xff] 0.0
    %36 = vst [vmem:[#allocation2 + $0x88] sm:$0xff] 0.0
    %37 = vst [vmem:[#allocation2 + $0x90] sm:$0xff] 0.0
    %38 = vst [vmem:[#allocation2 + $0x98] sm:$0xff] 0.0
    %39 = vst [vmem:[#allocation2 + $0xa0] sm:$0xff] 0.0
    %40 = vst [vmem:[#allocation2 + $0xa8] sm:$0xff] 0.0
    %41 = vst [vmem:[#allocation2 + $0xb0] sm:$0xff] 0.0
    %42 = vst [vmem:[#allocation2 + $0xb8] sm:$0xff] 0.0
    %43 = vst [vmem:[#allocation2 + $0xc0] sm:$0xff] 0.0
    %44 = vst [vmem:[#allocation2 + $0xc8] sm:$0xff] 0.0
    %45 = vst [vmem:[#allocation2 + $0xd0] sm:$0xff] 0.0
    %46 = vst [vmem:[#allocation2 + $0xd8] sm:$0xff] 0.0
    %47 = vst [vmem:[#allocation2 + $0xe0] sm:$0xff] 0.0
    %48 = vst [vmem:[#allocation2 + $0xe8] sm:$0xff] 0.0
    %49 = vst [vmem:[#allocation2 + $0xf0] sm:$0xff] 0.0
    %50 = vst [vmem:[#allocation2 + $0xf8] sm:$0xff] 0.0
    %51 = vst [vmem:[#allocation2 + $0x100] sm:$0xff] 0.0
    %52 = vst [vmem:[#allocation2 + $0x108] sm:$0xff] 0.0
    %53 = vst [vmem:[#allocation2 + $0x110] sm:$0xff] 0.0
    %54 = vst [vmem:[#allocation2 + $0x118] sm:$0xff] 0.0
    %55 = vst [vmem:[#allocation2 + $0x120] sm:$0xff] 0.0
    %56 = vst [vmem:[#allocation2 + $0x128] sm:$0xff] 0.0
    %57 = vst [vmem:[#allocation2 + $0x130] sm:$0xff] 0.0
    %58 = vst [vmem:[#allocation2 + $0x138] sm:$0xff] 0.0
    %59 = vst [vmem:[#allocation2 + $0x140] sm:$0xff] 0.0
    %60 = vst [vmem:[#allocation2 + $0x148] sm:$0xff] 0.0
    %61 = vst [vmem:[#allocation2 + $0x150] sm:$0xff] 0.0
    %62 = vst [vmem:[#allocation2 + $0x158] sm:$0xff] 0.0
    %63 = vst [vmem:[#allocation2 + $0x160] sm:$0xff] 0.0
    %64 = vst [vmem:[#allocation2 + $0x168] sm:$0xff] 0.0
    %65 = vst [vmem:[#allocation2 + $0x170] sm:$0xff] 0.0
    %66 = vst [vmem:[#allocation2 + $0x178] sm:$0xff] 0.0
    %67 = vst [vmem:[#allocation2 + $0x180] sm:$0xff] 0.0
    %68 = vst [vmem:[#allocation2 + $0x188] sm:$0xff] 0.0
    %69 = vst [vmem:[#allocation2 + $0x190] sm:$0xff] 0.0
    %70 = vst [vmem:[#allocation2 + $0x198] sm:$0xff] 0.0
    %71 = vst [vmem:[#allocation2 + $0x1a0] sm:$0xff] 0.0
    %72 = vst [vmem:[#allocation2 + $0x1a8] sm:$0xff] 0.0
    %73 = vst [vmem:[#allocation2 + $0x1b0] sm:$0xff] 0.0
    %74 = vst [vmem:[#allocation2 + $0x1b8] sm:$0xff] 0.0
    %75 = vst [vmem:[#allocation2 + $0x1c0] sm:$0xff] 0.0
    %76 = vst [vmem:[#allocation2 + $0x1c8] sm:$0xff] 0.0
    %77 = vst [vmem:[#allocation2 + $0x1d0] sm:$0xff] 0.0
    %78 = vst [vmem:[#allocation2 + $0x1d8] sm:$0xff] 0.0
    %79 = vst [vmem:[#allocation2 + $0x1e0] sm:$0xff] 0.0
    %80 = vst [vmem:[#allocation2 + $0x1e8] sm:$0xff] 0.0
    %81 = vst [vmem:[#allocation2 + $0x1f0] sm:$0xff] 0.0
    %82 = vst [vmem:[#allocation2 + $0x1f8] sm:$0xff] 0.0
  $region17: #{g_unet_add_middle_forward.10} parent=0 // pred_fallthru
    _
  %v83 = vld [vmem:[#allocation2] sm:$0xff]
  %v84 = vld [vmem:[#allocation2 + $0x8] sm:$0xff]
  %v85 = vld [vmem:[#allocation2 + $0x10] sm:$0xff]
  %v86 = vld [vmem:[#allocation2 + $0x18] sm:$0xff]
  %v87 = vld [vmem:[#allocation2 + $0x20] sm:$0xff]
  %v88 = vld [vmem:[#allocation2 + $0x28] sm:$0xff]
  %v89 = vld [vmem:[#allocation2 + $0x30] sm:$0xff]
  %v90 = vld [vmem:[#allocation2 + $0x38] sm:$0xff]
  %v91 = vld [vmem:[#allocation2 + $0x40] sm:$0xff]
  %v92 = vld [vmem:[#allocation2 + $0x48] sm:$0xff]
  %v93 = vld [vmem:[#allocation2 + $0x50] sm:$0xff]
  %v94 = vld [vmem:[#allocation2 + $0x58] sm:$0xff]
  %v95 = vld [vmem:[#allocation2 + $0x60] sm:$0xff]
  %v96 = vld [vmem:[#allocation2 + $0x68] sm:$0xff]
  %v97 = vld [vmem:[#allocation2 + $0x70] sm:$0xff]
  %v98 = vld [vmem:[#allocation2 + $0x78] sm:$0xff]
  %v99 = vld [vmem:[#allocation2 + $0x80] sm:$0xff]
  %v100 = vld [vmem:[#allocation2 + $0x88] sm:$0xff]
  %v101 = vld [vmem:[#allocation2 + $0x90] sm:$0xff]
  %v102 = vld [vmem:[#allocation2 + $0x98] sm:$0xff]
  %v103 = vld [vmem:[#allocation2 + $0xa0] sm:$0xff]
  %v104 = vld [vmem:[#allocation2 + $0xa8] sm:$0xff]
  %v105 = vld [vmem:[#allocation2 + $0xb0] sm:$0xff]
  %v106 = vld [vmem:[#allocation2 + $0xb8] sm:$0xff]
  %v107 = vld [vmem:[#allocation2 + $0xc0] sm:$0xff]
  %v108 = vld [vmem:[#allocation2 + $0xc8] sm:$0xff]
  %v109 = vld [vmem:[#allocation2 + $0xd0] sm:$0xff]
  %v110 = vld [vmem:[#allocation2 + $0xd8] sm:$0xff]
  %v111 = vld [vmem:[#allocation2 + $0xe0] sm:$0xff]
  %v112 = vld [vmem:[#allocation2 + $0xe8] sm:$0xff]
  %v113 = vld [vmem:[#allocation2 + $0xf0] sm:$0xff]
  %v114 = vld [vmem:[#allocation2 + $0xf8] sm:$0xff]
  %v115 = vld [vmem:[#allocation2 + $0x100] sm:$0xff]
  %v116 = vld [vmem:[#allocation2 + $0x108] sm:$0xff]
  %v117 = vld [vmem:[#allocation2 + $0x110] sm:$0xff]
  %v118 = vld [vmem:[#allocation2 + $0x118] sm:$0xff]
  %v119 = vld [vmem:[#allocation2 + $0x120] sm:$0xff]
  %v120 = vld [vmem:[#allocation2 + $0x128] sm:$0xff]
  %v121 = vld [vmem:[#allocation2 + $0x130] sm:$0xff]
  %v122 = vld [vmem:[#allocation2 + $0x138] sm:$0xff]
  %v123 = vld [vmem:[#allocation2 + $0x140] sm:$0xff]
  %v124 = vld [vmem:[#allocation2 + $0x148] sm:$0xff]
  %v125 = vld [vmem:[#allocation2 + $0x150] sm:$0xff]
  %v126 = vld [vmem:[#allocation2 + $0x158] sm:$0xff]
  %v127 = vld [vmem:[#allocation2 + $0x160] sm:$0xff]
  %v128 = vld [vmem:[#allocation2 + $0x168] sm:$0xff]
  %v129 = vld [vmem:[#allocation2 + $0x170] sm:$0xff]
  %v130 = vld [vmem:[#allocation2 + $0x178] sm:$0xff]
  %v131 = vld [vmem:[#allocation2 + $0x180] sm:$0xff]
  %v132 = vld [vmem:[#allocation2 + $0x188] sm:$0xff]
  %v133 = vld [vmem:[#allocation2 + $0x190] sm:$0xff]
  %v134 = vld [vmem:[#allocation2 + $0x198] sm:$0xff]
  %v135 = vld [vmem:[#allocation2 + $0x1a0] sm:$0xff]
  %v136 = vld [vmem:[#allocation2 + $0x1a8] sm:$0xff]
  %v137 = vld [vmem:[#allocation2 + $0x1b0] sm:$0xff]
  %v138 = vld [vmem:[#allocation2 + $0x1b8] sm:$0xff]
  %v139 = vld [vmem:[#allocation2 + $0x1c0] sm:$0xff]
  %v140 = vld [vmem:[#allocation2 + $0x1c8] sm:$0xff]
  %v141 = vld [vmem:[#allocation2 + $0x1d0] sm:$0xff]
  %v142 = vld [vmem:[#allocation2 + $0x1d8] sm:$0xff]
  %v143 = vld [vmem:[#allocation2 + $0x1e0] sm:$0xff]
  %v144 = vld [vmem:[#allocation2 + $0x1e8] sm:$0xff]
  %v145 = vld [vmem:[#allocation2 + $0x1f0] sm:$0xff]
  %v146 = vld [vmem:[#allocation2 + $0x1f8] sm:$0xff]
  %v147 = vld [vmem:[%s0] sm:$0xf]
  %v148 = vld [vmem:[%s0 + $0x4] sm:$0xf]
  %v149 = vld [vmem:[%s0 + $0x8] sm:$0xf]
  %v150 = vld [vmem:[%s0 + $0xc] sm:$0xf]
  %v151 = vld [vmem:[%s0 + $0x10] sm:$0xf]
  %v152 = vld [vmem:[%s0 + $0x14] sm:$0xf]
  %v153 = vld [vmem:[%s0 + $0x18] sm:$0xf]
  %v154 = vld [vmem:[%s0 + $0x1c] sm:$0xf]
  %v155 = vld [vmem:[%s0 + $0x20] sm:$0xf]
  %v156 = vld [vmem:[%s0 + $0x24] sm:$0xf]
  %v157 = vld [vmem:[%s0 + $0x28] sm:$0xf]
  %v158 = vld [vmem:[%s0 + $0x2c] sm:$0xf]
  %v159 = vld [vmem:[%s0 + $0x30] sm:$0xf]
  %v160 = vld [vmem:[%s0 + $0x34] sm:$0xf]
  %v161 = vld [vmem:[%s0 + $0x38] sm:$0xf]
  %v162 = vld [vmem:[%s0 + $0x3c] sm:$0xf]
  %v163 = vld [vmem:[%s0 + $0x40] sm:$0xf]
  %v164 = vld [vmem:[%s0 + $0x44] sm:$0xf]
  %v165 = vld [vmem:[%s0 + $0x48] sm:$0xf]
  %v166 = vld [vmem:[%s0 + $0x4c] sm:$0xf]
  %v167 = vld [vmem:[%s0 + $0x50] sm:$0xf]
  %v168 = vld [vmem:[%s0 + $0x54] sm:$0xf]
  %v169 = vld [vmem:[%s0 + $0x58] sm:$0xf]
  %v170 = vld [vmem:[%s0 + $0x5c] sm:$0xf]
  %v171 = vld [vmem:[%s0 + $0x60] sm:$0xf]
  %v172 = vld [vmem:[%s0 + $0x64] sm:$0xf]
  %v173 = vld [vmem:[%s0 + $0x68] sm:$0xf]
  %v174 = vld [vmem:[%s0 + $0x6c] sm:$0xf]
  %v175 = vld [vmem:[%s0 + $0x70] sm:$0xf]
  %v176 = vld [vmem:[%s0 + $0x74] sm:$0xf]
  %v177 = vld [vmem:[%s0 + $0x78] sm:$0xf]
  %v178 = vld [vmem:[%s0 + $0x7c] sm:$0xf]
  %v179 = vld [vmem:[%s0 + $0x80] sm:$0xf]
  %v180 = vld [vmem:[%s0 + $0x84] sm:$0xf]
  %v181 = vld [vmem:[%s0 + $0x88] sm:$0xf]
  %v182 = vld [vmem:[%s0 + $0x8c] sm:$0xf]
  %v183 = vld [vmem:[%s0 + $0x90] sm:$0xf]
  %v184 = vld [vmem:[%s0 + $0x94] sm:$0xf]
  %v185 = vld [vmem:[%s0 + $0x98] sm:$0xf]
  %v186 = vld [vmem:[%s0 + $0x9c] sm:$0xf]
  %v187 = vld [vmem:[%s0 + $0xa0] sm:$0xf]
  %v188 = vld [vmem:[%s0 + $0xa4] sm:$0xf]
  %v189 = vld [vmem:[%s0 + $0xa8] sm:$0xf]
  %v190 = vld [vmem:[%s0 + $0xac] sm:$0xf]
  %v191 = vld [vmem:[%s0 + $0xb0] sm:$0xf]
  %v192 = vld [vmem:[%s0 + $0xb4] sm:$0xf]
  %v193 = vld [vmem:[%s0 + $0xb8] sm:$0xf]
  %v194 = vld [vmem:[%s0 + $0xbc] sm:$0xf]
  %v195 = vld [vmem:[%s0 + $0xc0] sm:$0xf]
  %v196 = vld [vmem:[%s0 + $0xc4] sm:$0xf]
  %v197 = vld [vmem:[%s0 + $0xc8] sm:$0xf]
  %v198 = vld [vmem:[%s0 + $0xcc] sm:$0xf]
  %v199 = vld [vmem:[%s0 + $0xd0] sm:$0xf]
  %v200 = vld [vmem:[%s0 + $0xd4] sm:$0xf]
  %v201 = vld [vmem:[%s0 + $0xd8] sm:$0xf]
  %v202 = vld [vmem:[%s0 + $0xdc] sm:$0xf]
  %v203 = vld [vmem:[%s0 + $0xe0] sm:$0xf]
  %v204 = vld [vmem:[%s0 + $0xe4] sm:$0xf]
  %v205 = vld [vmem:[%s0 + $0xe8] sm:$0xf]
  %v206 = vld [vmem:[%s0 + $0xec] sm:$0xf]
  %v207 = vld [vmem:[%s0 + $0xf0] sm:$0xf]
  %v208 = vld [vmem:[%s0 + $0xf4] sm:$0xf]
  %v209 = vld [vmem:[%s0 + $0xf8] sm:$0xf]
  %v210 = vld [vmem:[%s0 + $0xfc] sm:$0xf]
  %v211 = vld [vmem:[%s1] sm:$0xf]
  %v212 = vld [vmem:[%s1 + $0x4] sm:$0xf]
  %v213 = vld [vmem:[%s1 + $0x8] sm:$0xf]
  %v214 = vld [vmem:[%s1 + $0xc] sm:$0xf]
  %v215 = vld [vmem:[%s1 + $0x10] sm:$0xf]
  %v216 = vld [vmem:[%s1 + $0x14] sm:$0xf]
  %v217 = vld [vmem:[%s1 + $0x18] sm:$0xf]
  %v218 = vld [vmem:[%s1 + $0x1c] sm:$0xf]
  %v219 = vld [vmem:[%s1 + $0x20] sm:$0xf]
  %v220 = vld [vmem:[%s1 + $0x24] sm:$0xf]
  %v221 = vld [vmem:[%s1 + $0x28] sm:$0xf]
  %v222 = vld [vmem:[%s1 + $0x2c] sm:$0xf]
  %v223 = vld [vmem:[%s1 + $0x30] sm:$0xf]
  %v224 = vld [vmem:[%s1 + $0x34] sm:$0xf]
  %v225 = vld [vmem:[%s1 + $0x38] sm:$0xf]
  %v226 = vld [vmem:[%s1 + $0x3c] sm:$0xf]
  %v291 = vunpack.c.l.b16 %v147
  %v292 = vunpack.c.l.b16 %v148
  %v293 = vunpack.c.l.b16 %v149
  %v294 = vunpack.c.l.b16 %v150
  %v295 = vunpack.c.l.b16 %v151
  %v296 = vunpack.c.l.b16 %v152
  %v297 = vunpack.c.l.b16 %v153
  %v298 = vunpack.c.l.b16 %v154
  %v299 = vunpack.c.l.b16 %v155
  %v300 = vunpack.c.l.b16 %v156
  %v301 = vunpack.c.l.b16 %v157
  %v302 = vunpack.c.l.b16 %v158
  %v303 = vunpack.c.l.b16 %v159
  %v304 = vunpack.c.l.b16 %v160
  %v305 = vunpack.c.l.b16 %v161
  %v306 = vunpack.c.l.b16 %v162
  %v307 = vunpack.c.l.b16 %v163
  %v308 = vunpack.c.l.b16 %v164
  %v309 = vunpack.c.l.b16 %v165
  %v310 = vunpack.c.l.b16 %v166
  %v311 = vunpack.c.l.b16 %v167
  %v312 = vunpack.c.l.b16 %v168
  %v313 = vunpack.c.l.b16 %v169
  %v314 = vunpack.c.l.b16 %v170
  %v315 = vunpack.c.l.b16 %v171
  %v316 = vunpack.c.l.b16 %v172
  %v317 = vunpack.c.l.b16 %v173
  %v318 = vunpack.c.l.b16 %v174
  %v319 = vunpack.c.l.b16 %v175
  %v320 = vunpack.c.l.b16 %v176
  %v321 = vunpack.c.l.b16 %v177
  %v322 = vunpack.c.l.b16 %v178
  %v323 = vunpack.c.l.b16 %v179
  %v324 = vunpack.c.l.b16 %v180
  %v325 = vunpack.c.l.b16 %v181
  %v326 = vunpack.c.l.b16 %v182
  %v327 = vunpack.c.l.b16 %v183
  %v328 = vunpack.c.l.b16 %v184
  %v329 = vunpack.c.l.b16 %v185
  %v330 = vunpack.c.l.b16 %v186
  %v331 = vunpack.c.l.b16 %v187
  %v332 = vunpack.c.l.b16 %v188
  %v333 = vunpack.c.l.b16 %v189
  %v334 = vunpack.c.l.b16 %v190
  %v335 = vunpack.c.l.b16 %v191
  %v336 = vunpack.c.l.b16 %v192
  %v337 = vunpack.c.l.b16 %v193
  %v338 = vunpack.c.l.b16 %v194
  %v339 = vunpack.c.l.b16 %v195
  %v340 = vunpack.c.l.b16 %v196
  %v341 = vunpack.c.l.b16 %v197
  %v342 = vunpack.c.l.b16 %v198
  %v343 = vunpack.c.l.b16 %v199
  %v344 = vunpack.c.l.b16 %v200
  %v345 = vunpack.c.l.b16 %v201
  %v346 = vunpack.c.l.b16 %v202
  %v347 = vunpack.c.l.b16 %v203
  %v348 = vunpack.c.l.b16 %v204
  %v349 = vunpack.c.l.b16 %v205
  %v350 = vunpack.c.l.b16 %v206
  %v351 = vunpack.c.l.b16 %v207
  %v352 = vunpack.c.l.b16 %v208
  %v353 = vunpack.c.l.b16 %v209
  %v354 = vunpack.c.l.b16 %v210
  %v355 = vpack.c.b16 %v292, %v291
  %v356 = vpack.c.b16 %v294, %v293
  %v357 = vpack.c.b16 %v296, %v295
  %v358 = vpack.c.b16 %v298, %v297
  %v359 = vpack.c.b16 %v300, %v299
  %v360 = vpack.c.b16 %v302, %v301
  %v361 = vpack.c.b16 %v304, %v303
  %v362 = vpack.c.b16 %v306, %v305
  %v363 = vpack.c.b16 %v308, %v307
  %v364 = vpack.c.b16 %v310, %v309
  %v365 = vpack.c.b16 %v312, %v311
  %v366 = vpack.c.b16 %v314, %v313
  %v367 = vpack.c.b16 %v316, %v315
  %v368 = vpack.c.b16 %v318, %v317
  %v369 = vpack.c.b16 %v320, %v319
  %v370 = vpack.c.b16 %v322, %v321
  %v371 = vpack.c.b16 %v324, %v323
  %v372 = vpack.c.b16 %v326, %v325
  %v373 = vpack.c.b16 %v328, %v327
  %v374 = vpack.c.b16 %v330, %v329
  %v375 = vpack.c.b16 %v332, %v331
  %v376 = vpack.c.b16 %v334, %v333
  %v377 = vpack.c.b16 %v336, %v335
  %v378 = vpack.c.b16 %v338, %v337
  %v379 = vpack.c.b16 %v340, %v339
  %v380 = vpack.c.b16 %v342, %v341
  %v381 = vpack.c.b16 %v344, %v343
  %v382 = vpack.c.b16 %v346, %v345
  %v383 = vpack.c.b16 %v348, %v347
  %v384 = vpack.c.b16 %v350, %v349
  %v385 = vpack.c.b16 %v352, %v351
  %v386 = vpack.c.b16 %v354, %v353
  %v435 = vunpack.c.l.b16 %v211
  %v436 = vunpack.c.l.b16 %v212
  %v437 = vunpack.c.l.b16 %v213
  %v438 = vunpack.c.l.b16 %v214
  %v439 = vunpack.c.l.b16 %v215
  %v440 = vunpack.c.l.b16 %v216
  %v441 = vunpack.c.l.b16 %v217
  %v442 = vunpack.c.l.b16 %v218
  %v443 = vunpack.c.l.b16 %v219
  %v444 = vunpack.c.l.b16 %v220
  %v445 = vunpack.c.l.b16 %v221
  %v446 = vunpack.c.l.b16 %v222
  %v447 = vunpack.c.l.b16 %v223
  %v448 = vunpack.c.l.b16 %v224
  %v449 = vunpack.c.l.b16 %v225
  %v450 = vunpack.c.l.b16 %v226
  %v451 = vpack.c.b16 %v436, %v435
  %v452 = vpack.c.b16 %v438, %v437
  %v453 = vpack.c.b16 %v440, %v439
  %v454 = vpack.c.b16 %v442, %v441
  %v455 = vpack.c.b16 %v444, %v443
  %v456 = vpack.c.b16 %v446, %v445
  %v457 = vpack.c.b16 %v448, %v447
  %v458 = vpack.c.b16 %v450, %v449
  %467 = vmatprep.subr.bf16.mxu0 0
  %468 = vmatpush1.bf16.msra.mxu0 %v451
  %469 = vmatprep.subr.bf16.mxu0 0
  %470 = vmatpush1.bf16.msra.mxu0 %v452
  %471 = vmatprep.subr.bf16.mxu0 0
  %472 = vmatpush1.bf16.msra.mxu0 %v453
  %473 = vmatprep.subr.bf16.mxu0 0
  %474 = vmatpush1.bf16.msra.mxu0 %v454
  %475 = vmatprep.subr.bf16.mxu0 0
  %476 = vmatpush1.bf16.msra.mxu0 %v455
  %477 = vmatprep.subr.bf16.mxu0 0
  %478 = vmatpush1.bf16.msra.mxu0 %v456
  %479 = vmatprep.subr.bf16.mxu0 0
  %480 = vmatpush1.bf16.msra.mxu0 %v457
  %481 = vmatprep.subr.bf16.mxu0 0
  %482 = vmatpush1.bf16.msra.mxu0 %v458
  %483 = vmatprep.subr.bf16.mxu0 0
  %484 = vmatpush1.bf16.msra.mxu0 0
  %485 = vmatprep.subr.bf16.mxu0 0
  %486 = vmatpush1.bf16.msra.mxu0 0
  %487 = vmatprep.subr.bf16.mxu0 0
  %488 = vmatpush1.bf16.msra.mxu0 0
  %489 = vmatprep.subr.bf16.mxu0 0
  %490 = vmatpush1.bf16.msra.mxu0 0
  %491 = vmatprep.subr.bf16.mxu0 0
  %492 = vmatpush1.bf16.msra.mxu0 0
  %493 = vmatprep.subr.bf16.mxu0 0
  %494 = vmatpush1.bf16.msra.mxu0 0
  %495 = vmatprep.subr.bf16.mxu0 0
  %496 = vmatpush1.bf16.msra.mxu0 0
  %497 = vmatprep.subr.bf16.mxu0 0
  %498 = vmatpush1.bf16.msra.mxu0 0
  %499 = vmatprep.mubr.bf16.mxu0 0
  %500 = vmatmul.mubr.bf16.gmra.mrb[0].mxu0 %v355
  %v501 = vpop.f32.mrb[0].mxu0
  %v502 = vadd.f32 0.0, %v501
  %v503 = vpop.f32.mrb[0].mxu0
  %v504 = vpop.f32.mrb[0].mxu0
  %v505 = vadd.f32 0.0, %v504
  %v506 = vpop.f32.mrb[0].mxu0
  %507 = vmatprep.mubr.bf16.mxu0 0
  %508 = vmatmul.mubr.bf16.gmra.mrb[0].mxu0 %v356
  %v509 = vpop.f32.mrb[0].mxu0
  %v510 = vadd.f32 0.0, %v509
  %v511 = vpop.f32.mrb[0].mxu0
  %v512 = vpop.f32.mrb[0].mxu0
  %v513 = vadd.f32 0.0, %v512
  %v514 = vpop.f32.mrb[0].mxu0
  %515 = vmatprep.mubr.bf16.mxu0 0
  %516 = vmatmul.mubr.bf16.gmra.mrb[0].mxu0 %v357
  %v517 = vpop.f32.mrb[0].mxu0
  %v518 = vadd.f32 0.0, %v517
  %v519 = vpop.f32.mrb[0].mxu0
  %v520 = vpop.f32.mrb[0].mxu0
  %v521 = vadd.f32 0.0, %v520
  %v522 = vpop.f32.mrb[0].mxu0
  %523 = vmatprep.mubr.bf16.mxu0 0
  %524 = vmatmul.mubr.bf16.gmra.mrb[0].mxu0 %v358
  %v525 = vpop.f32.mrb[0].mxu0
  %v526 = vadd.f32 0.0, %v525
  %v527 = vpop.f32.mrb[0].mxu0
  %v528 = vpop.f32.mrb[0].mxu0
  %v529 = vadd.f32 0.0, %v528
  %v530 = vpop.f32.mrb[0].mxu0
  %531 = vmatprep.mubr.bf16.mxu0 0
  %532 = vmatmul.mubr.bf16.gmra.mrb[0].mxu0 %v359
  %v533 = vpop.f32.mrb[0].mxu0
  %v534 = vadd.f32 0.0, %v533
  %v535 = vpop.f32.mrb[0].mxu0
  %v536 = vpop.f32.mrb[0].mxu0
  %v537 = vadd.f32 0.0, %v536
  %v538 = vpop.f32.mrb[0].mxu0
  %539 = vmatprep.mubr.bf16.mxu0 0
  %540 = vmatmul.mubr.bf16.gmra.mrb[0].mxu0 %v360
  %v541 = vpop.f32.mrb[0].mxu0
  %v542 = vadd.f32 0.0, %v541
  %v543 = vpop.f32.mrb[0].mxu0
  %v544 = vpop.f32.mrb[0].mxu0
  %v545 = vadd.f32 0.0, %v544
  %v546 = vpop.f32.mrb[0].mxu0
  %547 = vmatprep.mubr.bf16.mxu0 0
  %548 = vmatmul.mubr.bf16.gmra.mrb[0].mxu0 %v361
  %v549 = vpop.f32.mrb[0].mxu0
  %v550 = vadd.f32 0.0, %v549
  %v551 = vpop.f32.mrb[0].mxu0
  %v552 = vpop.f32.mrb[0].mxu0
  %v553 = vadd.f32 0.0, %v552
  %v554 = vpop.f32.mrb[0].mxu0
  %555 = vmatprep.mubr.bf16.mxu0 0
  %556 = vmatmul.mubr.bf16.gmra.mrb[0].mxu0 %v362
  %v557 = vpop.f32.mrb[0].mxu0
  %v558 = vadd.f32 0.0, %v557
  %v559 = vpop.f32.mrb[0].mxu0
  %v560 = vpop.f32.mrb[0].mxu0
  %v561 = vadd.f32 0.0, %v560
  %v562 = vpop.f32.mrb[0].mxu0
  %563 = vmatprep.mubr.bf16.mxu0 0
  %564 = vmatmul.mubr.bf16.gmra.mrb[0].mxu0 %v363
  %v565 = vpop.f32.mrb[0].mxu0
  %v566 = vadd.f32 0.0, %v565
  %v567 = vpop.f32.mrb[0].mxu0
  %v568 = vpop.f32.mrb[0].mxu0
  %v569 = vadd.f32 0.0, %v568
  %v570 = vpop.f32.mrb[0].mxu0
  %571 = vmatprep.mubr.bf16.mxu0 0
  %572 = vmatmul.mubr.bf16.gmra.mrb[0].mxu0 %v364
  %v573 = vpop.f32.mrb[0].mxu0
  %v574 = vadd.f32 0.0, %v573
  %v575 = vpop.f32.mrb[0].mxu0
  %v576 = vpop.f32.mrb[0].mxu0
  %v577 = vadd.f32 0.0, %v576
  %v578 = vpop.f32.mrb[0].mxu0
  %579 = vmatprep.mubr.bf16.mxu0 0
  %580 = vmatmul.mubr.bf16.gmra.mrb[0].mxu0 %v365
  %v581 = vpop.f32.mrb[0].mxu0
  %v582 = vadd.f32 0.0, %v581
  %v583 = vpop.f32.mrb[0].mxu0
  %v584 = vpop.f32.mrb[0].mxu0
  %v585 = vadd.f32 0.0, %v584
  %v586 = vpop.f32.mrb[0].mxu0
  %587 = vmatprep.mubr.bf16.mxu0 0
  %588 = vmatmul.mubr.bf16.gmra.mrb[0].mxu0 %v366
  %v589 = vpop.f32.mrb[0].mxu0
  %v590 = vadd.f32 0.0, %v589
  %v591 = vpop.f32.mrb[0].mxu0
  %v592 = vpop.f32.mrb[0].mxu0
  %v593 = vadd.f32 0.0, %v592
  %v594 = vpop.f32.mrb[0].mxu0
  %595 = vmatprep.mubr.bf16.mxu0 0
  %596 = vmatmul.mubr.bf16.gmra.mrb[0].mxu0 %v367
  %v597 = vpop.f32.mrb[0].mxu0
  %v598 = vadd.f32 0.0, %v597
  %v599 = vpop.f32.mrb[0].mxu0
  %v600 = vpop.f32.mrb[0].mxu0
  %v601 = vadd.f32 0.0, %v600
  %v602 = vpop.f32.mrb[0].mxu0
  %603 = vmatprep.mubr.bf16.mxu0 0
  %604 = vmatmul.mubr.bf16.gmra.mrb[0].mxu0 %v368
  %v605 = vpop.f32.mrb[0].mxu0
  %v606 = vadd.f32 0.0, %v605
  %v607 = vpop.f32.mrb[0].mxu0
  %v608 = vpop.f32.mrb[0].mxu0
  %v609 = vadd.f32 0.0, %v608
  %v610 = vpop.f32.mrb[0].mxu0
  %611 = vmatprep.mubr.bf16.mxu0 0
  %612 = vmatmul.mubr.bf16.gmra.mrb[0].mxu0 %v369
  %v613 = vpop.f32.mrb[0].mxu0
  %v614 = vadd.f32 0.0, %v613
  %v615 = vpop.f32.mrb[0].mxu0
  %v616 = vpop.f32.mrb[0].mxu0
  %v617 = vadd.f32 0.0, %v616
  %v618 = vpop.f32.mrb[0].mxu0
  %619 = vmatprep.mubr.bf16.mxu0 0
  %620 = vmatmul.mubr.bf16.gmra.mrb[0].mxu0 %v370
  %v621 = vpop.f32.mrb[0].mxu0
  %v622 = vadd.f32 0.0, %v621
  %v623 = vpop.f32.mrb[0].mxu0
  %v624 = vpop.f32.mrb[0].mxu0
  %v625 = vadd.f32 0.0, %v624
  %v626 = vpop.f32.mrb[0].mxu0
  %627 = vmatprep.mubr.bf16.mxu0 0
  %628 = vmatmul.mubr.bf16.gmra.mrb[0].mxu0 %v371
  %v629 = vpop.f32.mrb[0].mxu0
  %v630 = vadd.f32 0.0, %v629
  %v631 = vpop.f32.mrb[0].mxu0
  %v632 = vpop.f32.mrb[0].mxu0
  %v633 = vadd.f32 0.0, %v632
  %v634 = vpop.f32.mrb[0].mxu0
  %635 = vmatprep.mubr.bf16.mxu0 0
  %636 = vmatmul.mubr.bf16.gmra.mrb[0].mxu0 %v372
  %v637 = vpop.f32.mrb[0].mxu0
  %v638 = vadd.f32 0.0, %v637
  %v639 = vpop.f32.mrb[0].mxu0
  %v640 = vpop.f32.mrb[0].mxu0
  %v641 = vadd.f32 0.0, %v640
  %v642 = vpop.f32.mrb[0].mxu0
  %643 = vmatprep.mubr.bf16.mxu0 0
  %644 = vmatmul.mubr.bf16.gmra.mrb[0].mxu0 %v373
  %v645 = vpop.f32.mrb[0].mxu0
  %v646 = vadd.f32 0.0, %v645
  %v647 = vpop.f32.mrb[0].mxu0
  %v648 = vpop.f32.mrb[0].mxu0
  %v649 = vadd.f32 0.0, %v648
  %v650 = vpop.f32.mrb[0].mxu0
  %651 = vmatprep.mubr.bf16.mxu0 0
  %652 = vmatmul.mubr.bf16.gmra.mrb[0].mxu0 %v374
  %v653 = vpop.f32.mrb[0].mxu0
  %v654 = vadd.f32 0.0, %v653
  %v655 = vpop.f32.mrb[0].mxu0
  %v656 = vpop.f32.mrb[0].mxu0
  %v657 = vadd.f32 0.0, %v656
  %v658 = vpop.f32.mrb[0].mxu0
  %659 = vmatprep.mubr.bf16.mxu0 0
  %660 = vmatmul.mubr.bf16.gmra.mrb[0].mxu0 %v375
  %v661 = vpop.f32.mrb[0].mxu0
  %v662 = vadd.f32 0.0, %v661
  %v663 = vpop.f32.mrb[0].mxu0
  %v664 = vpop.f32.mrb[0].mxu0
  %v665 = vadd.f32 0.0, %v664
  %v666 = vpop.f32.mrb[0].mxu0
  %667 = vmatprep.mubr.bf16.mxu0 0
  %668 = vmatmul.mubr.bf16.gmra.mrb[0].mxu0 %v376
  %v669 = vpop.f32.mrb[0].mxu0
  %v670 = vadd.f32 0.0, %v669
  %v671 = vpop.f32.mrb[0].mxu0
  %v672 = vpop.f32.mrb[0].mxu0
  %v673 = vadd.f32 0.0, %v672
  %v674 = vpop.f32.mrb[0].mxu0
  %675 = vmatprep.mubr.bf16.mxu0 0
  %676 = vmatmul.mubr.bf16.gmra.mrb[0].mxu0 %v377
  %v677 = vpop.f32.mrb[0].mxu0
  %v678 = vadd.f32 0.0, %v677
  %v679 = vpop.f32.mrb[0].mxu0
  %v680 = vpop.f32.mrb[0].mxu0
  %v681 = vadd.f32 0.0, %v680
  %v682 = vpop.f32.mrb[0].mxu0
  %683 = vmatprep.mubr.bf16.mxu0 0
  %684 = vmatmul.mubr.bf16.gmra.mrb[0].mxu0 %v378
  %v685 = vpop.f32.mrb[0].mxu0
  %v686 = vadd.f32 0.0, %v685
  %v687 = vpop.f32.mrb[0].mxu0
  %v688 = vpop.f32.mrb[0].mxu0
  %v689 = vadd.f32 0.0, %v688
  %v690 = vpop.f32.mrb[0].mxu0
  %691 = vmatprep.mubr.bf16.mxu0 0
  %692 = vmatmul.mubr.bf16.gmra.mrb[0].mxu0 %v379
  %v693 = vpop.f32.mrb[0].mxu0
  %v694 = vadd.f32 0.0, %v693
  %v695 = vpop.f32.mrb[0].mxu0
  %v696 = vpop.f32.mrb[0].mxu0
  %v697 = vadd.f32 0.0, %v696
  %v698 = vpop.f32.mrb[0].mxu0
  %699 = vmatprep.mubr.bf16.mxu0 0
  %700 = vmatmul.mubr.bf16.gmra.mrb[0].mxu0 %v380
  %v701 = vpop.f32.mrb[0].mxu0
  %v702 = vadd.f32 0.0, %v701
  %v703 = vpop.f32.mrb[0].mxu0
  %v704 = vpop.f32.mrb[0].mxu0
  %v705 = vadd.f32 0.0, %v704
  %v706 = vpop.f32.mrb[0].mxu0
  %707 = vmatprep.mubr.bf16.mxu0 0
  %708 = vmatmul.mubr.bf16.gmra.mrb[0].mxu0 %v381
  %v709 = vpop.f32.mrb[0].mxu0
  %v710 = vadd.f32 0.0, %v709
  %v711 = vpop.f32.mrb[0].mxu0
  %v712 = vpop.f32.mrb[0].mxu0
  %v713 = vadd.f32 0.0, %v712
  %v714 = vpop.f32.mrb[0].mxu0
  %715 = vmatprep.mubr.bf16.mxu0 0
  %716 = vmatmul.mubr.bf16.gmra.mrb[0].mxu0 %v382
  %v717 = vpop.f32.mrb[0].mxu0
  %v718 = vadd.f32 0.0, %v717
  %v719 = vpop.f32.mrb[0].mxu0
  %v720 = vpop.f32.mrb[0].mxu0
  %v721 = vadd.f32 0.0, %v720
  %v722 = vpop.f32.mrb[0].mxu0
  %723 = vmatprep.mubr.bf16.mxu0 0
  %724 = vmatmul.mubr.bf16.gmra.mrb[0].mxu0 %v383
  %v725 = vpop.f32.mrb[0].mxu0
  %v726 = vadd.f32 0.0, %v725
  %v727 = vpop.f32.mrb[0].mxu0
  %v728 = vpop.f32.mrb[0].mxu0
  %v729 = vadd.f32 0.0, %v728
  %v730 = vpop.f32.mrb[0].mxu0
  %731 = vmatprep.mubr.bf16.mxu0 0
  %732 = vmatmul.mubr.bf16.gmra.mrb[0].mxu0 %v384
  %v733 = vpop.f32.mrb[0].mxu0
  %v734 = vadd.f32 0.0, %v733
  %v735 = vpop.f32.mrb[0].mxu0
  %v736 = vpop.f32.mrb[0].mxu0
  %v737 = vadd.f32 0.0, %v736
  %v738 = vpop.f32.mrb[0].mxu0
  %739 = vmatprep.mubr.bf16.mxu0 0
  %740 = vmatmul.mubr.bf16.gmra.mrb[0].mxu0 %v385
  %v741 = vpop.f32.mrb[0].mxu0
  %v742 = vadd.f32 0.0, %v741
  %v743 = vpop.f32.mrb[0].mxu0
  %v744 = vpop.f32.mrb[0].mxu0
  %v745 = vadd.f32 0.0, %v744
  %v746 = vpop.f32.mrb[0].mxu0
  %747 = vmatprep.mubr.bf16.mxu0 0
  %748 = vmatmul.mubr.bf16.gmra.mrb[0].mxu0 %v386
  %v749 = vpop.f32.mrb[0].mxu0
  %v750 = vadd.f32 0.0, %v749
  %v751 = vpop.f32.mrb[0].mxu0
  %v752 = vpop.f32.mrb[0].mxu0
  %v753 = vadd.f32 0.0, %v752
  %v754 = vpop.f32.mrb[0].mxu0
  %755 = vdwg.mxu0
  %v756 = vadd.f32 %v83, %v502
  %v757 = vadd.f32 %v84, %v505
  %v758 = vadd.f32 %v85, %v510
  %v759 = vadd.f32 %v86, %v513
  %v760 = vadd.f32 %v87, %v518
  %v761 = vadd.f32 %v88, %v521
  %v762 = vadd.f32 %v89, %v526
  %v763 = vadd.f32 %v90, %v529
  %v764 = vadd.f32 %v91, %v534
  %v765 = vadd.f32 %v92, %v537
  %v766 = vadd.f32 %v93, %v542
  %v767 = vadd.f32 %v94, %v545
  %v768 = vadd.f32 %v95, %v550
  %v769 = vadd.f32 %v96, %v553
  %v770 = vadd.f32 %v97, %v558
  %v771 = vadd.f32 %v98, %v561
  %v772 = vadd.f32 %v99, %v566
  %v773 = vadd.f32 %v100, %v569
  %v774 = vadd.f32 %v101, %v574
  %v775 = vadd.f32 %v102, %v577
  %v776 = vadd.f32 %v103, %v582
  %v777 = vadd.f32 %v104, %v585
  %v778 = vadd.f32 %v105, %v590
  %v779 = vadd.f32 %v106, %v593
  %v780 = vadd.f32 %v107, %v598
  %v781 = vadd.f32 %v108, %v601
  %v782 = vadd.f32 %v109, %v606
  %v783 = vadd.f32 %v110, %v609
  %v784 = vadd.f32 %v111, %v614
  %v785 = vadd.f32 %v112, %v617
  %v786 = vadd.f32 %v113, %v622
  %v787 = vadd.f32 %v114, %v625
  %v788 = vadd.f32 %v115, %v630
  %v789 = vadd.f32 %v116, %v633
  %v790 = vadd.f32 %v117, %v638
  %v791 = vadd.f32 %v118, %v641
  %v792 = vadd.f32 %v119, %v646
  %v793 = vadd.f32 %v120, %v649
  %v794 = vadd.f32 %v121, %v654
  %v795 = vadd.f32 %v122, %v657
  %v796 = vadd.f32 %v123, %v662
  %v797 = vadd.f32 %v124, %v665
  %v798 = vadd.f32 %v125, %v670
  %v799 = vadd.f32 %v126, %v673
  %v800 = vadd.f32 %v127, %v678
  %v801 = vadd.f32 %v128, %v681
  %v802 = vadd.f32 %v129, %v686
  %v803 = vadd.f32 %v130, %v689
  %v804 = vadd.f32 %v131, %v694
  %v805 = vadd.f32 %v132, %v697
  %v806 = vadd.f32 %v133, %v702
  %v807 = vadd.f32 %v134, %v705
  %v808 = vadd.f32 %v135, %v710
  %v809 = vadd.f32 %v136, %v713
  %v810 = vadd.f32 %v137, %v718
  %v811 = vadd.f32 %v138, %v721
  %v812 = vadd.f32 %v139, %v726
  %v813 = vadd.f32 %v140, %v729
  %v814 = vadd.f32 %v141, %v734
  %v815 = vadd.f32 %v142, %v737
  %v816 = vadd.f32 %v143, %v742
  %v817 = vadd.f32 %v144, %v745
  %v818 = vadd.f32 %v145, %v750
  %v819 = vadd.f32 %v146, %v753
  %820 = vst [vmem:[#allocation2] sm:$0xff] %v756
  %821 = vst [vmem:[#allocation2 + $0x8] sm:$0xff] %v757
  %822 = vst [vmem:[#allocation2 + $0x10] sm:$0xff] %v758
  %823 = vst [vmem:[#allocation2 + $0x18] sm:$0xff] %v759
  %824 = vst [vmem:[#allocation2 + $0x20] sm:$0xff] %v760
  %825 = vst [vmem:[#allocation2 + $0x28] sm:$0xff] %v761
  %826 = vst [vmem:[#allocation2 + $0x30] sm:$0xff] %v762
  %827 = vst [vmem:[#allocation2 + $0x38] sm:$0xff] %v763
  %828 = vst [vmem:[#allocation2 + $0x40] sm:$0xff] %v764
  %829 = vst [vmem:[#allocation2 + $0x48] sm:$0xff] %v765
  %830 = vst [vmem:[#allocation2 + $0x50] sm:$0xff] %v766
  %831 = vst [vmem:[#allocation2 + $0x58] sm:$0xff] %v767
  %832 = vst [vmem:[#allocation2 + $0x60] sm:$0xff] %v768
  %833 = vst [vmem:[#allocation2 + $0x68] sm:$0xff] %v769
  %834 = vst [vmem:[#allocation2 + $0x70] sm:$0xff] %v770
  %835 = vst [vmem:[#allocation2 + $0x78] sm:$0xff] %v771
  %836 = vst [vmem:[#allocation2 + $0x80] sm:$0xff] %v772
  %837 = vst [vmem:[#allocation2 + $0x88] sm:$0xff] %v773
  %838 = vst [vmem:[#allocation2 + $0x90] sm:$0xff] %v774
  %839 = vst [vmem:[#allocation2 + $0x98] sm:$0xff] %v775
  %840 = vst [vmem:[#allocation2 + $0xa0] sm:$0xff] %v776
  %841 = vst [vmem:[#allocation2 + $0xa8] sm:$0xff] %v777
  %842 = vst [vmem:[#allocation2 + $0xb0] sm:$0xff] %v778
  %843 = vst [vmem:[#allocation2 + $0xb8] sm:$0xff] %v779
  %844 = vst [vmem:[#allocation2 + $0xc0] sm:$0xff] %v780
  %845 = vst [vmem:[#allocation2 + $0xc8] sm:$0xff] %v781
  %846 = vst [vmem:[#allocation2 + $0xd0] sm:$0xff] %v782
  %847 = vst [vmem:[#allocation2 + $0xd8] sm:$0xff] %v783
  %848 = vst [vmem:[#allocation2 + $0xe0] sm:$0xff] %v784
  %849 = vst [vmem:[#allocation2 + $0xe8] sm:$0xff] %v785
  %850 = vst [vmem:[#allocation2 + $0xf0] sm:$0xff] %v786
  %851 = vst [vmem:[#allocation2 + $0xf8] sm:$0xff] %v787
  %852 = vst [vmem:[#allocation2 + $0x100] sm:$0xff] %v788
  %853 = vst [vmem:[#allocation2 + $0x108] sm:$0xff] %v789
  %854 = vst [vmem:[#allocation2 + $0x110] sm:$0xff] %v790
  %855 = vst [vmem:[#allocation2 + $0x118] sm:$0xff] %v791
  %856 = vst [vmem:[#allocation2 + $0x120] sm:$0xff] %v792
  %857 = vst [vmem:[#allocation2 + $0x128] sm:$0xff] %v793
  %858 = vst [vmem:[#allocation2 + $0x130] sm:$0xff] %v794
  %859 = vst [vmem:[#allocation2 + $0x138] sm:$0xff] %v795
  %860 = vst [vmem:[#allocation2 + $0x140] sm:$0xff] %v796
  %861 = vst [vmem:[#allocation2 + $0x148] sm:$0xff] %v797
  %862 = vst [vmem:[#allocation2 + $0x150] sm:$0xff] %v798
  %863 = vst [vmem:[#allocation2 + $0x158] sm:$0xff] %v799
  %864 = vst [vmem:[#allocation2 + $0x160] sm:$0xff] %v800
  %865 = vst [vmem:[#allocation2 + $0x168] sm:$0xff] %v801
  %866 = vst [vmem:[#allocation2 + $0x170] sm:$0xff] %v802
  %867 = vst [vmem:[#allocation2 + $0x178] sm:$0xff] %v803
  %868 = vst [vmem:[#allocation2 + $0x180] sm:$0xff] %v804
  %869 = vst [vmem:[#allocation2 + $0x188] sm:$0xff] %v805
  %870 = vst [vmem:[#allocation2 + $0x190] sm:$0xff] %v806
  %871 = vst [vmem:[#allocation2 + $0x198] sm:$0xff] %v807
  %872 = vst [vmem:[#allocation2 + $0x1a0] sm:$0xff] %v808
  %873 = vst [vmem:[#allocation2 + $0x1a8] sm:$0xff] %v809
  %874 = vst [vmem:[#allocation2 + $0x1b0] sm:$0xff] %v810
  %875 = vst [vmem:[#allocation2 + $0x1b8] sm:$0xff] %v811
  %876 = vst [vmem:[#allocation2 + $0x1c0] sm:$0xff] %v812
  %877 = vst [vmem:[#allocation2 + $0x1c8] sm:$0xff] %v813
  %878 = vst [vmem:[#allocation2 + $0x1d0] sm:$0xff] %v814
  %879 = vst [vmem:[#allocation2 + $0x1d8] sm:$0xff] %v815
  %880 = vst [vmem:[#allocation2 + $0x1e0] sm:$0xff] %v816
  %881 = vst [vmem:[#allocation2 + $0x1e8] sm:$0xff] %v817
  %882 = vst [vmem:[#allocation2 + $0x1f0] sm:$0xff] %v818
  %883 = vst [vmem:[#allocation2 + $0x1f8] sm:$0xff] %v819
  // Predicated region
  $region18: #{g_unet_add_middle_forward.10} parent=0 // pred_check
    %p884 = pneg %p15
  $region19: #{g_unet_add_middle_forward.10} parent=0 // pred_check_branch
    %886 = sbr.rel (%p884) target = $region21
  $region20: #{g_unet_add_middle_forward.10} parent=0 // pred_region
    %v887 = vld [vmem:[#allocation2] sm:$0xff]
    %v888 = vld [vmem:[#allocation2 + $0x8] sm:$0xff]
    %v889 = vld [vmem:[#allocation2 + $0x10] sm:$0xff]
    %v890 = vld [vmem:[#allocation2 + $0x18] sm:$0xff]
    %v891 = vld [vmem:[#allocation2 + $0x20] sm:$0xff]
    %v892 = vld [vmem:[#allocation2 + $0x28] sm:$0xff]
    %v893 = vld [vmem:[#allocation2 + $0x30] sm:$0xff]
    %v894 = vld [vmem:[#allocation2 + $0x38] sm:$0xff]
    %v895 = vld [vmem:[#allocation2 + $0x40] sm:$0xff]
    %v896 = vld [vmem:[#allocation2 + $0x48] sm:$0xff]
    %v897 = vld [vmem:[#allocation2 + $0x50] sm:$0xff]
    %v898 = vld [vmem:[#allocation2 + $0x58] sm:$0xff]
    %v899 = vld [vmem:[#allocation2 + $0x60] sm:$0xff]
    %v900 = vld [vmem:[#allocation2 + $0x68] sm:$0xff]
    %v901 = vld [vmem:[#allocation2 + $0x70] sm:$0xff]
    %v902 = vld [vmem:[#allocation2 + $0x78] sm:$0xff]
    %v903 = vld [vmem:[#allocation2 + $0x80] sm:$0xff]
    %v904 = vld [vmem:[#allocation2 + $0x88] sm:$0xff]
    %v905 = vld [vmem:[#allocation2 + $0x90] sm:$0xff]
    %v906 = vld [vmem:[#allocation2 + $0x98] sm:$0xff]
    %v907 = vld [vmem:[#allocation2 + $0xa0] sm:$0xff]
    %v908 = vld [vmem:[#allocation2 + $0xa8] sm:$0xff]
    %v909 = vld [vmem:[#allocation2 + $0xb0] sm:$0xff]
    %v910 = vld [vmem:[#allocation2 + $0xb8] sm:$0xff]
    %v911 = vld [vmem:[#allocation2 + $0xc0] sm:$0xff]
    %v912 = vld [vmem:[#allocation2 + $0xc8] sm:$0xff]
    %v913 = vld [vmem:[#allocation2 + $0xd0] sm:$0xff]
    %v914 = vld [vmem:[#allocation2 + $0xd8] sm:$0xff]
    %v915 = vld [vmem:[#allocation2 + $0xe0] sm:$0xff]
    %v916 = vld [vmem:[#allocation2 + $0xe8] sm:$0xff]
    %v917 = vld [vmem:[#allocation2 + $0xf0] sm:$0xff]
    %v918 = vld [vmem:[#allocation2 + $0xf8] sm:$0xff]
    %v919 = vld [vmem:[#allocation2 + $0x100] sm:$0xff]
    %v920 = vld [vmem:[#allocation2 + $0x108] sm:$0xff]
    %v921 = vld [vmem:[#allocation2 + $0x110] sm:$0xff]
    %v922 = vld [vmem:[#allocation2 + $0x118] sm:$0xff]
    %v923 = vld [vmem:[#allocation2 + $0x120] sm:$0xff]
    %v924 = vld [vmem:[#allocation2 + $0x128] sm:$0xff]
    %v925 = vld [vmem:[#allocation2 + $0x130] sm:$0xff]
    %v926 = vld [vmem:[#allocation2 + $0x138] sm:$0xff]
    %v927 = vld [vmem:[#allocation2 + $0x140] sm:$0xff]
    %v928 = vld [vmem:[#allocation2 + $0x148] sm:$0xff]
    %v929 = vld [vmem:[#allocation2 + $0x150] sm:$0xff]
    %v930 = vld [vmem:[#allocation2 + $0x158] sm:$0xff]
    %v931 = vld [vmem:[#allocation2 + $0x160] sm:$0xff]
    %v932 = vld [vmem:[#allocation2 + $0x168] sm:$0xff]
    %v933 = vld [vmem:[#allocation2 + $0x170] sm:$0xff]
    %v934 = vld [vmem:[#allocation2 + $0x178] sm:$0xff]
    %v935 = vld [vmem:[#allocation2 + $0x180] sm:$0xff]
    %v936 = vld [vmem:[#allocation2 + $0x188] sm:$0xff]
    %v937 = vld [vmem:[#allocation2 + $0x190] sm:$0xff]
    %v938 = vld [vmem:[#allocation2 + $0x198] sm:$0xff]
    %v939 = vld [vmem:[#allocation2 + $0x1a0] sm:$0xff]
    %v940 = vld [vmem:[#allocation2 + $0x1a8] sm:$0xff]
    %v941 = vld [vmem:[#allocation2 + $0x1b0] sm:$0xff]
    %v942 = vld [vmem:[#allocation2 + $0x1b8] sm:$0xff]
    %v943 = vld [vmem:[#allocation2 + $0x1c0] sm:$0xff]
    %v944 = vld [vmem:[#allocation2 + $0x1c8] sm:$0xff]
    %v945 = vld [vmem:[#allocation2 + $0x1d0] sm:$0xff]
    %v946 = vld [vmem:[#allocation2 + $0x1d8] sm:$0xff]
    %v947 = vld [vmem:[#allocation2 + $0x1e0] sm:$0xff]
    %v948 = vld [vmem:[#allocation2 + $0x1e8] sm:$0xff]
    %v949 = vld [vmem:[#allocation2 + $0x1f0] sm:$0xff]
    %v950 = vld [vmem:[#allocation2 + $0x1f8] sm:$0xff]
    %v951 = vld [vmem:[%s2] sm:$0x1]
    %v953 = vlaneseq
    %v954 = vshrl.u32 %v953, 7
    %v955 = vsub.s32 0, %v954
    %v956 = vrot.slane %v951, %v955
    %v958 = vadd.f32 %v887, %v956
    %v959 = vadd.f32 %v888, %v956
    %v960 = vadd.f32 %v889, %v956
    %v961 = vadd.f32 %v890, %v956
    %v962 = vadd.f32 %v891, %v956
    %v963 = vadd.f32 %v892, %v956
    %v964 = vadd.f32 %v893, %v956
    %v965 = vadd.f32 %v894, %v956
    %v966 = vadd.f32 %v895, %v956
    %v967 = vadd.f32 %v896, %v956
    %v968 = vadd.f32 %v897, %v956
    %v969 = vadd.f32 %v898, %v956
    %v970 = vadd.f32 %v899, %v956
    %v971 = vadd.f32 %v900, %v956
    %v972 = vadd.f32 %v901, %v956
    %v973 = vadd.f32 %v902, %v956
    %v974 = vadd.f32 %v903, %v956
    %v975 = vadd.f32 %v904, %v956
    %v976 = vadd.f32 %v905, %v956
    %v977 = vadd.f32 %v906, %v956
    %v978 = vadd.f32 %v907, %v956
    %v979 = vadd.f32 %v908, %v956
    %v980 = vadd.f32 %v909, %v956
    %v981 = vadd.f32 %v910, %v956
    %v982 = vadd.f32 %v911, %v956
    %v983 = vadd.f32 %v912, %v956
    %v984 = vadd.f32 %v913, %v956
    %v985 = vadd.f32 %v914, %v956
    %v986 = vadd.f32 %v915, %v956
    %v987 = vadd.f32 %v916, %v956
    %v988 = vadd.f32 %v917, %v956
    %v989 = vadd.f32 %v918, %v956
    %v990 = vadd.f32 %v919, %v956
    %v991 = vadd.f32 %v920, %v956
    %v992 = vadd.f32 %v921, %v956
    %v993 = vadd.f32 %v922, %v956
    %v994 = vadd.f32 %v923, %v956
    %v995 = vadd.f32 %v924, %v956
    %v996 = vadd.f32 %v925, %v956
    %v997 = vadd.f32 %v926, %v956
    %v998 = vadd.f32 %v927, %v956
    %v999 = vadd.f32 %v928, %v956
    %v1000 = vadd.f32 %v929, %v956
    %v1001 = vadd.f32 %v930, %v956
    %v1002 = vadd.f32 %v931, %v956
    %v1003 = vadd.f32 %v932, %v956
    %v1004 = vadd.f32 %v933, %v956
    %v1005 = vadd.f32 %v934, %v956
    %v1006 = vadd.f32 %v935, %v956
    %v1007 = vadd.f32 %v936, %v956
    %v1008 = vadd.f32 %v937, %v956
    %v1009 = vadd.f32 %v938, %v956
    %v1010 = vadd.f32 %v939, %v956
    %v1011 = vadd.f32 %v940, %v956
    %v1012 = vadd.f32 %v941, %v956
    %v1013 = vadd.f32 %v942, %v956
    %v1014 = vadd.f32 %v943, %v956
    %v1015 = vadd.f32 %v944, %v956
    %v1016 = vadd.f32 %v945, %v956
    %v1017 = vadd.f32 %v946, %v956
    %v1018 = vadd.f32 %v947, %v956
    %v1019 = vadd.f32 %v948, %v956
    %v1020 = vadd.f32 %v949, %v956
    %v1021 = vadd.f32 %v950, %v956
    %vm1022 = vcmp.ge.f32.partialorder %v958, 0.0
    %vm1023 = vcmp.ge.f32.partialorder %v959, 0.0
    %vm1024 = vcmp.ge.f32.partialorder %v960, 0.0
    %vm1025 = vcmp.ge.f32.partialorder %v961, 0.0
    %vm1026 = vcmp.ge.f32.partialorder %v962, 0.0
    %vm1027 = vcmp.ge.f32.partialorder %v963, 0.0
    %vm1028 = vcmp.ge.f32.partialorder %v964, 0.0
    %vm1029 = vcmp.ge.f32.partialorder %v965, 0.0
    %vm1030 = vcmp.ge.f32.partialorder %v966, 0.0
    %vm1031 = vcmp.ge.f32.partialorder %v967, 0.0
    %vm1032 = vcmp.ge.f32.partialorder %v968, 0.0
    %vm1033 = vcmp.ge.f32.partialorder %v969, 0.0
    %vm1034 = vcmp.ge.f32.partialorder %v970, 0.0
    %vm1035 = vcmp.ge.f32.partialorder %v971, 0.0
    %vm1036 = vcmp.ge.f32.partialorder %v972, 0.0
    %vm1037 = vcmp.ge.f32.partialorder %v973, 0.0
    %vm1038 = vcmp.ge.f32.partialorder %v974, 0.0
    %vm1039 = vcmp.ge.f32.partialorder %v975, 0.0
    %vm1040 = vcmp.ge.f32.partialorder %v976, 0.0
    %vm1041 = vcmp.ge.f32.partialorder %v977, 0.0
    %vm1042 = vcmp.ge.f32.partialorder %v978, 0.0
    %vm1043 = vcmp.ge.f32.partialorder %v979, 0.0
    %vm1044 = vcmp.ge.f32.partialorder %v980, 0.0
    %vm1045 = vcmp.ge.f32.partialorder %v981, 0.0
    %vm1046 = vcmp.ge.f32.partialorder %v982, 0.0
    %vm1047 = vcmp.ge.f32.partialorder %v983, 0.0
    %vm1048 = vcmp.ge.f32.partialorder %v984, 0.0
    %vm1049 = vcmp.ge.f32.partialorder %v985, 0.0
    %vm1050 = vcmp.ge.f32.partialorder %v986, 0.0
    %vm1051 = vcmp.ge.f32.partialorder %v987, 0.0
    %vm1052 = vcmp.ge.f32.partialorder %v988, 0.0
    %vm1053 = vcmp.ge.f32.partialorder %v989, 0.0
    %vm1054 = vcmp.ge.f32.partialorder %v990, 0.0
    %vm1055 = vcmp.ge.f32.partialorder %v991, 0.0
    %vm1056 = vcmp.ge.f32.partialorder %v992, 0.0
    %vm1057 = vcmp.ge.f32.partialorder %v993, 0.0
    %vm1058 = vcmp.ge.f32.partialorder %v994, 0.0
    %vm1059 = vcmp.ge.f32.partialorder %v995, 0.0
    %vm1060 = vcmp.ge.f32.partialorder %v996, 0.0
    %vm1061 = vcmp.ge.f32.partialorder %v997, 0.0
    %vm1062 = vcmp.ge.f32.partialorder %v998, 0.0
    %vm1063 = vcmp.ge.f32.partialorder %v999, 0.0
    %vm1064 = vcmp.ge.f32.partialorder %v1000, 0.0
    %vm1065 = vcmp.ge.f32.partialorder %v1001, 0.0
    %vm1066 = vcmp.ge.f32.partialorder %v1002, 0.0
    %vm1067 = vcmp.ge.f32.partialorder %v1003, 0.0
    %vm1068 = vcmp.ge.f32.partialorder %v1004, 0.0
    %vm1069 = vcmp.ge.f32.partialorder %v1005, 0.0
    %vm1070 = vcmp.ge.f32.partialorder %v1006, 0.0
    %vm1071 = vcmp.ge.f32.partialorder %v1007, 0.0
    %vm1072 = vcmp.ge.f32.partialorder %v1008, 0.0
    %vm1073 = vcmp.ge.f32.partialorder %v1009, 0.0
    %vm1074 = vcmp.ge.f32.partialorder %v1010, 0.0
    %vm1075 = vcmp.ge.f32.partialorder %v1011, 0.0
    %vm1076 = vcmp.ge.f32.partialorder %v1012, 0.0
    %vm1077 = vcmp.ge.f32.partialorder %v1013, 0.0
    %vm1078 = vcmp.ge.f32.partialorder %v1014, 0.0
    %vm1079 = vcmp.ge.f32.partialorder %v1015, 0.0
    %vm1080 = vcmp.ge.f32.partialorder %v1016, 0.0
    %vm1081 = vcmp.ge.f32.partialorder %v1017, 0.0
    %vm1082 = vcmp.ge.f32.partialorder %v1018, 0.0
    %vm1083 = vcmp.ge.f32.partialorder %v1019, 0.0
    %vm1084 = vcmp.ge.f32.partialorder %v1020, 0.0
    %vm1085 = vcmp.ge.f32.partialorder %v1021, 0.0
    %v1086 = vmul.f32 %v958, 0.2
    %v1087 = vmul.f32 %v959, 0.2
    %v1088 = vmul.f32 %v960, 0.2
    %v1089 = vmul.f32 %v961, 0.2
    %v1090 = vmul.f32 %v962, 0.2
    %v1091 = vmul.f32 %v963, 0.2
    %v1092 = vmul.f32 %v964, 0.2
    %v1093 = vmul.f32 %v965, 0.2
    %v1094 = vmul.f32 %v966, 0.2
    %v1095 = vmul.f32 %v967, 0.2
    %v1096 = vmul.f32 %v968, 0.2
    %v1097 = vmul.f32 %v969, 0.2
    %v1098 = vmul.f32 %v970, 0.2
    %v1099 = vmul.f32 %v971, 0.2
    %v1100 = vmul.f32 %v972, 0.2
    %v1101 = vmul.f32 %v973, 0.2
    %v1102 = vmul.f32 %v974, 0.2
    %v1103 = vmul.f32 %v975, 0.2
    %v1104 = vmul.f32 %v976, 0.2
    %v1105 = vmul.f32 %v977, 0.2
    %v1106 = vmul.f32 %v978, 0.2
    %v1107 = vmul.f32 %v979, 0.2
    %v1108 = vmul.f32 %v980, 0.2
    %v1109 = vmul.f32 %v981, 0.2
    %v1110 = vmul.f32 %v982, 0.2
    %v1111 = vmul.f32 %v983, 0.2
    %v1112 = vmul.f32 %v984, 0.2
    %v1113 = vmul.f32 %v985, 0.2
    %v1114 = vmul.f32 %v986, 0.2
    %v1115 = vmul.f32 %v987, 0.2
    %v1116 = vmul.f32 %v988, 0.2
    %v1117 = vmul.f32 %v989, 0.2
    %v1118 = vmul.f32 %v990, 0.2
    %v1119 = vmul.f32 %v991, 0.2
    %v1120 = vmul.f32 %v992, 0.2
    %v1121 = vmul.f32 %v993, 0.2
    %v1122 = vmul.f32 %v994, 0.2
    %v1123 = vmul.f32 %v995, 0.2
    %v1124 = vmul.f32 %v996, 0.2
    %v1125 = vmul.f32 %v997, 0.2
    %v1126 = vmul.f32 %v998, 0.2
    %v1127 = vmul.f32 %v999, 0.2
    %v1128 = vmul.f32 %v1000, 0.2
    %v1129 = vmul.f32 %v1001, 0.2
    %v1130 = vmul.f32 %v1002, 0.2
    %v1131 = vmul.f32 %v1003, 0.2
    %v1132 = vmul.f32 %v1004, 0.2
    %v1133 = vmul.f32 %v1005, 0.2
    %v1134 = vmul.f32 %v1006, 0.2
    %v1135 = vmul.f32 %v1007, 0.2
    %v1136 = vmul.f32 %v1008, 0.2
    %v1137 = vmul.f32 %v1009, 0.2
    %v1138 = vmul.f32 %v1010, 0.2
    %v1139 = vmul.f32 %v1011, 0.2
    %v1140 = vmul.f32 %v1012, 0.2
    %v1141 = vmul.f32 %v1013, 0.2
    %v1142 = vmul.f32 %v1014, 0.2
    %v1143 = vmul.f32 %v1015, 0.2
    %v1144 = vmul.f32 %v1016, 0.2
    %v1145 = vmul.f32 %v1017, 0.2
    %v1146 = vmul.f32 %v1018, 0.2
    %v1147 = vmul.f32 %v1019, 0.2
    %v1148 = vmul.f32 %v1020, 0.2
    %v1149 = vmul.f32 %v1021, 0.2
    %v1150 = vsel %vm1022, %v958, %v1086
    %v1151 = vsel %vm1023, %v959, %v1087
    %v1152 = vsel %vm1024, %v960, %v1088
    %v1153 = vsel %vm1025, %v961, %v1089
    %v1154 = vsel %vm1026, %v962, %v1090
    %v1155 = vsel %vm1027, %v963, %v1091
    %v1156 = vsel %vm1028, %v964, %v1092
    %v1157 = vsel %vm1029, %v965, %v1093
    %v1158 = vsel %vm1030, %v966, %v1094
    %v1159 = vsel %vm1031, %v967, %v1095
    %v1160 = vsel %vm1032, %v968, %v1096
    %v1161 = vsel %vm1033, %v969, %v1097
    %v1162 = vsel %vm1034, %v970, %v1098
    %v1163 = vsel %vm1035, %v971, %v1099
    %v1164 = vsel %vm1036, %v972, %v1100
    %v1165 = vsel %vm1037, %v973, %v1101
    %v1166 = vsel %vm1038, %v974, %v1102
    %v1167 = vsel %vm1039, %v975, %v1103
    %v1168 = vsel %vm1040, %v976, %v1104
    %v1169 = vsel %vm1041, %v977, %v1105
    %v1170 = vsel %vm1042, %v978, %v1106
    %v1171 = vsel %vm1043, %v979, %v1107
    %v1172 = vsel %vm1044, %v980, %v1108
    %v1173 = vsel %vm1045, %v981, %v1109
    %v1174 = vsel %vm1046, %v982, %v1110
    %v1175 = vsel %vm1047, %v983, %v1111
    %v1176 = vsel %vm1048, %v984, %v1112
    %v1177 = vsel %vm1049, %v985, %v1113
    %v1178 = vsel %vm1050, %v986, %v1114
    %v1179 = vsel %vm1051, %v987, %v1115
    %v1180 = vsel %vm1052, %v988, %v1116
    %v1181 = vsel %vm1053, %v989, %v1117
    %v1182 = vsel %vm1054, %v990, %v1118
    %v1183 = vsel %vm1055, %v991, %v1119
    %v1184 = vsel %vm1056, %v992, %v1120
    %v1185 = vsel %vm1057, %v993, %v1121
    %v1186 = vsel %vm1058, %v994, %v1122
    %v1187 = vsel %vm1059, %v995, %v1123
    %v1188 = vsel %vm1060, %v996, %v1124
    %v1189 = vsel %vm1061, %v997, %v1125
    %v1190 = vsel %vm1062, %v998, %v1126
    %v1191 = vsel %vm1063, %v999, %v1127
    %v1192 = vsel %vm1064, %v1000, %v1128
    %v1193 = vsel %vm1065, %v1001, %v1129
    %v1194 = vsel %vm1066, %v1002, %v1130
    %v1195 = vsel %vm1067, %v1003, %v1131
    %v1196 = vsel %vm1068, %v1004, %v1132
    %v1197 = vsel %vm1069, %v1005, %v1133
    %v1198 = vsel %vm1070, %v1006, %v1134
    %v1199 = vsel %vm1071, %v1007, %v1135
    %v1200 = vsel %vm1072, %v1008, %v1136
    %v1201 = vsel %vm1073, %v1009, %v1137
    %v1202 = vsel %vm1074, %v1010, %v1138
    %v1203 = vsel %vm1075, %v1011, %v1139
    %v1204 = vsel %vm1076, %v1012, %v1140
    %v1205 = vsel %vm1077, %v1013, %v1141
    %v1206 = vsel %vm1078, %v1014, %v1142
    %v1207 = vsel %vm1079, %v1015, %v1143
    %v1208 = vsel %vm1080, %v1016, %v1144
    %v1209 = vsel %vm1081, %v1017, %v1145
    %v1210 = vsel %vm1082, %v1018, %v1146
    %v1211 = vsel %vm1083, %v1019, %v1147
    %v1212 = vsel %vm1084, %v1020, %v1148
    %v1213 = vsel %vm1085, %v1021, %v1149
    %v1214 = vpack.c.bf16 %v1151, %v1150
    %v1215 = vpack.c.bf16 %v1153, %v1152
    %v1216 = vpack.c.bf16 %v1155, %v1154
    %v1217 = vpack.c.bf16 %v1157, %v1156
    %v1218 = vpack.c.bf16 %v1159, %v1158
    %v1219 = vpack.c.bf16 %v1161, %v1160
    %v1220 = vpack.c.bf16 %v1163, %v1162
    %v1221 = vpack.c.bf16 %v1165, %v1164
    %v1222 = vpack.c.bf16 %v1167, %v1166
    %v1223 = vpack.c.bf16 %v1169, %v1168
    %v1224 = vpack.c.bf16 %v1171, %v1170
    %v1225 = vpack.c.bf16 %v1173, %v1172
    %v1226 = vpack.c.bf16 %v1175, %v1174
    %v1227 = vpack.c.bf16 %v1177, %v1176
    %v1228 = vpack.c.bf16 %v1179, %v1178
    %v1229 = vpack.c.bf16 %v1181, %v1180
    %v1230 = vpack.c.bf16 %v1183, %v1182
    %v1231 = vpack.c.bf16 %v1185, %v1184
    %v1232 = vpack.c.bf16 %v1187, %v1186
    %v1233 = vpack.c.bf16 %v1189, %v1188
    %v1234 = vpack.c.bf16 %v1191, %v1190
    %v1235 = vpack.c.bf16 %v1193, %v1192
    %v1236 = vpack.c.bf16 %v1195, %v1194
    %v1237 = vpack.c.bf16 %v1197, %v1196
    %v1238 = vpack.c.bf16 %v1199, %v1198
    %v1239 = vpack.c.bf16 %v1201, %v1200
    %v1240 = vpack.c.bf16 %v1203, %v1202
    %v1241 = vpack.c.bf16 %v1205, %v1204
    %v1242 = vpack.c.bf16 %v1207, %v1206
    %v1243 = vpack.c.bf16 %v1209, %v1208
    %v1244 = vpack.c.bf16 %v1211, %v1210
    %v1245 = vpack.c.bf16 %v1213, %v1212
    %v1278 = vunpack.c.l.b16 %v1214
    %v1279 = vunpack.c.h.b16 %v1214
    %v1280 = vunpack.c.l.b16 %v1215
    %v1281 = vunpack.c.h.b16 %v1215
    %v1282 = vunpack.c.l.b16 %v1216
    %v1283 = vunpack.c.h.b16 %v1216
    %v1284 = vunpack.c.l.b16 %v1217
    %v1285 = vunpack.c.h.b16 %v1217
    %v1286 = vunpack.c.l.b16 %v1218
    %v1287 = vunpack.c.h.b16 %v1218
    %v1288 = vunpack.c.l.b16 %v1219
    %v1289 = vunpack.c.h.b16 %v1219
    %v1290 = vunpack.c.l.b16 %v1220
    %v1291 = vunpack.c.h.b16 %v1220
    %v1292 = vunpack.c.l.b16 %v1221
    %v1293 = vunpack.c.h.b16 %v1221
    %v1294 = vunpack.c.l.b16 %v1222
    %v1295 = vunpack.c.h.b16 %v1222
    %v1296 = vunpack.c.l.b16 %v1223
    %v1297 = vunpack.c.h.b16 %v1223
    %v1298 = vunpack.c.l.b16 %v1224
    %v1299 = vunpack.c.h.b16 %v1224
    %v1300 = vunpack.c.l.b16 %v1225
    %v1301 = vunpack.c.h.b16 %v1225
    %v1302 = vunpack.c.l.b16 %v1226
    %v1303 = vunpack.c.h.b16 %v1226
    %v1304 = vunpack.c.l.b16 %v1227
    %v1305 = vunpack.c.h.b16 %v1227
    %v1306 = vunpack.c.l.b16 %v1228
    %v1307 = vunpack.c.h.b16 %v1228
    %v1308 = vunpack.c.l.b16 %v1229
    %v1309 = vunpack.c.h.b16 %v1229
    %v1310 = vunpack.c.l.b16 %v1230
    %v1311 = vunpack.c.h.b16 %v1230
    %v1312 = vunpack.c.l.b16 %v1231
    %v1313 = vunpack.c.h.b16 %v1231
    %v1314 = vunpack.c.l.b16 %v1232
    %v1315 = vunpack.c.h.b16 %v1232
    %v1316 = vunpack.c.l.b16 %v1233
    %v1317 = vunpack.c.h.b16 %v1233
    %v1318 = vunpack.c.l.b16 %v1234
    %v1319 = vunpack.c.h.b16 %v1234
    %v1320 = vunpack.c.l.b16 %v1235
    %v1321 = vunpack.c.h.b16 %v1235
    %v1322 = vunpack.c.l.b16 %v1236
    %v1323 = vunpack.c.h.b16 %v1236
    %v1324 = vunpack.c.l.b16 %v1237
    %v1325 = vunpack.c.h.b16 %v1237
    %v1326 = vunpack.c.l.b16 %v1238
    %v1327 = vunpack.c.h.b16 %v1238
    %v1328 = vunpack.c.l.b16 %v1239
    %v1329 = vunpack.c.h.b16 %v1239
    %v1330 = vunpack.c.l.b16 %v1240
    %v1331 = vunpack.c.h.b16 %v1240
    %v1332 = vunpack.c.l.b16 %v1241
    %v1333 = vunpack.c.h.b16 %v1241
    %v1334 = vunpack.c.l.b16 %v1242
    %v1335 = vunpack.c.h.b16 %v1242
    %v1336 = vunpack.c.l.b16 %v1243
    %v1337 = vunpack.c.h.b16 %v1243
    %v1338 = vunpack.c.l.b16 %v1244
    %v1339 = vunpack.c.h.b16 %v1244
    %v1340 = vunpack.c.l.b16 %v1245
    %v1341 = vunpack.c.h.b16 %v1245
    %v1342 = vpack.c.b16 %v1278, %v1278
    %v1343 = vpack.c.b16 %v1279, %v1279
    %v1344 = vpack.c.b16 %v1280, %v1280
    %v1345 = vpack.c.b16 %v1281, %v1281
    %v1346 = vpack.c.b16 %v1282, %v1282
    %v1347 = vpack.c.b16 %v1283, %v1283
    %v1348 = vpack.c.b16 %v1284, %v1284
    %v1349 = vpack.c.b16 %v1285, %v1285
    %v1350 = vpack.c.b16 %v1286, %v1286
    %v1351 = vpack.c.b16 %v1287, %v1287
    %v1352 = vpack.c.b16 %v1288, %v1288
    %v1353 = vpack.c.b16 %v1289, %v1289
    %v1354 = vpack.c.b16 %v1290, %v1290
    %v1355 = vpack.c.b16 %v1291, %v1291
    %v1356 = vpack.c.b16 %v1292, %v1292
    %v1357 = vpack.c.b16 %v1293, %v1293
    %v1358 = vpack.c.b16 %v1294, %v1294
    %v1359 = vpack.c.b16 %v1295, %v1295
    %v1360 = vpack.c.b16 %v1296, %v1296
    %v1361 = vpack.c.b16 %v1297, %v1297
    %v1362 = vpack.c.b16 %v1298, %v1298
    %v1363 = vpack.c.b16 %v1299, %v1299
    %v1364 = vpack.c.b16 %v1300, %v1300
    %v1365 = vpack.c.b16 %v1301, %v1301
    %v1366 = vpack.c.b16 %v1302, %v1302
    %v1367 = vpack.c.b16 %v1303, %v1303
    %v1368 = vpack.c.b16 %v1304, %v1304
    %v1369 = vpack.c.b16 %v1305, %v1305
    %v1370 = vpack.c.b16 %v1306, %v1306
    %v1371 = vpack.c.b16 %v1307, %v1307
    %v1372 = vpack.c.b16 %v1308, %v1308
    %v1373 = vpack.c.b16 %v1309, %v1309
    %v1374 = vpack.c.b16 %v1310, %v1310
    %v1375 = vpack.c.b16 %v1311, %v1311
    %v1376 = vpack.c.b16 %v1312, %v1312
    %v1377 = vpack.c.b16 %v1313, %v1313
    %v1378 = vpack.c.b16 %v1314, %v1314
    %v1379 = vpack.c.b16 %v1315, %v1315
    %v1380 = vpack.c.b16 %v1316, %v1316
    %v1381 = vpack.c.b16 %v1317, %v1317
    %v1382 = vpack.c.b16 %v1318, %v1318
    %v1383 = vpack.c.b16 %v1319, %v1319
    %v1384 = vpack.c.b16 %v1320, %v1320
    %v1385 = vpack.c.b16 %v1321, %v1321
    %v1386 = vpack.c.b16 %v1322, %v1322
    %v1387 = vpack.c.b16 %v1323, %v1323
    %v1388 = vpack.c.b16 %v1324, %v1324
    %v1389 = vpack.c.b16 %v1325, %v1325
    %v1390 = vpack.c.b16 %v1326, %v1326
    %v1391 = vpack.c.b16 %v1327, %v1327
    %v1392 = vpack.c.b16 %v1328, %v1328
    %v1393 = vpack.c.b16 %v1329, %v1329
    %v1394 = vpack.c.b16 %v1330, %v1330
    %v1395 = vpack.c.b16 %v1331, %v1331
    %v1396 = vpack.c.b16 %v1332, %v1332
    %v1397 = vpack.c.b16 %v1333, %v1333
    %v1398 = vpack.c.b16 %v1334, %v1334
    %v1399 = vpack.c.b16 %v1335, %v1335
    %v1400 = vpack.c.b16 %v1336, %v1336
    %v1401 = vpack.c.b16 %v1337, %v1337
    %v1402 = vpack.c.b16 %v1338, %v1338
    %v1403 = vpack.c.b16 %v1339, %v1339
    %v1404 = vpack.c.b16 %v1340, %v1340
    %v1405 = vpack.c.b16 %v1341, %v1341
    %1470 = vst [vmem:[%s3] sm:$0xf] %v1342
    %1471 = vst [vmem:[%s3 + $0x4] sm:$0xf] %v1343
    %1472 = vst [vmem:[%s3 + $0x8] sm:$0xf] %v1344
    %1473 = vst [vmem:[%s3 + $0xc] sm:$0xf] %v1345
    %1474 = vst [vmem:[%s3 + $0x10] sm:$0xf] %v1346
    %1475 = vst [vmem:[%s3 + $0x14] sm:$0xf] %v1347
    %1476 = vst [vmem:[%s3 + $0x18] sm:$0xf] %v1348
    %1477 = vst [vmem:[%s3 + $0x1c] sm:$0xf] %v1349
    %1478 = vst [vmem:[%s3 + $0x20] sm:$0xf] %v1350
    %1479 = vst [vmem:[%s3 + $0x24] sm:$0xf] %v1351
    %1480 = vst [vmem:[%s3 + $0x28] sm:$0xf] %v1352
    %1481 = vst [vmem:[%s3 + $0x2c] sm:$0xf] %v1353
    %1482 = vst [vmem:[%s3 + $0x30] sm:$0xf] %v1354
    %1483 = vst [vmem:[%s3 + $0x34] sm:$0xf] %v1355
    %1484 = vst [vmem:[%s3 + $0x38] sm:$0xf] %v1356
    %1485 = vst [vmem:[%s3 + $0x3c] sm:$0xf] %v1357
    %1486 = vst [vmem:[%s3 + $0x40] sm:$0xf] %v1358
    %1487 = vst [vmem:[%s3 + $0x44] sm:$0xf] %v1359
    %1488 = vst [vmem:[%s3 + $0x48] sm:$0xf] %v1360
    %1489 = vst [vmem:[%s3 + $0x4c] sm:$0xf] %v1361
    %1490 = vst [vmem:[%s3 + $0x50] sm:$0xf] %v1362
    %1491 = vst [vmem:[%s3 + $0x54] sm:$0xf] %v1363
    %1492 = vst [vmem:[%s3 + $0x58] sm:$0xf] %v1364
    %1493 = vst [vmem:[%s3 + $0x5c] sm:$0xf] %v1365
    %1494 = vst [vmem:[%s3 + $0x60] sm:$0xf] %v1366
    %1495 = vst [vmem:[%s3 + $0x64] sm:$0xf] %v1367
    %1496 = vst [vmem:[%s3 + $0x68] sm:$0xf] %v1368
    %1497 = vst [vmem:[%s3 + $0x6c] sm:$0xf] %v1369
    %1498 = vst [vmem:[%s3 + $0x70] sm:$0xf] %v1370
    %1499 = vst [vmem:[%s3 + $0x74] sm:$0xf] %v1371
    %1500 = vst [vmem:[%s3 + $0x78] sm:$0xf] %v1372
    %1501 = vst [vmem:[%s3 + $0x7c] sm:$0xf] %v1373
    %1502 = vst [vmem:[%s3 + $0x80] sm:$0xf] %v1374
    %1503 = vst [vmem:[%s3 + $0x84] sm:$0xf] %v1375
    %1504 = vst [vmem:[%s3 + $0x88] sm:$0xf] %v1376
    %1505 = vst [vmem:[%s3 + $0x8c] sm:$0xf] %v1377
    %1506 = vst [vmem:[%s3 + $0x90] sm:$0xf] %v1378
    %1507 = vst [vmem:[%s3 + $0x94] sm:$0xf] %v1379
    %1508 = vst [vmem:[%s3 + $0x98] sm:$0xf] %v1380
    %1509 = vst [vmem:[%s3 + $0x9c] sm:$0xf] %v1381
    %1510 = vst [vmem:[%s3 + $0xa0] sm:$0xf] %v1382
    %1511 = vst [vmem:[%s3 + $0xa4] sm:$0xf] %v1383
    %1512 = vst [vmem:[%s3 + $0xa8] sm:$0xf] %v1384
    %1513 = vst [vmem:[%s3 + $0xac] sm:$0xf] %v1385
    %1514 = vst [vmem:[%s3 + $0xb0] sm:$0xf] %v1386
    %1515 = vst [vmem:[%s3 + $0xb4] sm:$0xf] %v1387
    %1516 = vst [vmem:[%s3 + $0xb8] sm:$0xf] %v1388
    %1517 = vst [vmem:[%s3 + $0xbc] sm:$0xf] %v1389
    %1518 = vst [vmem:[%s3 + $0xc0] sm:$0xf] %v1390
    %1519 = vst [vmem:[%s3 + $0xc4] sm:$0xf] %v1391
    %1520 = vst [vmem:[%s3 + $0xc8] sm:$0xf] %v1392
    %1521 = vst [vmem:[%s3 + $0xcc] sm:$0xf] %v1393
    %1522 = vst [vmem:[%s3 + $0xd0] sm:$0xf] %v1394
    %1523 = vst [vmem:[%s3 + $0xd4] sm:$0xf] %v1395
    %1524 = vst [vmem:[%s3 + $0xd8] sm:$0xf] %v1396
    %1525 = vst [vmem:[%s3 + $0xdc] sm:$0xf] %v1397
    %1526 = vst [vmem:[%s3 + $0xe0] sm:$0xf] %v1398
    %1527 = vst [vmem:[%s3 + $0xe4] sm:$0xf] %v1399
    %1528 = vst [vmem:[%s3 + $0xe8] sm:$0xf] %v1400
    %1529 = vst [vmem:[%s3 + $0xec] sm:$0xf] %v1401
    %1530 = vst [vmem:[%s3 + $0xf0] sm:$0xf] %v1402
    %1531 = vst [vmem:[%s3 + $0xf4] sm:$0xf] %v1403
    %1532 = vst [vmem:[%s3 + $0xf8] sm:$0xf] %v1404
    %1533 = vst [vmem:[%s3 + $0xfc] sm:$0xf] %v1405
  $region21: #{g_unet_add_middle_forward.10} parent=0 // pred_fallthru
    _
  // Predicated region
  $region22: #{g_unet_add_middle_forward.10} parent=0 // pred_check
    _
  $region23: #{g_unet_add_middle_forward.10} parent=0 // pred_check_branch
    %1535 = sbr.rel (0) target = $region25
  $region24: #{g_unet_add_middle_forward.10} parent=0 // pred_region
    _
  $region25: #{g_unet_add_middle_forward.10} parent=0 // pred_fallthru
    _
  // Predicated region
  $region26: #{g_unet_add_middle_forward.10} parent=0 // pred_check
    _
  $region27: #{g_unet_add_middle_forward.10} parent=0 // pred_check_branch
    %1537 = sbr.rel (0) target = $region29
  $region28: #{g_unet_add_middle_forward.10} parent=0 // pred_region
    _
  $region29: #{g_unet_add_middle_forward.10} parent=0 // pred_fallthru
    _

// kernel: g_unet_add_middle_forward.11
$region0: #{g_unet_add_middle_forward.11}
  #allocation0 [shape = 'u32[]', space=smem, size = 0x4, offset = 0x4, fixed_abs, tag = 'smem constant byte address 0x4 - core index']
  #allocation1 [shape = 'u32[144,128]{1,0:T(1,128)}', space=vmem, size = 0x12000, scoped, tag = 'internal scratch']
  #allocation2 [shape = 'f32[128,128]{1,0:T(8,128)}', space=vmem, size = 0x10000, scoped, tag = 'scratch operand']
  %s0 = inlined_call_operand.vmem [shape: bf16[1,128,128], index: 0, kind: input, shape index: {}]
  %s1 = inlined_call_operand.vmem [shape: bf16[1,128,128], index: 1, kind: input, shape index: {}]
  %s2 = inlined_call_operand.vmem [shape: f32[1,128], index: 2, kind: input, shape index: {}]
  %s3 = inlined_call_operand.vmem [shape: bf16[1,128,128], index: 3, kind: output, shape index: {}]
  %s4 = sld [smem:[#allocation0]]
  $region30: #{g_unet_add_middle_forward.11} parent=0
    _
  %s6 = ssub.s32 1, %s4
  %s7 = scalar_select 0, %s6, %s4
  // Predicated region
  $region2: #{g_unet_add_middle_forward.11} parent=0 // pred_check
    _
  $region3: #{g_unet_add_middle_forward.11} parent=0 // pred_check_branch
    %9 = sbr.rel (0) target = $region5
  $region4: #{g_unet_add_middle_forward.11} parent=0 // pred_region
    _
  $region5: #{g_unet_add_middle_forward.11} parent=0 // pred_fallthru
    _
  // Predicated region
  $region6: #{g_unet_add_middle_forward.11} parent=0 // pred_check
    _
  $region7: #{g_unet_add_middle_forward.11} parent=0 // pred_check_branch
    %11 = sbr.rel (0) target = $region9
  $region8: #{g_unet_add_middle_forward.11} parent=0 // pred_region
    _
  $region9: #{g_unet_add_middle_forward.11} parent=0 // pred_fallthru
    _
  // Predicated region
  $region10: #{g_unet_add_middle_forward.11} parent=0 // pred_check
    _
  $region11: #{g_unet_add_middle_forward.11} parent=0 // pred_check_branch
    %13 = sbr.rel (0) target = $region13
  $region12: #{g_unet_add_middle_forward.11} parent=0 // pred_region
    _
  $region13: #{g_unet_add_middle_forward.11} parent=0 // pred_fallthru
    _
  %p15 = scmp.eq.s32.totalorder 0, 0
  // Predicated region
  $region14: #{g_unet_add_middle_forward.11} parent=0 // pred_check
    %p16 = pneg %p15
  $region15: #{g_unet_add_middle_forward.11} parent=0 // pred_check_branch
    %18 = sbr.rel (%p16) target = $region17
  $region16: #{g_unet_add_middle_forward.11} parent=0 // pred_region
    %19 = vst [vmem:[#allocation2] sm:$0xff] 0.0
    %20 = vst [vmem:[#allocation2 + $0x8] sm:$0xff] 0.0
    %21 = vst [vmem:[#allocation2 + $0x10] sm:$0xff] 0.0
    %22 = vst [vmem:[#allocation2 + $0x18] sm:$0xff] 0.0
    %23 = vst [vmem:[#allocation2 + $0x20] sm:$0xff] 0.0
    %24 = vst [vmem:[#allocation2 + $0x28] sm:$0xff] 0.0
    %25 = vst [vmem:[#allocation2 + $0x30] sm:$0xff] 0.0
    %26 = vst [vmem:[#allocation2 + $0x38] sm:$0xff] 0.0
    %27 = vst [vmem:[#allocation2 + $0x40] sm:$0xff] 0.0
    %28 = vst [vmem:[#allocation2 + $0x48] sm:$0xff] 0.0
    %29 = vst [vmem:[#allocation2 + $0x50] sm:$0xff] 0.0
    %30 = vst [vmem:[#allocation2 + $0x58] sm:$0xff] 0.0
    %31 = vst [vmem:[#allocation2 + $0x60] sm:$0xff] 0.0
    %32 = vst [vmem:[#allocation2 + $0x68] sm:$0xff] 0.0
    %33 = vst [vmem:[#allocation2 + $0x70] sm:$0xff] 0.0
    %34 = vst [vmem:[#allocation2 + $0x78] sm:$0xff] 0.0
  $region17: #{g_unet_add_middle_forward.11} parent=0 // pred_fallthru
    _
  %v35 = vld [vmem:[#allocation2] sm:$0xff]
  %v36 = vld [vmem:[#allocation2 + $0x8] sm:$0xff]
  %v37 = vld [vmem:[#allocation2 + $0x10] sm:$0xff]
  %v38 = vld [vmem:[#allocation2 + $0x18] sm:$0xff]
  %v39 = vld [vmem:[#allocation2 + $0x20] sm:$0xff]
  %v40 = vld [vmem:[#allocation2 + $0x28] sm:$0xff]
  %v41 = vld [vmem:[#allocation2 + $0x30] sm:$0xff]
  %v42 = vld [vmem:[#allocation2 + $0x38] sm:$0xff]
  %v43 = vld [vmem:[#allocation2 + $0x40] sm:$0xff]
  %v44 = vld [vmem:[#allocation2 + $0x48] sm:$0xff]
  %v45 = vld [vmem:[#allocation2 + $0x50] sm:$0xff]
  %v46 = vld [vmem:[#allocation2 + $0x58] sm:$0xff]
  %v47 = vld [vmem:[#allocation2 + $0x60] sm:$0xff]
  %v48 = vld [vmem:[#allocation2 + $0x68] sm:$0xff]
  %v49 = vld [vmem:[#allocation2 + $0x70] sm:$0xff]
  %v50 = vld [vmem:[#allocation2 + $0x78] sm:$0xff]
  %v51 = vld [vmem:[%s0] sm:$0xf]
  %v52 = vld [vmem:[%s0 + $0x4] sm:$0xf]
  %v53 = vld [vmem:[%s0 + $0x8] sm:$0xf]
  %v54 = vld [vmem:[%s0 + $0xc] sm:$0xf]
  %v55 = vld [vmem:[%s0 + $0x10] sm:$0xf]
  %v56 = vld [vmem:[%s0 + $0x14] sm:$0xf]
  %v57 = vld [vmem:[%s0 + $0x18] sm:$0xf]
  %v58 = vld [vmem:[%s0 + $0x1c] sm:$0xf]
  %v59 = vld [vmem:[%s0 + $0x20] sm:$0xf]
  %v60 = vld [vmem:[%s0 + $0x24] sm:$0xf]
  %v61 = vld [vmem:[%s0 + $0x28] sm:$0xf]
  %v62 = vld [vmem:[%s0 + $0x2c] sm:$0xf]
  %v63 = vld [vmem:[%s0 + $0x30] sm:$0xf]
  %v64 = vld [vmem:[%s0 + $0x34] sm:$0xf]
  %v65 = vld [vmem:[%s0 + $0x38] sm:$0xf]
  %v66 = vld [vmem:[%s0 + $0x3c] sm:$0xf]
  %v67 = vld [vmem:[%s1] sm:$0xf]
  %v68 = vld [vmem:[%s1 + $0x4] sm:$0xf]
  %v69 = vld [vmem:[%s1 + $0x8] sm:$0xf]
  %v70 = vld [vmem:[%s1 + $0xc] sm:$0xf]
  %v71 = vld [vmem:[%s1 + $0x10] sm:$0xf]
  %v72 = vld [vmem:[%s1 + $0x14] sm:$0xf]
  %v73 = vld [vmem:[%s1 + $0x18] sm:$0xf]
  %v74 = vld [vmem:[%s1 + $0x1c] sm:$0xf]
  %v75 = vld [vmem:[%s1 + $0x20] sm:$0xf]
  %v76 = vld [vmem:[%s1 + $0x24] sm:$0xf]
  %v77 = vld [vmem:[%s1 + $0x28] sm:$0xf]
  %v78 = vld [vmem:[%s1 + $0x2c] sm:$0xf]
  %v79 = vld [vmem:[%s1 + $0x30] sm:$0xf]
  %v80 = vld [vmem:[%s1 + $0x34] sm:$0xf]
  %v81 = vld [vmem:[%s1 + $0x38] sm:$0xf]
  %v82 = vld [vmem:[%s1 + $0x3c] sm:$0xf]
  %v99 = vunpack.c.l.b16 %v51
  %v100 = vunpack.c.l.b16 %v52
  %v101 = vunpack.c.l.b16 %v53
  %v102 = vunpack.c.l.b16 %v54
  %v103 = vunpack.c.l.b16 %v55
  %v104 = vunpack.c.l.b16 %v56
  %v105 = vunpack.c.l.b16 %v57
  %v106 = vunpack.c.l.b16 %v58
  %v107 = vunpack.c.l.b16 %v59
  %v108 = vunpack.c.l.b16 %v60
  %v109 = vunpack.c.l.b16 %v61
  %v110 = vunpack.c.l.b16 %v62
  %v111 = vunpack.c.l.b16 %v63
  %v112 = vunpack.c.l.b16 %v64
  %v113 = vunpack.c.l.b16 %v65
  %v114 = vunpack.c.l.b16 %v66
  %v115 = vpack.c.b16 %v100, %v99
  %v116 = vpack.c.b16 %v102, %v101
  %v117 = vpack.c.b16 %v104, %v103
  %v118 = vpack.c.b16 %v106, %v105
  %v119 = vpack.c.b16 %v108, %v107
  %v120 = vpack.c.b16 %v110, %v109
  %v121 = vpack.c.b16 %v112, %v111
  %v122 = vpack.c.b16 %v114, %v113
  %v147 = vunpack.c.l.b16 %v67
  %v148 = vunpack.c.l.b16 %v68
  %v149 = vunpack.c.l.b16 %v69
  %v150 = vunpack.c.l.b16 %v70
  %v151 = vunpack.c.l.b16 %v71
  %v152 = vunpack.c.l.b16 %v72
  %v153 = vunpack.c.l.b16 %v73
  %v154 = vunpack.c.l.b16 %v74
  %v155 = vunpack.c.l.b16 %v75
  %v156 = vunpack.c.l.b16 %v76
  %v157 = vunpack.c.l.b16 %v77
  %v158 = vunpack.c.l.b16 %v78
  %v159 = vunpack.c.l.b16 %v79
  %v160 = vunpack.c.l.b16 %v80
  %v161 = vunpack.c.l.b16 %v81
  %v162 = vunpack.c.l.b16 %v82
  %v163 = vpack.c.b16 %v148, %v147
  %v164 = vpack.c.b16 %v150, %v149
  %v165 = vpack.c.b16 %v152, %v151
  %v166 = vpack.c.b16 %v154, %v153
  %v167 = vpack.c.b16 %v156, %v155
  %v168 = vpack.c.b16 %v158, %v157
  %v169 = vpack.c.b16 %v160, %v159
  %v170 = vpack.c.b16 %v162, %v161
  %179 = vmatprep.subr.bf16.mxu0 0
  %180 = vmatpush1.bf16.msra.mxu0 %v163
  %181 = vmatprep.subr.bf16.mxu0 0
  %182 = vmatpush1.bf16.msra.mxu0 %v164
  %183 = vmatprep.subr.bf16.mxu0 0
  %184 = vmatpush1.bf16.msra.mxu0 %v165
  %185 = vmatprep.subr.bf16.mxu0 0
  %186 = vmatpush1.bf16.msra.mxu0 %v166
  %187 = vmatprep.subr.bf16.mxu0 0
  %188 = vmatpush1.bf16.msra.mxu0 %v167
  %189 = vmatprep.subr.bf16.mxu0 0
  %190 = vmatpush1.bf16.msra.mxu0 %v168
  %191 = vmatprep.subr.bf16.mxu0 0
  %192 = vmatpush1.bf16.msra.mxu0 %v169
  %193 = vmatprep.subr.bf16.mxu0 0
  %194 = vmatpush1.bf16.msra.mxu0 %v170
  %195 = vmatprep.subr.bf16.mxu0 0
  %196 = vmatpush1.bf16.msra.mxu0 0
  %197 = vmatprep.subr.bf16.mxu0 0
  %198 = vmatpush1.bf16.msra.mxu0 0
  %199 = vmatprep.subr.bf16.mxu0 0
  %200 = vmatpush1.bf16.msra.mxu0 0
  %201 = vmatprep.subr.bf16.mxu0 0
  %202 = vmatpush1.bf16.msra.mxu0 0
  %203 = vmatprep.subr.bf16.mxu0 0
  %204 = vmatpush1.bf16.msra.mxu0 0
  %205 = vmatprep.subr.bf16.mxu0 0
  %206 = vmatpush1.bf16.msra.mxu0 0
  %207 = vmatprep.subr.bf16.mxu0 0
  %208 = vmatpush1.bf16.msra.mxu0 0
  %209 = vmatprep.subr.bf16.mxu0 0
  %210 = vmatpush1.bf16.msra.mxu0 0
  %211 = vmatprep.mubr.bf16.mxu0 0
  %212 = vmatmul.mubr.bf16.gmra.mrb[0].mxu0 %v115
  %v213 = vpop.f32.mrb[0].mxu0
  %v214 = vadd.f32 0.0, %v213
  %v215 = vpop.f32.mrb[0].mxu0
  %v216 = vpop.f32.mrb[0].mxu0
  %v217 = vadd.f32 0.0, %v216
  %v218 = vpop.f32.mrb[0].mxu0
  %219 = vmatprep.mubr.bf16.mxu0 0
  %220 = vmatmul.mubr.bf16.gmra.mrb[0].mxu0 %v116
  %v221 = vpop.f32.mrb[0].mxu0
  %v222 = vadd.f32 0.0, %v221
  %v223 = vpop.f32.mrb[0].mxu0
  %v224 = vpop.f32.mrb[0].mxu0
  %v225 = vadd.f32 0.0, %v224
  %v226 = vpop.f32.mrb[0].mxu0
  %227 = vmatprep.mubr.bf16.mxu0 0
  %228 = vmatmul.mubr.bf16.gmra.mrb[0].mxu0 %v117
  %v229 = vpop.f32.mrb[0].mxu0
  %v230 = vadd.f32 0.0, %v229
  %v231 = vpop.f32.mrb[0].mxu0
  %v232 = vpop.f32.mrb[0].mxu0
  %v233 = vadd.f32 0.0, %v232
  %v234 = vpop.f32.mrb[0].mxu0
  %235 = vmatprep.mubr.bf16.mxu0 0
  %236 = vmatmul.mubr.bf16.gmra.mrb[0].mxu0 %v118
  %v237 = vpop.f32.mrb[0].mxu0
  %v238 = vadd.f32 0.0, %v237
  %v239 = vpop.f32.mrb[0].mxu0
  %v240 = vpop.f32.mrb[0].mxu0
  %v241 = vadd.f32 0.0, %v240
  %v242 = vpop.f32.mrb[0].mxu0
  %243 = vmatprep.mubr.bf16.mxu0 0
  %244 = vmatmul.mubr.bf16.gmra.mrb[0].mxu0 %v119
  %v245 = vpop.f32.mrb[0].mxu0
  %v246 = vadd.f32 0.0, %v245
  %v247 = vpop.f32.mrb[0].mxu0
  %v248 = vpop.f32.mrb[0].mxu0
  %v249 = vadd.f32 0.0, %v248
  %v250 = vpop.f32.mrb[0].mxu0
  %251 = vmatprep.mubr.bf16.mxu0 0
  %252 = vmatmul.mubr.bf16.gmra.mrb[0].mxu0 %v120
  %v253 = vpop.f32.mrb[0].mxu0
  %v254 = vadd.f32 0.0, %v253
  %v255 = vpop.f32.mrb[0].mxu0
  %v256 = vpop.f32.mrb[0].mxu0
  %v257 = vadd.f32 0.0, %v256
  %v258 = vpop.f32.mrb[0].mxu0
  %259 = vmatprep.mubr.bf16.mxu0 0
  %260 = vmatmul.mubr.bf16.gmra.mrb[0].mxu0 %v121
  %v261 = vpop.f32.mrb[0].mxu0
  %v262 = vadd.f32 0.0, %v261
  %v263 = vpop.f32.mrb[0].mxu0
  %v264 = vpop.f32.mrb[0].mxu0
  %v265 = vadd.f32 0.0, %v264
  %v266 = vpop.f32.mrb[0].mxu0
  %267 = vmatprep.mubr.bf16.mxu0 0
  %268 = vmatmul.mubr.bf16.gmra.mrb[0].mxu0 %v122
  %v269 = vpop.f32.mrb[0].mxu0
  %v270 = vadd.f32 0.0, %v269
  %v271 = vpop.f32.mrb[0].mxu0
  %v272 = vpop.f32.mrb[0].mxu0
  %v273 = vadd.f32 0.0, %v272
  %v274 = vpop.f32.mrb[0].mxu0
  %275 = vdwg.mxu0
  %v276 = vadd.f32 %v35, %v214
  %v277 = vadd.f32 %v36, %v217
  %v278 = vadd.f32 %v37, %v222
  %v279 = vadd.f32 %v38, %v225
  %v280 = vadd.f32 %v39, %v230
  %v281 = vadd.f32 %v40, %v233
  %v282 = vadd.f32 %v41, %v238
  %v283 = vadd.f32 %v42, %v241
  %v284 = vadd.f32 %v43, %v246
  %v285 = vadd.f32 %v44, %v249
  %v286 = vadd.f32 %v45, %v254
  %v287 = vadd.f32 %v46, %v257
  %v288 = vadd.f32 %v47, %v262
  %v289 = vadd.f32 %v48, %v265
  %v290 = vadd.f32 %v49, %v270
  %v291 = vadd.f32 %v50, %v273
  %292 = vst [vmem:[#allocation2] sm:$0xff] %v276
  %293 = vst [vmem:[#allocation2 + $0x8] sm:$0xff] %v277
  %294 = vst [vmem:[#allocation2 + $0x10] sm:$0xff] %v278
  %295 = vst [vmem:[#allocation2 + $0x18] sm:$0xff] %v279
  %296 = vst [vmem:[#allocation2 + $0x20] sm:$0xff] %v280
  %297 = vst [vmem:[#allocation2 + $0x28] sm:$0xff] %v281
  %298 = vst [vmem:[#allocation2 + $0x30] sm:$0xff] %v282
  %299 = vst [vmem:[#allocation2 + $0x38] sm:$0xff] %v283
  %300 = vst [vmem:[#allocation2 + $0x40] sm:$0xff] %v284
  %301 = vst [vmem:[#allocation2 + $0x48] sm:$0xff] %v285
  %302 = vst [vmem:[#allocation2 + $0x50] sm:$0xff] %v286
  %303 = vst [vmem:[#allocation2 + $0x58] sm:$0xff] %v287
  %304 = vst [vmem:[#allocation2 + $0x60] sm:$0xff] %v288
  %305 = vst [vmem:[#allocation2 + $0x68] sm:$0xff] %v289
  %306 = vst [vmem:[#allocation2 + $0x70] sm:$0xff] %v290
  %307 = vst [vmem:[#allocation2 + $0x78] sm:$0xff] %v291
  // Predicated region
  $region18: #{g_unet_add_middle_forward.11} parent=0 // pred_check
    %p308 = pneg %p15
  $region19: #{g_unet_add_middle_forward.11} parent=0 // pred_check_branch
    %310 = sbr.rel (%p308) target = $region21
  $region20: #{g_unet_add_middle_forward.11} parent=0 // pred_region
    %v311 = vld [vmem:[#allocation2] sm:$0xff]
    %v312 = vld [vmem:[#allocation2 + $0x8] sm:$0xff]
    %v313 = vld [vmem:[#allocation2 + $0x10] sm:$0xff]
    %v314 = vld [vmem:[#allocation2 + $0x18] sm:$0xff]
    %v315 = vld [vmem:[#allocation2 + $0x20] sm:$0xff]
    %v316 = vld [vmem:[#allocation2 + $0x28] sm:$0xff]
    %v317 = vld [vmem:[#allocation2 + $0x30] sm:$0xff]
    %v318 = vld [vmem:[#allocation2 + $0x38] sm:$0xff]
    %v319 = vld [vmem:[#allocation2 + $0x40] sm:$0xff]
    %v320 = vld [vmem:[#allocation2 + $0x48] sm:$0xff]
    %v321 = vld [vmem:[#allocation2 + $0x50] sm:$0xff]
    %v322 = vld [vmem:[#allocation2 + $0x58] sm:$0xff]
    %v323 = vld [vmem:[#allocation2 + $0x60] sm:$0xff]
    %v324 = vld [vmem:[#allocation2 + $0x68] sm:$0xff]
    %v325 = vld [vmem:[#allocation2 + $0x70] sm:$0xff]
    %v326 = vld [vmem:[#allocation2 + $0x78] sm:$0xff]
    %v327 = vld [vmem:[%s2] sm:$0x1]
    %v329 = vlaneseq
    %v330 = vshrl.u32 %v329, 7
    %v331 = vsub.s32 0, %v330
    %v332 = vrot.slane %v327, %v331
    %v334 = vadd.f32 %v311, %v332
    %v335 = vadd.f32 %v312, %v332
    %v336 = vadd.f32 %v313, %v332
    %v337 = vadd.f32 %v314, %v332
    %v338 = vadd.f32 %v315, %v332
    %v339 = vadd.f32 %v316, %v332
    %v340 = vadd.f32 %v317, %v332
    %v341 = vadd.f32 %v318, %v332
    %v342 = vadd.f32 %v319, %v332
    %v343 = vadd.f32 %v320, %v332
    %v344 = vadd.f32 %v321, %v332
    %v345 = vadd.f32 %v322, %v332
    %v346 = vadd.f32 %v323, %v332
    %v347 = vadd.f32 %v324, %v332
    %v348 = vadd.f32 %v325, %v332
    %v349 = vadd.f32 %v326, %v332
    %vm350 = vcmp.ge.f32.partialorder %v334, 0.0
    %vm351 = vcmp.ge.f32.partialorder %v335, 0.0
    %vm352 = vcmp.ge.f32.partialorder %v336, 0.0
    %vm353 = vcmp.ge.f32.partialorder %v337, 0.0
    %vm354 = vcmp.ge.f32.partialorder %v338, 0.0
    %vm355 = vcmp.ge.f32.partialorder %v339, 0.0
    %vm356 = vcmp.ge.f32.partialorder %v340, 0.0
    %vm357 = vcmp.ge.f32.partialorder %v341, 0.0
    %vm358 = vcmp.ge.f32.partialorder %v342, 0.0
    %vm359 = vcmp.ge.f32.partialorder %v343, 0.0
    %vm360 = vcmp.ge.f32.partialorder %v344, 0.0
    %vm361 = vcmp.ge.f32.partialorder %v345, 0.0
    %vm362 = vcmp.ge.f32.partialorder %v346, 0.0
    %vm363 = vcmp.ge.f32.partialorder %v347, 0.0
    %vm364 = vcmp.ge.f32.partialorder %v348, 0.0
    %vm365 = vcmp.ge.f32.partialorder %v349, 0.0
    %v366 = vmul.f32 %v334, 0.2
    %v367 = vmul.f32 %v335, 0.2
    %v368 = vmul.f32 %v336, 0.2
    %v369 = vmul.f32 %v337, 0.2
    %v370 = vmul.f32 %v338, 0.2
    %v371 = vmul.f32 %v339, 0.2
    %v372 = vmul.f32 %v340, 0.2
    %v373 = vmul.f32 %v341, 0.2
    %v374 = vmul.f32 %v342, 0.2
    %v375 = vmul.f32 %v343, 0.2
    %v376 = vmul.f32 %v344, 0.2
    %v377 = vmul.f32 %v345, 0.2
    %v378 = vmul.f32 %v346, 0.2
    %v379 = vmul.f32 %v347, 0.2
    %v380 = vmul.f32 %v348, 0.2
    %v381 = vmul.f32 %v349, 0.2
    %v382 = vsel %vm350, %v334, %v366
    %v383 = vsel %vm351, %v335, %v367
    %v384 = vsel %vm352, %v336, %v368
    %v385 = vsel %vm353, %v337, %v369
    %v386 = vsel %vm354, %v338, %v370
    %v387 = vsel %vm355, %v339, %v371
    %v388 = vsel %vm356, %v340, %v372
    %v389 = vsel %vm357, %v341, %v373
    %v390 = vsel %vm358, %v342, %v374
    %v391 = vsel %vm359, %v343, %v375
    %v392 = vsel %vm360, %v344, %v376
    %v393 = vsel %vm361, %v345, %v377
    %v394 = vsel %vm362, %v346, %v378
    %v395 = vsel %vm363, %v347, %v379
    %v396 = vsel %vm364, %v348, %v380
    %v397 = vsel %vm365, %v349, %v381
    %v398 = vpack.c.bf16 %v383, %v382
    %v399 = vpack.c.bf16 %v385, %v384
    %v400 = vpack.c.bf16 %v387, %v386
    %v401 = vpack.c.bf16 %v389, %v388
    %v402 = vpack.c.bf16 %v391, %v390
    %v403 = vpack.c.bf16 %v393, %v392
    %v404 = vpack.c.bf16 %v395, %v394
    %v405 = vpack.c.bf16 %v397, %v396
    %v414 = vunpack.c.l.b16 %v398
    %v415 = vunpack.c.h.b16 %v398
    %v416 = vunpack.c.l.b16 %v399
    %v417 = vunpack.c.h.b16 %v399
    %v418 = vunpack.c.l.b16 %v400
    %v419 = vunpack.c.h.b16 %v400
    %v420 = vunpack.c.l.b16 %v401
    %v421 = vunpack.c.h.b16 %v401
    %v422 = vunpack.c.l.b16 %v402
    %v423 = vunpack.c.h.b16 %v402
    %v424 = vunpack.c.l.b16 %v403
    %v425 = vunpack.c.h.b16 %v403
    %v426 = vunpack.c.l.b16 %v404
    %v427 = vunpack.c.h.b16 %v404
    %v428 = vunpack.c.l.b16 %v405
    %v429 = vunpack.c.h.b16 %v405
    %v430 = vpack.c.b16 %v414, %v414
    %v431 = vpack.c.b16 %v415, %v415
    %v432 = vpack.c.b16 %v416, %v416
    %v433 = vpack.c.b16 %v417, %v417
    %v434 = vpack.c.b16 %v418, %v418
    %v435 = vpack.c.b16 %v419, %v419
    %v436 = vpack.c.b16 %v420, %v420
    %v437 = vpack.c.b16 %v421, %v421
    %v438 = vpack.c.b16 %v422, %v422
    %v439 = vpack.c.b16 %v423, %v423
    %v440 = vpack.c.b16 %v424, %v424
    %v441 = vpack.c.b16 %v425, %v425
    %v442 = vpack.c.b16 %v426, %v426
    %v443 = vpack.c.b16 %v427, %v427
    %v444 = vpack.c.b16 %v428, %v428
    %v445 = vpack.c.b16 %v429, %v429
    %462 = vst [vmem:[%s3] sm:$0xf] %v430
    %463 = vst [vmem:[%s3 + $0x4] sm:$0xf] %v431
    %464 = vst [vmem:[%s3 + $0x8] sm:$0xf] %v432
    %465 = vst [vmem:[%s3 + $0xc] sm:$0xf] %v433
    %466 = vst [vmem:[%s3 + $0x10] sm:$0xf] %v434
    %467 = vst [vmem:[%s3 + $0x14] sm:$0xf] %v435
    %468 = vst [vmem:[%s3 + $0x18] sm:$0xf] %v436
    %469 = vst [vmem:[%s3 + $0x1c] sm:$0xf] %v437
    %470 = vst [vmem:[%s3 + $0x20] sm:$0xf] %v438
    %471 = vst [vmem:[%s3 + $0x24] sm:$0xf] %v439
    %472 = vst [vmem:[%s3 + $0x28] sm:$0xf] %v440
    %473 = vst [vmem:[%s3 + $0x2c] sm:$0xf] %v441
    %474 = vst [vmem:[%s3 + $0x30] sm:$0xf] %v442
    %475 = vst [vmem:[%s3 + $0x34] sm:$0xf] %v443
    %476 = vst [vmem:[%s3 + $0x38] sm:$0xf] %v444
    %477 = vst [vmem:[%s3 + $0x3c] sm:$0xf] %v445
  $region21: #{g_unet_add_middle_forward.11} parent=0 // pred_fallthru
    _
  // Predicated region
  $region22: #{g_unet_add_middle_forward.11} parent=0 // pred_check
    _
  $region23: #{g_unet_add_middle_forward.11} parent=0 // pred_check_branch
    %479 = sbr.rel (0) target = $region25
  $region24: #{g_unet_add_middle_forward.11} parent=0 // pred_region
    _
  $region25: #{g_unet_add_middle_forward.11} parent=0 // pred_fallthru
    _
  // Predicated region
  $region26: #{g_unet_add_middle_forward.11} parent=0 // pred_check
    _
  $region27: #{g_unet_add_middle_forward.11} parent=0 // pred_check_branch
    %481 = sbr.rel (0) target = $region29
  $region28: #{g_unet_add_middle_forward.11} parent=0 // pred_region
    _
  $region29: #{g_unet_add_middle_forward.11} parent=0 // pred_fallthru
    _

// kernel: g_unet_add_middle_forward.12
$region0: #{g_unet_add_middle_forward.12}
  #allocation0 [shape = 'u32[]', space=smem, size = 0x4, offset = 0x4, fixed_abs, tag = 'smem constant byte address 0x4 - core index']
  #allocation1 [shape = 'u32[144,128]{1,0:T(1,128)}', space=vmem, size = 0x12000, scoped, tag = 'internal scratch']
  #allocation2 [shape = 'f32[32,128]{1,0:T(8,128)}', space=vmem, size = 0x4000, scoped, tag = 'scratch operand']
  %s0 = inlined_call_operand.vmem [shape: bf16[1,32,128], index: 0, kind: input, shape index: {}]
  %s1 = inlined_call_operand.vmem [shape: bf16[1,128,128], index: 1, kind: input, shape index: {}]
  %s2 = inlined_call_operand.vmem [shape: f32[1,128], index: 2, kind: input, shape index: {}]
  %s3 = inlined_call_operand.vmem [shape: bf16[1,32,128], index: 3, kind: output, shape index: {}]
  %s4 = sld [smem:[#allocation0]]
  $region30: #{g_unet_add_middle_forward.12} parent=0
    _
  %s6 = ssub.s32 1, %s4
  %s7 = scalar_select 0, %s6, %s4
  // Predicated region
  $region2: #{g_unet_add_middle_forward.12} parent=0 // pred_check
    _
  $region3: #{g_unet_add_middle_forward.12} parent=0 // pred_check_branch
    %9 = sbr.rel (0) target = $region5
  $region4: #{g_unet_add_middle_forward.12} parent=0 // pred_region
    _
  $region5: #{g_unet_add_middle_forward.12} parent=0 // pred_fallthru
    _
  // Predicated region
  $region6: #{g_unet_add_middle_forward.12} parent=0 // pred_check
    _
  $region7: #{g_unet_add_middle_forward.12} parent=0 // pred_check_branch
    %11 = sbr.rel (0) target = $region9
  $region8: #{g_unet_add_middle_forward.12} parent=0 // pred_region
    _
  $region9: #{g_unet_add_middle_forward.12} parent=0 // pred_fallthru
    _
  // Predicated region
  $region10: #{g_unet_add_middle_forward.12} parent=0 // pred_check
    _
  $region11: #{g_unet_add_middle_forward.12} parent=0 // pred_check_branch
    %13 = sbr.rel (0) target = $region13
  $region12: #{g_unet_add_middle_forward.12} parent=0 // pred_region
    _
  $region13: #{g_unet_add_middle_forward.12} parent=0 // pred_fallthru
    _
  %p15 = scmp.eq.s32.totalorder 0, 0
  // Predicated region
  $region14: #{g_unet_add_middle_forward.12} parent=0 // pred_check
    %p16 = pneg %p15
  $region15: #{g_unet_add_middle_forward.12} parent=0 // pred_check_branch
    %18 = sbr.rel (%p16) target = $region17
  $region16: #{g_unet_add_middle_forward.12} parent=0 // pred_region
    %19 = vst [vmem:[#allocation2] sm:$0xff] 0.0
    %20 = vst [vmem:[#allocation2 + $0x8] sm:$0xff] 0.0
    %21 = vst [vmem:[#allocation2 + $0x10] sm:$0xff] 0.0
    %22 = vst [vmem:[#allocation2 + $0x18] sm:$0xff] 0.0
  $region17: #{g_unet_add_middle_forward.12} parent=0 // pred_fallthru
    _
  %v23 = vld [vmem:[#allocation2] sm:$0xff]
  %v24 = vld [vmem:[#allocation2 + $0x8] sm:$0xff]
  %v25 = vld [vmem:[#allocation2 + $0x10] sm:$0xff]
  %v26 = vld [vmem:[#allocation2 + $0x18] sm:$0xff]
  %v27 = vld [vmem:[%s0] sm:$0xf]
  %v28 = vld [vmem:[%s0 + $0x4] sm:$0xf]
  %v29 = vld [vmem:[%s0 + $0x8] sm:$0xf]
  %v30 = vld [vmem:[%s0 + $0xc] sm:$0xf]
  %v31 = vld [vmem:[%s1] sm:$0xf]
  %v32 = vld [vmem:[%s1 + $0x4] sm:$0xf]
  %v33 = vld [vmem:[%s1 + $0x8] sm:$0xf]
  %v34 = vld [vmem:[%s1 + $0xc] sm:$0xf]
  %v35 = vld [vmem:[%s1 + $0x10] sm:$0xf]
  %v36 = vld [vmem:[%s1 + $0x14] sm:$0xf]
  %v37 = vld [vmem:[%s1 + $0x18] sm:$0xf]
  %v38 = vld [vmem:[%s1 + $0x1c] sm:$0xf]
  %v39 = vld [vmem:[%s1 + $0x20] sm:$0xf]
  %v40 = vld [vmem:[%s1 + $0x24] sm:$0xf]
  %v41 = vld [vmem:[%s1 + $0x28] sm:$0xf]
  %v42 = vld [vmem:[%s1 + $0x2c] sm:$0xf]
  %v43 = vld [vmem:[%s1 + $0x30] sm:$0xf]
  %v44 = vld [vmem:[%s1 + $0x34] sm:$0xf]
  %v45 = vld [vmem:[%s1 + $0x38] sm:$0xf]
  %v46 = vld [vmem:[%s1 + $0x3c] sm:$0xf]
  %v51 = vunpack.c.l.b16 %v27
  %v52 = vunpack.c.l.b16 %v28
  %v53 = vunpack.c.l.b16 %v29
  %v54 = vunpack.c.l.b16 %v30
  %v55 = vpack.c.b16 %v52, %v51
  %v56 = vpack.c.b16 %v54, %v53
  %v75 = vunpack.c.l.b16 %v31
  %v76 = vunpack.c.l.b16 %v32
  %v77 = vunpack.c.l.b16 %v33
  %v78 = vunpack.c.l.b16 %v34
  %v79 = vunpack.c.l.b16 %v35
  %v80 = vunpack.c.l.b16 %v36
  %v81 = vunpack.c.l.b16 %v37
  %v82 = vunpack.c.l.b16 %v38
  %v83 = vunpack.c.l.b16 %v39
  %v84 = vunpack.c.l.b16 %v40
  %v85 = vunpack.c.l.b16 %v41
  %v86 = vunpack.c.l.b16 %v42
  %v87 = vunpack.c.l.b16 %v43
  %v88 = vunpack.c.l.b16 %v44
  %v89 = vunpack.c.l.b16 %v45
  %v90 = vunpack.c.l.b16 %v46
  %v91 = vpack.c.b16 %v76, %v75
  %v92 = vpack.c.b16 %v78, %v77
  %v93 = vpack.c.b16 %v80, %v79
  %v94 = vpack.c.b16 %v82, %v81
  %v95 = vpack.c.b16 %v84, %v83
  %v96 = vpack.c.b16 %v86, %v85
  %v97 = vpack.c.b16 %v88, %v87
  %v98 = vpack.c.b16 %v90, %v89
  %107 = vmatprep.subr.bf16.mxu0 0
  %108 = vmatpush1.bf16.msra.mxu0 %v91
  %109 = vmatprep.subr.bf16.mxu0 0
  %110 = vmatpush1.bf16.msra.mxu0 %v92
  %111 = vmatprep.subr.bf16.mxu0 0
  %112 = vmatpush1.bf16.msra.mxu0 %v93
  %113 = vmatprep.subr.bf16.mxu0 0
  %114 = vmatpush1.bf16.msra.mxu0 %v94
  %115 = vmatprep.subr.bf16.mxu0 0
  %116 = vmatpush1.bf16.msra.mxu0 %v95
  %117 = vmatprep.subr.bf16.mxu0 0
  %118 = vmatpush1.bf16.msra.mxu0 %v96
  %119 = vmatprep.subr.bf16.mxu0 0
  %120 = vmatpush1.bf16.msra.mxu0 %v97
  %121 = vmatprep.subr.bf16.mxu0 0
  %122 = vmatpush1.bf16.msra.mxu0 %v98
  %123 = vmatprep.subr.bf16.mxu0 0
  %124 = vmatpush1.bf16.msra.mxu0 0
  %125 = vmatprep.subr.bf16.mxu0 0
  %126 = vmatpush1.bf16.msra.mxu0 0
  %127 = vmatprep.subr.bf16.mxu0 0
  %128 = vmatpush1.bf16.msra.mxu0 0
  %129 = vmatprep.subr.bf16.mxu0 0
  %130 = vmatpush1.bf16.msra.mxu0 0
  %131 = vmatprep.subr.bf16.mxu0 0
  %132 = vmatpush1.bf16.msra.mxu0 0
  %133 = vmatprep.subr.bf16.mxu0 0
  %134 = vmatpush1.bf16.msra.mxu0 0
  %135 = vmatprep.subr.bf16.mxu0 0
  %136 = vmatpush1.bf16.msra.mxu0 0
  %137 = vmatprep.subr.bf16.mxu0 0
  %138 = vmatpush1.bf16.msra.mxu0 0
  %139 = vmatprep.mubr.bf16.mxu0 0
  %140 = vmatmul.mubr.bf16.gmra.mrb[0].mxu0 %v55
  %v141 = vpop.f32.mrb[0].mxu0
  %v142 = vadd.f32 0.0, %v141
  %v143 = vpop.f32.mrb[0].mxu0
  %v144 = vpop.f32.mrb[0].mxu0
  %v145 = vadd.f32 0.0, %v144
  %v146 = vpop.f32.mrb[0].mxu0
  %147 = vmatprep.mubr.bf16.mxu0 0
  %148 = vmatmul.mubr.bf16.gmra.mrb[0].mxu0 %v56
  %v149 = vpop.f32.mrb[0].mxu0
  %v150 = vadd.f32 0.0, %v149
  %v151 = vpop.f32.mrb[0].mxu0
  %v152 = vpop.f32.mrb[0].mxu0
  %v153 = vadd.f32 0.0, %v152
  %v154 = vpop.f32.mrb[0].mxu0
  %155 = vdwg.mxu0
  %v156 = vadd.f32 %v23, %v142
  %v157 = vadd.f32 %v24, %v145
  %v158 = vadd.f32 %v25, %v150
  %v159 = vadd.f32 %v26, %v153
  %160 = vst [vmem:[#allocation2] sm:$0xff] %v156
  %161 = vst [vmem:[#allocation2 + $0x8] sm:$0xff] %v157
  %162 = vst [vmem:[#allocation2 + $0x10] sm:$0xff] %v158
  %163 = vst [vmem:[#allocation2 + $0x18] sm:$0xff] %v159
  // Predicated region
  $region18: #{g_unet_add_middle_forward.12} parent=0 // pred_check
    %p164 = pneg %p15
  $region19: #{g_unet_add_middle_forward.12} parent=0 // pred_check_branch
    %166 = sbr.rel (%p164) target = $region21
  $region20: #{g_unet_add_middle_forward.12} parent=0 // pred_region
    %v167 = vld [vmem:[#allocation2] sm:$0xff]
    %v168 = vld [vmem:[#allocation2 + $0x8] sm:$0xff]
    %v169 = vld [vmem:[#allocation2 + $0x10] sm:$0xff]
    %v170 = vld [vmem:[#allocation2 + $0x18] sm:$0xff]
    %v171 = vld [vmem:[%s2] sm:$0x1]
    %v173 = vlaneseq
    %v174 = vshrl.u32 %v173, 7
    %v175 = vsub.s32 0, %v174
    %v176 = vrot.slane %v171, %v175
    %v178 = vadd.f32 %v167, %v176
    %v179 = vadd.f32 %v168, %v176
    %v180 = vadd.f32 %v169, %v176
    %v181 = vadd.f32 %v170, %v176
    %vm182 = vcmp.ge.f32.partialorder %v178, 0.0
    %vm183 = vcmp.ge.f32.partialorder %v179, 0.0
    %vm184 = vcmp.ge.f32.partialorder %v180, 0.0
    %vm185 = vcmp.ge.f32.partialorder %v181, 0.0
    %v186 = vmul.f32 %v178, 0.2
    %v187 = vmul.f32 %v179, 0.2
    %v188 = vmul.f32 %v180, 0.2
    %v189 = vmul.f32 %v181, 0.2
    %v190 = vsel %vm182, %v178, %v186
    %v191 = vsel %vm183, %v179, %v187
    %v192 = vsel %vm184, %v180, %v188
    %v193 = vsel %vm185, %v181, %v189
    %v194 = vpack.c.bf16 %v191, %v190
    %v195 = vpack.c.bf16 %v193, %v192
    %v198 = vunpack.c.l.b16 %v194
    %v199 = vunpack.c.h.b16 %v194
    %v200 = vunpack.c.l.b16 %v195
    %v201 = vunpack.c.h.b16 %v195
    %v202 = vpack.c.b16 %v198, %v198
    %v203 = vpack.c.b16 %v199, %v199
    %v204 = vpack.c.b16 %v200, %v200
    %v205 = vpack.c.b16 %v201, %v201
    %210 = vst [vmem:[%s3] sm:$0xf] %v202
    %211 = vst [vmem:[%s3 + $0x4] sm:$0xf] %v203
    %212 = vst [vmem:[%s3 + $0x8] sm:$0xf] %v204
    %213 = vst [vmem:[%s3 + $0xc] sm:$0xf] %v205
  $region21: #{g_unet_add_middle_forward.12} parent=0 // pred_fallthru
    _
  // Predicated region
  $region22: #{g_unet_add_middle_forward.12} parent=0 // pred_check
    _
  $region23: #{g_unet_add_middle_forward.12} parent=0 // pred_check_branch
    %215 = sbr.rel (0) target = $region25
  $region24: #{g_unet_add_middle_forward.12} parent=0 // pred_region
    _
  $region25: #{g_unet_add_middle_forward.12} parent=0 // pred_fallthru
    _
  // Predicated region
  $region26: #{g_unet_add_middle_forward.12} parent=0 // pred_check
    _
  $region27: #{g_unet_add_middle_forward.12} parent=0 // pred_check_branch
    %217 = sbr.rel (0) target = $region29
  $region28: #{g_unet_add_middle_forward.12} parent=0 // pred_region
    _
  $region29: #{g_unet_add_middle_forward.12} parent=0 // pred_fallthru
    _

// kernel: g_unet_add_middle_forward.13
$region0: #{g_unet_add_middle_forward.13}
  #allocation0 [shape = 'u32[]', space=smem, size = 0x4, offset = 0x4, fixed_abs, tag = 'smem constant byte address 0x4 - core index']
  #allocation1 [shape = 'u32[144,128]{1,0:T(1,128)}', space=vmem, size = 0x12000, scoped, tag = 'internal scratch']
  #allocation2 [shape = 'f32[16,128]{1,0:T(8,128)}', space=vmem, size = 0x2000, scoped, tag = 'scratch operand']
  %s0 = inlined_call_operand.vmem [shape: bf16[1,16,256], index: 0, kind: input, shape index: {}]
  %s1 = inlined_call_operand.vmem [shape: bf16[1,256,128], index: 1, kind: input, shape index: {}]
  %s2 = inlined_call_operand.vmem [shape: f32[1,128], index: 2, kind: input, shape index: {}]
  %s3 = inlined_call_operand.vmem [shape: bf16[1,16,128], index: 3, kind: output, shape index: {}]
  %s4 = sld [smem:[#allocation0]]
  $region30: #{g_unet_add_middle_forward.13} parent=0
    _
  %s6 = ssub.s32 1, %s4
  %s7 = scalar_select 0, %s6, %s4
  // Predicated region
  $region2: #{g_unet_add_middle_forward.13} parent=0 // pred_check
    _
  $region3: #{g_unet_add_middle_forward.13} parent=0 // pred_check_branch
    %9 = sbr.rel (0) target = $region5
  $region4: #{g_unet_add_middle_forward.13} parent=0 // pred_region
    _
  $region5: #{g_unet_add_middle_forward.13} parent=0 // pred_fallthru
    _
  // Predicated region
  $region6: #{g_unet_add_middle_forward.13} parent=0 // pred_check
    _
  $region7: #{g_unet_add_middle_forward.13} parent=0 // pred_check_branch
    %11 = sbr.rel (0) target = $region9
  $region8: #{g_unet_add_middle_forward.13} parent=0 // pred_region
    _
  $region9: #{g_unet_add_middle_forward.13} parent=0 // pred_fallthru
    _
  // Predicated region
  $region10: #{g_unet_add_middle_forward.13} parent=0 // pred_check
    _
  $region11: #{g_unet_add_middle_forward.13} parent=0 // pred_check_branch
    %13 = sbr.rel (0) target = $region13
  $region12: #{g_unet_add_middle_forward.13} parent=0 // pred_region
    _
  $region13: #{g_unet_add_middle_forward.13} parent=0 // pred_fallthru
    _
  %p15 = scmp.eq.s32.totalorder 0, 0
  // Predicated region
  $region14: #{g_unet_add_middle_forward.13} parent=0 // pred_check
    %p16 = pneg %p15
  $region15: #{g_unet_add_middle_forward.13} parent=0 // pred_check_branch
    %18 = sbr.rel (%p16) target = $region17
  $region16: #{g_unet_add_middle_forward.13} parent=0 // pred_region
    %19 = vst [vmem:[#allocation2] sm:$0xff] 0.0
    %20 = vst [vmem:[#allocation2 + $0x8] sm:$0xff] 0.0
  $region17: #{g_unet_add_middle_forward.13} parent=0 // pred_fallthru
    _
  %v21 = vld [vmem:[#allocation2] sm:$0xff]
  %v22 = vld [vmem:[#allocation2 + $0x8] sm:$0xff]
  %v23 = vld [vmem:[%s0] sm:$0xff]
  %v24 = vld [vmem:[%s0 + $0x8] sm:$0xff]
  %v25 = vld [vmem:[%s1] sm:$0xf]
  %v26 = vld [vmem:[%s1 + $0x4] sm:$0xf]
  %v27 = vld [vmem:[%s1 + $0x8] sm:$0xf]
  %v28 = vld [vmem:[%s1 + $0xc] sm:$0xf]
  %v29 = vld [vmem:[%s1 + $0x10] sm:$0xf]
  %v30 = vld [vmem:[%s1 + $0x14] sm:$0xf]
  %v31 = vld [vmem:[%s1 + $0x18] sm:$0xf]
  %v32 = vld [vmem:[%s1 + $0x1c] sm:$0xf]
  %v33 = vld [vmem:[%s1 + $0x20] sm:$0xf]
  %v34 = vld [vmem:[%s1 + $0x24] sm:$0xf]
  %v35 = vld [vmem:[%s1 + $0x28] sm:$0xf]
  %v36 = vld [vmem:[%s1 + $0x2c] sm:$0xf]
  %v37 = vld [vmem:[%s1 + $0x30] sm:$0xf]
  %v38 = vld [vmem:[%s1 + $0x34] sm:$0xf]
  %v39 = vld [vmem:[%s1 + $0x38] sm:$0xf]
  %v40 = vld [vmem:[%s1 + $0x3c] sm:$0xf]
  %v41 = vld [vmem:[%s1 + $0x40] sm:$0xf]
  %v42 = vld [vmem:[%s1 + $0x44] sm:$0xf]
  %v43 = vld [vmem:[%s1 + $0x48] sm:$0xf]
  %v44 = vld [vmem:[%s1 + $0x4c] sm:$0xf]
  %v45 = vld [vmem:[%s1 + $0x50] sm:$0xf]
  %v46 = vld [vmem:[%s1 + $0x54] sm:$0xf]
  %v47 = vld [vmem:[%s1 + $0x58] sm:$0xf]
  %v48 = vld [vmem:[%s1 + $0x5c] sm:$0xf]
  %v49 = vld [vmem:[%s1 + $0x60] sm:$0xf]
  %v50 = vld [vmem:[%s1 + $0x64] sm:$0xf]
  %v51 = vld [vmem:[%s1 + $0x68] sm:$0xf]
  %v52 = vld [vmem:[%s1 + $0x6c] sm:$0xf]
  %v53 = vld [vmem:[%s1 + $0x70] sm:$0xf]
  %v54 = vld [vmem:[%s1 + $0x74] sm:$0xf]
  %v55 = vld [vmem:[%s1 + $0x78] sm:$0xf]
  %v56 = vld [vmem:[%s1 + $0x7c] sm:$0xf]
  %v59 = vunpack.c.l.b16 %v23
  %v60 = vunpack.c.h.b16 %v23
  %v61 = vunpack.c.l.b16 %v24
  %v62 = vunpack.c.h.b16 %v24
  %v63 = vpack.c.b16 %v61, %v59
  %v64 = vpack.c.b16 %v62, %v60
  %v99 = vunpack.c.l.b16 %v25
  %v100 = vunpack.c.l.b16 %v26
  %v101 = vunpack.c.l.b16 %v27
  %v102 = vunpack.c.l.b16 %v28
  %v103 = vunpack.c.l.b16 %v29
  %v104 = vunpack.c.l.b16 %v30
  %v105 = vunpack.c.l.b16 %v31
  %v106 = vunpack.c.l.b16 %v32
  %v107 = vunpack.c.l.b16 %v33
  %v108 = vunpack.c.l.b16 %v34
  %v109 = vunpack.c.l.b16 %v35
  %v110 = vunpack.c.l.b16 %v36
  %v111 = vunpack.c.l.b16 %v37
  %v112 = vunpack.c.l.b16 %v38
  %v113 = vunpack.c.l.b16 %v39
  %v114 = vunpack.c.l.b16 %v40
  %v115 = vunpack.c.l.b16 %v41
  %v116 = vunpack.c.l.b16 %v42
  %v117 = vunpack.c.l.b16 %v43
  %v118 = vunpack.c.l.b16 %v44
  %v119 = vunpack.c.l.b16 %v45
  %v120 = vunpack.c.l.b16 %v46
  %v121 = vunpack.c.l.b16 %v47
  %v122 = vunpack.c.l.b16 %v48
  %v123 = vunpack.c.l.b16 %v49
  %v124 = vunpack.c.l.b16 %v50
  %v125 = vunpack.c.l.b16 %v51
  %v126 = vunpack.c.l.b16 %v52
  %v127 = vunpack.c.l.b16 %v53
  %v128 = vunpack.c.l.b16 %v54
  %v129 = vunpack.c.l.b16 %v55
  %v130 = vunpack.c.l.b16 %v56
  %v131 = vpack.c.b16 %v100, %v99
  %v132 = vpack.c.b16 %v102, %v101
  %v133 = vpack.c.b16 %v104, %v103
  %v134 = vpack.c.b16 %v106, %v105
  %v135 = vpack.c.b16 %v108, %v107
  %v136 = vpack.c.b16 %v110, %v109
  %v137 = vpack.c.b16 %v112, %v111
  %v138 = vpack.c.b16 %v114, %v113
  %v139 = vpack.c.b16 %v116, %v115
  %v140 = vpack.c.b16 %v118, %v117
  %v141 = vpack.c.b16 %v120, %v119
  %v142 = vpack.c.b16 %v122, %v121
  %v143 = vpack.c.b16 %v124, %v123
  %v144 = vpack.c.b16 %v126, %v125
  %v145 = vpack.c.b16 %v128, %v127
  %v146 = vpack.c.b16 %v130, %v129
  %163 = vmatprep.subr.bf16.mxu0 0
  %164 = vmatpush1.bf16.msra.mxu0 %v131
  %165 = vmatprep.subr.bf16.mxu0 0
  %166 = vmatpush1.bf16.msra.mxu0 %v132
  %167 = vmatprep.subr.bf16.mxu0 0
  %168 = vmatpush1.bf16.msra.mxu0 %v133
  %169 = vmatprep.subr.bf16.mxu0 0
  %170 = vmatpush1.bf16.msra.mxu0 %v134
  %171 = vmatprep.subr.bf16.mxu0 0
  %172 = vmatpush1.bf16.msra.mxu0 %v135
  %173 = vmatprep.subr.bf16.mxu0 0
  %174 = vmatpush1.bf16.msra.mxu0 %v136
  %175 = vmatprep.subr.bf16.mxu0 0
  %176 = vmatpush1.bf16.msra.mxu0 %v137
  %177 = vmatprep.subr.bf16.mxu0 0
  %178 = vmatpush1.bf16.msra.mxu0 %v138
  %179 = vmatprep.subr.bf16.mxu0 0
  %180 = vmatpush1.bf16.msra.mxu0 %v139
  %181 = vmatprep.subr.bf16.mxu0 0
  %182 = vmatpush1.bf16.msra.mxu0 %v140
  %183 = vmatprep.subr.bf16.mxu0 0
  %184 = vmatpush1.bf16.msra.mxu0 %v141
  %185 = vmatprep.subr.bf16.mxu0 0
  %186 = vmatpush1.bf16.msra.mxu0 %v142
  %187 = vmatprep.subr.bf16.mxu0 0
  %188 = vmatpush1.bf16.msra.mxu0 %v143
  %189 = vmatprep.subr.bf16.mxu0 0
  %190 = vmatpush1.bf16.msra.mxu0 %v144
  %191 = vmatprep.subr.bf16.mxu0 0
  %192 = vmatpush1.bf16.msra.mxu0 %v145
  %193 = vmatprep.subr.bf16.mxu0 0
  %194 = vmatpush1.bf16.msra.mxu0 %v146
  %195 = vmatprep.mubr.bf16.mxu0 %v64
  %196 = vmatmul.mubr.bf16.gmra.mrb[0].mxu0 %v63
  %v197 = vpop.f32.mrb[0].mxu0
  %v198 = vadd.f32 0.0, %v197
  %v199 = vpop.f32.mrb[0].mxu0
  %v200 = vpop.f32.mrb[0].mxu0
  %v201 = vadd.f32 0.0, %v200
  %v202 = vpop.f32.mrb[0].mxu0
  %203 = vdwg.mxu0
  %v204 = vadd.f32 %v21, %v198
  %v205 = vadd.f32 %v22, %v201
  %206 = vst [vmem:[#allocation2] sm:$0xff] %v204
  %207 = vst [vmem:[#allocation2 + $0x8] sm:$0xff] %v205
  // Predicated region
  $region18: #{g_unet_add_middle_forward.13} parent=0 // pred_check
    %p208 = pneg %p15
  $region19: #{g_unet_add_middle_forward.13} parent=0 // pred_check_branch
    %210 = sbr.rel (%p208) target = $region21
  $region20: #{g_unet_add_middle_forward.13} parent=0 // pred_region
    %v211 = vld [vmem:[#allocation2] sm:$0xff]
    %v212 = vld [vmem:[#allocation2 + $0x8] sm:$0xff]
    %v213 = vld [vmem:[%s2] sm:$0x1]
    %v215 = vlaneseq
    %v216 = vshrl.u32 %v215, 7
    %v217 = vsub.s32 0, %v216
    %v218 = vrot.slane %v213, %v217
    %v220 = vadd.f32 %v211, %v218
    %v221 = vadd.f32 %v212, %v218
    %vm222 = vcmp.ge.f32.partialorder %v220, 0.0
    %vm223 = vcmp.ge.f32.partialorder %v221, 0.0
    %v224 = vmul.f32 %v220, 0.2
    %v225 = vmul.f32 %v221, 0.2
    %v226 = vsel %vm222, %v220, %v224
    %v227 = vsel %vm223, %v221, %v225
    %v228 = vpack.c.bf16 %v227, %v226
    %v230 = vunpack.c.l.b16 %v228
    %v231 = vunpack.c.h.b16 %v228
    %v232 = vpack.c.b16 %v230, %v230
    %v233 = vpack.c.b16 %v231, %v231
    %236 = vst [vmem:[%s3] sm:$0xf] %v232
    %237 = vst [vmem:[%s3 + $0x4] sm:$0xf] %v233
  $region21: #{g_unet_add_middle_forward.13} parent=0 // pred_fallthru
    _
  // Predicated region
  $region22: #{g_unet_add_middle_forward.13} parent=0 // pred_check
    _
  $region23: #{g_unet_add_middle_forward.13} parent=0 // pred_check_branch
    %239 = sbr.rel (0) target = $region25
  $region24: #{g_unet_add_middle_forward.13} parent=0 // pred_region
    _
  $region25: #{g_unet_add_middle_forward.13} parent=0 // pred_fallthru
    _
  // Predicated region
  $region26: #{g_unet_add_middle_forward.13} parent=0 // pred_check
    _
  $region27: #{g_unet_add_middle_forward.13} parent=0 // pred_check_branch
    %241 = sbr.rel (0) target = $region29
  $region28: #{g_unet_add_middle_forward.13} parent=0 // pred_region
    _
  $region29: #{g_unet_add_middle_forward.13} parent=0 // pred_fallthru
    _

// kernel: g_unet_add_middle_forward.15
$region0: #{g_unet_add_middle_forward.15}
  #allocation0 [shape = 'u32[]', space=smem, size = 0x4, offset = 0x4, fixed_abs, tag = 'smem constant byte address 0x4 - core index']
  #allocation1 [shape = 'u32[144,128]{1,0:T(1,128)}', space=vmem, size = 0x12000, scoped, tag = 'internal scratch']
  #allocation2 [shape = 'f32[16,128]{1,0:T(8,128)}', space=vmem, size = 0x2000, scoped, tag = 'scratch operand']
  %s0 = inlined_call_operand.vmem [shape: bf16[4,16,128], index: 0, kind: input, shape index: {}]
  %s1 = inlined_call_operand.vmem [shape: bf16[4,128,128], index: 1, kind: input, shape index: {}]
  %s2 = inlined_call_operand.vmem [shape: f32[1,128], index: 2, kind: input, shape index: {}]
  %s3 = inlined_call_operand.vmem [shape: bf16[4,16,128], index: 3, kind: output, shape index: {}]
  %s4 = sld [smem:[#allocation0]]
  $region53: #{g_unet_add_middle_forward.15} parent=0
    _
  %s6 = ssub.s32 1, %s4
  %s7 = scalar_select 0, %s6, %s4
  loop: start=0, step=1, limit=6
  $region2: #{g_unet_add_middle_forward.15} parent=0 // loop_pre_header
    _
  $region3: #{g_unet_add_middle_forward.15} parent=0 // loop_header
    %s9 = sphi 0, %s13
    %p10 = scmp.ge.s32.totalorder %s9, 6
    %s16 = sphi 0, %s42
    %s17 = sphi 0, %s38
    %s18 = sphi 0, %s34
    %s19 = sphi 0, %s30
    %s20 = sphi 0, %s16
    %s21 = sphi 0, %s17
    %s22 = sphi 0, %s18
    %s23 = sphi 0, %s19
    %s24 = sphi 0, %s20
    %s25 = sphi 0, %s21
    %s26 = sphi 0, %s22
    %s27 = sphi 0, %s23
    %s49 = sphi 0, %s51
    %s52 = sphi 0, %s49
    %s53 = sphi 0, %s52
    %s69 = sphi 0, %s53
    %s79 = sphi 0, %s81
    %s82 = sphi 0, %s79
    %s83 = sphi 0, %s82
    %s99 = sphi 0, %s83
    %s105 = sphi 0, %s107
    %s108 = sphi 0, %s105
    %s109 = sphi 0, %s108
    %s125 = sphi 0, %s109
    %s135 = sphi 0, %s137
    %s138 = sphi 0, %s135
    %s139 = sphi 0, %s138
    %s155 = sphi 0, %s139
  $region4: #{g_unet_add_middle_forward.15} parent=0 // loop_header_branch
    %12 = sbr.rel (%p10) target = $region8
  $region5: #{g_unet_add_middle_forward.15} parent=0 // loop_body
    %s14 = ssub.s32 %s9, 1
    %s15 = ssub.s32 %s9, 2
    %s28 = sadd.s32 1, %s19
    %p29 = scmp.ge.s32.totalorder %s28, 1
    %s30 = scalar_select %p29, 0, %s28
    %s31 = sadd.s32 1, %s18
    %s32 = scalar_select %p29, %s31, %s18
    %p33 = scmp.ge.s32.totalorder %s32, 1
    %s34 = scalar_select %p33, 0, %s32
    %s35 = sadd.s32 1, %s17
    %s36 = scalar_select %p33, %s35, %s17
    %p37 = scmp.ge.s32.totalorder %s36, 1
    %s38 = scalar_select %p37, 0, %s36
    %s39 = sadd.s32 1, %s16
    %s40 = scalar_select %p37, %s39, %s16
    %p41 = scmp.ge.s32.totalorder %s40, 4
    %s42 = scalar_select %p41, 0, %s40
    %s43 = ssub.s32 %s16, %s42
    %s44 = ssub.s32 %s17, %s38
    %s45 = sor.u32 %s43, %s44
    %s46 = ssub.s32 %s19, %s30
    %s47 = sor.u32 %s45, %s46
    %p48 = scmp.eq.s32.totalorder %s47, 0
    %s50 = sadd.s32 %s49, 1
    %s51 = scalar_select %p48, %s49, %s50
    %p54 = pneg %p48
    %p55 = scmp.eq.s32.totalorder %s9, 3
    %p56 = por %p54, %p55
    %p57 = scmp.ne.s32.totalorder %s49, %s52
    %p58 = scmp.eq.s32.totalorder %s9, 0
    %p59 = por %p57, %p58
    %p60 = scmp.ne.s32.totalorder %s49, %s52
    %p61 = scmp.eq.s32.totalorder %s14, 3
    %p62 = por %p60, %p61
    %p63 = scmp.ne.s32.totalorder %s52, %s53
    %p64 = scmp.eq.s32.totalorder %s14, 0
    %p65 = por %p63, %p64
    %p66 = scmp.ne.s32.totalorder %s52, %s53
    %p67 = scmp.eq.s32.totalorder %s15, 3
    %p68 = por %p66, %p67
    %p70 = scmp.ne.s32.totalorder %s53, %s69
    %p71 = scmp.eq.s32.totalorder %s15, 0
    %p72 = por %p70, %p71
    %s73 = ssub.s32 %s16, %s42
    %s74 = ssub.s32 %s19, %s30
    %s75 = sor.u32 %s73, %s74
    %s76 = ssub.s32 %s18, %s34
    %s77 = sor.u32 %s75, %s76
    %p78 = scmp.eq.s32.totalorder %s77, 0
    %s80 = sadd.s32 %s79, 1
    %s81 = scalar_select %p78, %s79, %s80
    %p84 = pneg %p78
    %p85 = scmp.eq.s32.totalorder %s9, 3
    %p86 = por %p84, %p85
    %p87 = scmp.ne.s32.totalorder %s79, %s82
    %p88 = scmp.eq.s32.totalorder %s9, 0
    %p89 = por %p87, %p88
    %p90 = scmp.ne.s32.totalorder %s79, %s82
    %p91 = scmp.eq.s32.totalorder %s14, 3
    %p92 = por %p90, %p91
    %p93 = scmp.ne.s32.totalorder %s82, %s83
    %p94 = scmp.eq.s32.totalorder %s14, 0
    %p95 = por %p93, %p94
    %p96 = scmp.ne.s32.totalorder %s82, %s83
    %p97 = scmp.eq.s32.totalorder %s15, 3
    %p98 = por %p96, %p97
    %p100 = scmp.ne.s32.totalorder %s83, %s99
    %p101 = scmp.eq.s32.totalorder %s15, 0
    %p102 = por %p100, %p101
    %s103 = ssub.s32 %s18, %s34
    %p104 = scmp.eq.s32.totalorder %s103, 0
    %s106 = sadd.s32 %s105, 1
    %s107 = scalar_select %p104, %s105, %s106
    %p110 = pneg %p104
    %p111 = scmp.eq.s32.totalorder %s9, 3
    %p112 = por %p110, %p111
    %p113 = scmp.ne.s32.totalorder %s105, %s108
    %p114 = scmp.eq.s32.totalorder %s9, 0
    %p115 = por %p113, %p114
    %p116 = scmp.ne.s32.totalorder %s105, %s108
    %p117 = scmp.eq.s32.totalorder %s14, 3
    %p118 = por %p116, %p117
    %p119 = scmp.ne.s32.totalorder %s108, %s109
    %p120 = scmp.eq.s32.totalorder %s14, 0
    %p121 = por %p119, %p120
    %p122 = scmp.ne.s32.totalorder %s108, %s109
    %p123 = scmp.eq.s32.totalorder %s15, 3
    %p124 = por %p122, %p123
    %p126 = scmp.ne.s32.totalorder %s109, %s125
    %p127 = scmp.eq.s32.totalorder %s15, 0
    %p128 = por %p126, %p127
    %s129 = ssub.s32 %s16, %s42
    %s130 = ssub.s32 %s17, %s38
    %s131 = sor.u32 %s129, %s130
    %s132 = ssub.s32 %s18, %s34
    %s133 = sor.u32 %s131, %s132
    %p134 = scmp.eq.s32.totalorder %s133, 0
    %s136 = sadd.s32 %s135, 1
    %s137 = scalar_select %p134, %s135, %s136
    %p140 = pneg %p134
    %p141 = scmp.eq.s32.totalorder %s9, 3
    %p142 = por %p140, %p141
    %p143 = scmp.ne.s32.totalorder %s135, %s138
    %p144 = scmp.eq.s32.totalorder %s9, 0
    %p145 = por %p143, %p144
    %p146 = scmp.ne.s32.totalorder %s135, %s138
    %p147 = scmp.eq.s32.totalorder %s14, 3
    %p148 = por %p146, %p147
    %p149 = scmp.ne.s32.totalorder %s138, %s139
    %p150 = scmp.eq.s32.totalorder %s14, 0
    %p151 = por %p149, %p150
    %p152 = scmp.ne.s32.totalorder %s138, %s139
    %p153 = scmp.eq.s32.totalorder %s15, 3
    %p154 = por %p152, %p153
    %p156 = scmp.ne.s32.totalorder %s139, %s155
    %p157 = scmp.eq.s32.totalorder %s15, 0
    %p158 = por %p156, %p157
    %p159 = scmp.le.s32.totalorder 1, %s9
    %p160 = scmp.lt.s32.totalorder %s9, 5
    %p161 = pnand %p159, %p160
    %p162 = pneg %p161
    // Predicated region
    $region9: #{g_unet_add_middle_forward.15} parent=5 // pred_check
      _
    $region10: #{g_unet_add_middle_forward.15} parent=5 // pred_check_branch
      %164 = sbr.rel (%p161) target = $region12
    $region11: #{g_unet_add_middle_forward.15} parent=5 // pred_region
      %s165 = ssub.s32 %s9, 1
      // Predicated region
      $region13: #{g_unet_add_middle_forward.15} parent=11 // pred_check
        %p166 = pneg %p121
      $region14: #{g_unet_add_middle_forward.15} parent=11 // pred_check_branch
        %168 = sbr.rel (%p166) target = $region16
      $region15: #{g_unet_add_middle_forward.15} parent=11 // pred_region
        %p169 = scmp.lt.s32.totalorder %s22, 0
        %s170 = scalar_select %p169, %s22, 0
        %s171 = scalar_lea.vmem %s2, %s170
      $region16: #{g_unet_add_middle_forward.15} parent=11 // pred_fallthru
        _
    $region12: #{g_unet_add_middle_forward.15} parent=5 // pred_fallthru
      _
    %p172 = scmp.lt.s32.totalorder %s9, 4
    // Predicated region
    $region17: #{g_unet_add_middle_forward.15} parent=5 // pred_check
      %p173 = pneg %p172
    $region18: #{g_unet_add_middle_forward.15} parent=5 // pred_check_branch
      %175 = sbr.rel (%p173) target = $region20
    $region19: #{g_unet_add_middle_forward.15} parent=5 // pred_region
      // Predicated region
      $region21: #{g_unet_add_middle_forward.15} parent=19 // pred_check
        %p176 = pneg %p59
      $region22: #{g_unet_add_middle_forward.15} parent=19 // pred_check_branch
        %178 = sbr.rel (%p176) target = $region24
      $region23: #{g_unet_add_middle_forward.15} parent=19 // pred_region
        %s179 = smul.u32 2, %s17
        %p180 = scmp.lt.s32.totalorder %s16, 3
        %s181 = scalar_select %p180, %s16, 3
        %p182 = scmp.lt.s32.totalorder %s179, 1
        %s183 = scalar_select %p182, %s179, 1
        %p184 = scmp.lt.s32.totalorder %s19, 0
        %s185 = scalar_select %p184, %s19, 0
        %s186 = sadd.s32 %s185, %s183
        %s187 = smul.addr %s181, 2
        %s188 = sadd.s32 %s186, %s187
        %s189 = smul.addr %s188, 4
        %s190 = scalar_lea.vmem %s0, %s189
        %s191 = smul.u32 2, %s17
      $region24: #{g_unet_add_middle_forward.15} parent=19 // pred_fallthru
        _
      // Predicated region
      $region25: #{g_unet_add_middle_forward.15} parent=19 // pred_check
        %p192 = pneg %p89
      $region26: #{g_unet_add_middle_forward.15} parent=19 // pred_check_branch
        %194 = sbr.rel (%p192) target = $region28
      $region27: #{g_unet_add_middle_forward.15} parent=19 // pred_region
        %s195 = smul.u32 16, %s19
        %p196 = scmp.lt.s32.totalorder %s16, 3
        %s197 = scalar_select %p196, %s16, 3
        %p198 = scmp.lt.s32.totalorder %s195, 15
        %s199 = scalar_select %p198, %s195, 15
        %p200 = scmp.lt.s32.totalorder %s18, 0
        %s201 = scalar_select %p200, %s18, 0
        %s202 = sadd.s32 %s201, %s199
        %s203 = smul.addr %s197, 16
        %s204 = sadd.s32 %s202, %s203
        %s205 = smul.addr %s204, 4
        %s206 = scalar_lea.vmem %s1, %s205
        %s207 = smul.u32 16, %s19
      $region28: #{g_unet_add_middle_forward.15} parent=19 // pred_fallthru
        _
    $region20: #{g_unet_add_middle_forward.15} parent=5 // pred_fallthru
      _
    %p208 = scmp.le.s32.totalorder 1, %s9
    %p209 = scmp.lt.s32.totalorder %s9, 5
    %p210 = pnand %p208, %p209
    %p211 = pneg %p210
    // Predicated region
    $region29: #{g_unet_add_middle_forward.15} parent=5 // pred_check
      _
    $region30: #{g_unet_add_middle_forward.15} parent=5 // pred_check_branch
      %213 = sbr.rel (%p210) target = $region32
    $region31: #{g_unet_add_middle_forward.15} parent=5 // pred_region
      %s214 = ssub.s32 %s9, 1
      %s215 = smul.u32 2, %s21
      %p216 = scmp.lt.s32.totalorder %s20, 3
      %s217 = scalar_select %p216, %s20, 3
      %p218 = scmp.lt.s32.totalorder %s215, 1
      %s219 = scalar_select %p218, %s215, 1
      %p220 = scmp.lt.s32.totalorder %s23, 0
      %s221 = scalar_select %p220, %s23, 0
      %s222 = sadd.s32 %s221, %s219
      %s223 = smul.addr %s217, 2
      %s224 = sadd.s32 %s222, %s223
      %s225 = smul.addr %s224, 4
      %s226 = scalar_lea.vmem %s0, %s225
      %p227 = pneg %p65
      %p228 = pneg %p62
      %s229 = smul.u32 16, %s23
      %p230 = scmp.lt.s32.totalorder %s20, 3
      %s231 = scalar_select %p230, %s20, 3
      %p232 = scmp.lt.s32.totalorder %s229, 15
      %s233 = scalar_select %p232, %s229, 15
      %p234 = scmp.lt.s32.totalorder %s22, 0
      %s235 = scalar_select %p234, %s22, 0
      %s236 = sadd.s32 %s235, %s233
      %s237 = smul.addr %s231, 16
      %s238 = sadd.s32 %s236, %s237
      %s239 = smul.addr %s238, 4
      %s240 = scalar_lea.vmem %s1, %s239
      %p241 = pneg %p95
      %p242 = pneg %p92
      %p243 = scmp.lt.s32.totalorder %s22, 0
      %s244 = scalar_select %p243, %s22, 0
      %s245 = scalar_lea.vmem %s2, %s244
      %p246 = pneg %p121
      %p247 = pneg %p118
      %p248 = pneg %p151
      %p249 = pneg %p148
      %s250 = smul.u32 2, %s21
      %p251 = scmp.lt.s32.totalorder %s20, 3
      %s252 = scalar_select %p251, %s20, 3
      %p253 = scmp.lt.s32.totalorder %s250, 1
      %s254 = scalar_select %p253, %s250, 1
      %p255 = scmp.lt.s32.totalorder %s22, 0
      %s256 = scalar_select %p255, %s22, 0
      %s257 = sadd.s32 %s256, %s254
      %s258 = smul.addr %s252, 2
      %s259 = sadd.s32 %s257, %s258
      %s260 = smul.addr %s259, 4
      %s261 = scalar_lea.vmem %s3, %s260
      %s262 = smul.u32 2, %s21
      %p263 = scmp.lt.s32.totalorder %s20, 3
      %s264 = scalar_select %p263, %s20, 3
      %p265 = scmp.lt.s32.totalorder %s262, 1
      %s266 = scalar_select %p265, %s262, 1
      %p267 = scmp.lt.s32.totalorder %s23, 0
      %s268 = scalar_select %p267, %s23, 0
      %s269 = sadd.s32 %s268, %s266
      %s270 = smul.addr %s264, 2
      %s271 = sadd.s32 %s269, %s270
      %s272 = smul.addr %s271, 4
      %s273 = scalar_lea.vmem %s0, %s272
      %s274 = smul.u32 2, %s21
      %s275 = smul.u32 16, %s23
      %p276 = scmp.lt.s32.totalorder %s20, 3
      %s277 = scalar_select %p276, %s20, 3
      %p278 = scmp.lt.s32.totalorder %s275, 15
      %s279 = scalar_select %p278, %s275, 15
      %p280 = scmp.lt.s32.totalorder %s22, 0
      %s281 = scalar_select %p280, %s22, 0
      %s282 = sadd.s32 %s281, %s279
      %s283 = smul.addr %s277, 16
      %s284 = sadd.s32 %s282, %s283
      %s285 = smul.addr %s284, 4
      %s286 = scalar_lea.vmem %s1, %s285
      %s287 = smul.u32 16, %s23
      %p288 = scmp.lt.s32.totalorder %s22, 0
      %s289 = scalar_select %p288, %s22, 0
      %s290 = scalar_lea.vmem %s2, %s289
      %s291 = smul.u32 2, %s21
      %p292 = scmp.lt.s32.totalorder %s20, 3
      %s293 = scalar_select %p292, %s20, 3
      %p294 = scmp.lt.s32.totalorder %s291, 1
      %s295 = scalar_select %p294, %s291, 1
      %p296 = scmp.lt.s32.totalorder %s22, 0
      %s297 = scalar_select %p296, %s22, 0
      %s298 = sadd.s32 %s297, %s295
      %s299 = smul.addr %s293, 2
      %s300 = sadd.s32 %s298, %s299
      %s301 = smul.addr %s300, 4
      %s302 = scalar_lea.vmem %s3, %s301
      %s303 = smul.u32 2, %s21
      %p305 = scmp.eq.s32.totalorder %s23, 0
      // Predicated region
      $region33: #{g_unet_add_middle_forward.15} parent=31 // pred_check
        %p306 = pneg %p305
      $region34: #{g_unet_add_middle_forward.15} parent=31 // pred_check_branch
        %308 = sbr.rel (%p306) target = $region36
      $region35: #{g_unet_add_middle_forward.15} parent=31 // pred_region
        %309 = vst [vmem:[#allocation2] sm:$0xff] 0.0
        %310 = vst [vmem:[#allocation2 + $0x8] sm:$0xff] 0.0
      $region36: #{g_unet_add_middle_forward.15} parent=31 // pred_fallthru
        _
      %v311 = vld [vmem:[#allocation2] sm:$0xff]
      %v312 = vld [vmem:[#allocation2 + $0x8] sm:$0xff]
      %v313 = vld [vmem:[%s273] sm:$0xf]
      %v314 = vld [vmem:[%s273 + $0x4] sm:$0xf]
      %v315 = vld [vmem:[%s286] sm:$0xf]
      %v316 = vld [vmem:[%s286 + $0x4] sm:$0xf]
      %v317 = vld [vmem:[%s286 + $0x8] sm:$0xf]
      %v318 = vld [vmem:[%s286 + $0xc] sm:$0xf]
      %v319 = vld [vmem:[%s286 + $0x10] sm:$0xf]
      %v320 = vld [vmem:[%s286 + $0x14] sm:$0xf]
      %v321 = vld [vmem:[%s286 + $0x18] sm:$0xf]
      %v322 = vld [vmem:[%s286 + $0x1c] sm:$0xf]
      %v323 = vld [vmem:[%s286 + $0x20] sm:$0xf]
      %v324 = vld [vmem:[%s286 + $0x24] sm:$0xf]
      %v325 = vld [vmem:[%s286 + $0x28] sm:$0xf]
      %v326 = vld [vmem:[%s286 + $0x2c] sm:$0xf]
      %v327 = vld [vmem:[%s286 + $0x30] sm:$0xf]
      %v328 = vld [vmem:[%s286 + $0x34] sm:$0xf]
      %v329 = vld [vmem:[%s286 + $0x38] sm:$0xf]
      %v330 = vld [vmem:[%s286 + $0x3c] sm:$0xf]
      %v333 = vunpack.c.l.b16 %v313
      %v334 = vunpack.c.l.b16 %v314
      %v335 = vpack.c.b16 %v334, %v333
      %v353 = vunpack.c.l.b16 %v315
      %v354 = vunpack.c.l.b16 %v316
      %v355 = vunpack.c.l.b16 %v317
      %v356 = vunpack.c.l.b16 %v318
      %v357 = vunpack.c.l.b16 %v319
      %v358 = vunpack.c.l.b16 %v320
      %v359 = vunpack.c.l.b16 %v321
      %v360 = vunpack.c.l.b16 %v322
      %v361 = vunpack.c.l.b16 %v323
      %v362 = vunpack.c.l.b16 %v324
      %v363 = vunpack.c.l.b16 %v325
      %v364 = vunpack.c.l.b16 %v326
      %v365 = vunpack.c.l.b16 %v327
      %v366 = vunpack.c.l.b16 %v328
      %v367 = vunpack.c.l.b16 %v329
      %v368 = vunpack.c.l.b16 %v330
      %v369 = vpack.c.b16 %v354, %v353
      %v370 = vpack.c.b16 %v356, %v355
      %v371 = vpack.c.b16 %v358, %v357
      %v372 = vpack.c.b16 %v360, %v359
      %v373 = vpack.c.b16 %v362, %v361
      %v374 = vpack.c.b16 %v364, %v363
      %v375 = vpack.c.b16 %v366, %v365
      %v376 = vpack.c.b16 %v368, %v367
      %385 = vmatprep.subr.bf16.mxu0 0
      %386 = vmatpush1.bf16.msra.mxu0 %v369
      %387 = vmatprep.subr.bf16.mxu0 0
      %388 = vmatpush1.bf16.msra.mxu0 %v370
      %389 = vmatprep.subr.bf16.mxu0 0
      %390 = vmatpush1.bf16.msra.mxu0 %v371
      %391 = vmatprep.subr.bf16.mxu0 0
      %392 = vmatpush1.bf16.msra.mxu0 %v372
      %393 = vmatprep.subr.bf16.mxu0 0
      %394 = vmatpush1.bf16.msra.mxu0 %v373
      %395 = vmatprep.subr.bf16.mxu0 0
      %396 = vmatpush1.bf16.msra.mxu0 %v374
      %397 = vmatprep.subr.bf16.mxu0 0
      %398 = vmatpush1.bf16.msra.mxu0 %v375
      %399 = vmatprep.subr.bf16.mxu0 0
      %400 = vmatpush1.bf16.msra.mxu0 %v376
      %401 = vmatprep.subr.bf16.mxu0 0
      %402 = vmatpush1.bf16.msra.mxu0 0
      %403 = vmatprep.subr.bf16.mxu0 0
      %404 = vmatpush1.bf16.msra.mxu0 0
      %405 = vmatprep.subr.bf16.mxu0 0
      %406 = vmatpush1.bf16.msra.mxu0 0
      %407 = vmatprep.subr.bf16.mxu0 0
      %408 = vmatpush1.bf16.msra.mxu0 0
      %409 = vmatprep.subr.bf16.mxu0 0
      %410 = vmatpush1.bf16.msra.mxu0 0
      %411 = vmatprep.subr.bf16.mxu0 0
      %412 = vmatpush1.bf16.msra.mxu0 0
      %413 = vmatprep.subr.bf16.mxu0 0
      %414 = vmatpush1.bf16.msra.mxu0 0
      %415 = vmatprep.subr.bf16.mxu0 0
      %416 = vmatpush1.bf16.msra.mxu0 0
      %417 = vmatprep.mubr.bf16.mxu0 0
      %418 = vmatmul.mubr.bf16.gmra.mrb[0].mxu0 %v335
      %v419 = vpop.f32.mrb[0].mxu0
      %v420 = vadd.f32 0.0, %v419
      %v421 = vpop.f32.mrb[0].mxu0
      %v422 = vpop.f32.mrb[0].mxu0
      %v423 = vadd.f32 0.0, %v422
      %v424 = vpop.f32.mrb[0].mxu0
      %425 = vdwg.mxu0
      %v426 = vadd.f32 %v311, %v420
      %v427 = vadd.f32 %v312, %v423
      %428 = vst [vmem:[#allocation2] sm:$0xff] %v426
      %429 = vst [vmem:[#allocation2 + $0x8] sm:$0xff] %v427
      // Predicated region
      $region37: #{g_unet_add_middle_forward.15} parent=31 // pred_check
        %p430 = pneg %p305
      $region38: #{g_unet_add_middle_forward.15} parent=31 // pred_check_branch
        %432 = sbr.rel (%p430) target = $region40
      $region39: #{g_unet_add_middle_forward.15} parent=31 // pred_region
        %v433 = vld [vmem:[#allocation2] sm:$0xff]
        %v434 = vld [vmem:[#allocation2 + $0x8] sm:$0xff]
        %v435 = vld [vmem:[%s290] sm:$0x1]
        %v437 = vlaneseq
        %v438 = vshrl.u32 %v437, 7
        %v439 = vsub.s32 0, %v438
        %v440 = vrot.slane %v435, %v439
        %v442 = vadd.f32 %v433, %v440
        %v443 = vadd.f32 %v434, %v440
        %v444 = vmax.f32 %v442, 0.0
        %v445 = vmax.f32 %v443, 0.0
        %v446 = vpack.c.bf16 %v445, %v444
        %v448 = vunpack.c.l.b16 %v446
        %v449 = vunpack.c.h.b16 %v446
        %v450 = vpack.c.b16 %v448, %v448
        %v451 = vpack.c.b16 %v449, %v449
        %454 = vst [vmem:[%s302] sm:$0xf] %v450
        %455 = vst [vmem:[%s302 + $0x4] sm:$0xf] %v451
      $region40: #{g_unet_add_middle_forward.15} parent=31 // pred_fallthru
        _
      %s456 = smul.u32 2, %s21
      %p457 = scmp.lt.s32.totalorder %s20, 3
      %s458 = scalar_select %p457, %s20, 3
      %p459 = scmp.lt.s32.totalorder %s456, 1
      %s460 = scalar_select %p459, %s456, 1
      %p461 = scmp.lt.s32.totalorder %s22, 0
      %s462 = scalar_select %p461, %s22, 0
      %s463 = sadd.s32 %s462, %s460
      %s464 = smul.addr %s458, 2
      %s465 = sadd.s32 %s463, %s464
      %s466 = smul.addr %s465, 4
      %s467 = scalar_lea.vmem %s3, %s466
      // Predicated region
      $region41: #{g_unet_add_middle_forward.15} parent=31 // pred_check
        %p468 = pneg %p148
      $region42: #{g_unet_add_middle_forward.15} parent=31 // pred_check_branch
        %470 = sbr.rel (%p468) target = $region44
      $region43: #{g_unet_add_middle_forward.15} parent=31 // pred_region
        %s471 = smul.u32 2, %s21
      $region44: #{g_unet_add_middle_forward.15} parent=31 // pred_fallthru
        _
    $region32: #{g_unet_add_middle_forward.15} parent=5 // pred_fallthru
      _
    %p472 = scmp.le.s32.totalorder 2, %s9
    // Predicated region
    $region45: #{g_unet_add_middle_forward.15} parent=5 // pred_check
      %p473 = pneg %p472
    $region46: #{g_unet_add_middle_forward.15} parent=5 // pred_check_branch
      %475 = sbr.rel (%p473) target = $region48
    $region47: #{g_unet_add_middle_forward.15} parent=5 // pred_region
      %s476 = ssub.s32 %s9, 2
      // Predicated region
      $region49: #{g_unet_add_middle_forward.15} parent=47 // pred_check
        %p477 = pneg %p154
      $region50: #{g_unet_add_middle_forward.15} parent=47 // pred_check_branch
        %479 = sbr.rel (%p477) target = $region52
      $region51: #{g_unet_add_middle_forward.15} parent=47 // pred_region
        %s480 = smul.u32 2, %s25
        %p481 = scmp.lt.s32.totalorder %s24, 3
        %s482 = scalar_select %p481, %s24, 3
        %p483 = scmp.lt.s32.totalorder %s480, 1
        %s484 = scalar_select %p483, %s480, 1
        %p485 = scmp.lt.s32.totalorder %s26, 0
        %s486 = scalar_select %p485, %s26, 0
        %s487 = sadd.s32 %s486, %s484
        %s488 = smul.addr %s482, 2
        %s489 = sadd.s32 %s487, %s488
        %s490 = smul.addr %s489, 4
        %s491 = scalar_lea.vmem %s3, %s490
      $region52: #{g_unet_add_middle_forward.15} parent=47 // pred_fallthru
        _
    $region48: #{g_unet_add_middle_forward.15} parent=5 // pred_fallthru
      _
  $region6: #{g_unet_add_middle_forward.15} parent=0 // loop_footer
    %s13 = sadd.s32 1, %s9
  $region7: #{g_unet_add_middle_forward.15} parent=0 // loop_footer_branch
    %8 = sbr.rel target = $region3
  $region8: #{g_unet_add_middle_forward.15} parent=0 // loop_exit
    _

// kernel: g_unet_add_middle_forward.14
$region0: #{g_unet_add_middle_forward.14}
  #allocation0 [shape = 'u32[]', space=smem, size = 0x4, offset = 0x4, fixed_abs, tag = 'smem constant byte address 0x4 - core index']
  #allocation1 [shape = 'u32[144,128]{1,0:T(1,128)}', space=vmem, size = 0x12000, scoped, tag = 'internal scratch']
  #allocation2 [shape = 'f32[16,128]{1,0:T(8,128)}', space=vmem, size = 0x2000, scoped, tag = 'scratch operand']
  %s0 = inlined_call_operand.vmem [shape: bf16[1,16,384], index: 0, kind: input, shape index: {}]
  %s1 = inlined_call_operand.vmem [shape: bf16[1,384,128], index: 1, kind: input, shape index: {}]
  %s2 = inlined_call_operand.vmem [shape: f32[1,128], index: 2, kind: input, shape index: {}]
  %s3 = inlined_call_operand.vmem [shape: bf16[1,16,128], index: 3, kind: output, shape index: {}]
  %s4 = sld [smem:[#allocation0]]
  $region30: #{g_unet_add_middle_forward.14} parent=0
    _
  %s6 = ssub.s32 1, %s4
  %s7 = scalar_select 0, %s6, %s4
  // Predicated region
  $region2: #{g_unet_add_middle_forward.14} parent=0 // pred_check
    _
  $region3: #{g_unet_add_middle_forward.14} parent=0 // pred_check_branch
    %9 = sbr.rel (0) target = $region5
  $region4: #{g_unet_add_middle_forward.14} parent=0 // pred_region
    _
  $region5: #{g_unet_add_middle_forward.14} parent=0 // pred_fallthru
    _
  // Predicated region
  $region6: #{g_unet_add_middle_forward.14} parent=0 // pred_check
    _
  $region7: #{g_unet_add_middle_forward.14} parent=0 // pred_check_branch
    %11 = sbr.rel (0) target = $region9
  $region8: #{g_unet_add_middle_forward.14} parent=0 // pred_region
    _
  $region9: #{g_unet_add_middle_forward.14} parent=0 // pred_fallthru
    _
  // Predicated region
  $region10: #{g_unet_add_middle_forward.14} parent=0 // pred_check
    _
  $region11: #{g_unet_add_middle_forward.14} parent=0 // pred_check_branch
    %13 = sbr.rel (0) target = $region13
  $region12: #{g_unet_add_middle_forward.14} parent=0 // pred_region
    _
  $region13: #{g_unet_add_middle_forward.14} parent=0 // pred_fallthru
    _
  %p15 = scmp.eq.s32.totalorder 0, 0
  // Predicated region
  $region14: #{g_unet_add_middle_forward.14} parent=0 // pred_check
    %p16 = pneg %p15
  $region15: #{g_unet_add_middle_forward.14} parent=0 // pred_check_branch
    %18 = sbr.rel (%p16) target = $region17
  $region16: #{g_unet_add_middle_forward.14} parent=0 // pred_region
    %19 = vst [vmem:[#allocation2] sm:$0xff] 0.0
    %20 = vst [vmem:[#allocation2 + $0x8] sm:$0xff] 0.0
  $region17: #{g_unet_add_middle_forward.14} parent=0 // pred_fallthru
    _
  %v21 = vld [vmem:[#allocation2] sm:$0xff]
  %v22 = vld [vmem:[#allocation2 + $0x8] sm:$0xff]
  %v23 = vld [vmem:[%s0] sm:$0xff]
  %v24 = vld [vmem:[%s0 + $0x8] sm:$0xf]
  %v25 = vld [vmem:[%s0 + $0xc] sm:$0xff]
  %v26 = vld [vmem:[%s0 + $0x14] sm:$0xf]
  %v27 = vld [vmem:[%s1] sm:$0xf]
  %v28 = vld [vmem:[%s1 + $0x4] sm:$0xf]
  %v29 = vld [vmem:[%s1 + $0x8] sm:$0xf]
  %v30 = vld [vmem:[%s1 + $0xc] sm:$0xf]
  %v31 = vld [vmem:[%s1 + $0x10] sm:$0xf]
  %v32 = vld [vmem:[%s1 + $0x14] sm:$0xf]
  %v33 = vld [vmem:[%s1 + $0x18] sm:$0xf]
  %v34 = vld [vmem:[%s1 + $0x1c] sm:$0xf]
  %v35 = vld [vmem:[%s1 + $0x20] sm:$0xf]
  %v36 = vld [vmem:[%s1 + $0x24] sm:$0xf]
  %v37 = vld [vmem:[%s1 + $0x28] sm:$0xf]
  %v38 = vld [vmem:[%s1 + $0x2c] sm:$0xf]
  %v39 = vld [vmem:[%s1 + $0x30] sm:$0xf]
  %v40 = vld [vmem:[%s1 + $0x34] sm:$0xf]
  %v41 = vld [vmem:[%s1 + $0x38] sm:$0xf]
  %v42 = vld [vmem:[%s1 + $0x3c] sm:$0xf]
  %v43 = vld [vmem:[%s1 + $0x40] sm:$0xf]
  %v44 = vld [vmem:[%s1 + $0x44] sm:$0xf]
  %v45 = vld [vmem:[%s1 + $0x48] sm:$0xf]
  %v46 = vld [vmem:[%s1 + $0x4c] sm:$0xf]
  %v47 = vld [vmem:[%s1 + $0x50] sm:$0xf]
  %v48 = vld [vmem:[%s1 + $0x54] sm:$0xf]
  %v49 = vld [vmem:[%s1 + $0x58] sm:$0xf]
  %v50 = vld [vmem:[%s1 + $0x5c] sm:$0xf]
  %v51 = vld [vmem:[%s1 + $0x60] sm:$0xf]
  %v52 = vld [vmem:[%s1 + $0x64] sm:$0xf]
  %v53 = vld [vmem:[%s1 + $0x68] sm:$0xf]
  %v54 = vld [vmem:[%s1 + $0x6c] sm:$0xf]
  %v55 = vld [vmem:[%s1 + $0x70] sm:$0xf]
  %v56 = vld [vmem:[%s1 + $0x74] sm:$0xf]
  %v57 = vld [vmem:[%s1 + $0x78] sm:$0xf]
  %v58 = vld [vmem:[%s1 + $0x7c] sm:$0xf]
  %v59 = vld [vmem:[%s1 + $0x80] sm:$0xf]
  %v60 = vld [vmem:[%s1 + $0x84] sm:$0xf]
  %v61 = vld [vmem:[%s1 + $0x88] sm:$0xf]
  %v62 = vld [vmem:[%s1 + $0x8c] sm:$0xf]
  %v63 = vld [vmem:[%s1 + $0x90] sm:$0xf]
  %v64 = vld [vmem:[%s1 + $0x94] sm:$0xf]
  %v65 = vld [vmem:[%s1 + $0x98] sm:$0xf]
  %v66 = vld [vmem:[%s1 + $0x9c] sm:$0xf]
  %v67 = vld [vmem:[%s1 + $0xa0] sm:$0xf]
  %v68 = vld [vmem:[%s1 + $0xa4] sm:$0xf]
  %v69 = vld [vmem:[%s1 + $0xa8] sm:$0xf]
  %v70 = vld [vmem:[%s1 + $0xac] sm:$0xf]
  %v71 = vld [vmem:[%s1 + $0xb0] sm:$0xf]
  %v72 = vld [vmem:[%s1 + $0xb4] sm:$0xf]
  %v73 = vld [vmem:[%s1 + $0xb8] sm:$0xf]
  %v74 = vld [vmem:[%s1 + $0xbc] sm:$0xf]
  %v79 = vunpack.c.l.b16 %v23
  %v80 = vunpack.c.h.b16 %v23
  %v81 = vunpack.c.l.b16 %v24
  %v82 = vunpack.c.l.b16 %v25
  %v83 = vunpack.c.h.b16 %v25
  %v84 = vunpack.c.l.b16 %v26
  %v85 = vpack.c.b16 %v82, %v79
  %v86 = vpack.c.b16 %v83, %v80
  %v87 = vpack.c.b16 %v84, %v81
  %v139 = vunpack.c.l.b16 %v27
  %v140 = vunpack.c.l.b16 %v28
  %v141 = vunpack.c.l.b16 %v29
  %v142 = vunpack.c.l.b16 %v30
  %v143 = vunpack.c.l.b16 %v31
  %v144 = vunpack.c.l.b16 %v32
  %v145 = vunpack.c.l.b16 %v33
  %v146 = vunpack.c.l.b16 %v34
  %v147 = vunpack.c.l.b16 %v35
  %v148 = vunpack.c.l.b16 %v36
  %v149 = vunpack.c.l.b16 %v37
  %v150 = vunpack.c.l.b16 %v38
  %v151 = vunpack.c.l.b16 %v39
  %v152 = vunpack.c.l.b16 %v40
  %v153 = vunpack.c.l.b16 %v41
  %v154 = vunpack.c.l.b16 %v42
  %v155 = vunpack.c.l.b16 %v43
  %v156 = vunpack.c.l.b16 %v44
  %v157 = vunpack.c.l.b16 %v45
  %v158 = vunpack.c.l.b16 %v46
  %v159 = vunpack.c.l.b16 %v47
  %v160 = vunpack.c.l.b16 %v48
  %v161 = vunpack.c.l.b16 %v49
  %v162 = vunpack.c.l.b16 %v50
  %v163 = vunpack.c.l.b16 %v51
  %v164 = vunpack.c.l.b16 %v52
  %v165 = vunpack.c.l.b16 %v53
  %v166 = vunpack.c.l.b16 %v54
  %v167 = vunpack.c.l.b16 %v55
  %v168 = vunpack.c.l.b16 %v56
  %v169 = vunpack.c.l.b16 %v57
  %v170 = vunpack.c.l.b16 %v58
  %v171 = vunpack.c.l.b16 %v59
  %v172 = vunpack.c.l.b16 %v60
  %v173 = vunpack.c.l.b16 %v61
  %v174 = vunpack.c.l.b16 %v62
  %v175 = vunpack.c.l.b16 %v63
  %v176 = vunpack.c.l.b16 %v64
  %v177 = vunpack.c.l.b16 %v65
  %v178 = vunpack.c.l.b16 %v66
  %v179 = vunpack.c.l.b16 %v67
  %v180 = vunpack.c.l.b16 %v68
  %v181 = vunpack.c.l.b16 %v69
  %v182 = vunpack.c.l.b16 %v70
  %v183 = vunpack.c.l.b16 %v71
  %v184 = vunpack.c.l.b16 %v72
  %v185 = vunpack.c.l.b16 %v73
  %v186 = vunpack.c.l.b16 %v74
  %v187 = vpack.c.b16 %v140, %v139
  %v188 = vpack.c.b16 %v142, %v141
  %v189 = vpack.c.b16 %v144, %v143
  %v190 = vpack.c.b16 %v146, %v145
  %v191 = vpack.c.b16 %v148, %v147
  %v192 = vpack.c.b16 %v150, %v149
  %v193 = vpack.c.b16 %v152, %v151
  %v194 = vpack.c.b16 %v154, %v153
  %v195 = vpack.c.b16 %v156, %v155
  %v196 = vpack.c.b16 %v158, %v157
  %v197 = vpack.c.b16 %v160, %v159
  %v198 = vpack.c.b16 %v162, %v161
  %v199 = vpack.c.b16 %v164, %v163
  %v200 = vpack.c.b16 %v166, %v165
  %v201 = vpack.c.b16 %v168, %v167
  %v202 = vpack.c.b16 %v170, %v169
  %v203 = vpack.c.b16 %v172, %v171
  %v204 = vpack.c.b16 %v174, %v173
  %v205 = vpack.c.b16 %v176, %v175
  %v206 = vpack.c.b16 %v178, %v177
  %v207 = vpack.c.b16 %v180, %v179
  %v208 = vpack.c.b16 %v182, %v181
  %v209 = vpack.c.b16 %v184, %v183
  %v210 = vpack.c.b16 %v186, %v185
  %235 = vmatprep.subr.bf16.mxu0 0
  %236 = vmatpush1.bf16.msra.mxu0 %v187
  %237 = vmatprep.subr.bf16.mxu0 0
  %238 = vmatpush1.bf16.msra.mxu0 %v188
  %239 = vmatprep.subr.bf16.mxu0 0
  %240 = vmatpush1.bf16.msra.mxu0 %v189
  %241 = vmatprep.subr.bf16.mxu0 0
  %242 = vmatpush1.bf16.msra.mxu0 %v190
  %243 = vmatprep.subr.bf16.mxu0 0
  %244 = vmatpush1.bf16.msra.mxu0 %v191
  %245 = vmatprep.subr.bf16.mxu0 0
  %246 = vmatpush1.bf16.msra.mxu0 %v192
  %247 = vmatprep.subr.bf16.mxu0 0
  %248 = vmatpush1.bf16.msra.mxu0 %v193
  %249 = vmatprep.subr.bf16.mxu0 0
  %250 = vmatpush1.bf16.msra.mxu0 %v194
  %251 = vmatprep.subr.bf16.mxu0 0
  %252 = vmatpush1.bf16.msra.mxu0 %v195
  %253 = vmatprep.subr.bf16.mxu0 0
  %254 = vmatpush1.bf16.msra.mxu0 %v196
  %255 = vmatprep.subr.bf16.mxu0 0
  %256 = vmatpush1.bf16.msra.mxu0 %v197
  %257 = vmatprep.subr.bf16.mxu0 0
  %258 = vmatpush1.bf16.msra.mxu0 %v198
  %259 = vmatprep.subr.bf16.mxu0 0
  %260 = vmatpush1.bf16.msra.mxu0 %v199
  %261 = vmatprep.subr.bf16.mxu0 0
  %262 = vmatpush1.bf16.msra.mxu0 %v200
  %263 = vmatprep.subr.bf16.mxu0 0
  %264 = vmatpush1.bf16.msra.mxu0 %v201
  %265 = vmatprep.subr.bf16.mxu0 0
  %266 = vmatpush1.bf16.msra.mxu0 %v202
  %267 = vmatprep.mubr.bf16.mxu0 %v86
  %268 = vmatmul.mubr.bf16.gmra.mrb[0].mxu0 %v85
  %v269 = vpop.f32.mrb[0].mxu0
  %v270 = vadd.f32 0.0, %v269
  %v271 = vpop.f32.mrb[0].mxu0
  %v272 = vpop.f32.mrb[0].mxu0
  %v273 = vadd.f32 0.0, %v272
  %v274 = vpop.f32.mrb[0].mxu0
  %275 = vdwg.mxu0
  %276 = vmatprep.subr.bf16.mxu0 0
  %277 = vmatpush1.bf16.msra.mxu0 %v203
  %278 = vmatprep.subr.bf16.mxu0 0
  %279 = vmatpush1.bf16.msra.mxu0 %v204
  %280 = vmatprep.subr.bf16.mxu0 0
  %281 = vmatpush1.bf16.msra.mxu0 %v205
  %282 = vmatprep.subr.bf16.mxu0 0
  %283 = vmatpush1.bf16.msra.mxu0 %v206
  %284 = vmatprep.subr.bf16.mxu0 0
  %285 = vmatpush1.bf16.msra.mxu0 %v207
  %286 = vmatprep.subr.bf16.mxu0 0
  %287 = vmatpush1.bf16.msra.mxu0 %v208
  %288 = vmatprep.subr.bf16.mxu0 0
  %289 = vmatpush1.bf16.msra.mxu0 %v209
  %290 = vmatprep.subr.bf16.mxu0 0
  %291 = vmatpush1.bf16.msra.mxu0 %v210
  %292 = vmatprep.subr.bf16.mxu0 0
  %293 = vmatpush1.bf16.msra.mxu0 0
  %294 = vmatprep.subr.bf16.mxu0 0
  %295 = vmatpush1.bf16.msra.mxu0 0
  %296 = vmatprep.subr.bf16.mxu0 0
  %297 = vmatpush1.bf16.msra.mxu0 0
  %298 = vmatprep.subr.bf16.mxu0 0
  %299 = vmatpush1.bf16.msra.mxu0 0
  %300 = vmatprep.subr.bf16.mxu0 0
  %301 = vmatpush1.bf16.msra.mxu0 0
  %302 = vmatprep.subr.bf16.mxu0 0
  %303 = vmatpush1.bf16.msra.mxu0 0
  %304 = vmatprep.subr.bf16.mxu0 0
  %305 = vmatpush1.bf16.msra.mxu0 0
  %306 = vmatprep.subr.bf16.mxu0 0
  %307 = vmatpush1.bf16.msra.mxu0 0
  %308 = vmatprep.mubr.bf16.mxu0 0
  %309 = vmatmul.mubr.bf16.gmra.mrb[0].mxu0 %v87
  %v310 = vpop.f32.mrb[0].mxu0
  %v311 = vadd.f32 %v270, %v310
  %v312 = vpop.f32.mrb[0].mxu0
  %v313 = vpop.f32.mrb[0].mxu0
  %v314 = vadd.f32 %v273, %v313
  %v315 = vpop.f32.mrb[0].mxu0
  %316 = vdwg.mxu0
  %v317 = vadd.f32 %v21, %v311
  %v318 = vadd.f32 %v22, %v314
  %319 = vst [vmem:[#allocation2] sm:$0xff] %v317
  %320 = vst [vmem:[#allocation2 + $0x8] sm:$0xff] %v318
  // Predicated region
  $region18: #{g_unet_add_middle_forward.14} parent=0 // pred_check
    %p321 = pneg %p15
  $region19: #{g_unet_add_middle_forward.14} parent=0 // pred_check_branch
    %323 = sbr.rel (%p321) target = $region21
  $region20: #{g_unet_add_middle_forward.14} parent=0 // pred_region
    %v324 = vld [vmem:[#allocation2] sm:$0xff]
    %v325 = vld [vmem:[#allocation2 + $0x8] sm:$0xff]
    %v326 = vld [vmem:[%s2] sm:$0x1]
    %v328 = vlaneseq
    %v329 = vshrl.u32 %v328, 7
    %v330 = vsub.s32 0, %v329
    %v331 = vrot.slane %v326, %v330
    %v333 = vadd.f32 %v324, %v331
    %v334 = vadd.f32 %v325, %v331
    %v335 = vmax.f32 %v333, 0.0
    %v336 = vmax.f32 %v334, 0.0
    %v337 = vpack.c.bf16 %v336, %v335
    %v339 = vunpack.c.l.b16 %v337
    %v340 = vunpack.c.h.b16 %v337
    %v341 = vpack.c.b16 %v339, %v339
    %v342 = vpack.c.b16 %v340, %v340
    %345 = vst [vmem:[%s3] sm:$0xf] %v341
    %346 = vst [vmem:[%s3 + $0x4] sm:$0xf] %v342
  $region21: #{g_unet_add_middle_forward.14} parent=0 // pred_fallthru
    _
  // Predicated region
  $region22: #{g_unet_add_middle_forward.14} parent=0 // pred_check
    _
  $region23: #{g_unet_add_middle_forward.14} parent=0 // pred_check_branch
    %348 = sbr.rel (0) target = $region25
  $region24: #{g_unet_add_middle_forward.14} parent=0 // pred_region
    _
  $region25: #{g_unet_add_middle_forward.14} parent=0 // pred_fallthru
    _
  // Predicated region
  $region26: #{g_unet_add_middle_forward.14} parent=0 // pred_check
    _
  $region27: #{g_unet_add_middle_forward.14} parent=0 // pred_check_branch
    %350 = sbr.rel (0) target = $region29
  $region28: #{g_unet_add_middle_forward.14} parent=0 // pred_region
    _
  $region29: #{g_unet_add_middle_forward.14} parent=0 // pred_fallthru
    _

// kernel: g_unet_add_middle_forward.16
$region0: #{g_unet_add_middle_forward.16}
  #allocation0 [shape = 'u32[]', space=smem, size = 0x4, offset = 0x4, fixed_abs, tag = 'smem constant byte address 0x4 - core index']
  #allocation1 [shape = 'u32[144,128]{1,0:T(1,128)}', space=vmem, size = 0x12000, scoped, tag = 'internal scratch']
  #allocation2 [shape = 'f32[16,128]{1,0:T(8,128)}', space=vmem, size = 0x2000, scoped, tag = 'scratch operand']
  %s0 = inlined_call_operand.vmem [shape: bf16[4,16,256], index: 0, kind: input, shape index: {}]
  %s1 = inlined_call_operand.vmem [shape: bf16[4,256,128], index: 1, kind: input, shape index: {}]
  %s2 = inlined_call_operand.vmem [shape: f32[1,128], index: 2, kind: input, shape index: {}]
  %s3 = inlined_call_operand.vmem [shape: bf16[4,16,128], index: 3, kind: output, shape index: {}]
  %s4 = sld [smem:[#allocation0]]
  $region53: #{g_unet_add_middle_forward.16} parent=0
    _
  %s6 = ssub.s32 1, %s4
  %s7 = scalar_select 0, %s6, %s4
  loop: start=0, step=1, limit=6
  $region2: #{g_unet_add_middle_forward.16} parent=0 // loop_pre_header
    _
  $region3: #{g_unet_add_middle_forward.16} parent=0 // loop_header
    %s9 = sphi 0, %s13
    %p10 = scmp.ge.s32.totalorder %s9, 6
    %s16 = sphi 0, %s42
    %s17 = sphi 0, %s38
    %s18 = sphi 0, %s34
    %s19 = sphi 0, %s30
    %s20 = sphi 0, %s16
    %s21 = sphi 0, %s17
    %s22 = sphi 0, %s18
    %s23 = sphi 0, %s19
    %s24 = sphi 0, %s20
    %s25 = sphi 0, %s21
    %s26 = sphi 0, %s22
    %s27 = sphi 0, %s23
    %s49 = sphi 0, %s51
    %s52 = sphi 0, %s49
    %s53 = sphi 0, %s52
    %s69 = sphi 0, %s53
    %s79 = sphi 0, %s81
    %s82 = sphi 0, %s79
    %s83 = sphi 0, %s82
    %s99 = sphi 0, %s83
    %s105 = sphi 0, %s107
    %s108 = sphi 0, %s105
    %s109 = sphi 0, %s108
    %s125 = sphi 0, %s109
    %s135 = sphi 0, %s137
    %s138 = sphi 0, %s135
    %s139 = sphi 0, %s138
    %s155 = sphi 0, %s139
  $region4: #{g_unet_add_middle_forward.16} parent=0 // loop_header_branch
    %12 = sbr.rel (%p10) target = $region8
  $region5: #{g_unet_add_middle_forward.16} parent=0 // loop_body
    %s14 = ssub.s32 %s9, 1
    %s15 = ssub.s32 %s9, 2
    %s28 = sadd.s32 1, %s19
    %p29 = scmp.ge.s32.totalorder %s28, 1
    %s30 = scalar_select %p29, 0, %s28
    %s31 = sadd.s32 1, %s18
    %s32 = scalar_select %p29, %s31, %s18
    %p33 = scmp.ge.s32.totalorder %s32, 1
    %s34 = scalar_select %p33, 0, %s32
    %s35 = sadd.s32 1, %s17
    %s36 = scalar_select %p33, %s35, %s17
    %p37 = scmp.ge.s32.totalorder %s36, 1
    %s38 = scalar_select %p37, 0, %s36
    %s39 = sadd.s32 1, %s16
    %s40 = scalar_select %p37, %s39, %s16
    %p41 = scmp.ge.s32.totalorder %s40, 4
    %s42 = scalar_select %p41, 0, %s40
    %s43 = ssub.s32 %s16, %s42
    %s44 = ssub.s32 %s17, %s38
    %s45 = sor.u32 %s43, %s44
    %s46 = ssub.s32 %s19, %s30
    %s47 = sor.u32 %s45, %s46
    %p48 = scmp.eq.s32.totalorder %s47, 0
    %s50 = sadd.s32 %s49, 1
    %s51 = scalar_select %p48, %s49, %s50
    %p54 = pneg %p48
    %p55 = scmp.eq.s32.totalorder %s9, 3
    %p56 = por %p54, %p55
    %p57 = scmp.ne.s32.totalorder %s49, %s52
    %p58 = scmp.eq.s32.totalorder %s9, 0
    %p59 = por %p57, %p58
    %p60 = scmp.ne.s32.totalorder %s49, %s52
    %p61 = scmp.eq.s32.totalorder %s14, 3
    %p62 = por %p60, %p61
    %p63 = scmp.ne.s32.totalorder %s52, %s53
    %p64 = scmp.eq.s32.totalorder %s14, 0
    %p65 = por %p63, %p64
    %p66 = scmp.ne.s32.totalorder %s52, %s53
    %p67 = scmp.eq.s32.totalorder %s15, 3
    %p68 = por %p66, %p67
    %p70 = scmp.ne.s32.totalorder %s53, %s69
    %p71 = scmp.eq.s32.totalorder %s15, 0
    %p72 = por %p70, %p71
    %s73 = ssub.s32 %s16, %s42
    %s74 = ssub.s32 %s19, %s30
    %s75 = sor.u32 %s73, %s74
    %s76 = ssub.s32 %s18, %s34
    %s77 = sor.u32 %s75, %s76
    %p78 = scmp.eq.s32.totalorder %s77, 0
    %s80 = sadd.s32 %s79, 1
    %s81 = scalar_select %p78, %s79, %s80
    %p84 = pneg %p78
    %p85 = scmp.eq.s32.totalorder %s9, 3
    %p86 = por %p84, %p85
    %p87 = scmp.ne.s32.totalorder %s79, %s82
    %p88 = scmp.eq.s32.totalorder %s9, 0
    %p89 = por %p87, %p88
    %p90 = scmp.ne.s32.totalorder %s79, %s82
    %p91 = scmp.eq.s32.totalorder %s14, 3
    %p92 = por %p90, %p91
    %p93 = scmp.ne.s32.totalorder %s82, %s83
    %p94 = scmp.eq.s32.totalorder %s14, 0
    %p95 = por %p93, %p94
    %p96 = scmp.ne.s32.totalorder %s82, %s83
    %p97 = scmp.eq.s32.totalorder %s15, 3
    %p98 = por %p96, %p97
    %p100 = scmp.ne.s32.totalorder %s83, %s99
    %p101 = scmp.eq.s32.totalorder %s15, 0
    %p102 = por %p100, %p101
    %s103 = ssub.s32 %s18, %s34
    %p104 = scmp.eq.s32.totalorder %s103, 0
    %s106 = sadd.s32 %s105, 1
    %s107 = scalar_select %p104, %s105, %s106
    %p110 = pneg %p104
    %p111 = scmp.eq.s32.totalorder %s9, 3
    %p112 = por %p110, %p111
    %p113 = scmp.ne.s32.totalorder %s105, %s108
    %p114 = scmp.eq.s32.totalorder %s9, 0
    %p115 = por %p113, %p114
    %p116 = scmp.ne.s32.totalorder %s105, %s108
    %p117 = scmp.eq.s32.totalorder %s14, 3
    %p118 = por %p116, %p117
    %p119 = scmp.ne.s32.totalorder %s108, %s109
    %p120 = scmp.eq.s32.totalorder %s14, 0
    %p121 = por %p119, %p120
    %p122 = scmp.ne.s32.totalorder %s108, %s109
    %p123 = scmp.eq.s32.totalorder %s15, 3
    %p124 = por %p122, %p123
    %p126 = scmp.ne.s32.totalorder %s109, %s125
    %p127 = scmp.eq.s32.totalorder %s15, 0
    %p128 = por %p126, %p127
    %s129 = ssub.s32 %s16, %s42
    %s130 = ssub.s32 %s17, %s38
    %s131 = sor.u32 %s129, %s130
    %s132 = ssub.s32 %s18, %s34
    %s133 = sor.u32 %s131, %s132
    %p134 = scmp.eq.s32.totalorder %s133, 0
    %s136 = sadd.s32 %s135, 1
    %s137 = scalar_select %p134, %s135, %s136
    %p140 = pneg %p134
    %p141 = scmp.eq.s32.totalorder %s9, 3
    %p142 = por %p140, %p141
    %p143 = scmp.ne.s32.totalorder %s135, %s138
    %p144 = scmp.eq.s32.totalorder %s9, 0
    %p145 = por %p143, %p144
    %p146 = scmp.ne.s32.totalorder %s135, %s138
    %p147 = scmp.eq.s32.totalorder %s14, 3
    %p148 = por %p146, %p147
    %p149 = scmp.ne.s32.totalorder %s138, %s139
    %p150 = scmp.eq.s32.totalorder %s14, 0
    %p151 = por %p149, %p150
    %p152 = scmp.ne.s32.totalorder %s138, %s139
    %p153 = scmp.eq.s32.totalorder %s15, 3
    %p154 = por %p152, %p153
    %p156 = scmp.ne.s32.totalorder %s139, %s155
    %p157 = scmp.eq.s32.totalorder %s15, 0
    %p158 = por %p156, %p157
    %p159 = scmp.le.s32.totalorder 1, %s9
    %p160 = scmp.lt.s32.totalorder %s9, 5
    %p161 = pnand %p159, %p160
    %p162 = pneg %p161
    // Predicated region
    $region9: #{g_unet_add_middle_forward.16} parent=5 // pred_check
      _
    $region10: #{g_unet_add_middle_forward.16} parent=5 // pred_check_branch
      %164 = sbr.rel (%p161) target = $region12
    $region11: #{g_unet_add_middle_forward.16} parent=5 // pred_region
      %s165 = ssub.s32 %s9, 1
      // Predicated region
      $region13: #{g_unet_add_middle_forward.16} parent=11 // pred_check
        %p166 = pneg %p121
      $region14: #{g_unet_add_middle_forward.16} parent=11 // pred_check_branch
        %168 = sbr.rel (%p166) target = $region16
      $region15: #{g_unet_add_middle_forward.16} parent=11 // pred_region
        %p169 = scmp.lt.s32.totalorder %s22, 0
        %s170 = scalar_select %p169, %s22, 0
        %s171 = scalar_lea.vmem %s2, %s170
      $region16: #{g_unet_add_middle_forward.16} parent=11 // pred_fallthru
        _
    $region12: #{g_unet_add_middle_forward.16} parent=5 // pred_fallthru
      _
    %p172 = scmp.lt.s32.totalorder %s9, 4
    // Predicated region
    $region17: #{g_unet_add_middle_forward.16} parent=5 // pred_check
      %p173 = pneg %p172
    $region18: #{g_unet_add_middle_forward.16} parent=5 // pred_check_branch
      %175 = sbr.rel (%p173) target = $region20
    $region19: #{g_unet_add_middle_forward.16} parent=5 // pred_region
      // Predicated region
      $region21: #{g_unet_add_middle_forward.16} parent=19 // pred_check
        %p176 = pneg %p59
      $region22: #{g_unet_add_middle_forward.16} parent=19 // pred_check_branch
        %178 = sbr.rel (%p176) target = $region24
      $region23: #{g_unet_add_middle_forward.16} parent=19 // pred_region
        %s179 = smul.u32 2, %s17
        %s180 = smul.u32 2, %s19
        %p181 = scmp.lt.s32.totalorder %s16, 3
        %s182 = scalar_select %p181, %s16, 3
        %p183 = scmp.lt.s32.totalorder %s179, 1
        %s184 = scalar_select %p183, %s179, 1
        %p185 = scmp.lt.s32.totalorder %s180, 1
        %s186 = scalar_select %p185, %s180, 1
        %s187 = smul.addr %s184, 2
        %s188 = sadd.s32 %s186, %s187
        %s189 = smul.addr %s182, 4
        %s190 = sadd.s32 %s188, %s189
        %s191 = smul.addr %s190, 4
        %s192 = scalar_lea.vmem %s0, %s191
        %s193 = smul.u32 2, %s17
        %s194 = smul.u32 2, %s19
      $region24: #{g_unet_add_middle_forward.16} parent=19 // pred_fallthru
        _
      // Predicated region
      $region25: #{g_unet_add_middle_forward.16} parent=19 // pred_check
        %p195 = pneg %p89
      $region26: #{g_unet_add_middle_forward.16} parent=19 // pred_check_branch
        %197 = sbr.rel (%p195) target = $region28
      $region27: #{g_unet_add_middle_forward.16} parent=19 // pred_region
        %s198 = smul.u32 32, %s19
        %p199 = scmp.lt.s32.totalorder %s16, 3
        %s200 = scalar_select %p199, %s16, 3
        %p201 = scmp.lt.s32.totalorder %s198, 31
        %s202 = scalar_select %p201, %s198, 31
        %p203 = scmp.lt.s32.totalorder %s18, 0
        %s204 = scalar_select %p203, %s18, 0
        %s205 = sadd.s32 %s204, %s202
        %s206 = smul.addr %s200, 32
        %s207 = sadd.s32 %s205, %s206
        %s208 = smul.addr %s207, 4
        %s209 = scalar_lea.vmem %s1, %s208
        %s210 = smul.u32 32, %s19
      $region28: #{g_unet_add_middle_forward.16} parent=19 // pred_fallthru
        _
    $region20: #{g_unet_add_middle_forward.16} parent=5 // pred_fallthru
      _
    %p211 = scmp.le.s32.totalorder 1, %s9
    %p212 = scmp.lt.s32.totalorder %s9, 5
    %p213 = pnand %p211, %p212
    %p214 = pneg %p213
    // Predicated region
    $region29: #{g_unet_add_middle_forward.16} parent=5 // pred_check
      _
    $region30: #{g_unet_add_middle_forward.16} parent=5 // pred_check_branch
      %216 = sbr.rel (%p213) target = $region32
    $region31: #{g_unet_add_middle_forward.16} parent=5 // pred_region
      %s217 = ssub.s32 %s9, 1
      %s218 = smul.u32 2, %s21
      %s219 = smul.u32 2, %s23
      %p220 = scmp.lt.s32.totalorder %s20, 3
      %s221 = scalar_select %p220, %s20, 3
      %p222 = scmp.lt.s32.totalorder %s218, 1
      %s223 = scalar_select %p222, %s218, 1
      %p224 = scmp.lt.s32.totalorder %s219, 1
      %s225 = scalar_select %p224, %s219, 1
      %s226 = smul.addr %s223, 2
      %s227 = sadd.s32 %s225, %s226
      %s228 = smul.addr %s221, 4
      %s229 = sadd.s32 %s227, %s228
      %s230 = smul.addr %s229, 4
      %s231 = scalar_lea.vmem %s0, %s230
      %p232 = pneg %p65
      %p233 = pneg %p62
      %s234 = smul.u32 32, %s23
      %p235 = scmp.lt.s32.totalorder %s20, 3
      %s236 = scalar_select %p235, %s20, 3
      %p237 = scmp.lt.s32.totalorder %s234, 31
      %s238 = scalar_select %p237, %s234, 31
      %p239 = scmp.lt.s32.totalorder %s22, 0
      %s240 = scalar_select %p239, %s22, 0
      %s241 = sadd.s32 %s240, %s238
      %s242 = smul.addr %s236, 32
      %s243 = sadd.s32 %s241, %s242
      %s244 = smul.addr %s243, 4
      %s245 = scalar_lea.vmem %s1, %s244
      %p246 = pneg %p95
      %p247 = pneg %p92
      %p248 = scmp.lt.s32.totalorder %s22, 0
      %s249 = scalar_select %p248, %s22, 0
      %s250 = scalar_lea.vmem %s2, %s249
      %p251 = pneg %p121
      %p252 = pneg %p118
      %p253 = pneg %p151
      %p254 = pneg %p148
      %s255 = smul.u32 2, %s21
      %p256 = scmp.lt.s32.totalorder %s20, 3
      %s257 = scalar_select %p256, %s20, 3
      %p258 = scmp.lt.s32.totalorder %s255, 1
      %s259 = scalar_select %p258, %s255, 1
      %p260 = scmp.lt.s32.totalorder %s22, 0
      %s261 = scalar_select %p260, %s22, 0
      %s262 = sadd.s32 %s261, %s259
      %s263 = smul.addr %s257, 2
      %s264 = sadd.s32 %s262, %s263
      %s265 = smul.addr %s264, 4
      %s266 = scalar_lea.vmem %s3, %s265
      %s267 = smul.u32 2, %s21
      %s268 = smul.u32 2, %s23
      %p269 = scmp.lt.s32.totalorder %s20, 3
      %s270 = scalar_select %p269, %s20, 3
      %p271 = scmp.lt.s32.totalorder %s267, 1
      %s272 = scalar_select %p271, %s267, 1
      %p273 = scmp.lt.s32.totalorder %s268, 1
      %s274 = scalar_select %p273, %s268, 1
      %s275 = smul.addr %s272, 2
      %s276 = sadd.s32 %s274, %s275
      %s277 = smul.addr %s270, 4
      %s278 = sadd.s32 %s276, %s277
      %s279 = smul.addr %s278, 4
      %s280 = scalar_lea.vmem %s0, %s279
      %s281 = smul.u32 2, %s21
      %s282 = smul.u32 2, %s23
      %s283 = smul.u32 32, %s23
      %p284 = scmp.lt.s32.totalorder %s20, 3
      %s285 = scalar_select %p284, %s20, 3
      %p286 = scmp.lt.s32.totalorder %s283, 31
      %s287 = scalar_select %p286, %s283, 31
      %p288 = scmp.lt.s32.totalorder %s22, 0
      %s289 = scalar_select %p288, %s22, 0
      %s290 = sadd.s32 %s289, %s287
      %s291 = smul.addr %s285, 32
      %s292 = sadd.s32 %s290, %s291
      %s293 = smul.addr %s292, 4
      %s294 = scalar_lea.vmem %s1, %s293
      %s295 = smul.u32 32, %s23
      %p296 = scmp.lt.s32.totalorder %s22, 0
      %s297 = scalar_select %p296, %s22, 0
      %s298 = scalar_lea.vmem %s2, %s297
      %s299 = smul.u32 2, %s21
      %p300 = scmp.lt.s32.totalorder %s20, 3
      %s301 = scalar_select %p300, %s20, 3
      %p302 = scmp.lt.s32.totalorder %s299, 1
      %s303 = scalar_select %p302, %s299, 1
      %p304 = scmp.lt.s32.totalorder %s22, 0
      %s305 = scalar_select %p304, %s22, 0
      %s306 = sadd.s32 %s305, %s303
      %s307 = smul.addr %s301, 2
      %s308 = sadd.s32 %s306, %s307
      %s309 = smul.addr %s308, 4
      %s310 = scalar_lea.vmem %s3, %s309
      %s311 = smul.u32 2, %s21
      %p313 = scmp.eq.s32.totalorder %s23, 0
      // Predicated region
      $region33: #{g_unet_add_middle_forward.16} parent=31 // pred_check
        %p314 = pneg %p313
      $region34: #{g_unet_add_middle_forward.16} parent=31 // pred_check_branch
        %316 = sbr.rel (%p314) target = $region36
      $region35: #{g_unet_add_middle_forward.16} parent=31 // pred_region
        %317 = vst [vmem:[#allocation2] sm:$0xff] 0.0
        %318 = vst [vmem:[#allocation2 + $0x8] sm:$0xff] 0.0
      $region36: #{g_unet_add_middle_forward.16} parent=31 // pred_fallthru
        _
      %v319 = vld [vmem:[#allocation2] sm:$0xff]
      %v320 = vld [vmem:[#allocation2 + $0x8] sm:$0xff]
      %v321 = vld [vmem:[%s280] sm:$0xff]
      %v322 = vld [vmem:[%s280 + $0x8] sm:$0xff]
      %v323 = vld [vmem:[%s294] sm:$0xf]
      %v324 = vld [vmem:[%s294 + $0x4] sm:$0xf]
      %v325 = vld [vmem:[%s294 + $0x8] sm:$0xf]
      %v326 = vld [vmem:[%s294 + $0xc] sm:$0xf]
      %v327 = vld [vmem:[%s294 + $0x10] sm:$0xf]
      %v328 = vld [vmem:[%s294 + $0x14] sm:$0xf]
      %v329 = vld [vmem:[%s294 + $0x18] sm:$0xf]
      %v330 = vld [vmem:[%s294 + $0x1c] sm:$0xf]
      %v331 = vld [vmem:[%s294 + $0x20] sm:$0xf]
      %v332 = vld [vmem:[%s294 + $0x24] sm:$0xf]
      %v333 = vld [vmem:[%s294 + $0x28] sm:$0xf]
      %v334 = vld [vmem:[%s294 + $0x2c] sm:$0xf]
      %v335 = vld [vmem:[%s294 + $0x30] sm:$0xf]
      %v336 = vld [vmem:[%s294 + $0x34] sm:$0xf]
      %v337 = vld [vmem:[%s294 + $0x38] sm:$0xf]
      %v338 = vld [vmem:[%s294 + $0x3c] sm:$0xf]
      %v339 = vld [vmem:[%s294 + $0x40] sm:$0xf]
      %v340 = vld [vmem:[%s294 + $0x44] sm:$0xf]
      %v341 = vld [vmem:[%s294 + $0x48] sm:$0xf]
      %v342 = vld [vmem:[%s294 + $0x4c] sm:$0xf]
      %v343 = vld [vmem:[%s294 + $0x50] sm:$0xf]
      %v344 = vld [vmem:[%s294 + $0x54] sm:$0xf]
      %v345 = vld [vmem:[%s294 + $0x58] sm:$0xf]
      %v346 = vld [vmem:[%s294 + $0x5c] sm:$0xf]
      %v347 = vld [vmem:[%s294 + $0x60] sm:$0xf]
      %v348 = vld [vmem:[%s294 + $0x64] sm:$0xf]
      %v349 = vld [vmem:[%s294 + $0x68] sm:$0xf]
      %v350 = vld [vmem:[%s294 + $0x6c] sm:$0xf]
      %v351 = vld [vmem:[%s294 + $0x70] sm:$0xf]
      %v352 = vld [vmem:[%s294 + $0x74] sm:$0xf]
      %v353 = vld [vmem:[%s294 + $0x78] sm:$0xf]
      %v354 = vld [vmem:[%s294 + $0x7c] sm:$0xf]
      %v357 = vunpack.c.l.b16 %v321
      %v358 = vunpack.c.h.b16 %v321
      %v359 = vunpack.c.l.b16 %v322
      %v360 = vunpack.c.h.b16 %v322
      %v361 = vpack.c.b16 %v359, %v357
      %v362 = vpack.c.b16 %v360, %v358
      %v397 = vunpack.c.l.b16 %v323
      %v398 = vunpack.c.l.b16 %v324
      %v399 = vunpack.c.l.b16 %v325
      %v400 = vunpack.c.l.b16 %v326
      %v401 = vunpack.c.l.b16 %v327
      %v402 = vunpack.c.l.b16 %v328
      %v403 = vunpack.c.l.b16 %v329
      %v404 = vunpack.c.l.b16 %v330
      %v405 = vunpack.c.l.b16 %v331
      %v406 = vunpack.c.l.b16 %v332
      %v407 = vunpack.c.l.b16 %v333
      %v408 = vunpack.c.l.b16 %v334
      %v409 = vunpack.c.l.b16 %v335
      %v410 = vunpack.c.l.b16 %v336
      %v411 = vunpack.c.l.b16 %v337
      %v412 = vunpack.c.l.b16 %v338
      %v413 = vunpack.c.l.b16 %v339
      %v414 = vunpack.c.l.b16 %v340
      %v415 = vunpack.c.l.b16 %v341
      %v416 = vunpack.c.l.b16 %v342
      %v417 = vunpack.c.l.b16 %v343
      %v418 = vunpack.c.l.b16 %v344
      %v419 = vunpack.c.l.b16 %v345
      %v420 = vunpack.c.l.b16 %v346
      %v421 = vunpack.c.l.b16 %v347
      %v422 = vunpack.c.l.b16 %v348
      %v423 = vunpack.c.l.b16 %v349
      %v424 = vunpack.c.l.b16 %v350
      %v425 = vunpack.c.l.b16 %v351
      %v426 = vunpack.c.l.b16 %v352
      %v427 = vunpack.c.l.b16 %v353
      %v428 = vunpack.c.l.b16 %v354
      %v429 = vpack.c.b16 %v398, %v397
      %v430 = vpack.c.b16 %v400, %v399
      %v431 = vpack.c.b16 %v402, %v401
      %v432 = vpack.c.b16 %v404, %v403
      %v433 = vpack.c.b16 %v406, %v405
      %v434 = vpack.c.b16 %v408, %v407
      %v435 = vpack.c.b16 %v410, %v409
      %v436 = vpack.c.b16 %v412, %v411
      %v437 = vpack.c.b16 %v414, %v413
      %v438 = vpack.c.b16 %v416, %v415
      %v439 = vpack.c.b16 %v418, %v417
      %v440 = vpack.c.b16 %v420, %v419
      %v441 = vpack.c.b16 %v422, %v421
      %v442 = vpack.c.b16 %v424, %v423
      %v443 = vpack.c.b16 %v426, %v425
      %v444 = vpack.c.b16 %v428, %v427
      %461 = vmatprep.subr.bf16.mxu0 0
      %462 = vmatpush1.bf16.msra.mxu0 %v429
      %463 = vmatprep.subr.bf16.mxu0 0
      %464 = vmatpush1.bf16.msra.mxu0 %v430
      %465 = vmatprep.subr.bf16.mxu0 0
      %466 = vmatpush1.bf16.msra.mxu0 %v431
      %467 = vmatprep.subr.bf16.mxu0 0
      %468 = vmatpush1.bf16.msra.mxu0 %v432
      %469 = vmatprep.subr.bf16.mxu0 0
      %470 = vmatpush1.bf16.msra.mxu0 %v433
      %471 = vmatprep.subr.bf16.mxu0 0
      %472 = vmatpush1.bf16.msra.mxu0 %v434
      %473 = vmatprep.subr.bf16.mxu0 0
      %474 = vmatpush1.bf16.msra.mxu0 %v435
      %475 = vmatprep.subr.bf16.mxu0 0
      %476 = vmatpush1.bf16.msra.mxu0 %v436
      %477 = vmatprep.subr.bf16.mxu0 0
      %478 = vmatpush1.bf16.msra.mxu0 %v437
      %479 = vmatprep.subr.bf16.mxu0 0
      %480 = vmatpush1.bf16.msra.mxu0 %v438
      %481 = vmatprep.subr.bf16.mxu0 0
      %482 = vmatpush1.bf16.msra.mxu0 %v439
      %483 = vmatprep.subr.bf16.mxu0 0
      %484 = vmatpush1.bf16.msra.mxu0 %v440
      %485 = vmatprep.subr.bf16.mxu0 0
      %486 = vmatpush1.bf16.msra.mxu0 %v441
      %487 = vmatprep.subr.bf16.mxu0 0
      %488 = vmatpush1.bf16.msra.mxu0 %v442
      %489 = vmatprep.subr.bf16.mxu0 0
      %490 = vmatpush1.bf16.msra.mxu0 %v443
      %491 = vmatprep.subr.bf16.mxu0 0
      %492 = vmatpush1.bf16.msra.mxu0 %v444
      %493 = vmatprep.mubr.bf16.mxu0 %v362
      %494 = vmatmul.mubr.bf16.gmra.mrb[0].mxu0 %v361
      %v495 = vpop.f32.mrb[0].mxu0
      %v496 = vadd.f32 0.0, %v495
      %v497 = vpop.f32.mrb[0].mxu0
      %v498 = vpop.f32.mrb[0].mxu0
      %v499 = vadd.f32 0.0, %v498
      %v500 = vpop.f32.mrb[0].mxu0
      %501 = vdwg.mxu0
      %v502 = vadd.f32 %v319, %v496
      %v503 = vadd.f32 %v320, %v499
      %504 = vst [vmem:[#allocation2] sm:$0xff] %v502
      %505 = vst [vmem:[#allocation2 + $0x8] sm:$0xff] %v503
      // Predicated region
      $region37: #{g_unet_add_middle_forward.16} parent=31 // pred_check
        %p506 = pneg %p313
      $region38: #{g_unet_add_middle_forward.16} parent=31 // pred_check_branch
        %508 = sbr.rel (%p506) target = $region40
      $region39: #{g_unet_add_middle_forward.16} parent=31 // pred_region
        %v509 = vld [vmem:[#allocation2] sm:$0xff]
        %v510 = vld [vmem:[#allocation2 + $0x8] sm:$0xff]
        %v511 = vld [vmem:[%s298] sm:$0x1]
        %v513 = vlaneseq
        %v514 = vshrl.u32 %v513, 7
        %v515 = vsub.s32 0, %v514
        %v516 = vrot.slane %v511, %v515
        %v518 = vadd.f32 %v509, %v516
        %v519 = vadd.f32 %v510, %v516
        %v520 = vmax.f32 %v518, 0.0
        %v521 = vmax.f32 %v519, 0.0
        %v522 = vpack.c.bf16 %v521, %v520
        %v524 = vunpack.c.l.b16 %v522
        %v525 = vunpack.c.h.b16 %v522
        %v526 = vpack.c.b16 %v524, %v524
        %v527 = vpack.c.b16 %v525, %v525
        %530 = vst [vmem:[%s310] sm:$0xf] %v526
        %531 = vst [vmem:[%s310 + $0x4] sm:$0xf] %v527
      $region40: #{g_unet_add_middle_forward.16} parent=31 // pred_fallthru
        _
      %s532 = smul.u32 2, %s21
      %p533 = scmp.lt.s32.totalorder %s20, 3
      %s534 = scalar_select %p533, %s20, 3
      %p535 = scmp.lt.s32.totalorder %s532, 1
      %s536 = scalar_select %p535, %s532, 1
      %p537 = scmp.lt.s32.totalorder %s22, 0
      %s538 = scalar_select %p537, %s22, 0
      %s539 = sadd.s32 %s538, %s536
      %s540 = smul.addr %s534, 2
      %s541 = sadd.s32 %s539, %s540
      %s542 = smul.addr %s541, 4
      %s543 = scalar_lea.vmem %s3, %s542
      // Predicated region
      $region41: #{g_unet_add_middle_forward.16} parent=31 // pred_check
        %p544 = pneg %p148
      $region42: #{g_unet_add_middle_forward.16} parent=31 // pred_check_branch
        %546 = sbr.rel (%p544) target = $region44
      $region43: #{g_unet_add_middle_forward.16} parent=31 // pred_region
        %s547 = smul.u32 2, %s21
      $region44: #{g_unet_add_middle_forward.16} parent=31 // pred_fallthru
        _
    $region32: #{g_unet_add_middle_forward.16} parent=5 // pred_fallthru
      _
    %p548 = scmp.le.s32.totalorder 2, %s9
    // Predicated region
    $region45: #{g_unet_add_middle_forward.16} parent=5 // pred_check
      %p549 = pneg %p548
    $region46: #{g_unet_add_middle_forward.16} parent=5 // pred_check_branch
      %551 = sbr.rel (%p549) target = $region48
    $region47: #{g_unet_add_middle_forward.16} parent=5 // pred_region
      %s552 = ssub.s32 %s9, 2
      // Predicated region
      $region49: #{g_unet_add_middle_forward.16} parent=47 // pred_check
        %p553 = pneg %p154
      $region50: #{g_unet_add_middle_forward.16} parent=47 // pred_check_branch
        %555 = sbr.rel (%p553) target = $region52
      $region51: #{g_unet_add_middle_forward.16} parent=47 // pred_region
        %s556 = smul.u32 2, %s25
        %p557 = scmp.lt.s32.totalorder %s24, 3
        %s558 = scalar_select %p557, %s24, 3
        %p559 = scmp.lt.s32.totalorder %s556, 1
        %s560 = scalar_select %p559, %s556, 1
        %p561 = scmp.lt.s32.totalorder %s26, 0
        %s562 = scalar_select %p561, %s26, 0
        %s563 = sadd.s32 %s562, %s560
        %s564 = smul.addr %s558, 2
        %s565 = sadd.s32 %s563, %s564
        %s566 = smul.addr %s565, 4
        %s567 = scalar_lea.vmem %s3, %s566
      $region52: #{g_unet_add_middle_forward.16} parent=47 // pred_fallthru
        _
    $region48: #{g_unet_add_middle_forward.16} parent=5 // pred_fallthru
      _
  $region6: #{g_unet_add_middle_forward.16} parent=0 // loop_footer
    %s13 = sadd.s32 1, %s9
  $region7: #{g_unet_add_middle_forward.16} parent=0 // loop_footer_branch
    %8 = sbr.rel target = $region3
  $region8: #{g_unet_add_middle_forward.16} parent=0 // loop_exit
    _

// kernel: g_unet_add_middle_forward.17
$region0: #{g_unet_add_middle_forward.17}
  #allocation0 [shape = 'u32[]', space=smem, size = 0x4, offset = 0x4, fixed_abs, tag = 'smem constant byte address 0x4 - core index']
  #allocation1 [shape = 'u32[144,128]{1,0:T(1,128)}', space=vmem, size = 0x12000, scoped, tag = 'internal scratch']
  #allocation2 [shape = 'f32[32,128]{1,0:T(8,128)}', space=vmem, size = 0x4000, scoped, tag = 'scratch operand']
  %s0 = inlined_call_operand.vmem [shape: bf16[4,32,128], index: 0, kind: input, shape index: {}]
  %s1 = inlined_call_operand.vmem [shape: bf16[4,128,128], index: 1, kind: input, shape index: {}]
  %s2 = inlined_call_operand.vmem [shape: f32[1,128], index: 2, kind: input, shape index: {}]
  %s3 = inlined_call_operand.vmem [shape: bf16[4,32,128], index: 3, kind: output, shape index: {}]
  %s4 = sld [smem:[#allocation0]]
  $region53: #{g_unet_add_middle_forward.17} parent=0
    _
  %s6 = ssub.s32 1, %s4
  %s7 = scalar_select 0, %s6, %s4
  loop: start=0, step=1, limit=6
  $region2: #{g_unet_add_middle_forward.17} parent=0 // loop_pre_header
    _
  $region3: #{g_unet_add_middle_forward.17} parent=0 // loop_header
    %s9 = sphi 0, %s13
    %p10 = scmp.ge.s32.totalorder %s9, 6
    %s16 = sphi 0, %s42
    %s17 = sphi 0, %s38
    %s18 = sphi 0, %s34
    %s19 = sphi 0, %s30
    %s20 = sphi 0, %s16
    %s21 = sphi 0, %s17
    %s22 = sphi 0, %s18
    %s23 = sphi 0, %s19
    %s24 = sphi 0, %s20
    %s25 = sphi 0, %s21
    %s26 = sphi 0, %s22
    %s27 = sphi 0, %s23
    %s49 = sphi 0, %s51
    %s52 = sphi 0, %s49
    %s53 = sphi 0, %s52
    %s69 = sphi 0, %s53
    %s79 = sphi 0, %s81
    %s82 = sphi 0, %s79
    %s83 = sphi 0, %s82
    %s99 = sphi 0, %s83
    %s105 = sphi 0, %s107
    %s108 = sphi 0, %s105
    %s109 = sphi 0, %s108
    %s125 = sphi 0, %s109
    %s135 = sphi 0, %s137
    %s138 = sphi 0, %s135
    %s139 = sphi 0, %s138
    %s155 = sphi 0, %s139
  $region4: #{g_unet_add_middle_forward.17} parent=0 // loop_header_branch
    %12 = sbr.rel (%p10) target = $region8
  $region5: #{g_unet_add_middle_forward.17} parent=0 // loop_body
    %s14 = ssub.s32 %s9, 1
    %s15 = ssub.s32 %s9, 2
    %s28 = sadd.s32 1, %s19
    %p29 = scmp.ge.s32.totalorder %s28, 1
    %s30 = scalar_select %p29, 0, %s28
    %s31 = sadd.s32 1, %s18
    %s32 = scalar_select %p29, %s31, %s18
    %p33 = scmp.ge.s32.totalorder %s32, 1
    %s34 = scalar_select %p33, 0, %s32
    %s35 = sadd.s32 1, %s17
    %s36 = scalar_select %p33, %s35, %s17
    %p37 = scmp.ge.s32.totalorder %s36, 1
    %s38 = scalar_select %p37, 0, %s36
    %s39 = sadd.s32 1, %s16
    %s40 = scalar_select %p37, %s39, %s16
    %p41 = scmp.ge.s32.totalorder %s40, 4
    %s42 = scalar_select %p41, 0, %s40
    %s43 = ssub.s32 %s16, %s42
    %s44 = ssub.s32 %s17, %s38
    %s45 = sor.u32 %s43, %s44
    %s46 = ssub.s32 %s19, %s30
    %s47 = sor.u32 %s45, %s46
    %p48 = scmp.eq.s32.totalorder %s47, 0
    %s50 = sadd.s32 %s49, 1
    %s51 = scalar_select %p48, %s49, %s50
    %p54 = pneg %p48
    %p55 = scmp.eq.s32.totalorder %s9, 3
    %p56 = por %p54, %p55
    %p57 = scmp.ne.s32.totalorder %s49, %s52
    %p58 = scmp.eq.s32.totalorder %s9, 0
    %p59 = por %p57, %p58
    %p60 = scmp.ne.s32.totalorder %s49, %s52
    %p61 = scmp.eq.s32.totalorder %s14, 3
    %p62 = por %p60, %p61
    %p63 = scmp.ne.s32.totalorder %s52, %s53
    %p64 = scmp.eq.s32.totalorder %s14, 0
    %p65 = por %p63, %p64
    %p66 = scmp.ne.s32.totalorder %s52, %s53
    %p67 = scmp.eq.s32.totalorder %s15, 3
    %p68 = por %p66, %p67
    %p70 = scmp.ne.s32.totalorder %s53, %s69
    %p71 = scmp.eq.s32.totalorder %s15, 0
    %p72 = por %p70, %p71
    %s73 = ssub.s32 %s16, %s42
    %s74 = ssub.s32 %s19, %s30
    %s75 = sor.u32 %s73, %s74
    %s76 = ssub.s32 %s18, %s34
    %s77 = sor.u32 %s75, %s76
    %p78 = scmp.eq.s32.totalorder %s77, 0
    %s80 = sadd.s32 %s79, 1
    %s81 = scalar_select %p78, %s79, %s80
    %p84 = pneg %p78
    %p85 = scmp.eq.s32.totalorder %s9, 3
    %p86 = por %p84, %p85
    %p87 = scmp.ne.s32.totalorder %s79, %s82
    %p88 = scmp.eq.s32.totalorder %s9, 0
    %p89 = por %p87, %p88
    %p90 = scmp.ne.s32.totalorder %s79, %s82
    %p91 = scmp.eq.s32.totalorder %s14, 3
    %p92 = por %p90, %p91
    %p93 = scmp.ne.s32.totalorder %s82, %s83
    %p94 = scmp.eq.s32.totalorder %s14, 0
    %p95 = por %p93, %p94
    %p96 = scmp.ne.s32.totalorder %s82, %s83
    %p97 = scmp.eq.s32.totalorder %s15, 3
    %p98 = por %p96, %p97
    %p100 = scmp.ne.s32.totalorder %s83, %s99
    %p101 = scmp.eq.s32.totalorder %s15, 0
    %p102 = por %p100, %p101
    %s103 = ssub.s32 %s18, %s34
    %p104 = scmp.eq.s32.totalorder %s103, 0
    %s106 = sadd.s32 %s105, 1
    %s107 = scalar_select %p104, %s105, %s106
    %p110 = pneg %p104
    %p111 = scmp.eq.s32.totalorder %s9, 3
    %p112 = por %p110, %p111
    %p113 = scmp.ne.s32.totalorder %s105, %s108
    %p114 = scmp.eq.s32.totalorder %s9, 0
    %p115 = por %p113, %p114
    %p116 = scmp.ne.s32.totalorder %s105, %s108
    %p117 = scmp.eq.s32.totalorder %s14, 3
    %p118 = por %p116, %p117
    %p119 = scmp.ne.s32.totalorder %s108, %s109
    %p120 = scmp.eq.s32.totalorder %s14, 0
    %p121 = por %p119, %p120
    %p122 = scmp.ne.s32.totalorder %s108, %s109
    %p123 = scmp.eq.s32.totalorder %s15, 3
    %p124 = por %p122, %p123
    %p126 = scmp.ne.s32.totalorder %s109, %s125
    %p127 = scmp.eq.s32.totalorder %s15, 0
    %p128 = por %p126, %p127
    %s129 = ssub.s32 %s16, %s42
    %s130 = ssub.s32 %s17, %s38
    %s131 = sor.u32 %s129, %s130
    %s132 = ssub.s32 %s18, %s34
    %s133 = sor.u32 %s131, %s132
    %p134 = scmp.eq.s32.totalorder %s133, 0
    %s136 = sadd.s32 %s135, 1
    %s137 = scalar_select %p134, %s135, %s136
    %p140 = pneg %p134
    %p141 = scmp.eq.s32.totalorder %s9, 3
    %p142 = por %p140, %p141
    %p143 = scmp.ne.s32.totalorder %s135, %s138
    %p144 = scmp.eq.s32.totalorder %s9, 0
    %p145 = por %p143, %p144
    %p146 = scmp.ne.s32.totalorder %s135, %s138
    %p147 = scmp.eq.s32.totalorder %s14, 3
    %p148 = por %p146, %p147
    %p149 = scmp.ne.s32.totalorder %s138, %s139
    %p150 = scmp.eq.s32.totalorder %s14, 0
    %p151 = por %p149, %p150
    %p152 = scmp.ne.s32.totalorder %s138, %s139
    %p153 = scmp.eq.s32.totalorder %s15, 3
    %p154 = por %p152, %p153
    %p156 = scmp.ne.s32.totalorder %s139, %s155
    %p157 = scmp.eq.s32.totalorder %s15, 0
    %p158 = por %p156, %p157
    %p159 = scmp.le.s32.totalorder 1, %s9
    %p160 = scmp.lt.s32.totalorder %s9, 5
    %p161 = pnand %p159, %p160
    %p162 = pneg %p161
    // Predicated region
    $region9: #{g_unet_add_middle_forward.17} parent=5 // pred_check
      _
    $region10: #{g_unet_add_middle_forward.17} parent=5 // pred_check_branch
      %164 = sbr.rel (%p161) target = $region12
    $region11: #{g_unet_add_middle_forward.17} parent=5 // pred_region
      %s165 = ssub.s32 %s9, 1
      // Predicated region
      $region13: #{g_unet_add_middle_forward.17} parent=11 // pred_check
        %p166 = pneg %p121
      $region14: #{g_unet_add_middle_forward.17} parent=11 // pred_check_branch
        %168 = sbr.rel (%p166) target = $region16
      $region15: #{g_unet_add_middle_forward.17} parent=11 // pred_region
        %p169 = scmp.lt.s32.totalorder %s22, 0
        %s170 = scalar_select %p169, %s22, 0
        %s171 = scalar_lea.vmem %s2, %s170
      $region16: #{g_unet_add_middle_forward.17} parent=11 // pred_fallthru
        _
    $region12: #{g_unet_add_middle_forward.17} parent=5 // pred_fallthru
      _
    %p172 = scmp.lt.s32.totalorder %s9, 4
    // Predicated region
    $region17: #{g_unet_add_middle_forward.17} parent=5 // pred_check
      %p173 = pneg %p172
    $region18: #{g_unet_add_middle_forward.17} parent=5 // pred_check_branch
      %175 = sbr.rel (%p173) target = $region20
    $region19: #{g_unet_add_middle_forward.17} parent=5 // pred_region
      // Predicated region
      $region21: #{g_unet_add_middle_forward.17} parent=19 // pred_check
        %p176 = pneg %p59
      $region22: #{g_unet_add_middle_forward.17} parent=19 // pred_check_branch
        %178 = sbr.rel (%p176) target = $region24
      $region23: #{g_unet_add_middle_forward.17} parent=19 // pred_region
        %s179 = smul.u32 4, %s17
        %p180 = scmp.lt.s32.totalorder %s16, 3
        %s181 = scalar_select %p180, %s16, 3
        %p182 = scmp.lt.s32.totalorder %s179, 3
        %s183 = scalar_select %p182, %s179, 3
        %p184 = scmp.lt.s32.totalorder %s19, 0
        %s185 = scalar_select %p184, %s19, 0
        %s186 = sadd.s32 %s185, %s183
        %s187 = smul.addr %s181, 4
        %s188 = sadd.s32 %s186, %s187
        %s189 = smul.addr %s188, 4
        %s190 = scalar_lea.vmem %s0, %s189
        %s191 = smul.u32 4, %s17
      $region24: #{g_unet_add_middle_forward.17} parent=19 // pred_fallthru
        _
      // Predicated region
      $region25: #{g_unet_add_middle_forward.17} parent=19 // pred_check
        %p192 = pneg %p89
      $region26: #{g_unet_add_middle_forward.17} parent=19 // pred_check_branch
        %194 = sbr.rel (%p192) target = $region28
      $region27: #{g_unet_add_middle_forward.17} parent=19 // pred_region
        %s195 = smul.u32 16, %s19
        %p196 = scmp.lt.s32.totalorder %s16, 3
        %s197 = scalar_select %p196, %s16, 3
        %p198 = scmp.lt.s32.totalorder %s195, 15
        %s199 = scalar_select %p198, %s195, 15
        %p200 = scmp.lt.s32.totalorder %s18, 0
        %s201 = scalar_select %p200, %s18, 0
        %s202 = sadd.s32 %s201, %s199
        %s203 = smul.addr %s197, 16
        %s204 = sadd.s32 %s202, %s203
        %s205 = smul.addr %s204, 4
        %s206 = scalar_lea.vmem %s1, %s205
        %s207 = smul.u32 16, %s19
      $region28: #{g_unet_add_middle_forward.17} parent=19 // pred_fallthru
        _
    $region20: #{g_unet_add_middle_forward.17} parent=5 // pred_fallthru
      _
    %p208 = scmp.le.s32.totalorder 1, %s9
    %p209 = scmp.lt.s32.totalorder %s9, 5
    %p210 = pnand %p208, %p209
    %p211 = pneg %p210
    // Predicated region
    $region29: #{g_unet_add_middle_forward.17} parent=5 // pred_check
      _
    $region30: #{g_unet_add_middle_forward.17} parent=5 // pred_check_branch
      %213 = sbr.rel (%p210) target = $region32
    $region31: #{g_unet_add_middle_forward.17} parent=5 // pred_region
      %s214 = ssub.s32 %s9, 1
      %s215 = smul.u32 4, %s21
      %p216 = scmp.lt.s32.totalorder %s20, 3
      %s217 = scalar_select %p216, %s20, 3
      %p218 = scmp.lt.s32.totalorder %s215, 3
      %s219 = scalar_select %p218, %s215, 3
      %p220 = scmp.lt.s32.totalorder %s23, 0
      %s221 = scalar_select %p220, %s23, 0
      %s222 = sadd.s32 %s221, %s219
      %s223 = smul.addr %s217, 4
      %s224 = sadd.s32 %s222, %s223
      %s225 = smul.addr %s224, 4
      %s226 = scalar_lea.vmem %s0, %s225
      %p227 = pneg %p65
      %p228 = pneg %p62
      %s229 = smul.u32 16, %s23
      %p230 = scmp.lt.s32.totalorder %s20, 3
      %s231 = scalar_select %p230, %s20, 3
      %p232 = scmp.lt.s32.totalorder %s229, 15
      %s233 = scalar_select %p232, %s229, 15
      %p234 = scmp.lt.s32.totalorder %s22, 0
      %s235 = scalar_select %p234, %s22, 0
      %s236 = sadd.s32 %s235, %s233
      %s237 = smul.addr %s231, 16
      %s238 = sadd.s32 %s236, %s237
      %s239 = smul.addr %s238, 4
      %s240 = scalar_lea.vmem %s1, %s239
      %p241 = pneg %p95
      %p242 = pneg %p92
      %p243 = scmp.lt.s32.totalorder %s22, 0
      %s244 = scalar_select %p243, %s22, 0
      %s245 = scalar_lea.vmem %s2, %s244
      %p246 = pneg %p121
      %p247 = pneg %p118
      %p248 = pneg %p151
      %p249 = pneg %p148
      %s250 = smul.u32 4, %s21
      %p251 = scmp.lt.s32.totalorder %s20, 3
      %s252 = scalar_select %p251, %s20, 3
      %p253 = scmp.lt.s32.totalorder %s250, 3
      %s254 = scalar_select %p253, %s250, 3
      %p255 = scmp.lt.s32.totalorder %s22, 0
      %s256 = scalar_select %p255, %s22, 0
      %s257 = sadd.s32 %s256, %s254
      %s258 = smul.addr %s252, 4
      %s259 = sadd.s32 %s257, %s258
      %s260 = smul.addr %s259, 4
      %s261 = scalar_lea.vmem %s3, %s260
      %s262 = smul.u32 4, %s21
      %p263 = scmp.lt.s32.totalorder %s20, 3
      %s264 = scalar_select %p263, %s20, 3
      %p265 = scmp.lt.s32.totalorder %s262, 3
      %s266 = scalar_select %p265, %s262, 3
      %p267 = scmp.lt.s32.totalorder %s23, 0
      %s268 = scalar_select %p267, %s23, 0
      %s269 = sadd.s32 %s268, %s266
      %s270 = smul.addr %s264, 4
      %s271 = sadd.s32 %s269, %s270
      %s272 = smul.addr %s271, 4
      %s273 = scalar_lea.vmem %s0, %s272
      %s274 = smul.u32 4, %s21
      %s275 = smul.u32 16, %s23
      %p276 = scmp.lt.s32.totalorder %s20, 3
      %s277 = scalar_select %p276, %s20, 3
      %p278 = scmp.lt.s32.totalorder %s275, 15
      %s279 = scalar_select %p278, %s275, 15
      %p280 = scmp.lt.s32.totalorder %s22, 0
      %s281 = scalar_select %p280, %s22, 0
      %s282 = sadd.s32 %s281, %s279
      %s283 = smul.addr %s277, 16
      %s284 = sadd.s32 %s282, %s283
      %s285 = smul.addr %s284, 4
      %s286 = scalar_lea.vmem %s1, %s285
      %s287 = smul.u32 16, %s23
      %p288 = scmp.lt.s32.totalorder %s22, 0
      %s289 = scalar_select %p288, %s22, 0
      %s290 = scalar_lea.vmem %s2, %s289
      %s291 = smul.u32 4, %s21
      %p292 = scmp.lt.s32.totalorder %s20, 3
      %s293 = scalar_select %p292, %s20, 3
      %p294 = scmp.lt.s32.totalorder %s291, 3
      %s295 = scalar_select %p294, %s291, 3
      %p296 = scmp.lt.s32.totalorder %s22, 0
      %s297 = scalar_select %p296, %s22, 0
      %s298 = sadd.s32 %s297, %s295
      %s299 = smul.addr %s293, 4
      %s300 = sadd.s32 %s298, %s299
      %s301 = smul.addr %s300, 4
      %s302 = scalar_lea.vmem %s3, %s301
      %s303 = smul.u32 4, %s21
      %p305 = scmp.eq.s32.totalorder %s23, 0
      // Predicated region
      $region33: #{g_unet_add_middle_forward.17} parent=31 // pred_check
        %p306 = pneg %p305
      $region34: #{g_unet_add_middle_forward.17} parent=31 // pred_check_branch
        %308 = sbr.rel (%p306) target = $region36
      $region35: #{g_unet_add_middle_forward.17} parent=31 // pred_region
        %309 = vst [vmem:[#allocation2] sm:$0xff] 0.0
        %310 = vst [vmem:[#allocation2 + $0x8] sm:$0xff] 0.0
        %311 = vst [vmem:[#allocation2 + $0x10] sm:$0xff] 0.0
        %312 = vst [vmem:[#allocation2 + $0x18] sm:$0xff] 0.0
      $region36: #{g_unet_add_middle_forward.17} parent=31 // pred_fallthru
        _
      %v313 = vld [vmem:[#allocation2] sm:$0xff]
      %v314 = vld [vmem:[#allocation2 + $0x8] sm:$0xff]
      %v315 = vld [vmem:[#allocation2 + $0x10] sm:$0xff]
      %v316 = vld [vmem:[#allocation2 + $0x18] sm:$0xff]
      %v317 = vld [vmem:[%s273] sm:$0xf]
      %v318 = vld [vmem:[%s273 + $0x4] sm:$0xf]
      %v319 = vld [vmem:[%s273 + $0x8] sm:$0xf]
      %v320 = vld [vmem:[%s273 + $0xc] sm:$0xf]
      %v321 = vld [vmem:[%s286] sm:$0xf]
      %v322 = vld [vmem:[%s286 + $0x4] sm:$0xf]
      %v323 = vld [vmem:[%s286 + $0x8] sm:$0xf]
      %v324 = vld [vmem:[%s286 + $0xc] sm:$0xf]
      %v325 = vld [vmem:[%s286 + $0x10] sm:$0xf]
      %v326 = vld [vmem:[%s286 + $0x14] sm:$0xf]
      %v327 = vld [vmem:[%s286 + $0x18] sm:$0xf]
      %v328 = vld [vmem:[%s286 + $0x1c] sm:$0xf]
      %v329 = vld [vmem:[%s286 + $0x20] sm:$0xf]
      %v330 = vld [vmem:[%s286 + $0x24] sm:$0xf]
      %v331 = vld [vmem:[%s286 + $0x28] sm:$0xf]
      %v332 = vld [vmem:[%s286 + $0x2c] sm:$0xf]
      %v333 = vld [vmem:[%s286 + $0x30] sm:$0xf]
      %v334 = vld [vmem:[%s286 + $0x34] sm:$0xf]
      %v335 = vld [vmem:[%s286 + $0x38] sm:$0xf]
      %v336 = vld [vmem:[%s286 + $0x3c] sm:$0xf]
      %v341 = vunpack.c.l.b16 %v317
      %v342 = vunpack.c.l.b16 %v318
      %v343 = vunpack.c.l.b16 %v319
      %v344 = vunpack.c.l.b16 %v320
      %v345 = vpack.c.b16 %v342, %v341
      %v346 = vpack.c.b16 %v344, %v343
      %v365 = vunpack.c.l.b16 %v321
      %v366 = vunpack.c.l.b16 %v322
      %v367 = vunpack.c.l.b16 %v323
      %v368 = vunpack.c.l.b16 %v324
      %v369 = vunpack.c.l.b16 %v325
      %v370 = vunpack.c.l.b16 %v326
      %v371 = vunpack.c.l.b16 %v327
      %v372 = vunpack.c.l.b16 %v328
      %v373 = vunpack.c.l.b16 %v329
      %v374 = vunpack.c.l.b16 %v330
      %v375 = vunpack.c.l.b16 %v331
      %v376 = vunpack.c.l.b16 %v332
      %v377 = vunpack.c.l.b16 %v333
      %v378 = vunpack.c.l.b16 %v334
      %v379 = vunpack.c.l.b16 %v335
      %v380 = vunpack.c.l.b16 %v336
      %v381 = vpack.c.b16 %v366, %v365
      %v382 = vpack.c.b16 %v368, %v367
      %v383 = vpack.c.b16 %v370, %v369
      %v384 = vpack.c.b16 %v372, %v371
      %v385 = vpack.c.b16 %v374, %v373
      %v386 = vpack.c.b16 %v376, %v375
      %v387 = vpack.c.b16 %v378, %v377
      %v388 = vpack.c.b16 %v380, %v379
      %397 = vmatprep.subr.bf16.mxu0 0
      %398 = vmatpush1.bf16.msra.mxu0 %v381
      %399 = vmatprep.subr.bf16.mxu0 0
      %400 = vmatpush1.bf16.msra.mxu0 %v382
      %401 = vmatprep.subr.bf16.mxu0 0
      %402 = vmatpush1.bf16.msra.mxu0 %v383
      %403 = vmatprep.subr.bf16.mxu0 0
      %404 = vmatpush1.bf16.msra.mxu0 %v384
      %405 = vmatprep.subr.bf16.mxu0 0
      %406 = vmatpush1.bf16.msra.mxu0 %v385
      %407 = vmatprep.subr.bf16.mxu0 0
      %408 = vmatpush1.bf16.msra.mxu0 %v386
      %409 = vmatprep.subr.bf16.mxu0 0
      %410 = vmatpush1.bf16.msra.mxu0 %v387
      %411 = vmatprep.subr.bf16.mxu0 0
      %412 = vmatpush1.bf16.msra.mxu0 %v388
      %413 = vmatprep.subr.bf16.mxu0 0
      %414 = vmatpush1.bf16.msra.mxu0 0
      %415 = vmatprep.subr.bf16.mxu0 0
      %416 = vmatpush1.bf16.msra.mxu0 0
      %417 = vmatprep.subr.bf16.mxu0 0
      %418 = vmatpush1.bf16.msra.mxu0 0
      %419 = vmatprep.subr.bf16.mxu0 0
      %420 = vmatpush1.bf16.msra.mxu0 0
      %421 = vmatprep.subr.bf16.mxu0 0
      %422 = vmatpush1.bf16.msra.mxu0 0
      %423 = vmatprep.subr.bf16.mxu0 0
      %424 = vmatpush1.bf16.msra.mxu0 0
      %425 = vmatprep.subr.bf16.mxu0 0
      %426 = vmatpush1.bf16.msra.mxu0 0
      %427 = vmatprep.subr.bf16.mxu0 0
      %428 = vmatpush1.bf16.msra.mxu0 0
      %429 = vmatprep.mubr.bf16.mxu0 0
      %430 = vmatmul.mubr.bf16.gmra.mrb[0].mxu0 %v345
      %v431 = vpop.f32.mrb[0].mxu0
      %v432 = vadd.f32 0.0, %v431
      %v433 = vpop.f32.mrb[0].mxu0
      %v434 = vpop.f32.mrb[0].mxu0
      %v435 = vadd.f32 0.0, %v434
      %v436 = vpop.f32.mrb[0].mxu0
      %437 = vmatprep.mubr.bf16.mxu0 0
      %438 = vmatmul.mubr.bf16.gmra.mrb[0].mxu0 %v346
      %v439 = vpop.f32.mrb[0].mxu0
      %v440 = vadd.f32 0.0, %v439
      %v441 = vpop.f32.mrb[0].mxu0
      %v442 = vpop.f32.mrb[0].mxu0
      %v443 = vadd.f32 0.0, %v442
      %v444 = vpop.f32.mrb[0].mxu0
      %445 = vdwg.mxu0
      %v446 = vadd.f32 %v313, %v432
      %v447 = vadd.f32 %v314, %v435
      %v448 = vadd.f32 %v315, %v440
      %v449 = vadd.f32 %v316, %v443
      %450 = vst [vmem:[#allocation2] sm:$0xff] %v446
      %451 = vst [vmem:[#allocation2 + $0x8] sm:$0xff] %v447
      %452 = vst [vmem:[#allocation2 + $0x10] sm:$0xff] %v448
      %453 = vst [vmem:[#allocation2 + $0x18] sm:$0xff] %v449
      // Predicated region
      $region37: #{g_unet_add_middle_forward.17} parent=31 // pred_check
        %p454 = pneg %p305
      $region38: #{g_unet_add_middle_forward.17} parent=31 // pred_check_branch
        %456 = sbr.rel (%p454) target = $region40
      $region39: #{g_unet_add_middle_forward.17} parent=31 // pred_region
        %v457 = vld [vmem:[#allocation2] sm:$0xff]
        %v458 = vld [vmem:[#allocation2 + $0x8] sm:$0xff]
        %v459 = vld [vmem:[#allocation2 + $0x10] sm:$0xff]
        %v460 = vld [vmem:[#allocation2 + $0x18] sm:$0xff]
        %v461 = vld [vmem:[%s290] sm:$0x1]
        %v463 = vlaneseq
        %v464 = vshrl.u32 %v463, 7
        %v465 = vsub.s32 0, %v464
        %v466 = vrot.slane %v461, %v465
        %v468 = vadd.f32 %v457, %v466
        %v469 = vadd.f32 %v458, %v466
        %v470 = vadd.f32 %v459, %v466
        %v471 = vadd.f32 %v460, %v466
        %v472 = vmax.f32 %v468, 0.0
        %v473 = vmax.f32 %v469, 0.0
        %v474 = vmax.f32 %v470, 0.0
        %v475 = vmax.f32 %v471, 0.0
        %v476 = vpack.c.bf16 %v473, %v472
        %v477 = vpack.c.bf16 %v475, %v474
        %v480 = vunpack.c.l.b16 %v476
        %v481 = vunpack.c.h.b16 %v476
        %v482 = vunpack.c.l.b16 %v477
        %v483 = vunpack.c.h.b16 %v477
        %v484 = vpack.c.b16 %v480, %v480
        %v485 = vpack.c.b16 %v481, %v481
        %v486 = vpack.c.b16 %v482, %v482
        %v487 = vpack.c.b16 %v483, %v483
        %492 = vst [vmem:[%s302] sm:$0xf] %v484
        %493 = vst [vmem:[%s302 + $0x4] sm:$0xf] %v485
        %494 = vst [vmem:[%s302 + $0x8] sm:$0xf] %v486
        %495 = vst [vmem:[%s302 + $0xc] sm:$0xf] %v487
      $region40: #{g_unet_add_middle_forward.17} parent=31 // pred_fallthru
        _
      %s496 = smul.u32 4, %s21
      %p497 = scmp.lt.s32.totalorder %s20, 3
      %s498 = scalar_select %p497, %s20, 3
      %p499 = scmp.lt.s32.totalorder %s496, 3
      %s500 = scalar_select %p499, %s496, 3
      %p501 = scmp.lt.s32.totalorder %s22, 0
      %s502 = scalar_select %p501, %s22, 0
      %s503 = sadd.s32 %s502, %s500
      %s504 = smul.addr %s498, 4
      %s505 = sadd.s32 %s503, %s504
      %s506 = smul.addr %s505, 4
      %s507 = scalar_lea.vmem %s3, %s506
      // Predicated region
      $region41: #{g_unet_add_middle_forward.17} parent=31 // pred_check
        %p508 = pneg %p148
      $region42: #{g_unet_add_middle_forward.17} parent=31 // pred_check_branch
        %510 = sbr.rel (%p508) target = $region44
      $region43: #{g_unet_add_middle_forward.17} parent=31 // pred_region
        %s511 = smul.u32 4, %s21
      $region44: #{g_unet_add_middle_forward.17} parent=31 // pred_fallthru
        _
    $region32: #{g_unet_add_middle_forward.17} parent=5 // pred_fallthru
      _
    %p512 = scmp.le.s32.totalorder 2, %s9
    // Predicated region
    $region45: #{g_unet_add_middle_forward.17} parent=5 // pred_check
      %p513 = pneg %p512
    $region46: #{g_unet_add_middle_forward.17} parent=5 // pred_check_branch
      %515 = sbr.rel (%p513) target = $region48
    $region47: #{g_unet_add_middle_forward.17} parent=5 // pred_region
      %s516 = ssub.s32 %s9, 2
      // Predicated region
      $region49: #{g_unet_add_middle_forward.17} parent=47 // pred_check
        %p517 = pneg %p154
      $region50: #{g_unet_add_middle_forward.17} parent=47 // pred_check_branch
        %519 = sbr.rel (%p517) target = $region52
      $region51: #{g_unet_add_middle_forward.17} parent=47 // pred_region
        %s520 = smul.u32 4, %s25
        %p521 = scmp.lt.s32.totalorder %s24, 3
        %s522 = scalar_select %p521, %s24, 3
        %p523 = scmp.lt.s32.totalorder %s520, 3
        %s524 = scalar_select %p523, %s520, 3
        %p525 = scmp.lt.s32.totalorder %s26, 0
        %s526 = scalar_select %p525, %s26, 0
        %s527 = sadd.s32 %s526, %s524
        %s528 = smul.addr %s522, 4
        %s529 = sadd.s32 %s527, %s528
        %s530 = smul.addr %s529, 4
        %s531 = scalar_lea.vmem %s3, %s530
      $region52: #{g_unet_add_middle_forward.17} parent=47 // pred_fallthru
        _
    $region48: #{g_unet_add_middle_forward.17} parent=5 // pred_fallthru
      _
  $region6: #{g_unet_add_middle_forward.17} parent=0 // loop_footer
    %s13 = sadd.s32 1, %s9
  $region7: #{g_unet_add_middle_forward.17} parent=0 // loop_footer_branch
    %8 = sbr.rel target = $region3
  $region8: #{g_unet_add_middle_forward.17} parent=0 // loop_exit
    _

// kernel: g_unet_add_middle_forward.18
$region0: #{g_unet_add_middle_forward.18}
  #allocation0 [shape = 'u32[]', space=smem, size = 0x4, offset = 0x4, fixed_abs, tag = 'smem constant byte address 0x4 - core index']
  #allocation1 [shape = 'u32[144,128]{1,0:T(1,128)}', space=vmem, size = 0x12000, scoped, tag = 'internal scratch']
  #allocation2 [shape = 'f32[128,128]{1,0:T(8,128)}', space=vmem, size = 0x10000, scoped, tag = 'scratch operand']
  %s0 = inlined_call_operand.vmem [shape: bf16[4,128,128], index: 0, kind: input, shape index: {}]
  %s1 = inlined_call_operand.vmem [shape: bf16[4,128,128], index: 1, kind: input, shape index: {}]
  %s2 = inlined_call_operand.vmem [shape: f32[1,128], index: 2, kind: input, shape index: {}]
  %s3 = inlined_call_operand.vmem [shape: bf16[4,128,128], index: 3, kind: output, shape index: {}]
  %s4 = sld [smem:[#allocation0]]
  $region53: #{g_unet_add_middle_forward.18} parent=0
    _
  %s6 = ssub.s32 1, %s4
  %s7 = scalar_select 0, %s6, %s4
  loop: start=0, step=1, limit=6
  $region2: #{g_unet_add_middle_forward.18} parent=0 // loop_pre_header
    _
  $region3: #{g_unet_add_middle_forward.18} parent=0 // loop_header
    %s9 = sphi 0, %s13
    %p10 = scmp.ge.s32.totalorder %s9, 6
    %s16 = sphi 0, %s42
    %s17 = sphi 0, %s38
    %s18 = sphi 0, %s34
    %s19 = sphi 0, %s30
    %s20 = sphi 0, %s16
    %s21 = sphi 0, %s17
    %s22 = sphi 0, %s18
    %s23 = sphi 0, %s19
    %s24 = sphi 0, %s20
    %s25 = sphi 0, %s21
    %s26 = sphi 0, %s22
    %s27 = sphi 0, %s23
    %s49 = sphi 0, %s51
    %s52 = sphi 0, %s49
    %s53 = sphi 0, %s52
    %s69 = sphi 0, %s53
    %s79 = sphi 0, %s81
    %s82 = sphi 0, %s79
    %s83 = sphi 0, %s82
    %s99 = sphi 0, %s83
    %s105 = sphi 0, %s107
    %s108 = sphi 0, %s105
    %s109 = sphi 0, %s108
    %s125 = sphi 0, %s109
    %s135 = sphi 0, %s137
    %s138 = sphi 0, %s135
    %s139 = sphi 0, %s138
    %s155 = sphi 0, %s139
  $region4: #{g_unet_add_middle_forward.18} parent=0 // loop_header_branch
    %12 = sbr.rel (%p10) target = $region8
  $region5: #{g_unet_add_middle_forward.18} parent=0 // loop_body
    %s14 = ssub.s32 %s9, 1
    %s15 = ssub.s32 %s9, 2
    %s28 = sadd.s32 1, %s19
    %p29 = scmp.ge.s32.totalorder %s28, 1
    %s30 = scalar_select %p29, 0, %s28
    %s31 = sadd.s32 1, %s18
    %s32 = scalar_select %p29, %s31, %s18
    %p33 = scmp.ge.s32.totalorder %s32, 1
    %s34 = scalar_select %p33, 0, %s32
    %s35 = sadd.s32 1, %s17
    %s36 = scalar_select %p33, %s35, %s17
    %p37 = scmp.ge.s32.totalorder %s36, 1
    %s38 = scalar_select %p37, 0, %s36
    %s39 = sadd.s32 1, %s16
    %s40 = scalar_select %p37, %s39, %s16
    %p41 = scmp.ge.s32.totalorder %s40, 4
    %s42 = scalar_select %p41, 0, %s40
    %s43 = ssub.s32 %s16, %s42
    %s44 = ssub.s32 %s17, %s38
    %s45 = sor.u32 %s43, %s44
    %s46 = ssub.s32 %s19, %s30
    %s47 = sor.u32 %s45, %s46
    %p48 = scmp.eq.s32.totalorder %s47, 0
    %s50 = sadd.s32 %s49, 1
    %s51 = scalar_select %p48, %s49, %s50
    %p54 = pneg %p48
    %p55 = scmp.eq.s32.totalorder %s9, 3
    %p56 = por %p54, %p55
    %p57 = scmp.ne.s32.totalorder %s49, %s52
    %p58 = scmp.eq.s32.totalorder %s9, 0
    %p59 = por %p57, %p58
    %p60 = scmp.ne.s32.totalorder %s49, %s52
    %p61 = scmp.eq.s32.totalorder %s14, 3
    %p62 = por %p60, %p61
    %p63 = scmp.ne.s32.totalorder %s52, %s53
    %p64 = scmp.eq.s32.totalorder %s14, 0
    %p65 = por %p63, %p64
    %p66 = scmp.ne.s32.totalorder %s52, %s53
    %p67 = scmp.eq.s32.totalorder %s15, 3
    %p68 = por %p66, %p67
    %p70 = scmp.ne.s32.totalorder %s53, %s69
    %p71 = scmp.eq.s32.totalorder %s15, 0
    %p72 = por %p70, %p71
    %s73 = ssub.s32 %s16, %s42
    %s74 = ssub.s32 %s19, %s30
    %s75 = sor.u32 %s73, %s74
    %s76 = ssub.s32 %s18, %s34
    %s77 = sor.u32 %s75, %s76
    %p78 = scmp.eq.s32.totalorder %s77, 0
    %s80 = sadd.s32 %s79, 1
    %s81 = scalar_select %p78, %s79, %s80
    %p84 = pneg %p78
    %p85 = scmp.eq.s32.totalorder %s9, 3
    %p86 = por %p84, %p85
    %p87 = scmp.ne.s32.totalorder %s79, %s82
    %p88 = scmp.eq.s32.totalorder %s9, 0
    %p89 = por %p87, %p88
    %p90 = scmp.ne.s32.totalorder %s79, %s82
    %p91 = scmp.eq.s32.totalorder %s14, 3
    %p92 = por %p90, %p91
    %p93 = scmp.ne.s32.totalorder %s82, %s83
    %p94 = scmp.eq.s32.totalorder %s14, 0
    %p95 = por %p93, %p94
    %p96 = scmp.ne.s32.totalorder %s82, %s83
    %p97 = scmp.eq.s32.totalorder %s15, 3
    %p98 = por %p96, %p97
    %p100 = scmp.ne.s32.totalorder %s83, %s99
    %p101 = scmp.eq.s32.totalorder %s15, 0
    %p102 = por %p100, %p101
    %s103 = ssub.s32 %s18, %s34
    %p104 = scmp.eq.s32.totalorder %s103, 0
    %s106 = sadd.s32 %s105, 1
    %s107 = scalar_select %p104, %s105, %s106
    %p110 = pneg %p104
    %p111 = scmp.eq.s32.totalorder %s9, 3
    %p112 = por %p110, %p111
    %p113 = scmp.ne.s32.totalorder %s105, %s108
    %p114 = scmp.eq.s32.totalorder %s9, 0
    %p115 = por %p113, %p114
    %p116 = scmp.ne.s32.totalorder %s105, %s108
    %p117 = scmp.eq.s32.totalorder %s14, 3
    %p118 = por %p116, %p117
    %p119 = scmp.ne.s32.totalorder %s108, %s109
    %p120 = scmp.eq.s32.totalorder %s14, 0
    %p121 = por %p119, %p120
    %p122 = scmp.ne.s32.totalorder %s108, %s109
    %p123 = scmp.eq.s32.totalorder %s15, 3
    %p124 = por %p122, %p123
    %p126 = scmp.ne.s32.totalorder %s109, %s125
    %p127 = scmp.eq.s32.totalorder %s15, 0
    %p128 = por %p126, %p127
    %s129 = ssub.s32 %s16, %s42
    %s130 = ssub.s32 %s17, %s38
    %s131 = sor.u32 %s129, %s130
    %s132 = ssub.s32 %s18, %s34
    %s133 = sor.u32 %s131, %s132
    %p134 = scmp.eq.s32.totalorder %s133, 0
    %s136 = sadd.s32 %s135, 1
    %s137 = scalar_select %p134, %s135, %s136
    %p140 = pneg %p134
    %p141 = scmp.eq.s32.totalorder %s9, 3
    %p142 = por %p140, %p141
    %p143 = scmp.ne.s32.totalorder %s135, %s138
    %p144 = scmp.eq.s32.totalorder %s9, 0
    %p145 = por %p143, %p144
    %p146 = scmp.ne.s32.totalorder %s135, %s138
    %p147 = scmp.eq.s32.totalorder %s14, 3
    %p148 = por %p146, %p147
    %p149 = scmp.ne.s32.totalorder %s138, %s139
    %p150 = scmp.eq.s32.totalorder %s14, 0
    %p151 = por %p149, %p150
    %p152 = scmp.ne.s32.totalorder %s138, %s139
    %p153 = scmp.eq.s32.totalorder %s15, 3
    %p154 = por %p152, %p153
    %p156 = scmp.ne.s32.totalorder %s139, %s155
    %p157 = scmp.eq.s32.totalorder %s15, 0
    %p158 = por %p156, %p157
    %p159 = scmp.le.s32.totalorder 1, %s9
    %p160 = scmp.lt.s32.totalorder %s9, 5
    %p161 = pnand %p159, %p160
    %p162 = pneg %p161
    // Predicated region
    $region9: #{g_unet_add_middle_forward.18} parent=5 // pred_check
      _
    $region10: #{g_unet_add_middle_forward.18} parent=5 // pred_check_branch
      %164 = sbr.rel (%p161) target = $region12
    $region11: #{g_unet_add_middle_forward.18} parent=5 // pred_region
      %s165 = ssub.s32 %s9, 1
      // Predicated region
      $region13: #{g_unet_add_middle_forward.18} parent=11 // pred_check
        %p166 = pneg %p121
      $region14: #{g_unet_add_middle_forward.18} parent=11 // pred_check_branch
        %168 = sbr.rel (%p166) target = $region16
      $region15: #{g_unet_add_middle_forward.18} parent=11 // pred_region
        %p169 = scmp.lt.s32.totalorder %s22, 0
        %s170 = scalar_select %p169, %s22, 0
        %s171 = scalar_lea.vmem %s2, %s170
      $region16: #{g_unet_add_middle_forward.18} parent=11 // pred_fallthru
        _
    $region12: #{g_unet_add_middle_forward.18} parent=5 // pred_fallthru
      _
    %p172 = scmp.lt.s32.totalorder %s9, 4
    // Predicated region
    $region17: #{g_unet_add_middle_forward.18} parent=5 // pred_check
      %p173 = pneg %p172
    $region18: #{g_unet_add_middle_forward.18} parent=5 // pred_check_branch
      %175 = sbr.rel (%p173) target = $region20
    $region19: #{g_unet_add_middle_forward.18} parent=5 // pred_region
      // Predicated region
      $region21: #{g_unet_add_middle_forward.18} parent=19 // pred_check
        %p176 = pneg %p59
      $region22: #{g_unet_add_middle_forward.18} parent=19 // pred_check_branch
        %178 = sbr.rel (%p176) target = $region24
      $region23: #{g_unet_add_middle_forward.18} parent=19 // pred_region
        %s179 = smul.u32 16, %s17
        %p180 = scmp.lt.s32.totalorder %s16, 3
        %s181 = scalar_select %p180, %s16, 3
        %p182 = scmp.lt.s32.totalorder %s179, 15
        %s183 = scalar_select %p182, %s179, 15
        %p184 = scmp.lt.s32.totalorder %s19, 0
        %s185 = scalar_select %p184, %s19, 0
        %s186 = sadd.s32 %s185, %s183
        %s187 = smul.addr %s181, 16
        %s188 = sadd.s32 %s186, %s187
        %s189 = smul.addr %s188, 4
        %s190 = scalar_lea.vmem %s0, %s189
        %s191 = smul.u32 16, %s17
      $region24: #{g_unet_add_middle_forward.18} parent=19 // pred_fallthru
        _
      // Predicated region
      $region25: #{g_unet_add_middle_forward.18} parent=19 // pred_check
        %p192 = pneg %p89
      $region26: #{g_unet_add_middle_forward.18} parent=19 // pred_check_branch
        %194 = sbr.rel (%p192) target = $region28
      $region27: #{g_unet_add_middle_forward.18} parent=19 // pred_region
        %s195 = smul.u32 16, %s19
        %p196 = scmp.lt.s32.totalorder %s16, 3
        %s197 = scalar_select %p196, %s16, 3
        %p198 = scmp.lt.s32.totalorder %s195, 15
        %s199 = scalar_select %p198, %s195, 15
        %p200 = scmp.lt.s32.totalorder %s18, 0
        %s201 = scalar_select %p200, %s18, 0
        %s202 = sadd.s32 %s201, %s199
        %s203 = smul.addr %s197, 16
        %s204 = sadd.s32 %s202, %s203
        %s205 = smul.addr %s204, 4
        %s206 = scalar_lea.vmem %s1, %s205
        %s207 = smul.u32 16, %s19
      $region28: #{g_unet_add_middle_forward.18} parent=19 // pred_fallthru
        _
    $region20: #{g_unet_add_middle_forward.18} parent=5 // pred_fallthru
      _
    %p208 = scmp.le.s32.totalorder 1, %s9
    %p209 = scmp.lt.s32.totalorder %s9, 5
    %p210 = pnand %p208, %p209
    %p211 = pneg %p210
    // Predicated region
    $region29: #{g_unet_add_middle_forward.18} parent=5 // pred_check
      _
    $region30: #{g_unet_add_middle_forward.18} parent=5 // pred_check_branch
      %213 = sbr.rel (%p210) target = $region32
    $region31: #{g_unet_add_middle_forward.18} parent=5 // pred_region
      %s214 = ssub.s32 %s9, 1
      %s215 = smul.u32 16, %s21
      %p216 = scmp.lt.s32.totalorder %s20, 3
      %s217 = scalar_select %p216, %s20, 3
      %p218 = scmp.lt.s32.totalorder %s215, 15
      %s219 = scalar_select %p218, %s215, 15
      %p220 = scmp.lt.s32.totalorder %s23, 0
      %s221 = scalar_select %p220, %s23, 0
      %s222 = sadd.s32 %s221, %s219
      %s223 = smul.addr %s217, 16
      %s224 = sadd.s32 %s222, %s223
      %s225 = smul.addr %s224, 4
      %s226 = scalar_lea.vmem %s0, %s225
      %p227 = pneg %p65
      %p228 = pneg %p62
      %s229 = smul.u32 16, %s23
      %p230 = scmp.lt.s32.totalorder %s20, 3
      %s231 = scalar_select %p230, %s20, 3
      %p232 = scmp.lt.s32.totalorder %s229, 15
      %s233 = scalar_select %p232, %s229, 15
      %p234 = scmp.lt.s32.totalorder %s22, 0
      %s235 = scalar_select %p234, %s22, 0
      %s236 = sadd.s32 %s235, %s233
      %s237 = smul.addr %s231, 16
      %s238 = sadd.s32 %s236, %s237
      %s239 = smul.addr %s238, 4
      %s240 = scalar_lea.vmem %s1, %s239
      %p241 = pneg %p95
      %p242 = pneg %p92
      %p243 = scmp.lt.s32.totalorder %s22, 0
      %s244 = scalar_select %p243, %s22, 0
      %s245 = scalar_lea.vmem %s2, %s244
      %p246 = pneg %p121
      %p247 = pneg %p118
      %p248 = pneg %p151
      %p249 = pneg %p148
      %s250 = smul.u32 16, %s21
      %p251 = scmp.lt.s32.totalorder %s20, 3
      %s252 = scalar_select %p251, %s20, 3
      %p253 = scmp.lt.s32.totalorder %s250, 15
      %s254 = scalar_select %p253, %s250, 15
      %p255 = scmp.lt.s32.totalorder %s22, 0
      %s256 = scalar_select %p255, %s22, 0
      %s257 = sadd.s32 %s256, %s254
      %s258 = smul.addr %s252, 16
      %s259 = sadd.s32 %s257, %s258
      %s260 = smul.addr %s259, 4
      %s261 = scalar_lea.vmem %s3, %s260
      %s262 = smul.u32 16, %s21
      %p263 = scmp.lt.s32.totalorder %s20, 3
      %s264 = scalar_select %p263, %s20, 3
      %p265 = scmp.lt.s32.totalorder %s262, 15
      %s266 = scalar_select %p265, %s262, 15
      %p267 = scmp.lt.s32.totalorder %s23, 0
      %s268 = scalar_select %p267, %s23, 0
      %s269 = sadd.s32 %s268, %s266
      %s270 = smul.addr %s264, 16
      %s271 = sadd.s32 %s269, %s270
      %s272 = smul.addr %s271, 4
      %s273 = scalar_lea.vmem %s0, %s272
      %s274 = smul.u32 16, %s21
      %s275 = smul.u32 16, %s23
      %p276 = scmp.lt.s32.totalorder %s20, 3
      %s277 = scalar_select %p276, %s20, 3
      %p278 = scmp.lt.s32.totalorder %s275, 15
      %s279 = scalar_select %p278, %s275, 15
      %p280 = scmp.lt.s32.totalorder %s22, 0
      %s281 = scalar_select %p280, %s22, 0
      %s282 = sadd.s32 %s281, %s279
      %s283 = smul.addr %s277, 16
      %s284 = sadd.s32 %s282, %s283
      %s285 = smul.addr %s284, 4
      %s286 = scalar_lea.vmem %s1, %s285
      %s287 = smul.u32 16, %s23
      %p288 = scmp.lt.s32.totalorder %s22, 0
      %s289 = scalar_select %p288, %s22, 0
      %s290 = scalar_lea.vmem %s2, %s289
      %s291 = smul.u32 16, %s21
      %p292 = scmp.lt.s32.totalorder %s20, 3
      %s293 = scalar_select %p292, %s20, 3
      %p294 = scmp.lt.s32.totalorder %s291, 15
      %s295 = scalar_select %p294, %s291, 15
      %p296 = scmp.lt.s32.totalorder %s22, 0
      %s297 = scalar_select %p296, %s22, 0
      %s298 = sadd.s32 %s297, %s295
      %s299 = smul.addr %s293, 16
      %s300 = sadd.s32 %s298, %s299
      %s301 = smul.addr %s300, 4
      %s302 = scalar_lea.vmem %s3, %s301
      %s303 = smul.u32 16, %s21
      %p305 = scmp.eq.s32.totalorder %s23, 0
      // Predicated region
      $region33: #{g_unet_add_middle_forward.18} parent=31 // pred_check
        %p306 = pneg %p305
      $region34: #{g_unet_add_middle_forward.18} parent=31 // pred_check_branch
        %308 = sbr.rel (%p306) target = $region36
      $region35: #{g_unet_add_middle_forward.18} parent=31 // pred_region
        %309 = vst [vmem:[#allocation2] sm:$0xff] 0.0
        %310 = vst [vmem:[#allocation2 + $0x8] sm:$0xff] 0.0
        %311 = vst [vmem:[#allocation2 + $0x10] sm:$0xff] 0.0
        %312 = vst [vmem:[#allocation2 + $0x18] sm:$0xff] 0.0
        %313 = vst [vmem:[#allocation2 + $0x20] sm:$0xff] 0.0
        %314 = vst [vmem:[#allocation2 + $0x28] sm:$0xff] 0.0
        %315 = vst [vmem:[#allocation2 + $0x30] sm:$0xff] 0.0
        %316 = vst [vmem:[#allocation2 + $0x38] sm:$0xff] 0.0
        %317 = vst [vmem:[#allocation2 + $0x40] sm:$0xff] 0.0
        %318 = vst [vmem:[#allocation2 + $0x48] sm:$0xff] 0.0
        %319 = vst [vmem:[#allocation2 + $0x50] sm:$0xff] 0.0
        %320 = vst [vmem:[#allocation2 + $0x58] sm:$0xff] 0.0
        %321 = vst [vmem:[#allocation2 + $0x60] sm:$0xff] 0.0
        %322 = vst [vmem:[#allocation2 + $0x68] sm:$0xff] 0.0
        %323 = vst [vmem:[#allocation2 + $0x70] sm:$0xff] 0.0
        %324 = vst [vmem:[#allocation2 + $0x78] sm:$0xff] 0.0
      $region36: #{g_unet_add_middle_forward.18} parent=31 // pred_fallthru
        _
      %v325 = vld [vmem:[#allocation2] sm:$0xff]
      %v326 = vld [vmem:[#allocation2 + $0x8] sm:$0xff]
      %v327 = vld [vmem:[#allocation2 + $0x10] sm:$0xff]
      %v328 = vld [vmem:[#allocation2 + $0x18] sm:$0xff]
      %v329 = vld [vmem:[#allocation2 + $0x20] sm:$0xff]
      %v330 = vld [vmem:[#allocation2 + $0x28] sm:$0xff]
      %v331 = vld [vmem:[#allocation2 + $0x30] sm:$0xff]
      %v332 = vld [vmem:[#allocation2 + $0x38] sm:$0xff]
      %v333 = vld [vmem:[#allocation2 + $0x40] sm:$0xff]
      %v334 = vld [vmem:[#allocation2 + $0x48] sm:$0xff]
      %v335 = vld [vmem:[#allocation2 + $0x50] sm:$0xff]
      %v336 = vld [vmem:[#allocation2 + $0x58] sm:$0xff]
      %v337 = vld [vmem:[#allocation2 + $0x60] sm:$0xff]
      %v338 = vld [vmem:[#allocation2 + $0x68] sm:$0xff]
      %v339 = vld [vmem:[#allocation2 + $0x70] sm:$0xff]
      %v340 = vld [vmem:[#allocation2 + $0x78] sm:$0xff]
      %v341 = vld [vmem:[%s273] sm:$0xf]
      %v342 = vld [vmem:[%s273 + $0x4] sm:$0xf]
      %v343 = vld [vmem:[%s273 + $0x8] sm:$0xf]
      %v344 = vld [vmem:[%s273 + $0xc] sm:$0xf]
      %v345 = vld [vmem:[%s273 + $0x10] sm:$0xf]
      %v346 = vld [vmem:[%s273 + $0x14] sm:$0xf]
      %v347 = vld [vmem:[%s273 + $0x18] sm:$0xf]
      %v348 = vld [vmem:[%s273 + $0x1c] sm:$0xf]
      %v349 = vld [vmem:[%s273 + $0x20] sm:$0xf]
      %v350 = vld [vmem:[%s273 + $0x24] sm:$0xf]
      %v351 = vld [vmem:[%s273 + $0x28] sm:$0xf]
      %v352 = vld [vmem:[%s273 + $0x2c] sm:$0xf]
      %v353 = vld [vmem:[%s273 + $0x30] sm:$0xf]
      %v354 = vld [vmem:[%s273 + $0x34] sm:$0xf]
      %v355 = vld [vmem:[%s273 + $0x38] sm:$0xf]
      %v356 = vld [vmem:[%s273 + $0x3c] sm:$0xf]
      %v357 = vld [vmem:[%s286] sm:$0xf]
      %v358 = vld [vmem:[%s286 + $0x4] sm:$0xf]
      %v359 = vld [vmem:[%s286 + $0x8] sm:$0xf]
      %v360 = vld [vmem:[%s286 + $0xc] sm:$0xf]
      %v361 = vld [vmem:[%s286 + $0x10] sm:$0xf]
      %v362 = vld [vmem:[%s286 + $0x14] sm:$0xf]
      %v363 = vld [vmem:[%s286 + $0x18] sm:$0xf]
      %v364 = vld [vmem:[%s286 + $0x1c] sm:$0xf]
      %v365 = vld [vmem:[%s286 + $0x20] sm:$0xf]
      %v366 = vld [vmem:[%s286 + $0x24] sm:$0xf]
      %v367 = vld [vmem:[%s286 + $0x28] sm:$0xf]
      %v368 = vld [vmem:[%s286 + $0x2c] sm:$0xf]
      %v369 = vld [vmem:[%s286 + $0x30] sm:$0xf]
      %v370 = vld [vmem:[%s286 + $0x34] sm:$0xf]
      %v371 = vld [vmem:[%s286 + $0x38] sm:$0xf]
      %v372 = vld [vmem:[%s286 + $0x3c] sm:$0xf]
      %v389 = vunpack.c.l.b16 %v341
      %v390 = vunpack.c.l.b16 %v342
      %v391 = vunpack.c.l.b16 %v343
      %v392 = vunpack.c.l.b16 %v344
      %v393 = vunpack.c.l.b16 %v345
      %v394 = vunpack.c.l.b16 %v346
      %v395 = vunpack.c.l.b16 %v347
      %v396 = vunpack.c.l.b16 %v348
      %v397 = vunpack.c.l.b16 %v349
      %v398 = vunpack.c.l.b16 %v350
      %v399 = vunpack.c.l.b16 %v351
      %v400 = vunpack.c.l.b16 %v352
      %v401 = vunpack.c.l.b16 %v353
      %v402 = vunpack.c.l.b16 %v354
      %v403 = vunpack.c.l.b16 %v355
      %v404 = vunpack.c.l.b16 %v356
      %v405 = vpack.c.b16 %v390, %v389
      %v406 = vpack.c.b16 %v392, %v391
      %v407 = vpack.c.b16 %v394, %v393
      %v408 = vpack.c.b16 %v396, %v395
      %v409 = vpack.c.b16 %v398, %v397
      %v410 = vpack.c.b16 %v400, %v399
      %v411 = vpack.c.b16 %v402, %v401
      %v412 = vpack.c.b16 %v404, %v403
      %v437 = vunpack.c.l.b16 %v357
      %v438 = vunpack.c.l.b16 %v358
      %v439 = vunpack.c.l.b16 %v359
      %v440 = vunpack.c.l.b16 %v360
      %v441 = vunpack.c.l.b16 %v361
      %v442 = vunpack.c.l.b16 %v362
      %v443 = vunpack.c.l.b16 %v363
      %v444 = vunpack.c.l.b16 %v364
      %v445 = vunpack.c.l.b16 %v365
      %v446 = vunpack.c.l.b16 %v366
      %v447 = vunpack.c.l.b16 %v367
      %v448 = vunpack.c.l.b16 %v368
      %v449 = vunpack.c.l.b16 %v369
      %v450 = vunpack.c.l.b16 %v370
      %v451 = vunpack.c.l.b16 %v371
      %v452 = vunpack.c.l.b16 %v372
      %v453 = vpack.c.b16 %v438, %v437
      %v454 = vpack.c.b16 %v440, %v439
      %v455 = vpack.c.b16 %v442, %v441
      %v456 = vpack.c.b16 %v444, %v443
      %v457 = vpack.c.b16 %v446, %v445
      %v458 = vpack.c.b16 %v448, %v447
      %v459 = vpack.c.b16 %v450, %v449
      %v460 = vpack.c.b16 %v452, %v451
      %469 = vmatprep.subr.bf16.mxu0 0
      %470 = vmatpush1.bf16.msra.mxu0 %v453
      %471 = vmatprep.subr.bf16.mxu0 0
      %472 = vmatpush1.bf16.msra.mxu0 %v454
      %473 = vmatprep.subr.bf16.mxu0 0
      %474 = vmatpush1.bf16.msra.mxu0 %v455
      %475 = vmatprep.subr.bf16.mxu0 0
      %476 = vmatpush1.bf16.msra.mxu0 %v456
      %477 = vmatprep.subr.bf16.mxu0 0
      %478 = vmatpush1.bf16.msra.mxu0 %v457
      %479 = vmatprep.subr.bf16.mxu0 0
      %480 = vmatpush1.bf16.msra.mxu0 %v458
      %481 = vmatprep.subr.bf16.mxu0 0
      %482 = vmatpush1.bf16.msra.mxu0 %v459
      %483 = vmatprep.subr.bf16.mxu0 0
      %484 = vmatpush1.bf16.msra.mxu0 %v460
      %485 = vmatprep.subr.bf16.mxu0 0
      %486 = vmatpush1.bf16.msra.mxu0 0
      %487 = vmatprep.subr.bf16.mxu0 0
      %488 = vmatpush1.bf16.msra.mxu0 0
      %489 = vmatprep.subr.bf16.mxu0 0
      %490 = vmatpush1.bf16.msra.mxu0 0
      %491 = vmatprep.subr.bf16.mxu0 0
      %492 = vmatpush1.bf16.msra.mxu0 0
      %493 = vmatprep.subr.bf16.mxu0 0
      %494 = vmatpush1.bf16.msra.mxu0 0
      %495 = vmatprep.subr.bf16.mxu0 0
      %496 = vmatpush1.bf16.msra.mxu0 0
      %497 = vmatprep.subr.bf16.mxu0 0
      %498 = vmatpush1.bf16.msra.mxu0 0
      %499 = vmatprep.subr.bf16.mxu0 0
      %500 = vmatpush1.bf16.msra.mxu0 0
      %501 = vmatprep.mubr.bf16.mxu0 0
      %502 = vmatmul.mubr.bf16.gmra.mrb[0].mxu0 %v405
      %v503 = vpop.f32.mrb[0].mxu0
      %v504 = vadd.f32 0.0, %v503
      %v505 = vpop.f32.mrb[0].mxu0
      %v506 = vpop.f32.mrb[0].mxu0
      %v507 = vadd.f32 0.0, %v506
      %v508 = vpop.f32.mrb[0].mxu0
      %509 = vmatprep.mubr.bf16.mxu0 0
      %510 = vmatmul.mubr.bf16.gmra.mrb[0].mxu0 %v406
      %v511 = vpop.f32.mrb[0].mxu0
      %v512 = vadd.f32 0.0, %v511
      %v513 = vpop.f32.mrb[0].mxu0
      %v514 = vpop.f32.mrb[0].mxu0
      %v515 = vadd.f32 0.0, %v514
      %v516 = vpop.f32.mrb[0].mxu0
      %517 = vmatprep.mubr.bf16.mxu0 0
      %518 = vmatmul.mubr.bf16.gmra.mrb[0].mxu0 %v407
      %v519 = vpop.f32.mrb[0].mxu0
      %v520 = vadd.f32 0.0, %v519
      %v521 = vpop.f32.mrb[0].mxu0
      %v522 = vpop.f32.mrb[0].mxu0
      %v523 = vadd.f32 0.0, %v522
      %v524 = vpop.f32.mrb[0].mxu0
      %525 = vmatprep.mubr.bf16.mxu0 0
      %526 = vmatmul.mubr.bf16.gmra.mrb[0].mxu0 %v408
      %v527 = vpop.f32.mrb[0].mxu0
      %v528 = vadd.f32 0.0, %v527
      %v529 = vpop.f32.mrb[0].mxu0
      %v530 = vpop.f32.mrb[0].mxu0
      %v531 = vadd.f32 0.0, %v530
      %v532 = vpop.f32.mrb[0].mxu0
      %533 = vmatprep.mubr.bf16.mxu0 0
      %534 = vmatmul.mubr.bf16.gmra.mrb[0].mxu0 %v409
      %v535 = vpop.f32.mrb[0].mxu0
      %v536 = vadd.f32 0.0, %v535
      %v537 = vpop.f32.mrb[0].mxu0
      %v538 = vpop.f32.mrb[0].mxu0
      %v539 = vadd.f32 0.0, %v538
      %v540 = vpop.f32.mrb[0].mxu0
      %541 = vmatprep.mubr.bf16.mxu0 0
      %542 = vmatmul.mubr.bf16.gmra.mrb[0].mxu0 %v410
      %v543 = vpop.f32.mrb[0].mxu0
      %v544 = vadd.f32 0.0, %v543
      %v545 = vpop.f32.mrb[0].mxu0
      %v546 = vpop.f32.mrb[0].mxu0
      %v547 = vadd.f32 0.0, %v546
      %v548 = vpop.f32.mrb[0].mxu0
      %549 = vmatprep.mubr.bf16.mxu0 0
      %550 = vmatmul.mubr.bf16.gmra.mrb[0].mxu0 %v411
      %v551 = vpop.f32.mrb[0].mxu0
      %v552 = vadd.f32 0.0, %v551
      %v553 = vpop.f32.mrb[0].mxu0
      %v554 = vpop.f32.mrb[0].mxu0
      %v555 = vadd.f32 0.0, %v554
      %v556 = vpop.f32.mrb[0].mxu0
      %557 = vmatprep.mubr.bf16.mxu0 0
      %558 = vmatmul.mubr.bf16.gmra.mrb[0].mxu0 %v412
      %v559 = vpop.f32.mrb[0].mxu0
      %v560 = vadd.f32 0.0, %v559
      %v561 = vpop.f32.mrb[0].mxu0
      %v562 = vpop.f32.mrb[0].mxu0
      %v563 = vadd.f32 0.0, %v562
      %v564 = vpop.f32.mrb[0].mxu0
      %565 = vdwg.mxu0
      %v566 = vadd.f32 %v325, %v504
      %v567 = vadd.f32 %v326, %v507
      %v568 = vadd.f32 %v327, %v512
      %v569 = vadd.f32 %v328, %v515
      %v570 = vadd.f32 %v329, %v520
      %v571 = vadd.f32 %v330, %v523
      %v572 = vadd.f32 %v331, %v528
      %v573 = vadd.f32 %v332, %v531
      %v574 = vadd.f32 %v333, %v536
      %v575 = vadd.f32 %v334, %v539
      %v576 = vadd.f32 %v335, %v544
      %v577 = vadd.f32 %v336, %v547
      %v578 = vadd.f32 %v337, %v552
      %v579 = vadd.f32 %v338, %v555
      %v580 = vadd.f32 %v339, %v560
      %v581 = vadd.f32 %v340, %v563
      %582 = vst [vmem:[#allocation2] sm:$0xff] %v566
      %583 = vst [vmem:[#allocation2 + $0x8] sm:$0xff] %v567
      %584 = vst [vmem:[#allocation2 + $0x10] sm:$0xff] %v568
      %585 = vst [vmem:[#allocation2 + $0x18] sm:$0xff] %v569
      %586 = vst [vmem:[#allocation2 + $0x20] sm:$0xff] %v570
      %587 = vst [vmem:[#allocation2 + $0x28] sm:$0xff] %v571
      %588 = vst [vmem:[#allocation2 + $0x30] sm:$0xff] %v572
      %589 = vst [vmem:[#allocation2 + $0x38] sm:$0xff] %v573
      %590 = vst [vmem:[#allocation2 + $0x40] sm:$0xff] %v574
      %591 = vst [vmem:[#allocation2 + $0x48] sm:$0xff] %v575
      %592 = vst [vmem:[#allocation2 + $0x50] sm:$0xff] %v576
      %593 = vst [vmem:[#allocation2 + $0x58] sm:$0xff] %v577
      %594 = vst [vmem:[#allocation2 + $0x60] sm:$0xff] %v578
      %595 = vst [vmem:[#allocation2 + $0x68] sm:$0xff] %v579
      %596 = vst [vmem:[#allocation2 + $0x70] sm:$0xff] %v580
      %597 = vst [vmem:[#allocation2 + $0x78] sm:$0xff] %v581
      // Predicated region
      $region37: #{g_unet_add_middle_forward.18} parent=31 // pred_check
        %p598 = pneg %p305
      $region38: #{g_unet_add_middle_forward.18} parent=31 // pred_check_branch
        %600 = sbr.rel (%p598) target = $region40
      $region39: #{g_unet_add_middle_forward.18} parent=31 // pred_region
        %v601 = vld [vmem:[#allocation2] sm:$0xff]
        %v602 = vld [vmem:[#allocation2 + $0x8] sm:$0xff]
        %v603 = vld [vmem:[#allocation2 + $0x10] sm:$0xff]
        %v604 = vld [vmem:[#allocation2 + $0x18] sm:$0xff]
        %v605 = vld [vmem:[#allocation2 + $0x20] sm:$0xff]
        %v606 = vld [vmem:[#allocation2 + $0x28] sm:$0xff]
        %v607 = vld [vmem:[#allocation2 + $0x30] sm:$0xff]
        %v608 = vld [vmem:[#allocation2 + $0x38] sm:$0xff]
        %v609 = vld [vmem:[#allocation2 + $0x40] sm:$0xff]
        %v610 = vld [vmem:[#allocation2 + $0x48] sm:$0xff]
        %v611 = vld [vmem:[#allocation2 + $0x50] sm:$0xff]
        %v612 = vld [vmem:[#allocation2 + $0x58] sm:$0xff]
        %v613 = vld [vmem:[#allocation2 + $0x60] sm:$0xff]
        %v614 = vld [vmem:[#allocation2 + $0x68] sm:$0xff]
        %v615 = vld [vmem:[#allocation2 + $0x70] sm:$0xff]
        %v616 = vld [vmem:[#allocation2 + $0x78] sm:$0xff]
        %v617 = vld [vmem:[%s290] sm:$0x1]
        %v619 = vlaneseq
        %v620 = vshrl.u32 %v619, 7
        %v621 = vsub.s32 0, %v620
        %v622 = vrot.slane %v617, %v621
        %v624 = vadd.f32 %v601, %v622
        %v625 = vadd.f32 %v602, %v622
        %v626 = vadd.f32 %v603, %v622
        %v627 = vadd.f32 %v604, %v622
        %v628 = vadd.f32 %v605, %v622
        %v629 = vadd.f32 %v606, %v622
        %v630 = vadd.f32 %v607, %v622
        %v631 = vadd.f32 %v608, %v622
        %v632 = vadd.f32 %v609, %v622
        %v633 = vadd.f32 %v610, %v622
        %v634 = vadd.f32 %v611, %v622
        %v635 = vadd.f32 %v612, %v622
        %v636 = vadd.f32 %v613, %v622
        %v637 = vadd.f32 %v614, %v622
        %v638 = vadd.f32 %v615, %v622
        %v639 = vadd.f32 %v616, %v622
        %v640 = vmax.f32 %v624, 0.0
        %v641 = vmax.f32 %v625, 0.0
        %v642 = vmax.f32 %v626, 0.0
        %v643 = vmax.f32 %v627, 0.0
        %v644 = vmax.f32 %v628, 0.0
        %v645 = vmax.f32 %v629, 0.0
        %v646 = vmax.f32 %v630, 0.0
        %v647 = vmax.f32 %v631, 0.0
        %v648 = vmax.f32 %v632, 0.0
        %v649 = vmax.f32 %v633, 0.0
        %v650 = vmax.f32 %v634, 0.0
        %v651 = vmax.f32 %v635, 0.0
        %v652 = vmax.f32 %v636, 0.0
        %v653 = vmax.f32 %v637, 0.0
        %v654 = vmax.f32 %v638, 0.0
        %v655 = vmax.f32 %v639, 0.0
        %v656 = vpack.c.bf16 %v641, %v640
        %v657 = vpack.c.bf16 %v643, %v642
        %v658 = vpack.c.bf16 %v645, %v644
        %v659 = vpack.c.bf16 %v647, %v646
        %v660 = vpack.c.bf16 %v649, %v648
        %v661 = vpack.c.bf16 %v651, %v650
        %v662 = vpack.c.bf16 %v653, %v652
        %v663 = vpack.c.bf16 %v655, %v654
        %v672 = vunpack.c.l.b16 %v656
        %v673 = vunpack.c.h.b16 %v656
        %v674 = vunpack.c.l.b16 %v657
        %v675 = vunpack.c.h.b16 %v657
        %v676 = vunpack.c.l.b16 %v658
        %v677 = vunpack.c.h.b16 %v658
        %v678 = vunpack.c.l.b16 %v659
        %v679 = vunpack.c.h.b16 %v659
        %v680 = vunpack.c.l.b16 %v660
        %v681 = vunpack.c.h.b16 %v660
        %v682 = vunpack.c.l.b16 %v661
        %v683 = vunpack.c.h.b16 %v661
        %v684 = vunpack.c.l.b16 %v662
        %v685 = vunpack.c.h.b16 %v662
        %v686 = vunpack.c.l.b16 %v663
        %v687 = vunpack.c.h.b16 %v663
        %v688 = vpack.c.b16 %v672, %v672
        %v689 = vpack.c.b16 %v673, %v673
        %v690 = vpack.c.b16 %v674, %v674
        %v691 = vpack.c.b16 %v675, %v675
        %v692 = vpack.c.b16 %v676, %v676
        %v693 = vpack.c.b16 %v677, %v677
        %v694 = vpack.c.b16 %v678, %v678
        %v695 = vpack.c.b16 %v679, %v679
        %v696 = vpack.c.b16 %v680, %v680
        %v697 = vpack.c.b16 %v681, %v681
        %v698 = vpack.c.b16 %v682, %v682
        %v699 = vpack.c.b16 %v683, %v683
        %v700 = vpack.c.b16 %v684, %v684
        %v701 = vpack.c.b16 %v685, %v685
        %v702 = vpack.c.b16 %v686, %v686
        %v703 = vpack.c.b16 %v687, %v687
        %720 = vst [vmem:[%s302] sm:$0xf] %v688
        %721 = vst [vmem:[%s302 + $0x4] sm:$0xf] %v689
        %722 = vst [vmem:[%s302 + $0x8] sm:$0xf] %v690
        %723 = vst [vmem:[%s302 + $0xc] sm:$0xf] %v691
        %724 = vst [vmem:[%s302 + $0x10] sm:$0xf] %v692
        %725 = vst [vmem:[%s302 + $0x14] sm:$0xf] %v693
        %726 = vst [vmem:[%s302 + $0x18] sm:$0xf] %v694
        %727 = vst [vmem:[%s302 + $0x1c] sm:$0xf] %v695
        %728 = vst [vmem:[%s302 + $0x20] sm:$0xf] %v696
        %729 = vst [vmem:[%s302 + $0x24] sm:$0xf] %v697
        %730 = vst [vmem:[%s302 + $0x28] sm:$0xf] %v698
        %731 = vst [vmem:[%s302 + $0x2c] sm:$0xf] %v699
        %732 = vst [vmem:[%s302 + $0x30] sm:$0xf] %v700
        %733 = vst [vmem:[%s302 + $0x34] sm:$0xf] %v701
        %734 = vst [vmem:[%s302 + $0x38] sm:$0xf] %v702
        %735 = vst [vmem:[%s302 + $0x3c] sm:$0xf] %v703
      $region40: #{g_unet_add_middle_forward.18} parent=31 // pred_fallthru
        _
      %s736 = smul.u32 16, %s21
      %p737 = scmp.lt.s32.totalorder %s20, 3
      %s738 = scalar_select %p737, %s20, 3
      %p739 = scmp.lt.s32.totalorder %s736, 15
      %s740 = scalar_select %p739, %s736, 15
      %p741 = scmp.lt.s32.totalorder %s22, 0
      %s742 = scalar_select %p741, %s22, 0
      %s743 = sadd.s32 %s742, %s740
      %s744 = smul.addr %s738, 16
      %s745 = sadd.s32 %s743, %s744
      %s746 = smul.addr %s745, 4
      %s747 = scalar_lea.vmem %s3, %s746
      // Predicated region
      $region41: #{g_unet_add_middle_forward.18} parent=31 // pred_check
        %p748 = pneg %p148
      $region42: #{g_unet_add_middle_forward.18} parent=31 // pred_check_branch
        %750 = sbr.rel (%p748) target = $region44
      $region43: #{g_unet_add_middle_forward.18} parent=31 // pred_region
        %s751 = smul.u32 16, %s21
      $region44: #{g_unet_add_middle_forward.18} parent=31 // pred_fallthru
        _
    $region32: #{g_unet_add_middle_forward.18} parent=5 // pred_fallthru
      _
    %p752 = scmp.le.s32.totalorder 2, %s9
    // Predicated region
    $region45: #{g_unet_add_middle_forward.18} parent=5 // pred_check
      %p753 = pneg %p752
    $region46: #{g_unet_add_middle_forward.18} parent=5 // pred_check_branch
      %755 = sbr.rel (%p753) target = $region48
    $region47: #{g_unet_add_middle_forward.18} parent=5 // pred_region
      %s756 = ssub.s32 %s9, 2
      // Predicated region
      $region49: #{g_unet_add_middle_forward.18} parent=47 // pred_check
        %p757 = pneg %p154
      $region50: #{g_unet_add_middle_forward.18} parent=47 // pred_check_branch
        %759 = sbr.rel (%p757) target = $region52
      $region51: #{g_unet_add_middle_forward.18} parent=47 // pred_region
        %s760 = smul.u32 16, %s25
        %p761 = scmp.lt.s32.totalorder %s24, 3
        %s762 = scalar_select %p761, %s24, 3
        %p763 = scmp.lt.s32.totalorder %s760, 15
        %s764 = scalar_select %p763, %s760, 15
        %p765 = scmp.lt.s32.totalorder %s26, 0
        %s766 = scalar_select %p765, %s26, 0
        %s767 = sadd.s32 %s766, %s764
        %s768 = smul.addr %s762, 16
        %s769 = sadd.s32 %s767, %s768
        %s770 = smul.addr %s769, 4
        %s771 = scalar_lea.vmem %s3, %s770
      $region52: #{g_unet_add_middle_forward.18} parent=47 // pred_fallthru
        _
    $region48: #{g_unet_add_middle_forward.18} parent=5 // pred_fallthru
      _
  $region6: #{g_unet_add_middle_forward.18} parent=0 // loop_footer
    %s13 = sadd.s32 1, %s9
  $region7: #{g_unet_add_middle_forward.18} parent=0 // loop_footer_branch
    %8 = sbr.rel target = $region3
  $region8: #{g_unet_add_middle_forward.18} parent=0 // loop_exit
    _

// kernel: g_unet_add_middle_forward.19
$region0: #{g_unet_add_middle_forward.19}
  #allocation0 [shape = 'u32[]', space=smem, size = 0x4, offset = 0x4, fixed_abs, tag = 'smem constant byte address 0x4 - core index']
  #allocation1 [shape = 'u32[144,128]{1,0:T(1,128)}', space=vmem, size = 0x12000, scoped, tag = 'internal scratch']
  #allocation2 [shape = 'f32[512,128]{1,0:T(8,128)}', space=vmem, size = 0x40000, scoped, tag = 'scratch operand']
  %s0 = inlined_call_operand.vmem [shape: bf16[4,512,128], index: 0, kind: input, shape index: {}]
  %s1 = inlined_call_operand.vmem [shape: bf16[4,128,128], index: 1, kind: input, shape index: {}]
  %s2 = inlined_call_operand.vmem [shape: f32[1,128], index: 2, kind: input, shape index: {}]
  %s3 = inlined_call_operand.vmem [shape: f32[4,512,128], index: 3, kind: output, shape index: {}]
  %s4 = sld [smem:[#allocation0]]
  $region53: #{g_unet_add_middle_forward.19} parent=0
    _
  %s6 = ssub.s32 1, %s4
  %s7 = scalar_select 0, %s6, %s4
  loop: start=0, step=1, limit=6
  $region2: #{g_unet_add_middle_forward.19} parent=0 // loop_pre_header
    _
  $region3: #{g_unet_add_middle_forward.19} parent=0 // loop_header
    %s9 = sphi 0, %s13
    %p10 = scmp.ge.s32.totalorder %s9, 6
    %s16 = sphi 0, %s42
    %s17 = sphi 0, %s38
    %s18 = sphi 0, %s34
    %s19 = sphi 0, %s30
    %s20 = sphi 0, %s16
    %s21 = sphi 0, %s17
    %s22 = sphi 0, %s18
    %s23 = sphi 0, %s19
    %s24 = sphi 0, %s20
    %s25 = sphi 0, %s21
    %s26 = sphi 0, %s22
    %s27 = sphi 0, %s23
    %s49 = sphi 0, %s51
    %s52 = sphi 0, %s49
    %s53 = sphi 0, %s52
    %s69 = sphi 0, %s53
    %s79 = sphi 0, %s81
    %s82 = sphi 0, %s79
    %s83 = sphi 0, %s82
    %s99 = sphi 0, %s83
    %s105 = sphi 0, %s107
    %s108 = sphi 0, %s105
    %s109 = sphi 0, %s108
    %s125 = sphi 0, %s109
    %s135 = sphi 0, %s137
    %s138 = sphi 0, %s135
    %s139 = sphi 0, %s138
    %s155 = sphi 0, %s139
  $region4: #{g_unet_add_middle_forward.19} parent=0 // loop_header_branch
    %12 = sbr.rel (%p10) target = $region8
  $region5: #{g_unet_add_middle_forward.19} parent=0 // loop_body
    %s14 = ssub.s32 %s9, 1
    %s15 = ssub.s32 %s9, 2
    %s28 = sadd.s32 1, %s19
    %p29 = scmp.ge.s32.totalorder %s28, 1
    %s30 = scalar_select %p29, 0, %s28
    %s31 = sadd.s32 1, %s18
    %s32 = scalar_select %p29, %s31, %s18
    %p33 = scmp.ge.s32.totalorder %s32, 1
    %s34 = scalar_select %p33, 0, %s32
    %s35 = sadd.s32 1, %s17
    %s36 = scalar_select %p33, %s35, %s17
    %p37 = scmp.ge.s32.totalorder %s36, 1
    %s38 = scalar_select %p37, 0, %s36
    %s39 = sadd.s32 1, %s16
    %s40 = scalar_select %p37, %s39, %s16
    %p41 = scmp.ge.s32.totalorder %s40, 4
    %s42 = scalar_select %p41, 0, %s40
    %s43 = ssub.s32 %s16, %s42
    %s44 = ssub.s32 %s17, %s38
    %s45 = sor.u32 %s43, %s44
    %s46 = ssub.s32 %s19, %s30
    %s47 = sor.u32 %s45, %s46
    %p48 = scmp.eq.s32.totalorder %s47, 0
    %s50 = sadd.s32 %s49, 1
    %s51 = scalar_select %p48, %s49, %s50
    %p54 = pneg %p48
    %p55 = scmp.eq.s32.totalorder %s9, 3
    %p56 = por %p54, %p55
    %p57 = scmp.ne.s32.totalorder %s49, %s52
    %p58 = scmp.eq.s32.totalorder %s9, 0
    %p59 = por %p57, %p58
    %p60 = scmp.ne.s32.totalorder %s49, %s52
    %p61 = scmp.eq.s32.totalorder %s14, 3
    %p62 = por %p60, %p61
    %p63 = scmp.ne.s32.totalorder %s52, %s53
    %p64 = scmp.eq.s32.totalorder %s14, 0
    %p65 = por %p63, %p64
    %p66 = scmp.ne.s32.totalorder %s52, %s53
    %p67 = scmp.eq.s32.totalorder %s15, 3
    %p68 = por %p66, %p67
    %p70 = scmp.ne.s32.totalorder %s53, %s69
    %p71 = scmp.eq.s32.totalorder %s15, 0
    %p72 = por %p70, %p71
    %s73 = ssub.s32 %s16, %s42
    %s74 = ssub.s32 %s19, %s30
    %s75 = sor.u32 %s73, %s74
    %s76 = ssub.s32 %s18, %s34
    %s77 = sor.u32 %s75, %s76
    %p78 = scmp.eq.s32.totalorder %s77, 0
    %s80 = sadd.s32 %s79, 1
    %s81 = scalar_select %p78, %s79, %s80
    %p84 = pneg %p78
    %p85 = scmp.eq.s32.totalorder %s9, 3
    %p86 = por %p84, %p85
    %p87 = scmp.ne.s32.totalorder %s79, %s82
    %p88 = scmp.eq.s32.totalorder %s9, 0
    %p89 = por %p87, %p88
    %p90 = scmp.ne.s32.totalorder %s79, %s82
    %p91 = scmp.eq.s32.totalorder %s14, 3
    %p92 = por %p90, %p91
    %p93 = scmp.ne.s32.totalorder %s82, %s83
    %p94 = scmp.eq.s32.totalorder %s14, 0
    %p95 = por %p93, %p94
    %p96 = scmp.ne.s32.totalorder %s82, %s83
    %p97 = scmp.eq.s32.totalorder %s15, 3
    %p98 = por %p96, %p97
    %p100 = scmp.ne.s32.totalorder %s83, %s99
    %p101 = scmp.eq.s32.totalorder %s15, 0
    %p102 = por %p100, %p101
    %s103 = ssub.s32 %s18, %s34
    %p104 = scmp.eq.s32.totalorder %s103, 0
    %s106 = sadd.s32 %s105, 1
    %s107 = scalar_select %p104, %s105, %s106
    %p110 = pneg %p104
    %p111 = scmp.eq.s32.totalorder %s9, 3
    %p112 = por %p110, %p111
    %p113 = scmp.ne.s32.totalorder %s105, %s108
    %p114 = scmp.eq.s32.totalorder %s9, 0
    %p115 = por %p113, %p114
    %p116 = scmp.ne.s32.totalorder %s105, %s108
    %p117 = scmp.eq.s32.totalorder %s14, 3
    %p118 = por %p116, %p117
    %p119 = scmp.ne.s32.totalorder %s108, %s109
    %p120 = scmp.eq.s32.totalorder %s14, 0
    %p121 = por %p119, %p120
    %p122 = scmp.ne.s32.totalorder %s108, %s109
    %p123 = scmp.eq.s32.totalorder %s15, 3
    %p124 = por %p122, %p123
    %p126 = scmp.ne.s32.totalorder %s109, %s125
    %p127 = scmp.eq.s32.totalorder %s15, 0
    %p128 = por %p126, %p127
    %s129 = ssub.s32 %s16, %s42
    %s130 = ssub.s32 %s17, %s38
    %s131 = sor.u32 %s129, %s130
    %s132 = ssub.s32 %s18, %s34
    %s133 = sor.u32 %s131, %s132
    %p134 = scmp.eq.s32.totalorder %s133, 0
    %s136 = sadd.s32 %s135, 1
    %s137 = scalar_select %p134, %s135, %s136
    %p140 = pneg %p134
    %p141 = scmp.eq.s32.totalorder %s9, 3
    %p142 = por %p140, %p141
    %p143 = scmp.ne.s32.totalorder %s135, %s138
    %p144 = scmp.eq.s32.totalorder %s9, 0
    %p145 = por %p143, %p144
    %p146 = scmp.ne.s32.totalorder %s135, %s138
    %p147 = scmp.eq.s32.totalorder %s14, 3
    %p148 = por %p146, %p147
    %p149 = scmp.ne.s32.totalorder %s138, %s139
    %p150 = scmp.eq.s32.totalorder %s14, 0
    %p151 = por %p149, %p150
    %p152 = scmp.ne.s32.totalorder %s138, %s139
    %p153 = scmp.eq.s32.totalorder %s15, 3
    %p154 = por %p152, %p153
    %p156 = scmp.ne.s32.totalorder %s139, %s155
    %p157 = scmp.eq.s32.totalorder %s15, 0
    %p158 = por %p156, %p157
    %p159 = scmp.le.s32.totalorder 1, %s9
    %p160 = scmp.lt.s32.totalorder %s9, 5
    %p161 = pnand %p159, %p160
    %p162 = pneg %p161
    // Predicated region
    $region9: #{g_unet_add_middle_forward.19} parent=5 // pred_check
      _
    $region10: #{g_unet_add_middle_forward.19} parent=5 // pred_check_branch
      %164 = sbr.rel (%p161) target = $region12
    $region11: #{g_unet_add_middle_forward.19} parent=5 // pred_region
      %s165 = ssub.s32 %s9, 1
      // Predicated region
      $region13: #{g_unet_add_middle_forward.19} parent=11 // pred_check
        %p166 = pneg %p121
      $region14: #{g_unet_add_middle_forward.19} parent=11 // pred_check_branch
        %168 = sbr.rel (%p166) target = $region16
      $region15: #{g_unet_add_middle_forward.19} parent=11 // pred_region
        %p169 = scmp.lt.s32.totalorder %s22, 0
        %s170 = scalar_select %p169, %s22, 0
        %s171 = scalar_lea.vmem %s2, %s170
      $region16: #{g_unet_add_middle_forward.19} parent=11 // pred_fallthru
        _
    $region12: #{g_unet_add_middle_forward.19} parent=5 // pred_fallthru
      _
    %p172 = scmp.lt.s32.totalorder %s9, 4
    // Predicated region
    $region17: #{g_unet_add_middle_forward.19} parent=5 // pred_check
      %p173 = pneg %p172
    $region18: #{g_unet_add_middle_forward.19} parent=5 // pred_check_branch
      %175 = sbr.rel (%p173) target = $region20
    $region19: #{g_unet_add_middle_forward.19} parent=5 // pred_region
      // Predicated region
      $region21: #{g_unet_add_middle_forward.19} parent=19 // pred_check
        %p176 = pneg %p59
      $region22: #{g_unet_add_middle_forward.19} parent=19 // pred_check_branch
        %178 = sbr.rel (%p176) target = $region24
      $region23: #{g_unet_add_middle_forward.19} parent=19 // pred_region
        %s179 = smul.u32 64, %s17
        %p180 = scmp.lt.s32.totalorder %s16, 3
        %s181 = scalar_select %p180, %s16, 3
        %p182 = scmp.lt.s32.totalorder %s179, 63
        %s183 = scalar_select %p182, %s179, 63
        %p184 = scmp.lt.s32.totalorder %s19, 0
        %s185 = scalar_select %p184, %s19, 0
        %s186 = sadd.s32 %s185, %s183
        %s187 = smul.addr %s181, 64
        %s188 = sadd.s32 %s186, %s187
        %s189 = smul.addr %s188, 4
        %s190 = scalar_lea.vmem %s0, %s189
        %s191 = smul.u32 64, %s17
      $region24: #{g_unet_add_middle_forward.19} parent=19 // pred_fallthru
        _
      // Predicated region
      $region25: #{g_unet_add_middle_forward.19} parent=19 // pred_check
        %p192 = pneg %p89
      $region26: #{g_unet_add_middle_forward.19} parent=19 // pred_check_branch
        %194 = sbr.rel (%p192) target = $region28
      $region27: #{g_unet_add_middle_forward.19} parent=19 // pred_region
        %s195 = smul.u32 16, %s19
        %p196 = scmp.lt.s32.totalorder %s16, 3
        %s197 = scalar_select %p196, %s16, 3
        %p198 = scmp.lt.s32.totalorder %s195, 15
        %s199 = scalar_select %p198, %s195, 15
        %p200 = scmp.lt.s32.totalorder %s18, 0
        %s201 = scalar_select %p200, %s18, 0
        %s202 = sadd.s32 %s201, %s199
        %s203 = smul.addr %s197, 16
        %s204 = sadd.s32 %s202, %s203
        %s205 = smul.addr %s204, 4
        %s206 = scalar_lea.vmem %s1, %s205
        %s207 = smul.u32 16, %s19
      $region28: #{g_unet_add_middle_forward.19} parent=19 // pred_fallthru
        _
    $region20: #{g_unet_add_middle_forward.19} parent=5 // pred_fallthru
      _
    %p208 = scmp.le.s32.totalorder 1, %s9
    %p209 = scmp.lt.s32.totalorder %s9, 5
    %p210 = pnand %p208, %p209
    %p211 = pneg %p210
    // Predicated region
    $region29: #{g_unet_add_middle_forward.19} parent=5 // pred_check
      _
    $region30: #{g_unet_add_middle_forward.19} parent=5 // pred_check_branch
      %213 = sbr.rel (%p210) target = $region32
    $region31: #{g_unet_add_middle_forward.19} parent=5 // pred_region
      %s214 = ssub.s32 %s9, 1
      %s215 = smul.u32 64, %s21
      %p216 = scmp.lt.s32.totalorder %s20, 3
      %s217 = scalar_select %p216, %s20, 3
      %p218 = scmp.lt.s32.totalorder %s215, 63
      %s219 = scalar_select %p218, %s215, 63
      %p220 = scmp.lt.s32.totalorder %s23, 0
      %s221 = scalar_select %p220, %s23, 0
      %s222 = sadd.s32 %s221, %s219
      %s223 = smul.addr %s217, 64
      %s224 = sadd.s32 %s222, %s223
      %s225 = smul.addr %s224, 4
      %s226 = scalar_lea.vmem %s0, %s225
      %p227 = pneg %p65
      %p228 = pneg %p62
      %s229 = smul.u32 16, %s23
      %p230 = scmp.lt.s32.totalorder %s20, 3
      %s231 = scalar_select %p230, %s20, 3
      %p232 = scmp.lt.s32.totalorder %s229, 15
      %s233 = scalar_select %p232, %s229, 15
      %p234 = scmp.lt.s32.totalorder %s22, 0
      %s235 = scalar_select %p234, %s22, 0
      %s236 = sadd.s32 %s235, %s233
      %s237 = smul.addr %s231, 16
      %s238 = sadd.s32 %s236, %s237
      %s239 = smul.addr %s238, 4
      %s240 = scalar_lea.vmem %s1, %s239
      %p241 = pneg %p95
      %p242 = pneg %p92
      %p243 = scmp.lt.s32.totalorder %s22, 0
      %s244 = scalar_select %p243, %s22, 0
      %s245 = scalar_lea.vmem %s2, %s244
      %p246 = pneg %p121
      %p247 = pneg %p118
      %p248 = pneg %p151
      %p249 = pneg %p148
      %s250 = smul.u32 64, %s21
      %p251 = scmp.lt.s32.totalorder %s20, 3
      %s252 = scalar_select %p251, %s20, 3
      %p253 = scmp.lt.s32.totalorder %s250, 63
      %s254 = scalar_select %p253, %s250, 63
      %p255 = scmp.lt.s32.totalorder %s22, 0
      %s256 = scalar_select %p255, %s22, 0
      %s257 = sadd.s32 %s256, %s254
      %s258 = smul.addr %s252, 64
      %s259 = sadd.s32 %s257, %s258
      %s260 = smul.addr %s259, 8
      %s261 = scalar_lea.vmem %s3, %s260
      %s262 = smul.u32 64, %s21
      %p263 = scmp.lt.s32.totalorder %s20, 3
      %s264 = scalar_select %p263, %s20, 3
      %p265 = scmp.lt.s32.totalorder %s262, 63
      %s266 = scalar_select %p265, %s262, 63
      %p267 = scmp.lt.s32.totalorder %s23, 0
      %s268 = scalar_select %p267, %s23, 0
      %s269 = sadd.s32 %s268, %s266
      %s270 = smul.addr %s264, 64
      %s271 = sadd.s32 %s269, %s270
      %s272 = smul.addr %s271, 4
      %s273 = scalar_lea.vmem %s0, %s272
      %s274 = smul.u32 64, %s21
      %s275 = smul.u32 16, %s23
      %p276 = scmp.lt.s32.totalorder %s20, 3
      %s277 = scalar_select %p276, %s20, 3
      %p278 = scmp.lt.s32.totalorder %s275, 15
      %s279 = scalar_select %p278, %s275, 15
      %p280 = scmp.lt.s32.totalorder %s22, 0
      %s281 = scalar_select %p280, %s22, 0
      %s282 = sadd.s32 %s281, %s279
      %s283 = smul.addr %s277, 16
      %s284 = sadd.s32 %s282, %s283
      %s285 = smul.addr %s284, 4
      %s286 = scalar_lea.vmem %s1, %s285
      %s287 = smul.u32 16, %s23
      %p288 = scmp.lt.s32.totalorder %s22, 0
      %s289 = scalar_select %p288, %s22, 0
      %s290 = scalar_lea.vmem %s2, %s289
      %s291 = smul.u32 64, %s21
      %p292 = scmp.lt.s32.totalorder %s20, 3
      %s293 = scalar_select %p292, %s20, 3
      %p294 = scmp.lt.s32.totalorder %s291, 63
      %s295 = scalar_select %p294, %s291, 63
      %p296 = scmp.lt.s32.totalorder %s22, 0
      %s297 = scalar_select %p296, %s22, 0
      %s298 = sadd.s32 %s297, %s295
      %s299 = smul.addr %s293, 64
      %s300 = sadd.s32 %s298, %s299
      %s301 = smul.addr %s300, 8
      %s302 = scalar_lea.vmem %s3, %s301
      %s303 = smul.u32 64, %s21
      %p305 = scmp.eq.s32.totalorder %s23, 0
      // Predicated region
      $region33: #{g_unet_add_middle_forward.19} parent=31 // pred_check
        %p306 = pneg %p305
      $region34: #{g_unet_add_middle_forward.19} parent=31 // pred_check_branch
        %308 = sbr.rel (%p306) target = $region36
      $region35: #{g_unet_add_middle_forward.19} parent=31 // pred_region
        %309 = vst [vmem:[#allocation2] sm:$0xff] 0.0
        %310 = vst [vmem:[#allocation2 + $0x8] sm:$0xff] 0.0
        %311 = vst [vmem:[#allocation2 + $0x10] sm:$0xff] 0.0
        %312 = vst [vmem:[#allocation2 + $0x18] sm:$0xff] 0.0
        %313 = vst [vmem:[#allocation2 + $0x20] sm:$0xff] 0.0
        %314 = vst [vmem:[#allocation2 + $0x28] sm:$0xff] 0.0
        %315 = vst [vmem:[#allocation2 + $0x30] sm:$0xff] 0.0
        %316 = vst [vmem:[#allocation2 + $0x38] sm:$0xff] 0.0
        %317 = vst [vmem:[#allocation2 + $0x40] sm:$0xff] 0.0
        %318 = vst [vmem:[#allocation2 + $0x48] sm:$0xff] 0.0
        %319 = vst [vmem:[#allocation2 + $0x50] sm:$0xff] 0.0
        %320 = vst [vmem:[#allocation2 + $0x58] sm:$0xff] 0.0
        %321 = vst [vmem:[#allocation2 + $0x60] sm:$0xff] 0.0
        %322 = vst [vmem:[#allocation2 + $0x68] sm:$0xff] 0.0
        %323 = vst [vmem:[#allocation2 + $0x70] sm:$0xff] 0.0
        %324 = vst [vmem:[#allocation2 + $0x78] sm:$0xff] 0.0
        %325 = vst [vmem:[#allocation2 + $0x80] sm:$0xff] 0.0
        %326 = vst [vmem:[#allocation2 + $0x88] sm:$0xff] 0.0
        %327 = vst [vmem:[#allocation2 + $0x90] sm:$0xff] 0.0
        %328 = vst [vmem:[#allocation2 + $0x98] sm:$0xff] 0.0
        %329 = vst [vmem:[#allocation2 + $0xa0] sm:$0xff] 0.0
        %330 = vst [vmem:[#allocation2 + $0xa8] sm:$0xff] 0.0
        %331 = vst [vmem:[#allocation2 + $0xb0] sm:$0xff] 0.0
        %332 = vst [vmem:[#allocation2 + $0xb8] sm:$0xff] 0.0
        %333 = vst [vmem:[#allocation2 + $0xc0] sm:$0xff] 0.0
        %334 = vst [vmem:[#allocation2 + $0xc8] sm:$0xff] 0.0
        %335 = vst [vmem:[#allocation2 + $0xd0] sm:$0xff] 0.0
        %336 = vst [vmem:[#allocation2 + $0xd8] sm:$0xff] 0.0
        %337 = vst [vmem:[#allocation2 + $0xe0] sm:$0xff] 0.0
        %338 = vst [vmem:[#allocation2 + $0xe8] sm:$0xff] 0.0
        %339 = vst [vmem:[#allocation2 + $0xf0] sm:$0xff] 0.0
        %340 = vst [vmem:[#allocation2 + $0xf8] sm:$0xff] 0.0
        %341 = vst [vmem:[#allocation2 + $0x100] sm:$0xff] 0.0
        %342 = vst [vmem:[#allocation2 + $0x108] sm:$0xff] 0.0
        %343 = vst [vmem:[#allocation2 + $0x110] sm:$0xff] 0.0
        %344 = vst [vmem:[#allocation2 + $0x118] sm:$0xff] 0.0
        %345 = vst [vmem:[#allocation2 + $0x120] sm:$0xff] 0.0
        %346 = vst [vmem:[#allocation2 + $0x128] sm:$0xff] 0.0
        %347 = vst [vmem:[#allocation2 + $0x130] sm:$0xff] 0.0
        %348 = vst [vmem:[#allocation2 + $0x138] sm:$0xff] 0.0
        %349 = vst [vmem:[#allocation2 + $0x140] sm:$0xff] 0.0
        %350 = vst [vmem:[#allocation2 + $0x148] sm:$0xff] 0.0
        %351 = vst [vmem:[#allocation2 + $0x150] sm:$0xff] 0.0
        %352 = vst [vmem:[#allocation2 + $0x158] sm:$0xff] 0.0
        %353 = vst [vmem:[#allocation2 + $0x160] sm:$0xff] 0.0
        %354 = vst [vmem:[#allocation2 + $0x168] sm:$0xff] 0.0
        %355 = vst [vmem:[#allocation2 + $0x170] sm:$0xff] 0.0
        %356 = vst [vmem:[#allocation2 + $0x178] sm:$0xff] 0.0
        %357 = vst [vmem:[#allocation2 + $0x180] sm:$0xff] 0.0
        %358 = vst [vmem:[#allocation2 + $0x188] sm:$0xff] 0.0
        %359 = vst [vmem:[#allocation2 + $0x190] sm:$0xff] 0.0
        %360 = vst [vmem:[#allocation2 + $0x198] sm:$0xff] 0.0
        %361 = vst [vmem:[#allocation2 + $0x1a0] sm:$0xff] 0.0
        %362 = vst [vmem:[#allocation2 + $0x1a8] sm:$0xff] 0.0
        %363 = vst [vmem:[#allocation2 + $0x1b0] sm:$0xff] 0.0
        %364 = vst [vmem:[#allocation2 + $0x1b8] sm:$0xff] 0.0
        %365 = vst [vmem:[#allocation2 + $0x1c0] sm:$0xff] 0.0
        %366 = vst [vmem:[#allocation2 + $0x1c8] sm:$0xff] 0.0
        %367 = vst [vmem:[#allocation2 + $0x1d0] sm:$0xff] 0.0
        %368 = vst [vmem:[#allocation2 + $0x1d8] sm:$0xff] 0.0
        %369 = vst [vmem:[#allocation2 + $0x1e0] sm:$0xff] 0.0
        %370 = vst [vmem:[#allocation2 + $0x1e8] sm:$0xff] 0.0
        %371 = vst [vmem:[#allocation2 + $0x1f0] sm:$0xff] 0.0
        %372 = vst [vmem:[#allocation2 + $0x1f8] sm:$0xff] 0.0
      $region36: #{g_unet_add_middle_forward.19} parent=31 // pred_fallthru
        _
      %v373 = vld [vmem:[#allocation2] sm:$0xff]
      %v374 = vld [vmem:[#allocation2 + $0x8] sm:$0xff]
      %v375 = vld [vmem:[#allocation2 + $0x10] sm:$0xff]
      %v376 = vld [vmem:[#allocation2 + $0x18] sm:$0xff]
      %v377 = vld [vmem:[#allocation2 + $0x20] sm:$0xff]
      %v378 = vld [vmem:[#allocation2 + $0x28] sm:$0xff]
      %v379 = vld [vmem:[#allocation2 + $0x30] sm:$0xff]
      %v380 = vld [vmem:[#allocation2 + $0x38] sm:$0xff]
      %v381 = vld [vmem:[#allocation2 + $0x40] sm:$0xff]
      %v382 = vld [vmem:[#allocation2 + $0x48] sm:$0xff]
      %v383 = vld [vmem:[#allocation2 + $0x50] sm:$0xff]
      %v384 = vld [vmem:[#allocation2 + $0x58] sm:$0xff]
      %v385 = vld [vmem:[#allocation2 + $0x60] sm:$0xff]
      %v386 = vld [vmem:[#allocation2 + $0x68] sm:$0xff]
      %v387 = vld [vmem:[#allocation2 + $0x70] sm:$0xff]
      %v388 = vld [vmem:[#allocation2 + $0x78] sm:$0xff]
      %v389 = vld [vmem:[#allocation2 + $0x80] sm:$0xff]
      %v390 = vld [vmem:[#allocation2 + $0x88] sm:$0xff]
      %v391 = vld [vmem:[#allocation2 + $0x90] sm:$0xff]
      %v392 = vld [vmem:[#allocation2 + $0x98] sm:$0xff]
      %v393 = vld [vmem:[#allocation2 + $0xa0] sm:$0xff]
      %v394 = vld [vmem:[#allocation2 + $0xa8] sm:$0xff]
      %v395 = vld [vmem:[#allocation2 + $0xb0] sm:$0xff]
      %v396 = vld [vmem:[#allocation2 + $0xb8] sm:$0xff]
      %v397 = vld [vmem:[#allocation2 + $0xc0] sm:$0xff]
      %v398 = vld [vmem:[#allocation2 + $0xc8] sm:$0xff]
      %v399 = vld [vmem:[#allocation2 + $0xd0] sm:$0xff]
      %v400 = vld [vmem:[#allocation2 + $0xd8] sm:$0xff]
      %v401 = vld [vmem:[#allocation2 + $0xe0] sm:$0xff]
      %v402 = vld [vmem:[#allocation2 + $0xe8] sm:$0xff]
      %v403 = vld [vmem:[#allocation2 + $0xf0] sm:$0xff]
      %v404 = vld [vmem:[#allocation2 + $0xf8] sm:$0xff]
      %v405 = vld [vmem:[#allocation2 + $0x100] sm:$0xff]
      %v406 = vld [vmem:[#allocation2 + $0x108] sm:$0xff]
      %v407 = vld [vmem:[#allocation2 + $0x110] sm:$0xff]
      %v408 = vld [vmem:[#allocation2 + $0x118] sm:$0xff]
      %v409 = vld [vmem:[#allocation2 + $0x120] sm:$0xff]
      %v410 = vld [vmem:[#allocation2 + $0x128] sm:$0xff]
      %v411 = vld [vmem:[#allocation2 + $0x130] sm:$0xff]
      %v412 = vld [vmem:[#allocation2 + $0x138] sm:$0xff]
      %v413 = vld [vmem:[#allocation2 + $0x140] sm:$0xff]
      %v414 = vld [vmem:[#allocation2 + $0x148] sm:$0xff]
      %v415 = vld [vmem:[#allocation2 + $0x150] sm:$0xff]
      %v416 = vld [vmem:[#allocation2 + $0x158] sm:$0xff]
      %v417 = vld [vmem:[#allocation2 + $0x160] sm:$0xff]
      %v418 = vld [vmem:[#allocation2 + $0x168] sm:$0xff]
      %v419 = vld [vmem:[#allocation2 + $0x170] sm:$0xff]
      %v420 = vld [vmem:[#allocation2 + $0x178] sm:$0xff]
      %v421 = vld [vmem:[#allocation2 + $0x180] sm:$0xff]
      %v422 = vld [vmem:[#allocation2 + $0x188] sm:$0xff]
      %v423 = vld [vmem:[#allocation2 + $0x190] sm:$0xff]
      %v424 = vld [vmem:[#allocation2 + $0x198] sm:$0xff]
      %v425 = vld [vmem:[#allocation2 + $0x1a0] sm:$0xff]
      %v426 = vld [vmem:[#allocation2 + $0x1a8] sm:$0xff]
      %v427 = vld [vmem:[#allocation2 + $0x1b0] sm:$0xff]
      %v428 = vld [vmem:[#allocation2 + $0x1b8] sm:$0xff]
      %v429 = vld [vmem:[#allocation2 + $0x1c0] sm:$0xff]
      %v430 = vld [vmem:[#allocation2 + $0x1c8] sm:$0xff]
      %v431 = vld [vmem:[#allocation2 + $0x1d0] sm:$0xff]
      %v432 = vld [vmem:[#allocation2 + $0x1d8] sm:$0xff]
      %v433 = vld [vmem:[#allocation2 + $0x1e0] sm:$0xff]
      %v434 = vld [vmem:[#allocation2 + $0x1e8] sm:$0xff]
      %v435 = vld [vmem:[#allocation2 + $0x1f0] sm:$0xff]
      %v436 = vld [vmem:[#allocation2 + $0x1f8] sm:$0xff]
      %v437 = vld [vmem:[%s273] sm:$0xf]
      %v438 = vld [vmem:[%s273 + $0x4] sm:$0xf]
      %v439 = vld [vmem:[%s273 + $0x8] sm:$0xf]
      %v440 = vld [vmem:[%s273 + $0xc] sm:$0xf]
      %v441 = vld [vmem:[%s273 + $0x10] sm:$0xf]
      %v442 = vld [vmem:[%s273 + $0x14] sm:$0xf]
      %v443 = vld [vmem:[%s273 + $0x18] sm:$0xf]
      %v444 = vld [vmem:[%s273 + $0x1c] sm:$0xf]
      %v445 = vld [vmem:[%s273 + $0x20] sm:$0xf]
      %v446 = vld [vmem:[%s273 + $0x24] sm:$0xf]
      %v447 = vld [vmem:[%s273 + $0x28] sm:$0xf]
      %v448 = vld [vmem:[%s273 + $0x2c] sm:$0xf]
      %v449 = vld [vmem:[%s273 + $0x30] sm:$0xf]
      %v450 = vld [vmem:[%s273 + $0x34] sm:$0xf]
      %v451 = vld [vmem:[%s273 + $0x38] sm:$0xf]
      %v452 = vld [vmem:[%s273 + $0x3c] sm:$0xf]
      %v453 = vld [vmem:[%s273 + $0x40] sm:$0xf]
      %v454 = vld [vmem:[%s273 + $0x44] sm:$0xf]
      %v455 = vld [vmem:[%s273 + $0x48] sm:$0xf]
      %v456 = vld [vmem:[%s273 + $0x4c] sm:$0xf]
      %v457 = vld [vmem:[%s273 + $0x50] sm:$0xf]
      %v458 = vld [vmem:[%s273 + $0x54] sm:$0xf]
      %v459 = vld [vmem:[%s273 + $0x58] sm:$0xf]
      %v460 = vld [vmem:[%s273 + $0x5c] sm:$0xf]
      %v461 = vld [vmem:[%s273 + $0x60] sm:$0xf]
      %v462 = vld [vmem:[%s273 + $0x64] sm:$0xf]
      %v463 = vld [vmem:[%s273 + $0x68] sm:$0xf]
      %v464 = vld [vmem:[%s273 + $0x6c] sm:$0xf]
      %v465 = vld [vmem:[%s273 + $0x70] sm:$0xf]
      %v466 = vld [vmem:[%s273 + $0x74] sm:$0xf]
      %v467 = vld [vmem:[%s273 + $0x78] sm:$0xf]
      %v468 = vld [vmem:[%s273 + $0x7c] sm:$0xf]
      %v469 = vld [vmem:[%s273 + $0x80] sm:$0xf]
      %v470 = vld [vmem:[%s273 + $0x84] sm:$0xf]
      %v471 = vld [vmem:[%s273 + $0x88] sm:$0xf]
      %v472 = vld [vmem:[%s273 + $0x8c] sm:$0xf]
      %v473 = vld [vmem:[%s273 + $0x90] sm:$0xf]
      %v474 = vld [vmem:[%s273 + $0x94] sm:$0xf]
      %v475 = vld [vmem:[%s273 + $0x98] sm:$0xf]
      %v476 = vld [vmem:[%s273 + $0x9c] sm:$0xf]
      %v477 = vld [vmem:[%s273 + $0xa0] sm:$0xf]
      %v478 = vld [vmem:[%s273 + $0xa4] sm:$0xf]
      %v479 = vld [vmem:[%s273 + $0xa8] sm:$0xf]
      %v480 = vld [vmem:[%s273 + $0xac] sm:$0xf]
      %v481 = vld [vmem:[%s273 + $0xb0] sm:$0xf]
      %v482 = vld [vmem:[%s273 + $0xb4] sm:$0xf]
      %v483 = vld [vmem:[%s273 + $0xb8] sm:$0xf]
      %v484 = vld [vmem:[%s273 + $0xbc] sm:$0xf]
      %v485 = vld [vmem:[%s273 + $0xc0] sm:$0xf]
      %v486 = vld [vmem:[%s273 + $0xc4] sm:$0xf]
      %v487 = vld [vmem:[%s273 + $0xc8] sm:$0xf]
      %v488 = vld [vmem:[%s273 + $0xcc] sm:$0xf]
      %v489 = vld [vmem:[%s273 + $0xd0] sm:$0xf]
      %v490 = vld [vmem:[%s273 + $0xd4] sm:$0xf]
      %v491 = vld [vmem:[%s273 + $0xd8] sm:$0xf]
      %v492 = vld [vmem:[%s273 + $0xdc] sm:$0xf]
      %v493 = vld [vmem:[%s273 + $0xe0] sm:$0xf]
      %v494 = vld [vmem:[%s273 + $0xe4] sm:$0xf]
      %v495 = vld [vmem:[%s273 + $0xe8] sm:$0xf]
      %v496 = vld [vmem:[%s273 + $0xec] sm:$0xf]
      %v497 = vld [vmem:[%s273 + $0xf0] sm:$0xf]
      %v498 = vld [vmem:[%s273 + $0xf4] sm:$0xf]
      %v499 = vld [vmem:[%s273 + $0xf8] sm:$0xf]
      %v500 = vld [vmem:[%s273 + $0xfc] sm:$0xf]
      %v501 = vld [vmem:[%s286] sm:$0xf]
      %v502 = vld [vmem:[%s286 + $0x4] sm:$0xf]
      %v503 = vld [vmem:[%s286 + $0x8] sm:$0xf]
      %v504 = vld [vmem:[%s286 + $0xc] sm:$0xf]
      %v505 = vld [vmem:[%s286 + $0x10] sm:$0xf]
      %v506 = vld [vmem:[%s286 + $0x14] sm:$0xf]
      %v507 = vld [vmem:[%s286 + $0x18] sm:$0xf]
      %v508 = vld [vmem:[%s286 + $0x1c] sm:$0xf]
      %v509 = vld [vmem:[%s286 + $0x20] sm:$0xf]
      %v510 = vld [vmem:[%s286 + $0x24] sm:$0xf]
      %v511 = vld [vmem:[%s286 + $0x28] sm:$0xf]
      %v512 = vld [vmem:[%s286 + $0x2c] sm:$0xf]
      %v513 = vld [vmem:[%s286 + $0x30] sm:$0xf]
      %v514 = vld [vmem:[%s286 + $0x34] sm:$0xf]
      %v515 = vld [vmem:[%s286 + $0x38] sm:$0xf]
      %v516 = vld [vmem:[%s286 + $0x3c] sm:$0xf]
      %v581 = vunpack.c.l.b16 %v437
      %v582 = vunpack.c.l.b16 %v438
      %v583 = vunpack.c.l.b16 %v439
      %v584 = vunpack.c.l.b16 %v440
      %v585 = vunpack.c.l.b16 %v441
      %v586 = vunpack.c.l.b16 %v442
      %v587 = vunpack.c.l.b16 %v443
      %v588 = vunpack.c.l.b16 %v444
      %v589 = vunpack.c.l.b16 %v445
      %v590 = vunpack.c.l.b16 %v446
      %v591 = vunpack.c.l.b16 %v447
      %v592 = vunpack.c.l.b16 %v448
      %v593 = vunpack.c.l.b16 %v449
      %v594 = vunpack.c.l.b16 %v450
      %v595 = vunpack.c.l.b16 %v451
      %v596 = vunpack.c.l.b16 %v452
      %v597 = vunpack.c.l.b16 %v453
      %v598 = vunpack.c.l.b16 %v454
      %v599 = vunpack.c.l.b16 %v455
      %v600 = vunpack.c.l.b16 %v456
      %v601 = vunpack.c.l.b16 %v457
      %v602 = vunpack.c.l.b16 %v458
      %v603 = vunpack.c.l.b16 %v459
      %v604 = vunpack.c.l.b16 %v460
      %v605 = vunpack.c.l.b16 %v461
      %v606 = vunpack.c.l.b16 %v462
      %v607 = vunpack.c.l.b16 %v463
      %v608 = vunpack.c.l.b16 %v464
      %v609 = vunpack.c.l.b16 %v465
      %v610 = vunpack.c.l.b16 %v466
      %v611 = vunpack.c.l.b16 %v467
      %v612 = vunpack.c.l.b16 %v468
      %v613 = vunpack.c.l.b16 %v469
      %v614 = vunpack.c.l.b16 %v470
      %v615 = vunpack.c.l.b16 %v471
      %v616 = vunpack.c.l.b16 %v472
      %v617 = vunpack.c.l.b16 %v473
      %v618 = vunpack.c.l.b16 %v474
      %v619 = vunpack.c.l.b16 %v475
      %v620 = vunpack.c.l.b16 %v476
      %v621 = vunpack.c.l.b16 %v477
      %v622 = vunpack.c.l.b16 %v478
      %v623 = vunpack.c.l.b16 %v479
      %v624 = vunpack.c.l.b16 %v480
      %v625 = vunpack.c.l.b16 %v481
      %v626 = vunpack.c.l.b16 %v482
      %v627 = vunpack.c.l.b16 %v483
      %v628 = vunpack.c.l.b16 %v484
      %v629 = vunpack.c.l.b16 %v485
      %v630 = vunpack.c.l.b16 %v486
      %v631 = vunpack.c.l.b16 %v487
      %v632 = vunpack.c.l.b16 %v488
      %v633 = vunpack.c.l.b16 %v489
      %v634 = vunpack.c.l.b16 %v490
      %v635 = vunpack.c.l.b16 %v491
      %v636 = vunpack.c.l.b16 %v492
      %v637 = vunpack.c.l.b16 %v493
      %v638 = vunpack.c.l.b16 %v494
      %v639 = vunpack.c.l.b16 %v495
      %v640 = vunpack.c.l.b16 %v496
      %v641 = vunpack.c.l.b16 %v497
      %v642 = vunpack.c.l.b16 %v498
      %v643 = vunpack.c.l.b16 %v499
      %v644 = vunpack.c.l.b16 %v500
      %v645 = vpack.c.b16 %v582, %v581
      %v646 = vpack.c.b16 %v584, %v583
      %v647 = vpack.c.b16 %v586, %v585
      %v648 = vpack.c.b16 %v588, %v587
      %v649 = vpack.c.b16 %v590, %v589
      %v650 = vpack.c.b16 %v592, %v591
      %v651 = vpack.c.b16 %v594, %v593
      %v652 = vpack.c.b16 %v596, %v595
      %v653 = vpack.c.b16 %v598, %v597
      %v654 = vpack.c.b16 %v600, %v599
      %v655 = vpack.c.b16 %v602, %v601
      %v656 = vpack.c.b16 %v604, %v603
      %v657 = vpack.c.b16 %v606, %v605
      %v658 = vpack.c.b16 %v608, %v607
      %v659 = vpack.c.b16 %v610, %v609
      %v660 = vpack.c.b16 %v612, %v611
      %v661 = vpack.c.b16 %v614, %v613
      %v662 = vpack.c.b16 %v616, %v615
      %v663 = vpack.c.b16 %v618, %v617
      %v664 = vpack.c.b16 %v620, %v619
      %v665 = vpack.c.b16 %v622, %v621
      %v666 = vpack.c.b16 %v624, %v623
      %v667 = vpack.c.b16 %v626, %v625
      %v668 = vpack.c.b16 %v628, %v627
      %v669 = vpack.c.b16 %v630, %v629
      %v670 = vpack.c.b16 %v632, %v631
      %v671 = vpack.c.b16 %v634, %v633
      %v672 = vpack.c.b16 %v636, %v635
      %v673 = vpack.c.b16 %v638, %v637
      %v674 = vpack.c.b16 %v640, %v639
      %v675 = vpack.c.b16 %v642, %v641
      %v676 = vpack.c.b16 %v644, %v643
      %v725 = vunpack.c.l.b16 %v501
      %v726 = vunpack.c.l.b16 %v502
      %v727 = vunpack.c.l.b16 %v503
      %v728 = vunpack.c.l.b16 %v504
      %v729 = vunpack.c.l.b16 %v505
      %v730 = vunpack.c.l.b16 %v506
      %v731 = vunpack.c.l.b16 %v507
      %v732 = vunpack.c.l.b16 %v508
      %v733 = vunpack.c.l.b16 %v509
      %v734 = vunpack.c.l.b16 %v510
      %v735 = vunpack.c.l.b16 %v511
      %v736 = vunpack.c.l.b16 %v512
      %v737 = vunpack.c.l.b16 %v513
      %v738 = vunpack.c.l.b16 %v514
      %v739 = vunpack.c.l.b16 %v515
      %v740 = vunpack.c.l.b16 %v516
      %v741 = vpack.c.b16 %v726, %v725
      %v742 = vpack.c.b16 %v728, %v727
      %v743 = vpack.c.b16 %v730, %v729
      %v744 = vpack.c.b16 %v732, %v731
      %v745 = vpack.c.b16 %v734, %v733
      %v746 = vpack.c.b16 %v736, %v735
      %v747 = vpack.c.b16 %v738, %v737
      %v748 = vpack.c.b16 %v740, %v739
      %757 = vmatprep.subr.bf16.mxu0 0
      %758 = vmatpush1.bf16.msra.mxu0 %v741
      %759 = vmatprep.subr.bf16.mxu0 0
      %760 = vmatpush1.bf16.msra.mxu0 %v742
      %761 = vmatprep.subr.bf16.mxu0 0
      %762 = vmatpush1.bf16.msra.mxu0 %v743
      %763 = vmatprep.subr.bf16.mxu0 0
      %764 = vmatpush1.bf16.msra.mxu0 %v744
      %765 = vmatprep.subr.bf16.mxu0 0
      %766 = vmatpush1.bf16.msra.mxu0 %v745
      %767 = vmatprep.subr.bf16.mxu0 0
      %768 = vmatpush1.bf16.msra.mxu0 %v746
      %769 = vmatprep.subr.bf16.mxu0 0
      %770 = vmatpush1.bf16.msra.mxu0 %v747
      %771 = vmatprep.subr.bf16.mxu0 0
      %772 = vmatpush1.bf16.msra.mxu0 %v748
      %773 = vmatprep.subr.bf16.mxu0 0
      %774 = vmatpush1.bf16.msra.mxu0 0
      %775 = vmatprep.subr.bf16.mxu0 0
      %776 = vmatpush1.bf16.msra.mxu0 0
      %777 = vmatprep.subr.bf16.mxu0 0
      %778 = vmatpush1.bf16.msra.mxu0 0
      %779 = vmatprep.subr.bf16.mxu0 0
      %780 = vmatpush1.bf16.msra.mxu0 0
      %781 = vmatprep.subr.bf16.mxu0 0
      %782 = vmatpush1.bf16.msra.mxu0 0
      %783 = vmatprep.subr.bf16.mxu0 0
      %784 = vmatpush1.bf16.msra.mxu0 0
      %785 = vmatprep.subr.bf16.mxu0 0
      %786 = vmatpush1.bf16.msra.mxu0 0
      %787 = vmatprep.subr.bf16.mxu0 0
      %788 = vmatpush1.bf16.msra.mxu0 0
      %789 = vmatprep.mubr.bf16.mxu0 0
      %790 = vmatmul.mubr.bf16.gmra.mrb[0].mxu0 %v645
      %v791 = vpop.f32.mrb[0].mxu0
      %v792 = vadd.f32 0.0, %v791
      %v793 = vpop.f32.mrb[0].mxu0
      %v794 = vpop.f32.mrb[0].mxu0
      %v795 = vadd.f32 0.0, %v794
      %v796 = vpop.f32.mrb[0].mxu0
      %797 = vmatprep.mubr.bf16.mxu0 0
      %798 = vmatmul.mubr.bf16.gmra.mrb[0].mxu0 %v646
      %v799 = vpop.f32.mrb[0].mxu0
      %v800 = vadd.f32 0.0, %v799
      %v801 = vpop.f32.mrb[0].mxu0
      %v802 = vpop.f32.mrb[0].mxu0
      %v803 = vadd.f32 0.0, %v802
      %v804 = vpop.f32.mrb[0].mxu0
      %805 = vmatprep.mubr.bf16.mxu0 0
      %806 = vmatmul.mubr.bf16.gmra.mrb[0].mxu0 %v647
      %v807 = vpop.f32.mrb[0].mxu0
      %v808 = vadd.f32 0.0, %v807
      %v809 = vpop.f32.mrb[0].mxu0
      %v810 = vpop.f32.mrb[0].mxu0
      %v811 = vadd.f32 0.0, %v810
      %v812 = vpop.f32.mrb[0].mxu0
      %813 = vmatprep.mubr.bf16.mxu0 0
      %814 = vmatmul.mubr.bf16.gmra.mrb[0].mxu0 %v648
      %v815 = vpop.f32.mrb[0].mxu0
      %v816 = vadd.f32 0.0, %v815
      %v817 = vpop.f32.mrb[0].mxu0
      %v818 = vpop.f32.mrb[0].mxu0
      %v819 = vadd.f32 0.0, %v818
      %v820 = vpop.f32.mrb[0].mxu0
      %821 = vmatprep.mubr.bf16.mxu0 0
      %822 = vmatmul.mubr.bf16.gmra.mrb[0].mxu0 %v649
      %v823 = vpop.f32.mrb[0].mxu0
      %v824 = vadd.f32 0.0, %v823
      %v825 = vpop.f32.mrb[0].mxu0
      %v826 = vpop.f32.mrb[0].mxu0
      %v827 = vadd.f32 0.0, %v826
      %v828 = vpop.f32.mrb[0].mxu0
      %829 = vmatprep.mubr.bf16.mxu0 0
      %830 = vmatmul.mubr.bf16.gmra.mrb[0].mxu0 %v650
      %v831 = vpop.f32.mrb[0].mxu0
      %v832 = vadd.f32 0.0, %v831
      %v833 = vpop.f32.mrb[0].mxu0
      %v834 = vpop.f32.mrb[0].mxu0
      %v835 = vadd.f32 0.0, %v834
      %v836 = vpop.f32.mrb[0].mxu0
      %837 = vmatprep.mubr.bf16.mxu0 0
      %838 = vmatmul.mubr.bf16.gmra.mrb[0].mxu0 %v651
      %v839 = vpop.f32.mrb[0].mxu0
      %v840 = vadd.f32 0.0, %v839
      %v841 = vpop.f32.mrb[0].mxu0
      %v842 = vpop.f32.mrb[0].mxu0
      %v843 = vadd.f32 0.0, %v842
      %v844 = vpop.f32.mrb[0].mxu0
      %845 = vmatprep.mubr.bf16.mxu0 0
      %846 = vmatmul.mubr.bf16.gmra.mrb[0].mxu0 %v652
      %v847 = vpop.f32.mrb[0].mxu0
      %v848 = vadd.f32 0.0, %v847
      %v849 = vpop.f32.mrb[0].mxu0
      %v850 = vpop.f32.mrb[0].mxu0
      %v851 = vadd.f32 0.0, %v850
      %v852 = vpop.f32.mrb[0].mxu0
      %853 = vmatprep.mubr.bf16.mxu0 0
      %854 = vmatmul.mubr.bf16.gmra.mrb[0].mxu0 %v653
      %v855 = vpop.f32.mrb[0].mxu0
      %v856 = vadd.f32 0.0, %v855
      %v857 = vpop.f32.mrb[0].mxu0
      %v858 = vpop.f32.mrb[0].mxu0
      %v859 = vadd.f32 0.0, %v858
      %v860 = vpop.f32.mrb[0].mxu0
      %861 = vmatprep.mubr.bf16.mxu0 0
      %862 = vmatmul.mubr.bf16.gmra.mrb[0].mxu0 %v654
      %v863 = vpop.f32.mrb[0].mxu0
      %v864 = vadd.f32 0.0, %v863
      %v865 = vpop.f32.mrb[0].mxu0
      %v866 = vpop.f32.mrb[0].mxu0
      %v867 = vadd.f32 0.0, %v866
      %v868 = vpop.f32.mrb[0].mxu0
      %869 = vmatprep.mubr.bf16.mxu0 0
      %870 = vmatmul.mubr.bf16.gmra.mrb[0].mxu0 %v655
      %v871 = vpop.f32.mrb[0].mxu0
      %v872 = vadd.f32 0.0, %v871
      %v873 = vpop.f32.mrb[0].mxu0
      %v874 = vpop.f32.mrb[0].mxu0
      %v875 = vadd.f32 0.0, %v874
      %v876 = vpop.f32.mrb[0].mxu0
      %877 = vmatprep.mubr.bf16.mxu0 0
      %878 = vmatmul.mubr.bf16.gmra.mrb[0].mxu0 %v656
      %v879 = vpop.f32.mrb[0].mxu0
      %v880 = vadd.f32 0.0, %v879
      %v881 = vpop.f32.mrb[0].mxu0
      %v882 = vpop.f32.mrb[0].mxu0
      %v883 = vadd.f32 0.0, %v882
      %v884 = vpop.f32.mrb[0].mxu0
      %885 = vmatprep.mubr.bf16.mxu0 0
      %886 = vmatmul.mubr.bf16.gmra.mrb[0].mxu0 %v657
      %v887 = vpop.f32.mrb[0].mxu0
      %v888 = vadd.f32 0.0, %v887
      %v889 = vpop.f32.mrb[0].mxu0
      %v890 = vpop.f32.mrb[0].mxu0
      %v891 = vadd.f32 0.0, %v890
      %v892 = vpop.f32.mrb[0].mxu0
      %893 = vmatprep.mubr.bf16.mxu0 0
      %894 = vmatmul.mubr.bf16.gmra.mrb[0].mxu0 %v658
      %v895 = vpop.f32.mrb[0].mxu0
      %v896 = vadd.f32 0.0, %v895
      %v897 = vpop.f32.mrb[0].mxu0
      %v898 = vpop.f32.mrb[0].mxu0
      %v899 = vadd.f32 0.0, %v898
      %v900 = vpop.f32.mrb[0].mxu0
      %901 = vmatprep.mubr.bf16.mxu0 0
      %902 = vmatmul.mubr.bf16.gmra.mrb[0].mxu0 %v659
      %v903 = vpop.f32.mrb[0].mxu0
      %v904 = vadd.f32 0.0, %v903
      %v905 = vpop.f32.mrb[0].mxu0
      %v906 = vpop.f32.mrb[0].mxu0
      %v907 = vadd.f32 0.0, %v906
      %v908 = vpop.f32.mrb[0].mxu0
      %909 = vmatprep.mubr.bf16.mxu0 0
      %910 = vmatmul.mubr.bf16.gmra.mrb[0].mxu0 %v660
      %v911 = vpop.f32.mrb[0].mxu0
      %v912 = vadd.f32 0.0, %v911
      %v913 = vpop.f32.mrb[0].mxu0
      %v914 = vpop.f32.mrb[0].mxu0
      %v915 = vadd.f32 0.0, %v914
      %v916 = vpop.f32.mrb[0].mxu0
      %917 = vmatprep.mubr.bf16.mxu0 0
      %918 = vmatmul.mubr.bf16.gmra.mrb[0].mxu0 %v661
      %v919 = vpop.f32.mrb[0].mxu0
      %v920 = vadd.f32 0.0, %v919
      %v921 = vpop.f32.mrb[0].mxu0
      %v922 = vpop.f32.mrb[0].mxu0
      %v923 = vadd.f32 0.0, %v922
      %v924 = vpop.f32.mrb[0].mxu0
      %925 = vmatprep.mubr.bf16.mxu0 0
      %926 = vmatmul.mubr.bf16.gmra.mrb[0].mxu0 %v662
      %v927 = vpop.f32.mrb[0].mxu0
      %v928 = vadd.f32 0.0, %v927
      %v929 = vpop.f32.mrb[0].mxu0
      %v930 = vpop.f32.mrb[0].mxu0
      %v931 = vadd.f32 0.0, %v930
      %v932 = vpop.f32.mrb[0].mxu0
      %933 = vmatprep.mubr.bf16.mxu0 0
      %934 = vmatmul.mubr.bf16.gmra.mrb[0].mxu0 %v663
      %v935 = vpop.f32.mrb[0].mxu0
      %v936 = vadd.f32 0.0, %v935
      %v937 = vpop.f32.mrb[0].mxu0
      %v938 = vpop.f32.mrb[0].mxu0
      %v939 = vadd.f32 0.0, %v938
      %v940 = vpop.f32.mrb[0].mxu0
      %941 = vmatprep.mubr.bf16.mxu0 0
      %942 = vmatmul.mubr.bf16.gmra.mrb[0].mxu0 %v664
      %v943 = vpop.f32.mrb[0].mxu0
      %v944 = vadd.f32 0.0, %v943
      %v945 = vpop.f32.mrb[0].mxu0
      %v946 = vpop.f32.mrb[0].mxu0
      %v947 = vadd.f32 0.0, %v946
      %v948 = vpop.f32.mrb[0].mxu0
      %949 = vmatprep.mubr.bf16.mxu0 0
      %950 = vmatmul.mubr.bf16.gmra.mrb[0].mxu0 %v665
      %v951 = vpop.f32.mrb[0].mxu0
      %v952 = vadd.f32 0.0, %v951
      %v953 = vpop.f32.mrb[0].mxu0
      %v954 = vpop.f32.mrb[0].mxu0
      %v955 = vadd.f32 0.0, %v954
      %v956 = vpop.f32.mrb[0].mxu0
      %957 = vmatprep.mubr.bf16.mxu0 0
      %958 = vmatmul.mubr.bf16.gmra.mrb[0].mxu0 %v666
      %v959 = vpop.f32.mrb[0].mxu0
      %v960 = vadd.f32 0.0, %v959
      %v961 = vpop.f32.mrb[0].mxu0
      %v962 = vpop.f32.mrb[0].mxu0
      %v963 = vadd.f32 0.0, %v962
      %v964 = vpop.f32.mrb[0].mxu0
      %965 = vmatprep.mubr.bf16.mxu0 0
      %966 = vmatmul.mubr.bf16.gmra.mrb[0].mxu0 %v667
      %v967 = vpop.f32.mrb[0].mxu0
      %v968 = vadd.f32 0.0, %v967
      %v969 = vpop.f32.mrb[0].mxu0
      %v970 = vpop.f32.mrb[0].mxu0
      %v971 = vadd.f32 0.0, %v970
      %v972 = vpop.f32.mrb[0].mxu0
      %973 = vmatprep.mubr.bf16.mxu0 0
      %974 = vmatmul.mubr.bf16.gmra.mrb[0].mxu0 %v668
      %v975 = vpop.f32.mrb[0].mxu0
      %v976 = vadd.f32 0.0, %v975
      %v977 = vpop.f32.mrb[0].mxu0
      %v978 = vpop.f32.mrb[0].mxu0
      %v979 = vadd.f32 0.0, %v978
      %v980 = vpop.f32.mrb[0].mxu0
      %981 = vmatprep.mubr.bf16.mxu0 0
      %982 = vmatmul.mubr.bf16.gmra.mrb[0].mxu0 %v669
      %v983 = vpop.f32.mrb[0].mxu0
      %v984 = vadd.f32 0.0, %v983
      %v985 = vpop.f32.mrb[0].mxu0
      %v986 = vpop.f32.mrb[0].mxu0
      %v987 = vadd.f32 0.0, %v986
      %v988 = vpop.f32.mrb[0].mxu0
      %989 = vmatprep.mubr.bf16.mxu0 0
      %990 = vmatmul.mubr.bf16.gmra.mrb[0].mxu0 %v670
      %v991 = vpop.f32.mrb[0].mxu0
      %v992 = vadd.f32 0.0, %v991
      %v993 = vpop.f32.mrb[0].mxu0
      %v994 = vpop.f32.mrb[0].mxu0
      %v995 = vadd.f32 0.0, %v994
      %v996 = vpop.f32.mrb[0].mxu0
      %997 = vmatprep.mubr.bf16.mxu0 0
      %998 = vmatmul.mubr.bf16.gmra.mrb[0].mxu0 %v671
      %v999 = vpop.f32.mrb[0].mxu0
      %v1000 = vadd.f32 0.0, %v999
      %v1001 = vpop.f32.mrb[0].mxu0
      %v1002 = vpop.f32.mrb[0].mxu0
      %v1003 = vadd.f32 0.0, %v1002
      %v1004 = vpop.f32.mrb[0].mxu0
      %1005 = vmatprep.mubr.bf16.mxu0 0
      %1006 = vmatmul.mubr.bf16.gmra.mrb[0].mxu0 %v672
      %v1007 = vpop.f32.mrb[0].mxu0
      %v1008 = vadd.f32 0.0, %v1007
      %v1009 = vpop.f32.mrb[0].mxu0
      %v1010 = vpop.f32.mrb[0].mxu0
      %v1011 = vadd.f32 0.0, %v1010
      %v1012 = vpop.f32.mrb[0].mxu0
      %1013 = vmatprep.mubr.bf16.mxu0 0
      %1014 = vmatmul.mubr.bf16.gmra.mrb[0].mxu0 %v673
      %v1015 = vpop.f32.mrb[0].mxu0
      %v1016 = vadd.f32 0.0, %v1015
      %v1017 = vpop.f32.mrb[0].mxu0
      %v1018 = vpop.f32.mrb[0].mxu0
      %v1019 = vadd.f32 0.0, %v1018
      %v1020 = vpop.f32.mrb[0].mxu0
      %1021 = vmatprep.mubr.bf16.mxu0 0
      %1022 = vmatmul.mubr.bf16.gmra.mrb[0].mxu0 %v674
      %v1023 = vpop.f32.mrb[0].mxu0
      %v1024 = vadd.f32 0.0, %v1023
      %v1025 = vpop.f32.mrb[0].mxu0
      %v1026 = vpop.f32.mrb[0].mxu0
      %v1027 = vadd.f32 0.0, %v1026
      %v1028 = vpop.f32.mrb[0].mxu0
      %1029 = vmatprep.mubr.bf16.mxu0 0
      %1030 = vmatmul.mubr.bf16.gmra.mrb[0].mxu0 %v675
      %v1031 = vpop.f32.mrb[0].mxu0
      %v1032 = vadd.f32 0.0, %v1031
      %v1033 = vpop.f32.mrb[0].mxu0
      %v1034 = vpop.f32.mrb[0].mxu0
      %v1035 = vadd.f32 0.0, %v1034
      %v1036 = vpop.f32.mrb[0].mxu0
      %1037 = vmatprep.mubr.bf16.mxu0 0
      %1038 = vmatmul.mubr.bf16.gmra.mrb[0].mxu0 %v676
      %v1039 = vpop.f32.mrb[0].mxu0
      %v1040 = vadd.f32 0.0, %v1039
      %v1041 = vpop.f32.mrb[0].mxu0
      %v1042 = vpop.f32.mrb[0].mxu0
      %v1043 = vadd.f32 0.0, %v1042
      %v1044 = vpop.f32.mrb[0].mxu0
      %1045 = vdwg.mxu0
      %v1046 = vadd.f32 %v373, %v792
      %v1047 = vadd.f32 %v374, %v795
      %v1048 = vadd.f32 %v375, %v800
      %v1049 = vadd.f32 %v376, %v803
      %v1050 = vadd.f32 %v377, %v808
      %v1051 = vadd.f32 %v378, %v811
      %v1052 = vadd.f32 %v379, %v816
      %v1053 = vadd.f32 %v380, %v819
      %v1054 = vadd.f32 %v381, %v824
      %v1055 = vadd.f32 %v382, %v827
      %v1056 = vadd.f32 %v383, %v832
      %v1057 = vadd.f32 %v384, %v835
      %v1058 = vadd.f32 %v385, %v840
      %v1059 = vadd.f32 %v386, %v843
      %v1060 = vadd.f32 %v387, %v848
      %v1061 = vadd.f32 %v388, %v851
      %v1062 = vadd.f32 %v389, %v856
      %v1063 = vadd.f32 %v390, %v859
      %v1064 = vadd.f32 %v391, %v864
      %v1065 = vadd.f32 %v392, %v867
      %v1066 = vadd.f32 %v393, %v872
      %v1067 = vadd.f32 %v394, %v875
      %v1068 = vadd.f32 %v395, %v880
      %v1069 = vadd.f32 %v396, %v883
      %v1070 = vadd.f32 %v397, %v888
      %v1071 = vadd.f32 %v398, %v891
      %v1072 = vadd.f32 %v399, %v896
      %v1073 = vadd.f32 %v400, %v899
      %v1074 = vadd.f32 %v401, %v904
      %v1075 = vadd.f32 %v402, %v907
      %v1076 = vadd.f32 %v403, %v912
      %v1077 = vadd.f32 %v404, %v915
      %v1078 = vadd.f32 %v405, %v920
      %v1079 = vadd.f32 %v406, %v923
      %v1080 = vadd.f32 %v407, %v928
      %v1081 = vadd.f32 %v408, %v931
      %v1082 = vadd.f32 %v409, %v936
      %v1083 = vadd.f32 %v410, %v939
      %v1084 = vadd.f32 %v411, %v944
      %v1085 = vadd.f32 %v412, %v947
      %v1086 = vadd.f32 %v413, %v952
      %v1087 = vadd.f32 %v414, %v955
      %v1088 = vadd.f32 %v415, %v960
      %v1089 = vadd.f32 %v416, %v963
      %v1090 = vadd.f32 %v417, %v968
      %v1091 = vadd.f32 %v418, %v971
      %v1092 = vadd.f32 %v419, %v976
      %v1093 = vadd.f32 %v420, %v979
      %v1094 = vadd.f32 %v421, %v984
      %v1095 = vadd.f32 %v422, %v987
      %v1096 = vadd.f32 %v423, %v992
      %v1097 = vadd.f32 %v424, %v995
      %v1098 = vadd.f32 %v425, %v1000
      %v1099 = vadd.f32 %v426, %v1003
      %v1100 = vadd.f32 %v427, %v1008
      %v1101 = vadd.f32 %v428, %v1011
      %v1102 = vadd.f32 %v429, %v1016
      %v1103 = vadd.f32 %v430, %v1019
      %v1104 = vadd.f32 %v431, %v1024
      %v1105 = vadd.f32 %v432, %v1027
      %v1106 = vadd.f32 %v433, %v1032
      %v1107 = vadd.f32 %v434, %v1035
      %v1108 = vadd.f32 %v435, %v1040
      %v1109 = vadd.f32 %v436, %v1043
      %1110 = vst [vmem:[#allocation2] sm:$0xff] %v1046
      %1111 = vst [vmem:[#allocation2 + $0x8] sm:$0xff] %v1047
      %1112 = vst [vmem:[#allocation2 + $0x10] sm:$0xff] %v1048
      %1113 = vst [vmem:[#allocation2 + $0x18] sm:$0xff] %v1049
      %1114 = vst [vmem:[#allocation2 + $0x20] sm:$0xff] %v1050
      %1115 = vst [vmem:[#allocation2 + $0x28] sm:$0xff] %v1051
      %1116 = vst [vmem:[#allocation2 + $0x30] sm:$0xff] %v1052
      %1117 = vst [vmem:[#allocation2 + $0x38] sm:$0xff] %v1053
      %1118 = vst [vmem:[#allocation2 + $0x40] sm:$0xff] %v1054
      %1119 = vst [vmem:[#allocation2 + $0x48] sm:$0xff] %v1055
      %1120 = vst [vmem:[#allocation2 + $0x50] sm:$0xff] %v1056
      %1121 = vst [vmem:[#allocation2 + $0x58] sm:$0xff] %v1057
      %1122 = vst [vmem:[#allocation2 + $0x60] sm:$0xff] %v1058
      %1123 = vst [vmem:[#allocation2 + $0x68] sm:$0xff] %v1059
      %1124 = vst [vmem:[#allocation2 + $0x70] sm:$0xff] %v1060
      %1125 = vst [vmem:[#allocation2 + $0x78] sm:$0xff] %v1061
      %1126 = vst [vmem:[#allocation2 + $0x80] sm:$0xff] %v1062
      %1127 = vst [vmem:[#allocation2 + $0x88] sm:$0xff] %v1063
      %1128 = vst [vmem:[#allocation2 + $0x90] sm:$0xff] %v1064
      %1129 = vst [vmem:[#allocation2 + $0x98] sm:$0xff] %v1065
      %1130 = vst [vmem:[#allocation2 + $0xa0] sm:$0xff] %v1066
      %1131 = vst [vmem:[#allocation2 + $0xa8] sm:$0xff] %v1067
      %1132 = vst [vmem:[#allocation2 + $0xb0] sm:$0xff] %v1068
      %1133 = vst [vmem:[#allocation2 + $0xb8] sm:$0xff] %v1069
      %1134 = vst [vmem:[#allocation2 + $0xc0] sm:$0xff] %v1070
      %1135 = vst [vmem:[#allocation2 + $0xc8] sm:$0xff] %v1071
      %1136 = vst [vmem:[#allocation2 + $0xd0] sm:$0xff] %v1072
      %1137 = vst [vmem:[#allocation2 + $0xd8] sm:$0xff] %v1073
      %1138 = vst [vmem:[#allocation2 + $0xe0] sm:$0xff] %v1074
      %1139 = vst [vmem:[#allocation2 + $0xe8] sm:$0xff] %v1075
      %1140 = vst [vmem:[#allocation2 + $0xf0] sm:$0xff] %v1076
      %1141 = vst [vmem:[#allocation2 + $0xf8] sm:$0xff] %v1077
      %1142 = vst [vmem:[#allocation2 + $0x100] sm:$0xff] %v1078
      %1143 = vst [vmem:[#allocation2 + $0x108] sm:$0xff] %v1079
      %1144 = vst [vmem:[#allocation2 + $0x110] sm:$0xff] %v1080
      %1145 = vst [vmem:[#allocation2 + $0x118] sm:$0xff] %v1081
      %1146 = vst [vmem:[#allocation2 + $0x120] sm:$0xff] %v1082
      %1147 = vst [vmem:[#allocation2 + $0x128] sm:$0xff] %v1083
      %1148 = vst [vmem:[#allocation2 + $0x130] sm:$0xff] %v1084
      %1149 = vst [vmem:[#allocation2 + $0x138] sm:$0xff] %v1085
      %1150 = vst [vmem:[#allocation2 + $0x140] sm:$0xff] %v1086
      %1151 = vst [vmem:[#allocation2 + $0x148] sm:$0xff] %v1087
      %1152 = vst [vmem:[#allocation2 + $0x150] sm:$0xff] %v1088
      %1153 = vst [vmem:[#allocation2 + $0x158] sm:$0xff] %v1089
      %1154 = vst [vmem:[#allocation2 + $0x160] sm:$0xff] %v1090
      %1155 = vst [vmem:[#allocation2 + $0x168] sm:$0xff] %v1091
      %1156 = vst [vmem:[#allocation2 + $0x170] sm:$0xff] %v1092
      %1157 = vst [vmem:[#allocation2 + $0x178] sm:$0xff] %v1093
      %1158 = vst [vmem:[#allocation2 + $0x180] sm:$0xff] %v1094
      %1159 = vst [vmem:[#allocation2 + $0x188] sm:$0xff] %v1095
      %1160 = vst [vmem:[#allocation2 + $0x190] sm:$0xff] %v1096
      %1161 = vst [vmem:[#allocation2 + $0x198] sm:$0xff] %v1097
      %1162 = vst [vmem:[#allocation2 + $0x1a0] sm:$0xff] %v1098
      %1163 = vst [vmem:[#allocation2 + $0x1a8] sm:$0xff] %v1099
      %1164 = vst [vmem:[#allocation2 + $0x1b0] sm:$0xff] %v1100
      %1165 = vst [vmem:[#allocation2 + $0x1b8] sm:$0xff] %v1101
      %1166 = vst [vmem:[#allocation2 + $0x1c0] sm:$0xff] %v1102
      %1167 = vst [vmem:[#allocation2 + $0x1c8] sm:$0xff] %v1103
      %1168 = vst [vmem:[#allocation2 + $0x1d0] sm:$0xff] %v1104
      %1169 = vst [vmem:[#allocation2 + $0x1d8] sm:$0xff] %v1105
      %1170 = vst [vmem:[#allocation2 + $0x1e0] sm:$0xff] %v1106
      %1171 = vst [vmem:[#allocation2 + $0x1e8] sm:$0xff] %v1107
      %1172 = vst [vmem:[#allocation2 + $0x1f0] sm:$0xff] %v1108
      %1173 = vst [vmem:[#allocation2 + $0x1f8] sm:$0xff] %v1109
      // Predicated region
      $region37: #{g_unet_add_middle_forward.19} parent=31 // pred_check
        %p1174 = pneg %p305
      $region38: #{g_unet_add_middle_forward.19} parent=31 // pred_check_branch
        %1176 = sbr.rel (%p1174) target = $region40
      $region39: #{g_unet_add_middle_forward.19} parent=31 // pred_region
        %v1177 = vld [vmem:[#allocation2] sm:$0xff]
        %v1178 = vld [vmem:[#allocation2 + $0x8] sm:$0xff]
        %v1179 = vld [vmem:[#allocation2 + $0x10] sm:$0xff]
        %v1180 = vld [vmem:[#allocation2 + $0x18] sm:$0xff]
        %v1181 = vld [vmem:[#allocation2 + $0x20] sm:$0xff]
        %v1182 = vld [vmem:[#allocation2 + $0x28] sm:$0xff]
        %v1183 = vld [vmem:[#allocation2 + $0x30] sm:$0xff]
        %v1184 = vld [vmem:[#allocation2 + $0x38] sm:$0xff]
        %v1185 = vld [vmem:[#allocation2 + $0x40] sm:$0xff]
        %v1186 = vld [vmem:[#allocation2 + $0x48] sm:$0xff]
        %v1187 = vld [vmem:[#allocation2 + $0x50] sm:$0xff]
        %v1188 = vld [vmem:[#allocation2 + $0x58] sm:$0xff]
        %v1189 = vld [vmem:[#allocation2 + $0x60] sm:$0xff]
        %v1190 = vld [vmem:[#allocation2 + $0x68] sm:$0xff]
        %v1191 = vld [vmem:[#allocation2 + $0x70] sm:$0xff]
        %v1192 = vld [vmem:[#allocation2 + $0x78] sm:$0xff]
        %v1193 = vld [vmem:[#allocation2 + $0x80] sm:$0xff]
        %v1194 = vld [vmem:[#allocation2 + $0x88] sm:$0xff]
        %v1195 = vld [vmem:[#allocation2 + $0x90] sm:$0xff]
        %v1196 = vld [vmem:[#allocation2 + $0x98] sm:$0xff]
        %v1197 = vld [vmem:[#allocation2 + $0xa0] sm:$0xff]
        %v1198 = vld [vmem:[#allocation2 + $0xa8] sm:$0xff]
        %v1199 = vld [vmem:[#allocation2 + $0xb0] sm:$0xff]
        %v1200 = vld [vmem:[#allocation2 + $0xb8] sm:$0xff]
        %v1201 = vld [vmem:[#allocation2 + $0xc0] sm:$0xff]
        %v1202 = vld [vmem:[#allocation2 + $0xc8] sm:$0xff]
        %v1203 = vld [vmem:[#allocation2 + $0xd0] sm:$0xff]
        %v1204 = vld [vmem:[#allocation2 + $0xd8] sm:$0xff]
        %v1205 = vld [vmem:[#allocation2 + $0xe0] sm:$0xff]
        %v1206 = vld [vmem:[#allocation2 + $0xe8] sm:$0xff]
        %v1207 = vld [vmem:[#allocation2 + $0xf0] sm:$0xff]
        %v1208 = vld [vmem:[#allocation2 + $0xf8] sm:$0xff]
        %v1209 = vld [vmem:[#allocation2 + $0x100] sm:$0xff]
        %v1210 = vld [vmem:[#allocation2 + $0x108] sm:$0xff]
        %v1211 = vld [vmem:[#allocation2 + $0x110] sm:$0xff]
        %v1212 = vld [vmem:[#allocation2 + $0x118] sm:$0xff]
        %v1213 = vld [vmem:[#allocation2 + $0x120] sm:$0xff]
        %v1214 = vld [vmem:[#allocation2 + $0x128] sm:$0xff]
        %v1215 = vld [vmem:[#allocation2 + $0x130] sm:$0xff]
        %v1216 = vld [vmem:[#allocation2 + $0x138] sm:$0xff]
        %v1217 = vld [vmem:[#allocation2 + $0x140] sm:$0xff]
        %v1218 = vld [vmem:[#allocation2 + $0x148] sm:$0xff]
        %v1219 = vld [vmem:[#allocation2 + $0x150] sm:$0xff]
        %v1220 = vld [vmem:[#allocation2 + $0x158] sm:$0xff]
        %v1221 = vld [vmem:[#allocation2 + $0x160] sm:$0xff]
        %v1222 = vld [vmem:[#allocation2 + $0x168] sm:$0xff]
        %v1223 = vld [vmem:[#allocation2 + $0x170] sm:$0xff]
        %v1224 = vld [vmem:[#allocation2 + $0x178] sm:$0xff]
        %v1225 = vld [vmem:[#allocation2 + $0x180] sm:$0xff]
        %v1226 = vld [vmem:[#allocation2 + $0x188] sm:$0xff]
        %v1227 = vld [vmem:[#allocation2 + $0x190] sm:$0xff]
        %v1228 = vld [vmem:[#allocation2 + $0x198] sm:$0xff]
        %v1229 = vld [vmem:[#allocation2 + $0x1a0] sm:$0xff]
        %v1230 = vld [vmem:[#allocation2 + $0x1a8] sm:$0xff]
        %v1231 = vld [vmem:[#allocation2 + $0x1b0] sm:$0xff]
        %v1232 = vld [vmem:[#allocation2 + $0x1b8] sm:$0xff]
        %v1233 = vld [vmem:[#allocation2 + $0x1c0] sm:$0xff]
        %v1234 = vld [vmem:[#allocation2 + $0x1c8] sm:$0xff]
        %v1235 = vld [vmem:[#allocation2 + $0x1d0] sm:$0xff]
        %v1236 = vld [vmem:[#allocation2 + $0x1d8] sm:$0xff]
        %v1237 = vld [vmem:[#allocation2 + $0x1e0] sm:$0xff]
        %v1238 = vld [vmem:[#allocation2 + $0x1e8] sm:$0xff]
        %v1239 = vld [vmem:[#allocation2 + $0x1f0] sm:$0xff]
        %v1240 = vld [vmem:[#allocation2 + $0x1f8] sm:$0xff]
        %v1241 = vld [vmem:[%s290] sm:$0x1]
        %v1243 = vlaneseq
        %v1244 = vshrl.u32 %v1243, 7
        %v1245 = vsub.s32 0, %v1244
        %v1246 = vrot.slane %v1241, %v1245
        %v1248 = vadd.f32 %v1177, %v1246
        %v1249 = vadd.f32 %v1178, %v1246
        %v1250 = vadd.f32 %v1179, %v1246
        %v1251 = vadd.f32 %v1180, %v1246
        %v1252 = vadd.f32 %v1181, %v1246
        %v1253 = vadd.f32 %v1182, %v1246
        %v1254 = vadd.f32 %v1183, %v1246
        %v1255 = vadd.f32 %v1184, %v1246
        %v1256 = vadd.f32 %v1185, %v1246
        %v1257 = vadd.f32 %v1186, %v1246
        %v1258 = vadd.f32 %v1187, %v1246
        %v1259 = vadd.f32 %v1188, %v1246
        %v1260 = vadd.f32 %v1189, %v1246
        %v1261 = vadd.f32 %v1190, %v1246
        %v1262 = vadd.f32 %v1191, %v1246
        %v1263 = vadd.f32 %v1192, %v1246
        %v1264 = vadd.f32 %v1193, %v1246
        %v1265 = vadd.f32 %v1194, %v1246
        %v1266 = vadd.f32 %v1195, %v1246
        %v1267 = vadd.f32 %v1196, %v1246
        %v1268 = vadd.f32 %v1197, %v1246
        %v1269 = vadd.f32 %v1198, %v1246
        %v1270 = vadd.f32 %v1199, %v1246
        %v1271 = vadd.f32 %v1200, %v1246
        %v1272 = vadd.f32 %v1201, %v1246
        %v1273 = vadd.f32 %v1202, %v1246
        %v1274 = vadd.f32 %v1203, %v1246
        %v1275 = vadd.f32 %v1204, %v1246
        %v1276 = vadd.f32 %v1205, %v1246
        %v1277 = vadd.f32 %v1206, %v1246
        %v1278 = vadd.f32 %v1207, %v1246
        %v1279 = vadd.f32 %v1208, %v1246
        %v1280 = vadd.f32 %v1209, %v1246
        %v1281 = vadd.f32 %v1210, %v1246
        %v1282 = vadd.f32 %v1211, %v1246
        %v1283 = vadd.f32 %v1212, %v1246
        %v1284 = vadd.f32 %v1213, %v1246
        %v1285 = vadd.f32 %v1214, %v1246
        %v1286 = vadd.f32 %v1215, %v1246
        %v1287 = vadd.f32 %v1216, %v1246
        %v1288 = vadd.f32 %v1217, %v1246
        %v1289 = vadd.f32 %v1218, %v1246
        %v1290 = vadd.f32 %v1219, %v1246
        %v1291 = vadd.f32 %v1220, %v1246
        %v1292 = vadd.f32 %v1221, %v1246
        %v1293 = vadd.f32 %v1222, %v1246
        %v1294 = vadd.f32 %v1223, %v1246
        %v1295 = vadd.f32 %v1224, %v1246
        %v1296 = vadd.f32 %v1225, %v1246
        %v1297 = vadd.f32 %v1226, %v1246
        %v1298 = vadd.f32 %v1227, %v1246
        %v1299 = vadd.f32 %v1228, %v1246
        %v1300 = vadd.f32 %v1229, %v1246
        %v1301 = vadd.f32 %v1230, %v1246
        %v1302 = vadd.f32 %v1231, %v1246
        %v1303 = vadd.f32 %v1232, %v1246
        %v1304 = vadd.f32 %v1233, %v1246
        %v1305 = vadd.f32 %v1234, %v1246
        %v1306 = vadd.f32 %v1235, %v1246
        %v1307 = vadd.f32 %v1236, %v1246
        %v1308 = vadd.f32 %v1237, %v1246
        %v1309 = vadd.f32 %v1238, %v1246
        %v1310 = vadd.f32 %v1239, %v1246
        %v1311 = vadd.f32 %v1240, %v1246
        %v1312 = vtanh.pop %v1248
        %v1313 = vtanh.pop %v1249
        %v1314 = vtanh.pop %v1250
        %v1315 = vtanh.pop %v1251
        %v1316 = vtanh.pop %v1252
        %v1317 = vtanh.pop %v1253
        %v1318 = vtanh.pop %v1254
        %v1319 = vtanh.pop %v1255
        %v1320 = vtanh.pop %v1256
        %v1321 = vtanh.pop %v1257
        %v1322 = vtanh.pop %v1258
        %v1323 = vtanh.pop %v1259
        %v1324 = vtanh.pop %v1260
        %v1325 = vtanh.pop %v1261
        %v1326 = vtanh.pop %v1262
        %v1327 = vtanh.pop %v1263
        %v1328 = vtanh.pop %v1264
        %v1329 = vtanh.pop %v1265
        %v1330 = vtanh.pop %v1266
        %v1331 = vtanh.pop %v1267
        %v1332 = vtanh.pop %v1268
        %v1333 = vtanh.pop %v1269
        %v1334 = vtanh.pop %v1270
        %v1335 = vtanh.pop %v1271
        %v1336 = vtanh.pop %v1272
        %v1337 = vtanh.pop %v1273
        %v1338 = vtanh.pop %v1274
        %v1339 = vtanh.pop %v1275
        %v1340 = vtanh.pop %v1276
        %v1341 = vtanh.pop %v1277
        %v1342 = vtanh.pop %v1278
        %v1343 = vtanh.pop %v1279
        %v1344 = vtanh.pop %v1280
        %v1345 = vtanh.pop %v1281
        %v1346 = vtanh.pop %v1282
        %v1347 = vtanh.pop %v1283
        %v1348 = vtanh.pop %v1284
        %v1349 = vtanh.pop %v1285
        %v1350 = vtanh.pop %v1286
        %v1351 = vtanh.pop %v1287
        %v1352 = vtanh.pop %v1288
        %v1353 = vtanh.pop %v1289
        %v1354 = vtanh.pop %v1290
        %v1355 = vtanh.pop %v1291
        %v1356 = vtanh.pop %v1292
        %v1357 = vtanh.pop %v1293
        %v1358 = vtanh.pop %v1294
        %v1359 = vtanh.pop %v1295
        %v1360 = vtanh.pop %v1296
        %v1361 = vtanh.pop %v1297
        %v1362 = vtanh.pop %v1298
        %v1363 = vtanh.pop %v1299
        %v1364 = vtanh.pop %v1300
        %v1365 = vtanh.pop %v1301
        %v1366 = vtanh.pop %v1302
        %v1367 = vtanh.pop %v1303
        %v1368 = vtanh.pop %v1304
        %v1369 = vtanh.pop %v1305
        %v1370 = vtanh.pop %v1306
        %v1371 = vtanh.pop %v1307
        %v1372 = vtanh.pop %v1308
        %v1373 = vtanh.pop %v1309
        %v1374 = vtanh.pop %v1310
        %v1375 = vtanh.pop %v1311
        %1376 = vst [vmem:[%s302] sm:$0xff] %v1312
        %1377 = vst [vmem:[%s302 + $0x8] sm:$0xff] %v1313
        %1378 = vst [vmem:[%s302 + $0x10] sm:$0xff] %v1314
        %1379 = vst [vmem:[%s302 + $0x18] sm:$0xff] %v1315
        %1380 = vst [vmem:[%s302 + $0x20] sm:$0xff] %v1316
        %1381 = vst [vmem:[%s302 + $0x28] sm:$0xff] %v1317
        %1382 = vst [vmem:[%s302 + $0x30] sm:$0xff] %v1318
        %1383 = vst [vmem:[%s302 + $0x38] sm:$0xff] %v1319
        %1384 = vst [vmem:[%s302 + $0x40] sm:$0xff] %v1320
        %1385 = vst [vmem:[%s302 + $0x48] sm:$0xff] %v1321
        %1386 = vst [vmem:[%s302 + $0x50] sm:$0xff] %v1322
        %1387 = vst [vmem:[%s302 + $0x58] sm:$0xff] %v1323
        %1388 = vst [vmem:[%s302 + $0x60] sm:$0xff] %v1324
        %1389 = vst [vmem:[%s302 + $0x68] sm:$0xff] %v1325
        %1390 = vst [vmem:[%s302 + $0x70] sm:$0xff] %v1326
        %1391 = vst [vmem:[%s302 + $0x78] sm:$0xff] %v1327
        %1392 = vst [vmem:[%s302 + $0x80] sm:$0xff] %v1328
        %1393 = vst [vmem:[%s302 + $0x88] sm:$0xff] %v1329
        %1394 = vst [vmem:[%s302 + $0x90] sm:$0xff] %v1330
        %1395 = vst [vmem:[%s302 + $0x98] sm:$0xff] %v1331
        %1396 = vst [vmem:[%s302 + $0xa0] sm:$0xff] %v1332
        %1397 = vst [vmem:[%s302 + $0xa8] sm:$0xff] %v1333
        %1398 = vst [vmem:[%s302 + $0xb0] sm:$0xff] %v1334
        %1399 = vst [vmem:[%s302 + $0xb8] sm:$0xff] %v1335
        %1400 = vst [vmem:[%s302 + $0xc0] sm:$0xff] %v1336
        %1401 = vst [vmem:[%s302 + $0xc8] sm:$0xff] %v1337
        %1402 = vst [vmem:[%s302 + $0xd0] sm:$0xff] %v1338
        %1403 = vst [vmem:[%s302 + $0xd8] sm:$0xff] %v1339
        %1404 = vst [vmem:[%s302 + $0xe0] sm:$0xff] %v1340
        %1405 = vst [vmem:[%s302 + $0xe8] sm:$0xff] %v1341
        %1406 = vst [vmem:[%s302 + $0xf0] sm:$0xff] %v1342
        %1407 = vst [vmem:[%s302 + $0xf8] sm:$0xff] %v1343
        %1408 = vst [vmem:[%s302 + $0x100] sm:$0xff] %v1344
        %1409 = vst [vmem:[%s302 + $0x108] sm:$0xff] %v1345
        %1410 = vst [vmem:[%s302 + $0x110] sm:$0xff] %v1346
        %1411 = vst [vmem:[%s302 + $0x118] sm:$0xff] %v1347
        %1412 = vst [vmem:[%s302 + $0x120] sm:$0xff] %v1348
        %1413 = vst [vmem:[%s302 + $0x128] sm:$0xff] %v1349
        %1414 = vst [vmem:[%s302 + $0x130] sm:$0xff] %v1350
        %1415 = vst [vmem:[%s302 + $0x138] sm:$0xff] %v1351
        %1416 = vst [vmem:[%s302 + $0x140] sm:$0xff] %v1352
        %1417 = vst [vmem:[%s302 + $0x148] sm:$0xff] %v1353
        %1418 = vst [vmem:[%s302 + $0x150] sm:$0xff] %v1354
        %1419 = vst [vmem:[%s302 + $0x158] sm:$0xff] %v1355
        %1420 = vst [vmem:[%s302 + $0x160] sm:$0xff] %v1356
        %1421 = vst [vmem:[%s302 + $0x168] sm:$0xff] %v1357
        %1422 = vst [vmem:[%s302 + $0x170] sm:$0xff] %v1358
        %1423 = vst [vmem:[%s302 + $0x178] sm:$0xff] %v1359
        %1424 = vst [vmem:[%s302 + $0x180] sm:$0xff] %v1360
        %1425 = vst [vmem:[%s302 + $0x188] sm:$0xff] %v1361
        %1426 = vst [vmem:[%s302 + $0x190] sm:$0xff] %v1362
        %1427 = vst [vmem:[%s302 + $0x198] sm:$0xff] %v1363
        %1428 = vst [vmem:[%s302 + $0x1a0] sm:$0xff] %v1364
        %1429 = vst [vmem:[%s302 + $0x1a8] sm:$0xff] %v1365
        %1430 = vst [vmem:[%s302 + $0x1b0] sm:$0xff] %v1366
        %1431 = vst [vmem:[%s302 + $0x1b8] sm:$0xff] %v1367
        %1432 = vst [vmem:[%s302 + $0x1c0] sm:$0xff] %v1368
        %1433 = vst [vmem:[%s302 + $0x1c8] sm:$0xff] %v1369
        %1434 = vst [vmem:[%s302 + $0x1d0] sm:$0xff] %v1370
        %1435 = vst [vmem:[%s302 + $0x1d8] sm:$0xff] %v1371
        %1436 = vst [vmem:[%s302 + $0x1e0] sm:$0xff] %v1372
        %1437 = vst [vmem:[%s302 + $0x1e8] sm:$0xff] %v1373
        %1438 = vst [vmem:[%s302 + $0x1f0] sm:$0xff] %v1374
        %1439 = vst [vmem:[%s302 + $0x1f8] sm:$0xff] %v1375
      $region40: #{g_unet_add_middle_forward.19} parent=31 // pred_fallthru
        _
      %s1440 = smul.u32 64, %s21
      %p1441 = scmp.lt.s32.totalorder %s20, 3
      %s1442 = scalar_select %p1441, %s20, 3
      %p1443 = scmp.lt.s32.totalorder %s1440, 63
      %s1444 = scalar_select %p1443, %s1440, 63
      %p1445 = scmp.lt.s32.totalorder %s22, 0
      %s1446 = scalar_select %p1445, %s22, 0
      %s1447 = sadd.s32 %s1446, %s1444
      %s1448 = smul.addr %s1442, 64
      %s1449 = sadd.s32 %s1447, %s1448
      %s1450 = smul.addr %s1449, 8
      %s1451 = scalar_lea.vmem %s3, %s1450
      // Predicated region
      $region41: #{g_unet_add_middle_forward.19} parent=31 // pred_check
        %p1452 = pneg %p148
      $region42: #{g_unet_add_middle_forward.19} parent=31 // pred_check_branch
        %1454 = sbr.rel (%p1452) target = $region44
      $region43: #{g_unet_add_middle_forward.19} parent=31 // pred_region
        %s1455 = smul.u32 64, %s21
      $region44: #{g_unet_add_middle_forward.19} parent=31 // pred_fallthru
        _
    $region32: #{g_unet_add_middle_forward.19} parent=5 // pred_fallthru
      _
    %p1456 = scmp.le.s32.totalorder 2, %s9
    // Predicated region
    $region45: #{g_unet_add_middle_forward.19} parent=5 // pred_check
      %p1457 = pneg %p1456
    $region46: #{g_unet_add_middle_forward.19} parent=5 // pred_check_branch
      %1459 = sbr.rel (%p1457) target = $region48
    $region47: #{g_unet_add_middle_forward.19} parent=5 // pred_region
      %s1460 = ssub.s32 %s9, 2
      // Predicated region
      $region49: #{g_unet_add_middle_forward.19} parent=47 // pred_check
        %p1461 = pneg %p154
      $region50: #{g_unet_add_middle_forward.19} parent=47 // pred_check_branch
        %1463 = sbr.rel (%p1461) target = $region52
      $region51: #{g_unet_add_middle_forward.19} parent=47 // pred_region
        %s1464 = smul.u32 64, %s25
        %p1465 = scmp.lt.s32.totalorder %s24, 3
        %s1466 = scalar_select %p1465, %s24, 3
        %p1467 = scmp.lt.s32.totalorder %s1464, 63
        %s1468 = scalar_select %p1467, %s1464, 63
        %p1469 = scmp.lt.s32.totalorder %s26, 0
        %s1470 = scalar_select %p1469, %s26, 0
        %s1471 = sadd.s32 %s1470, %s1468
        %s1472 = smul.addr %s1466, 64
        %s1473 = sadd.s32 %s1471, %s1472
        %s1474 = smul.addr %s1473, 8
        %s1475 = scalar_lea.vmem %s3, %s1474
      $region52: #{g_unet_add_middle_forward.19} parent=47 // pred_fallthru
        _
    $region48: #{g_unet_add_middle_forward.19} parent=5 // pred_fallthru
      _
  $region6: #{g_unet_add_middle_forward.19} parent=0 // loop_footer
    %s13 = sadd.s32 1, %s9
  $region7: #{g_unet_add_middle_forward.19} parent=0 // loop_footer_branch
    %8 = sbr.rel target = $region3
  $region8: #{g_unet_add_middle_forward.19} parent=0 // loop_exit
    _

</llo_original>
